<compile_context>
chip_gen: v7x
topology: tpu7x:2x2x1
jax: 0.10.0
libtpu: 0.0.40
codegen_flags: <defaults>
</compile_context>

<pallas_src>
import jax
import jax.numpy as jnp
from jax import lax
from jax.experimental import pallas as pl
from jax.experimental.pallas import tpu as pltpu

EPS = 1e-5


def _bn_relu(y, gamma, beta, count):
    """Training-mode batch-norm (biased var, shifted two-pass) + ReLU.

    y: (NHW, C) f32; gamma/beta: (1, C) f32.
    """
    inv_n = 1.0 / count
    mean = jnp.sum(y, axis=0, keepdims=True) * inv_n
    yc = y - mean
    var = jnp.sum(yc * yc, axis=0, keepdims=True) * inv_n
    scale = lax.rsqrt(var + EPS) * gamma
    return jnp.maximum(yc * scale + beta, 0.0)


def _zero_halo(pad_ref, n, h, w, c):
    """Zero only the 1-pixel halo of a (n, h+2, w+2, c) padded scratch."""
    dt = pad_ref.dtype
    zrow = jnp.zeros((n, 1, w + 2, c), dt)
    pad_ref[:, 0:1, :, :] = zrow                      # top halo row
    pad_ref[:, h + 1:h + 2, :, :] = zrow              # bottom halo row
    zcol = jnp.zeros((n, h, 1, c), dt)
    pad_ref[:, 1:h + 1, 0:1, :] = zcol                # left halo column
    pad_ref[:, 1:h + 1, w + 1:w + 2, :] = zcol        # right halo column


def _conv3x3_from_pad(pad_ref, w_ref, n, h, w, cin, cout):
    """3x3 'same' conv as 9 accumulating MXU matmuls over the padded scratch.

    pad_ref: (n, h+2, w+2, cin) f32 VMEM scratch (interior + zero halo).
    w_ref  : (9, cin, cout) bf16, tap-major (ky*3+kx).
    Returns (n*h*w, cout) f32.
    """
    nhw = n * h * w
    acc = jnp.zeros((nhw, cout), jnp.float32)
    for t in range(9):
        ky, kx = t // 3, t % 3
        # ky is a major-dim slice (free); kx is a sublane-offset slice.
        # TODO(synk): replace the kx shifts with pltpu.roll + edge masking to
        # avoid the sublane-unaligned relayouts (XLU slot is idle here).
        window = (pad_ref[:, ky:ky + h, kx:kx + w, :]
                  .reshape(nhw, cin).astype(jnp.bfloat16))
        acc = acc + jnp.dot(window, w_ref[t],
                            preferred_element_type=jnp.float32)
    return acc


def double_conv_kernel(x_ref, w1_ref, g1_ref, bt1_ref,
                       w2_ref, g2_ref, bt2_ref, o_ref,
                       xpad_ref, ypad_ref):
    """Fused [conv3x3(pad=1) -> BN(batch stats) -> ReLU] x 2, all in VMEM.

    x_ref  : (N, H, W, Cin)   f32, NHWC (channels on lanes)
    w1_ref : (9, Cin,  Cout)  bf16, tap-major (ky*3+kx)
    w2_ref : (9, Cout, Cout)  bf16
    g*/bt* : (1, Cout)        f32 (BN affine)
    o_ref  : (N, H, W, Cout)  f32
    scratch: xpad/ypad = (N, H+2, W+2, C) f32 zero-halo padded activations
    """
    N, H, W, Cin = x_ref.shape
    Cout = o_ref.shape[-1]
    NHW = N * H * W

    # ---------------- stage 1: conv3x3 -> BN -> ReLU -------------------------
    _zero_halo(xpad_ref, N, H, W, Cin)
    xpad_ref[:, 1:H + 1, 1:W + 1, :] = x_ref[...]

    # conv bias dropped: it cancels exactly under training-mode BN (y - mean).
    y = _conv3x3_from_pad(xpad_ref, w1_ref, N, H, W, Cin, Cout)
    y = _bn_relu(y, g1_ref[...], bt1_ref[...], NHW)

    # ---------------- stage 2: conv3x3 -> BN -> ReLU -------------------------
    # stage-1 activation goes straight into the stage-2 padded scratch interior
    _zero_halo(ypad_ref, N, H, W, Cout)
    ypad_ref[:, 1:H + 1, 1:W + 1, :] = y.reshape(N, H, W, Cout)

    z = _conv3x3_from_pad(ypad_ref, w2_ref, N, H, W, Cout, Cout)
    z = _bn_relu(z, g2_ref[...], bt2_ref[...], NHW)

    o_ref[...] = z.reshape(N, H, W, Cout).astype(o_ref.dtype)


def _tap_weight(w):
    """PyTorch conv weight (Cout, Cin, 3, 3) -> (9, Cin, Cout), tap = ky*3+kx."""
    cout, cin = w.shape[0], w.shape[1]
    return jnp.transpose(w, (2, 3, 1, 0)).reshape(9, cin, cout)


@jax.jit
def double_conv(x_nchw, params):
    """DoubleConv forward; NCHW in / NCHW out, mirroring the PyTorch module."""
    N, Cin, H, W = x_nchw.shape
    Cout = params["w1"].shape[0]

    # TODO(synk): keep the surrounding model in NHWC so these two full HBM
    # transpose passes disappear.
    x = jnp.transpose(x_nchw, (0, 2, 3, 1))                  # NHWC
    w1 = _tap_weight(params["w1"]).astype(jnp.bfloat16)
    w2 = _tap_weight(params["w2"]).astype(jnp.bfloat16)

    def cvec(v):
        return v.reshape(1, Cout).astype(jnp.float32)

    vmem = pl.BlockSpec(memory_space=pltpu.MemorySpace.VMEM)
    out = pl.pallas_call(
        double_conv_kernel,
        out_shape=jax.ShapeDtypeStruct((N, H, W, Cout), jnp.float32),
        in_specs=[vmem] * 7,
        out_specs=vmem,
        scratch_shapes=[
            pltpu.VMEM((N, H + 2, W + 2, Cin), jnp.float32),   # padded input
            pltpu.VMEM((N, H + 2, W + 2, Cout), jnp.float32),  # padded stage-1 act
        ],
    )(x, w1, cvec(params["g1"]), cvec(params["beta1"]),
      w2, cvec(params["g2"]), cvec(params["beta2"]))

    return jnp.transpose(out, (0, 3, 1, 2))                    # NHWC -> NCHW


# ------------------------------ reference (plain JAX, for validation) --------
def double_conv_ref(x_nchw, params):
    def stage(x, w, b, g, beta):
        y = lax.conv_general_dilated(
            x, w, window_strides=(1, 1), padding="SAME",
            dimension_numbers=("NCHW", "OIHW", "NCHW"),
        ) + b[None, :, None, None]
        mean = jnp.mean(y, axis=(0, 2, 3), keepdims=True)
        var = jnp.mean((y - mean) ** 2, axis=(0, 2, 3), keepdims=True)
        y = (y - mean) * lax.rsqrt(var + EPS) * g[None, :, None, None] \
            + beta[None, :, None, None]
        return jnp.maximum(y, 0.0)

    y = stage(x_nchw, params["w1"], params["b1"], params["g1"], params["beta1"])
    y = stage(y, params["w2"], params["b2"], params["g2"], params["beta2"])
    return y


if __name__ == "__main__":
    N, Cin, Cout, H, W = 2, 4, 8, 16, 16

    key = jax.random.PRNGKey(0)
    kx, k1, k2, k3, k4, k5, k6, k7, k8 = jax.random.split(key, 9)

    x = jax.random.normal(kx, (N, Cin, H, W), jnp.float32)   # NCHW like PyTorch

    params = {
        # conv1: Conv2d(in_ch, out_ch, 3, padding=1) — PyTorch weight layout
        "w1": 0.1 * jax.random.normal(k1, (Cout, Cin, 3, 3), jnp.float32),
        "b1": 0.05 * jax.random.normal(k2, (Cout,), jnp.float32),
        "g1": 1.0 + 0.1 * jax.random.normal(k3, (Cout,), jnp.float32),
        "beta1": 0.1 * jax.random.normal(k4, (Cout,), jnp.float32),
        # conv2: Conv2d(out_ch, out_ch, 3, padding=1)
        "w2": 0.1 * jax.random.normal(k5, (Cout, Cout, 3, 3), jnp.float32),
        "b2": 0.05 * jax.random.normal(k6, (Cout,), jnp.float32),
        "g2": 1.0 + 0.1 * jax.random.normal(k7, (Cout,), jnp.float32),
        "beta2": 0.1 * jax.random.normal(k8, (Cout,), jnp.float32),
    }

    out = jax.block_until_ready(double_conv(x, params))
    ref = double_conv_ref(x, params)

    assert out.shape == (N, Cout, H, W), out.shape
    max_err = float(jnp.max(jnp.abs(out - ref)))
    # bf16 matmul operands (f32 accumulation) -> loosened tolerance vs f32 ref;
    # conv biases omitted in the kernel cancel exactly under training-mode BN.
    assert jnp.allclose(out, ref, atol=5e-2, rtol=5e-2), max_err

    print("KERNEL_OK")
</pallas_src>

<mosaic_0001>
module attributes {stable_mosaic.version = 11 : i64} {
  func.func @double_conv_kernel(%arg0: memref<2x16x16x4xf32, #tpu.memory_space<vmem>>, %arg1: memref<9x4x8xbf16, #tpu.memory_space<vmem>>, %arg2: memref<1x8xf32, #tpu.memory_space<vmem>>, %arg3: memref<1x8xf32, #tpu.memory_space<vmem>>, %arg4: memref<9x8x8xbf16, #tpu.memory_space<vmem>>, %arg5: memref<1x8xf32, #tpu.memory_space<vmem>>, %arg6: memref<1x8xf32, #tpu.memory_space<vmem>>, %arg7: memref<2x16x16x8xf32, #tpu.memory_space<vmem>>, %arg8: memref<2x18x18x4xf32, #tpu.memory_space<vmem>>, %arg9: memref<2x18x18x8xf32, #tpu.memory_space<vmem>>) attributes {dimension_semantics = [], scalar_prefetch = 0 : i64, scratch_operands = 2 : i64, tpu.core_type = #tpu.core_type<tc>} {
    %cst = arith.constant 0.000000e+00 : f32
    %0 = vector.broadcast %cst : f32 to vector<2x1x18x4xf32>
    %c0 = arith.constant 0 : index
    %c0_0 = arith.constant 0 : index
    %c0_1 = arith.constant 0 : index
    %c0_2 = arith.constant 0 : index
    %1 = vector.load %arg8[%c0, %c0_0, %c0_1, %c0_2] : memref<2x18x18x4xf32, #tpu.memory_space<vmem>>, vector<2x1x18x4xf32>
    tpu.vector_store %arg8[%c0, %c0_0, %c0_1, %c0_2], %0 {strides = array<i32>} : memref<2x18x18x4xf32, #tpu.memory_space<vmem>>, vector<2x1x18x4xf32>,
    %c0_3 = arith.constant 0 : index
    %c17 = arith.constant 17 : index
    %c0_4 = arith.constant 0 : index
    %c0_5 = arith.constant 0 : index
    %2 = vector.load %arg8[%c0_3, %c17, %c0_4, %c0_5] : memref<2x18x18x4xf32, #tpu.memory_space<vmem>>, vector<2x1x18x4xf32>
    tpu.vector_store %arg8[%c0_3, %c17, %c0_4, %c0_5], %0 {strides = array<i32>} : memref<2x18x18x4xf32, #tpu.memory_space<vmem>>, vector<2x1x18x4xf32>,
    %cst_6 = arith.constant 0.000000e+00 : f32
    %3 = vector.broadcast %cst_6 : f32 to vector<2x16x1x4xf32>
    %c0_7 = arith.constant 0 : index
    %c1 = arith.constant 1 : index
    %c0_8 = arith.constant 0 : index
    %c0_9 = arith.constant 0 : index
    %4 = vector.load %arg8[%c0_7, %c1, %c0_8, %c0_9] : memref<2x18x18x4xf32, #tpu.memory_space<vmem>>, vector<2x16x1x4xf32>
    tpu.vector_store %arg8[%c0_7, %c1, %c0_8, %c0_9], %3 {strides = array<i32>} : memref<2x18x18x4xf32, #tpu.memory_space<vmem>>, vector<2x16x1x4xf32>,
    %c0_10 = arith.constant 0 : index
    %c1_11 = arith.constant 1 : index
    %c17_12 = arith.constant 17 : index
    %c0_13 = arith.constant 0 : index
    %5 = vector.load %arg8[%c0_10, %c1_11, %c17_12, %c0_13] : memref<2x18x18x4xf32, #tpu.memory_space<vmem>>, vector<2x16x1x4xf32>
    tpu.vector_store %arg8[%c0_10, %c1_11, %c17_12, %c0_13], %3 {strides = array<i32>} : memref<2x18x18x4xf32, #tpu.memory_space<vmem>>, vector<2x16x1x4xf32>,
    %c0_14 = arith.constant 0 : index
    %c0_15 = arith.constant 0 : index
    %c0_16 = arith.constant 0 : index
    %c0_17 = arith.constant 0 : index
    %6 = vector.load %arg0[%c0_14, %c0_15, %c0_16, %c0_17] : memref<2x16x16x4xf32, #tpu.memory_space<vmem>>, vector<2x16x16x4xf32>
    %c0_18 = arith.constant 0 : index
    %c1_19 = arith.constant 1 : index
    %c1_20 = arith.constant 1 : index
    %c0_21 = arith.constant 0 : index
    %7 = vector.load %arg8[%c0_18, %c1_19, %c1_20, %c0_21] : memref<2x18x18x4xf32, #tpu.memory_space<vmem>>, vector<2x16x16x4xf32>
    tpu.vector_store %arg8[%c0_18, %c1_19, %c1_20, %c0_21], %6 {strides = array<i32>} : memref<2x18x18x4xf32, #tpu.memory_space<vmem>>, vector<2x16x16x4xf32>,
    %cst_22 = arith.constant 0.000000e+00 : f32
    %8 = vector.broadcast %cst_22 : f32 to vector<512x8xf32>
    %c0_23 = arith.constant 0 : index
    %c0_24 = arith.constant 0 : index
    %c0_25 = arith.constant 0 : index
    %c0_26 = arith.constant 0 : index
    %9 = vector.load %arg8[%c0_23, %c0_24, %c0_25, %c0_26] : memref<2x18x18x4xf32, #tpu.memory_space<vmem>>, vector<2x16x16x4xf32>
    %10 = vector.shape_cast %9 : vector<2x16x16x4xf32> to vector<512x4xf32>
    %11 = arith.truncf %10 : vector<512x4xf32> to vector<512x4xbf16>
    %c0_27 = arith.constant 0 : index
    %c0_28 = arith.constant 0 : index
    %c0_29 = arith.constant 0 : index
    %12 = vector.load %arg1[%c0_27, %c0_28, %c0_29] : memref<9x4x8xbf16, #tpu.memory_space<vmem>>, vector<1x4x8xbf16>
    %13 = vector.shape_cast %12 : vector<1x4x8xbf16> to vector<4x8xbf16>
    %cst_30 = arith.constant dense<0.000000e+00> : vector<512x8xf32>
    %14 = tpu.matmul %11, %13, %cst_30 {dimension_numbers = #tpu.dot_dimension_numbers<[1], [0], [0], [1], [0, 0, 1, 1], [], []>} : vector<512x4xbf16>, vector<4x8xbf16>, vector<512x8xf32> -> vector<512x8xf32>
    %15 = arith.addf %8, %14 : vector<512x8xf32>
    %c0_31 = arith.constant 0 : index
    %c0_32 = arith.constant 0 : index
    %c1_33 = arith.constant 1 : index
    %c0_34 = arith.constant 0 : index
    %16 = vector.load %arg8[%c0_31, %c0_32, %c1_33, %c0_34] : memref<2x18x18x4xf32, #tpu.memory_space<vmem>>, vector<2x16x16x4xf32>
    %17 = vector.shape_cast %16 : vector<2x16x16x4xf32> to vector<512x4xf32>
    %18 = arith.truncf %17 : vector<512x4xf32> to vector<512x4xbf16>
    %c1_35 = arith.constant 1 : index
    %c0_36 = arith.constant 0 : index
    %c0_37 = arith.constant 0 : index
    %19 = vector.load %arg1[%c1_35, %c0_36, %c0_37] : memref<9x4x8xbf16, #tpu.memory_space<vmem>>, vector<1x4x8xbf16>
    %20 = vector.shape_cast %19 : vector<1x4x8xbf16> to vector<4x8xbf16>
    %cst_38 = arith.constant dense<0.000000e+00> : vector<512x8xf32>
    %21 = tpu.matmul %18, %20, %cst_38 {dimension_numbers = #tpu.dot_dimension_numbers<[1], [0], [0], [1], [0, 0, 1, 1], [], []>} : vector<512x4xbf16>, vector<4x8xbf16>, vector<512x8xf32> -> vector<512x8xf32>
    %22 = arith.addf %15, %21 : vector<512x8xf32>
    %c0_39 = arith.constant 0 : index
    %c0_40 = arith.constant 0 : index
    %c2 = arith.constant 2 : index
    %c0_41 = arith.constant 0 : index
    %23 = vector.load %arg8[%c0_39, %c0_40, %c2, %c0_41] : memref<2x18x18x4xf32, #tpu.memory_space<vmem>>, vector<2x16x16x4xf32>
    %24 = vector.shape_cast %23 : vector<2x16x16x4xf32> to vector<512x4xf32>
    %25 = arith.truncf %24 : vector<512x4xf32> to vector<512x4xbf16>
    %c2_42 = arith.constant 2 : index
    %c0_43 = arith.constant 0 : index
    %c0_44 = arith.constant 0 : index
    %26 = vector.load %arg1[%c2_42, %c0_43, %c0_44] : memref<9x4x8xbf16, #tpu.memory_space<vmem>>, vector<1x4x8xbf16>
    %27 = vector.shape_cast %26 : vector<1x4x8xbf16> to vector<4x8xbf16>
    %cst_45 = arith.constant dense<0.000000e+00> : vector<512x8xf32>
    %28 = tpu.matmul %25, %27, %cst_45 {dimension_numbers = #tpu.dot_dimension_numbers<[1], [0], [0], [1], [0, 0, 1, 1], [], []>} : vector<512x4xbf16>, vector<4x8xbf16>, vector<512x8xf32> -> vector<512x8xf32>
    %29 = arith.addf %22, %28 : vector<512x8xf32>
    %c0_46 = arith.constant 0 : index
    %c1_47 = arith.constant 1 : index
    %c0_48 = arith.constant 0 : index
    %c0_49 = arith.constant 0 : index
    %30 = vector.load %arg8[%c0_46, %c1_47, %c0_48, %c0_49] : memref<2x18x18x4xf32, #tpu.memory_space<vmem>>, vector<2x16x16x4xf32>
    %31 = vector.shape_cast %30 : vector<2x16x16x4xf32> to vector<512x4xf32>
    %32 = arith.truncf %31 : vector<512x4xf32> to vector<512x4xbf16>
    %c3 = arith.constant 3 : index
    %c0_50 = arith.constant 0 : index
    %c0_51 = arith.constant 0 : index
    %33 = vector.load %arg1[%c3, %c0_50, %c0_51] : memref<9x4x8xbf16, #tpu.memory_space<vmem>>, vector<1x4x8xbf16>
    %34 = vector.shape_cast %33 : vector<1x4x8xbf16> to vector<4x8xbf16>
    %cst_52 = arith.constant dense<0.000000e+00> : vector<512x8xf32>
    %35 = tpu.matmul %32, %34, %cst_52 {dimension_numbers = #tpu.dot_dimension_numbers<[1], [0], [0], [1], [0, 0, 1, 1], [], []>} : vector<512x4xbf16>, vector<4x8xbf16>, vector<512x8xf32> -> vector<512x8xf32>
    %36 = arith.addf %29, %35 : vector<512x8xf32>
    %c0_53 = arith.constant 0 : index
    %c1_54 = arith.constant 1 : index
    %c1_55 = arith.constant 1 : index
    %c0_56 = arith.constant 0 : index
    %37 = vector.load %arg8[%c0_53, %c1_54, %c1_55, %c0_56] : memref<2x18x18x4xf32, #tpu.memory_space<vmem>>, vector<2x16x16x4xf32>
    %38 = vector.shape_cast %37 : vector<2x16x16x4xf32> to vector<512x4xf32>
    %39 = arith.truncf %38 : vector<512x4xf32> to vector<512x4xbf16>
    %c4 = arith.constant 4 : index
    %c0_57 = arith.constant 0 : index
    %c0_58 = arith.constant 0 : index
    %40 = vector.load %arg1[%c4, %c0_57, %c0_58] : memref<9x4x8xbf16, #tpu.memory_space<vmem>>, vector<1x4x8xbf16>
    %41 = vector.shape_cast %40 : vector<1x4x8xbf16> to vector<4x8xbf16>
    %cst_59 = arith.constant dense<0.000000e+00> : vector<512x8xf32>
    %42 = tpu.matmul %39, %41, %cst_59 {dimension_numbers = #tpu.dot_dimension_numbers<[1], [0], [0], [1], [0, 0, 1, 1], [], []>} : vector<512x4xbf16>, vector<4x8xbf16>, vector<512x8xf32> -> vector<512x8xf32>
    %43 = arith.addf %36, %42 : vector<512x8xf32>
    %c0_60 = arith.constant 0 : index
    %c1_61 = arith.constant 1 : index
    %c2_62 = arith.constant 2 : index
    %c0_63 = arith.constant 0 : index
    %44 = vector.load %arg8[%c0_60, %c1_61, %c2_62, %c0_63] : memref<2x18x18x4xf32, #tpu.memory_space<vmem>>, vector<2x16x16x4xf32>
    %45 = vector.shape_cast %44 : vector<2x16x16x4xf32> to vector<512x4xf32>
    %46 = arith.truncf %45 : vector<512x4xf32> to vector<512x4xbf16>
    %c5 = arith.constant 5 : index
    %c0_64 = arith.constant 0 : index
    %c0_65 = arith.constant 0 : index
    %47 = vector.load %arg1[%c5, %c0_64, %c0_65] : memref<9x4x8xbf16, #tpu.memory_space<vmem>>, vector<1x4x8xbf16>
    %48 = vector.shape_cast %47 : vector<1x4x8xbf16> to vector<4x8xbf16>
    %cst_66 = arith.constant dense<0.000000e+00> : vector<512x8xf32>
    %49 = tpu.matmul %46, %48, %cst_66 {dimension_numbers = #tpu.dot_dimension_numbers<[1], [0], [0], [1], [0, 0, 1, 1], [], []>} : vector<512x4xbf16>, vector<4x8xbf16>, vector<512x8xf32> -> vector<512x8xf32>
    %50 = arith.addf %43, %49 : vector<512x8xf32>
    %c0_67 = arith.constant 0 : index
    %c2_68 = arith.constant 2 : index
    %c0_69 = arith.constant 0 : index
    %c0_70 = arith.constant 0 : index
    %51 = vector.load %arg8[%c0_67, %c2_68, %c0_69, %c0_70] : memref<2x18x18x4xf32, #tpu.memory_space<vmem>>, vector<2x16x16x4xf32>
    %52 = vector.shape_cast %51 : vector<2x16x16x4xf32> to vector<512x4xf32>
    %53 = arith.truncf %52 : vector<512x4xf32> to vector<512x4xbf16>
    %c6 = arith.constant 6 : index
    %c0_71 = arith.constant 0 : index
    %c0_72 = arith.constant 0 : index
    %54 = vector.load %arg1[%c6, %c0_71, %c0_72] : memref<9x4x8xbf16, #tpu.memory_space<vmem>>, vector<1x4x8xbf16>
    %55 = vector.shape_cast %54 : vector<1x4x8xbf16> to vector<4x8xbf16>
    %cst_73 = arith.constant dense<0.000000e+00> : vector<512x8xf32>
    %56 = tpu.matmul %53, %55, %cst_73 {dimension_numbers = #tpu.dot_dimension_numbers<[1], [0], [0], [1], [0, 0, 1, 1], [], []>} : vector<512x4xbf16>, vector<4x8xbf16>, vector<512x8xf32> -> vector<512x8xf32>
    %57 = arith.addf %50, %56 : vector<512x8xf32>
    %c0_74 = arith.constant 0 : index
    %c2_75 = arith.constant 2 : index
    %c1_76 = arith.constant 1 : index
    %c0_77 = arith.constant 0 : index
    %58 = vector.load %arg8[%c0_74, %c2_75, %c1_76, %c0_77] : memref<2x18x18x4xf32, #tpu.memory_space<vmem>>, vector<2x16x16x4xf32>
    %59 = vector.shape_cast %58 : vector<2x16x16x4xf32> to vector<512x4xf32>
    %60 = arith.truncf %59 : vector<512x4xf32> to vector<512x4xbf16>
    %c7 = arith.constant 7 : index
    %c0_78 = arith.constant 0 : index
    %c0_79 = arith.constant 0 : index
    %61 = vector.load %arg1[%c7, %c0_78, %c0_79] : memref<9x4x8xbf16, #tpu.memory_space<vmem>>, vector<1x4x8xbf16>
    %62 = vector.shape_cast %61 : vector<1x4x8xbf16> to vector<4x8xbf16>
    %cst_80 = arith.constant dense<0.000000e+00> : vector<512x8xf32>
    %63 = tpu.matmul %60, %62, %cst_80 {dimension_numbers = #tpu.dot_dimension_numbers<[1], [0], [0], [1], [0, 0, 1, 1], [], []>} : vector<512x4xbf16>, vector<4x8xbf16>, vector<512x8xf32> -> vector<512x8xf32>
    %64 = arith.addf %57, %63 : vector<512x8xf32>
    %c0_81 = arith.constant 0 : index
    %c2_82 = arith.constant 2 : index
    %c2_83 = arith.constant 2 : index
    %c0_84 = arith.constant 0 : index
    %65 = vector.load %arg8[%c0_81, %c2_82, %c2_83, %c0_84] : memref<2x18x18x4xf32, #tpu.memory_space<vmem>>, vector<2x16x16x4xf32>
    %66 = vector.shape_cast %65 : vector<2x16x16x4xf32> to vector<512x4xf32>
    %67 = arith.truncf %66 : vector<512x4xf32> to vector<512x4xbf16>
    %c8 = arith.constant 8 : index
    %c0_85 = arith.constant 0 : index
    %c0_86 = arith.constant 0 : index
    %68 = vector.load %arg1[%c8, %c0_85, %c0_86] : memref<9x4x8xbf16, #tpu.memory_space<vmem>>, vector<1x4x8xbf16>
    %69 = vector.shape_cast %68 : vector<1x4x8xbf16> to vector<4x8xbf16>
    %cst_87 = arith.constant dense<0.000000e+00> : vector<512x8xf32>
    %70 = tpu.matmul %67, %69, %cst_87 {dimension_numbers = #tpu.dot_dimension_numbers<[1], [0], [0], [1], [0, 0, 1, 1], [], []>} : vector<512x4xbf16>, vector<4x8xbf16>, vector<512x8xf32> -> vector<512x8xf32>
    %71 = arith.addf %64, %70 : vector<512x8xf32>
    %c0_88 = arith.constant 0 : index
    %c0_89 = arith.constant 0 : index
    %72 = vector.load %arg2[%c0_88, %c0_89] : memref<1x8xf32, #tpu.memory_space<vmem>>, vector<1x8xf32>
    %c0_90 = arith.constant 0 : index
    %c0_91 = arith.constant 0 : index
    %73 = vector.load %arg3[%c0_90, %c0_91] : memref<1x8xf32, #tpu.memory_space<vmem>>, vector<1x8xf32>
    %cst_92 = arith.constant dense<0.000000e+00> : vector<8xf32>
    %74 = vector.multi_reduction <add>, %71, %cst_92 [0] : vector<512x8xf32> to vector<8xf32>
    %75 = vector.shape_cast %74 : vector<8xf32> to vector<1x8xf32>
    %cst_93 = arith.constant 0.001953125 : f32
    %76 = vector.broadcast %cst_93 : f32 to vector<1x8xf32>
    %77 = arith.mulf %75, %76 : vector<1x8xf32>
    %78 = vector.broadcast %77 : vector<1x8xf32> to vector<512x8xf32>
    %79 = arith.subf %71, %78 : vector<512x8xf32>
    %80 = arith.mulf %79, %79 : vector<512x8xf32>
    %cst_94 = arith.constant dense<0.000000e+00> : vector<8xf32>
    %81 = vector.multi_reduction <add>, %80, %cst_94 [0] : vector<512x8xf32> to vector<8xf32>
    %82 = vector.shape_cast %81 : vector<8xf32> to vector<1x8xf32>
    %cst_95 = arith.constant 0.001953125 : f32
    %83 = vector.broadcast %cst_95 : f32 to vector<1x8xf32>
    %84 = arith.mulf %82, %83 : vector<1x8xf32>
    %cst_96 = arith.constant 9.99999974E-6 : f32
    %85 = vector.broadcast %cst_96 : f32 to vector<1x8xf32>
    %86 = arith.addf %84, %85 : vector<1x8xf32>
    %87 = math.rsqrt %86 : vector<1x8xf32>
    %88 = arith.mulf %87, %72 : vector<1x8xf32>
    %89 = vector.broadcast %88 : vector<1x8xf32> to vector<512x8xf32>
    %90 = arith.mulf %79, %89 : vector<512x8xf32>
    %91 = vector.broadcast %73 : vector<1x8xf32> to vector<512x8xf32>
    %92 = arith.addf %90, %91 : vector<512x8xf32>
    %cst_97 = arith.constant 0.000000e+00 : f32
    %93 = vector.broadcast %cst_97 : f32 to vector<512x8xf32>
    %94 = arith.maximumf %92, %93 : vector<512x8xf32>
    %cst_98 = arith.constant 0.000000e+00 : f32
    %95 = vector.broadcast %cst_98 : f32 to vector<2x1x18x8xf32>
    %c0_99 = arith.constant 0 : index
    %c0_100 = arith.constant 0 : index
    %c0_101 = arith.constant 0 : index
    %c0_102 = arith.constant 0 : index
    %96 = vector.load %arg9[%c0_99, %c0_100, %c0_101, %c0_102] : memref<2x18x18x8xf32, #tpu.memory_space<vmem>>, vector<2x1x18x8xf32>
    tpu.vector_store %arg9[%c0_99, %c0_100, %c0_101, %c0_102], %95 {strides = array<i32>} : memref<2x18x18x8xf32, #tpu.memory_space<vmem>>, vector<2x1x18x8xf32>,
    %c0_103 = arith.constant 0 : index
    %c17_104 = arith.constant 17 : index
    %c0_105 = arith.constant 0 : index
    %c0_106 = arith.constant 0 : index
    %97 = vector.load %arg9[%c0_103, %c17_104, %c0_105, %c0_106] : memref<2x18x18x8xf32, #tpu.memory_space<vmem>>, vector<2x1x18x8xf32>
    tpu.vector_store %arg9[%c0_103, %c17_104, %c0_105, %c0_106], %95 {strides = array<i32>} : memref<2x18x18x8xf32, #tpu.memory_space<vmem>>, vector<2x1x18x8xf32>,
    %cst_107 = arith.constant 0.000000e+00 : f32
    %98 = vector.broadcast %cst_107 : f32 to vector<2x16x1x8xf32>
    %c0_108 = arith.constant 0 : index
    %c1_109 = arith.constant 1 : index
    %c0_110 = arith.constant 0 : index
    %c0_111 = arith.constant 0 : index
    %99 = vector.load %arg9[%c0_108, %c1_109, %c0_110, %c0_111] : memref<2x18x18x8xf32, #tpu.memory_space<vmem>>, vector<2x16x1x8xf32>
    tpu.vector_store %arg9[%c0_108, %c1_109, %c0_110, %c0_111], %98 {strides = array<i32>} : memref<2x18x18x8xf32, #tpu.memory_space<vmem>>, vector<2x16x1x8xf32>,
    %c0_112 = arith.constant 0 : index
    %c1_113 = arith.constant 1 : index
    %c17_114 = arith.constant 17 : index
    %c0_115 = arith.constant 0 : index
    %100 = vector.load %arg9[%c0_112, %c1_113, %c17_114, %c0_115] : memref<2x18x18x8xf32, #tpu.memory_space<vmem>>, vector<2x16x1x8xf32>
    tpu.vector_store %arg9[%c0_112, %c1_113, %c17_114, %c0_115], %98 {strides = array<i32>} : memref<2x18x18x8xf32, #tpu.memory_space<vmem>>, vector<2x16x1x8xf32>,
    %101 = vector.shape_cast %94 : vector<512x8xf32> to vector<2x16x16x8xf32>
    %c0_116 = arith.constant 0 : index
    %c1_117 = arith.constant 1 : index
    %c1_118 = arith.constant 1 : index
    %c0_119 = arith.constant 0 : index
    %102 = vector.load %arg9[%c0_116, %c1_117, %c1_118, %c0_119] : memref<2x18x18x8xf32, #tpu.memory_space<vmem>>, vector<2x16x16x8xf32>
    tpu.vector_store %arg9[%c0_116, %c1_117, %c1_118, %c0_119], %101 {strides = array<i32>} : memref<2x18x18x8xf32, #tpu.memory_space<vmem>>, vector<2x16x16x8xf32>,
    %cst_120 = arith.constant 0.000000e+00 : f32
    %103 = vector.broadcast %cst_120 : f32 to vector<512x8xf32>
    %c0_121 = arith.constant 0 : index
    %c0_122 = arith.constant 0 : index
    %c0_123 = arith.constant 0 : index
    %c0_124 = arith.constant 0 : index
    %104 = vector.load %arg9[%c0_121, %c0_122, %c0_123, %c0_124] : memref<2x18x18x8xf32, #tpu.memory_space<vmem>>, vector<2x16x16x8xf32>
    %105 = vector.shape_cast %104 : vector<2x16x16x8xf32> to vector<512x8xf32>
    %106 = arith.truncf %105 : vector<512x8xf32> to vector<512x8xbf16>
    %c0_125 = arith.constant 0 : index
    %c0_126 = arith.constant 0 : index
    %c0_127 = arith.constant 0 : index
    %107 = vector.load %arg4[%c0_125, %c0_126, %c0_127] : memref<9x8x8xbf16, #tpu.memory_space<vmem>>, vector<1x8x8xbf16>
    %108 = vector.shape_cast %107 : vector<1x8x8xbf16> to vector<8x8xbf16>
    %cst_128 = arith.constant dense<0.000000e+00> : vector<512x8xf32>
    %109 = tpu.matmul %106, %108, %cst_128 {dimension_numbers = #tpu.dot_dimension_numbers<[1], [0], [0], [1], [0, 0, 1, 1], [], []>} : vector<512x8xbf16>, vector<8x8xbf16>, vector<512x8xf32> -> vector<512x8xf32>
    %110 = arith.addf %103, %109 : vector<512x8xf32>
    %c0_129 = arith.constant 0 : index
    %c0_130 = arith.constant 0 : index
    %c1_131 = arith.constant 1 : index
    %c0_132 = arith.constant 0 : index
    %111 = vector.load %arg9[%c0_129, %c0_130, %c1_131, %c0_132] : memref<2x18x18x8xf32, #tpu.memory_space<vmem>>, vector<2x16x16x8xf32>
    %112 = vector.shape_cast %111 : vector<2x16x16x8xf32> to vector<512x8xf32>
    %113 = arith.truncf %112 : vector<512x8xf32> to vector<512x8xbf16>
    %c1_133 = arith.constant 1 : index
    %c0_134 = arith.constant 0 : index
    %c0_135 = arith.constant 0 : index
    %114 = vector.load %arg4[%c1_133, %c0_134, %c0_135] : memref<9x8x8xbf16, #tpu.memory_space<vmem>>, vector<1x8x8xbf16>
    %115 = vector.shape_cast %114 : vector<1x8x8xbf16> to vector<8x8xbf16>
    %cst_136 = arith.constant dense<0.000000e+00> : vector<512x8xf32>
    %116 = tpu.matmul %113, %115, %cst_136 {dimension_numbers = #tpu.dot_dimension_numbers<[1], [0], [0], [1], [0, 0, 1, 1], [], []>} : vector<512x8xbf16>, vector<8x8xbf16>, vector<512x8xf32> -> vector<512x8xf32>
    %117 = arith.addf %110, %116 : vector<512x8xf32>
    %c0_137 = arith.constant 0 : index
    %c0_138 = arith.constant 0 : index
    %c2_139 = arith.constant 2 : index
    %c0_140 = arith.constant 0 : index
    %118 = vector.load %arg9[%c0_137, %c0_138, %c2_139, %c0_140] : memref<2x18x18x8xf32, #tpu.memory_space<vmem>>, vector<2x16x16x8xf32>
    %119 = vector.shape_cast %118 : vector<2x16x16x8xf32> to vector<512x8xf32>
    %120 = arith.truncf %119 : vector<512x8xf32> to vector<512x8xbf16>
    %c2_141 = arith.constant 2 : index
    %c0_142 = arith.constant 0 : index
    %c0_143 = arith.constant 0 : index
    %121 = vector.load %arg4[%c2_141, %c0_142, %c0_143] : memref<9x8x8xbf16, #tpu.memory_space<vmem>>, vector<1x8x8xbf16>
    %122 = vector.shape_cast %121 : vector<1x8x8xbf16> to vector<8x8xbf16>
    %cst_144 = arith.constant dense<0.000000e+00> : vector<512x8xf32>
    %123 = tpu.matmul %120, %122, %cst_144 {dimension_numbers = #tpu.dot_dimension_numbers<[1], [0], [0], [1], [0, 0, 1, 1], [], []>} : vector<512x8xbf16>, vector<8x8xbf16>, vector<512x8xf32> -> vector<512x8xf32>
    %124 = arith.addf %117, %123 : vector<512x8xf32>
    %c0_145 = arith.constant 0 : index
    %c1_146 = arith.constant 1 : index
    %c0_147 = arith.constant 0 : index
    %c0_148 = arith.constant 0 : index
    %125 = vector.load %arg9[%c0_145, %c1_146, %c0_147, %c0_148] : memref<2x18x18x8xf32, #tpu.memory_space<vmem>>, vector<2x16x16x8xf32>
    %126 = vector.shape_cast %125 : vector<2x16x16x8xf32> to vector<512x8xf32>
    %127 = arith.truncf %126 : vector<512x8xf32> to vector<512x8xbf16>
    %c3_149 = arith.constant 3 : index
    %c0_150 = arith.constant 0 : index
    %c0_151 = arith.constant 0 : index
    %128 = vector.load %arg4[%c3_149, %c0_150, %c0_151] : memref<9x8x8xbf16, #tpu.memory_space<vmem>>, vector<1x8x8xbf16>
    %129 = vector.shape_cast %128 : vector<1x8x8xbf16> to vector<8x8xbf16>
    %cst_152 = arith.constant dense<0.000000e+00> : vector<512x8xf32>
    %130 = tpu.matmul %127, %129, %cst_152 {dimension_numbers = #tpu.dot_dimension_numbers<[1], [0], [0], [1], [0, 0, 1, 1], [], []>} : vector<512x8xbf16>, vector<8x8xbf16>, vector<512x8xf32> -> vector<512x8xf32>
    %131 = arith.addf %124, %130 : vector<512x8xf32>
    %c0_153 = arith.constant 0 : index
    %c1_154 = arith.constant 1 : index
    %c1_155 = arith.constant 1 : index
    %c0_156 = arith.constant 0 : index
    %132 = vector.load %arg9[%c0_153, %c1_154, %c1_155, %c0_156] : memref<2x18x18x8xf32, #tpu.memory_space<vmem>>, vector<2x16x16x8xf32>
    %133 = vector.shape_cast %132 : vector<2x16x16x8xf32> to vector<512x8xf32>
    %134 = arith.truncf %133 : vector<512x8xf32> to vector<512x8xbf16>
    %c4_157 = arith.constant 4 : index
    %c0_158 = arith.constant 0 : index
    %c0_159 = arith.constant 0 : index
    %135 = vector.load %arg4[%c4_157, %c0_158, %c0_159] : memref<9x8x8xbf16, #tpu.memory_space<vmem>>, vector<1x8x8xbf16>
    %136 = vector.shape_cast %135 : vector<1x8x8xbf16> to vector<8x8xbf16>
    %cst_160 = arith.constant dense<0.000000e+00> : vector<512x8xf32>
    %137 = tpu.matmul %134, %136, %cst_160 {dimension_numbers = #tpu.dot_dimension_numbers<[1], [0], [0], [1], [0, 0, 1, 1], [], []>} : vector<512x8xbf16>, vector<8x8xbf16>, vector<512x8xf32> -> vector<512x8xf32>
    %138 = arith.addf %131, %137 : vector<512x8xf32>
    %c0_161 = arith.constant 0 : index
    %c1_162 = arith.constant 1 : index
    %c2_163 = arith.constant 2 : index
    %c0_164 = arith.constant 0 : index
    %139 = vector.load %arg9[%c0_161, %c1_162, %c2_163, %c0_164] : memref<2x18x18x8xf32, #tpu.memory_space<vmem>>, vector<2x16x16x8xf32>
    %140 = vector.shape_cast %139 : vector<2x16x16x8xf32> to vector<512x8xf32>
    %141 = arith.truncf %140 : vector<512x8xf32> to vector<512x8xbf16>
    %c5_165 = arith.constant 5 : index
    %c0_166 = arith.constant 0 : index
    %c0_167 = arith.constant 0 : index
    %142 = vector.load %arg4[%c5_165, %c0_166, %c0_167] : memref<9x8x8xbf16, #tpu.memory_space<vmem>>, vector<1x8x8xbf16>
    %143 = vector.shape_cast %142 : vector<1x8x8xbf16> to vector<8x8xbf16>
    %cst_168 = arith.constant dense<0.000000e+00> : vector<512x8xf32>
    %144 = tpu.matmul %141, %143, %cst_168 {dimension_numbers = #tpu.dot_dimension_numbers<[1], [0], [0], [1], [0, 0, 1, 1], [], []>} : vector<512x8xbf16>, vector<8x8xbf16>, vector<512x8xf32> -> vector<512x8xf32>
    %145 = arith.addf %138, %144 : vector<512x8xf32>
    %c0_169 = arith.constant 0 : index
    %c2_170 = arith.constant 2 : index
    %c0_171 = arith.constant 0 : index
    %c0_172 = arith.constant 0 : index
    %146 = vector.load %arg9[%c0_169, %c2_170, %c0_171, %c0_172] : memref<2x18x18x8xf32, #tpu.memory_space<vmem>>, vector<2x16x16x8xf32>
    %147 = vector.shape_cast %146 : vector<2x16x16x8xf32> to vector<512x8xf32>
    %148 = arith.truncf %147 : vector<512x8xf32> to vector<512x8xbf16>
    %c6_173 = arith.constant 6 : index
    %c0_174 = arith.constant 0 : index
    %c0_175 = arith.constant 0 : index
    %149 = vector.load %arg4[%c6_173, %c0_174, %c0_175] : memref<9x8x8xbf16, #tpu.memory_space<vmem>>, vector<1x8x8xbf16>
    %150 = vector.shape_cast %149 : vector<1x8x8xbf16> to vector<8x8xbf16>
    %cst_176 = arith.constant dense<0.000000e+00> : vector<512x8xf32>
    %151 = tpu.matmul %148, %150, %cst_176 {dimension_numbers = #tpu.dot_dimension_numbers<[1], [0], [0], [1], [0, 0, 1, 1], [], []>} : vector<512x8xbf16>, vector<8x8xbf16>, vector<512x8xf32> -> vector<512x8xf32>
    %152 = arith.addf %145, %151 : vector<512x8xf32>
    %c0_177 = arith.constant 0 : index
    %c2_178 = arith.constant 2 : index
    %c1_179 = arith.constant 1 : index
    %c0_180 = arith.constant 0 : index
    %153 = vector.load %arg9[%c0_177, %c2_178, %c1_179, %c0_180] : memref<2x18x18x8xf32, #tpu.memory_space<vmem>>, vector<2x16x16x8xf32>
    %154 = vector.shape_cast %153 : vector<2x16x16x8xf32> to vector<512x8xf32>
    %155 = arith.truncf %154 : vector<512x8xf32> to vector<512x8xbf16>
    %c7_181 = arith.constant 7 : index
    %c0_182 = arith.constant 0 : index
    %c0_183 = arith.constant 0 : index
    %156 = vector.load %arg4[%c7_181, %c0_182, %c0_183] : memref<9x8x8xbf16, #tpu.memory_space<vmem>>, vector<1x8x8xbf16>
    %157 = vector.shape_cast %156 : vector<1x8x8xbf16> to vector<8x8xbf16>
    %cst_184 = arith.constant dense<0.000000e+00> : vector<512x8xf32>
    %158 = tpu.matmul %155, %157, %cst_184 {dimension_numbers = #tpu.dot_dimension_numbers<[1], [0], [0], [1], [0, 0, 1, 1], [], []>} : vector<512x8xbf16>, vector<8x8xbf16>, vector<512x8xf32> -> vector<512x8xf32>
    %159 = arith.addf %152, %158 : vector<512x8xf32>
    %c0_185 = arith.constant 0 : index
    %c2_186 = arith.constant 2 : index
    %c2_187 = arith.constant 2 : index
    %c0_188 = arith.constant 0 : index
    %160 = vector.load %arg9[%c0_185, %c2_186, %c2_187, %c0_188] : memref<2x18x18x8xf32, #tpu.memory_space<vmem>>, vector<2x16x16x8xf32>
    %161 = vector.shape_cast %160 : vector<2x16x16x8xf32> to vector<512x8xf32>
    %162 = arith.truncf %161 : vector<512x8xf32> to vector<512x8xbf16>
    %c8_189 = arith.constant 8 : index
    %c0_190 = arith.constant 0 : index
    %c0_191 = arith.constant 0 : index
    %163 = vector.load %arg4[%c8_189, %c0_190, %c0_191] : memref<9x8x8xbf16, #tpu.memory_space<vmem>>, vector<1x8x8xbf16>
    %164 = vector.shape_cast %163 : vector<1x8x8xbf16> to vector<8x8xbf16>
    %cst_192 = arith.constant dense<0.000000e+00> : vector<512x8xf32>
    %165 = tpu.matmul %162, %164, %cst_192 {dimension_numbers = #tpu.dot_dimension_numbers<[1], [0], [0], [1], [0, 0, 1, 1], [], []>} : vector<512x8xbf16>, vector<8x8xbf16>, vector<512x8xf32> -> vector<512x8xf32>
    %166 = arith.addf %159, %165 : vector<512x8xf32>
    %c0_193 = arith.constant 0 : index
    %c0_194 = arith.constant 0 : index
    %167 = vector.load %arg5[%c0_193, %c0_194] : memref<1x8xf32, #tpu.memory_space<vmem>>, vector<1x8xf32>
    %c0_195 = arith.constant 0 : index
    %c0_196 = arith.constant 0 : index
    %168 = vector.load %arg6[%c0_195, %c0_196] : memref<1x8xf32, #tpu.memory_space<vmem>>, vector<1x8xf32>
    %cst_197 = arith.constant dense<0.000000e+00> : vector<8xf32>
    %169 = vector.multi_reduction <add>, %166, %cst_197 [0] : vector<512x8xf32> to vector<8xf32>
    %170 = vector.shape_cast %169 : vector<8xf32> to vector<1x8xf32>
    %cst_198 = arith.constant 0.001953125 : f32
    %171 = vector.broadcast %cst_198 : f32 to vector<1x8xf32>
    %172 = arith.mulf %170, %171 : vector<1x8xf32>
    %173 = vector.broadcast %172 : vector<1x8xf32> to vector<512x8xf32>
    %174 = arith.subf %166, %173 : vector<512x8xf32>
    %175 = arith.mulf %174, %174 : vector<512x8xf32>
    %cst_199 = arith.constant dense<0.000000e+00> : vector<8xf32>
    %176 = vector.multi_reduction <add>, %175, %cst_199 [0] : vector<512x8xf32> to vector<8xf32>
    %177 = vector.shape_cast %176 : vector<8xf32> to vector<1x8xf32>
    %cst_200 = arith.constant 0.001953125 : f32
    %178 = vector.broadcast %cst_200 : f32 to vector<1x8xf32>
    %179 = arith.mulf %177, %178 : vector<1x8xf32>
    %cst_201 = arith.constant 9.99999974E-6 : f32
    %180 = vector.broadcast %cst_201 : f32 to vector<1x8xf32>
    %181 = arith.addf %179, %180 : vector<1x8xf32>
    %182 = math.rsqrt %181 : vector<1x8xf32>
    %183 = arith.mulf %182, %167 : vector<1x8xf32>
    %184 = vector.broadcast %183 : vector<1x8xf32> to vector<512x8xf32>
    %185 = arith.mulf %174, %184 : vector<512x8xf32>
    %186 = vector.broadcast %168 : vector<1x8xf32> to vector<512x8xf32>
    %187 = arith.addf %185, %186 : vector<512x8xf32>
    %cst_202 = arith.constant 0.000000e+00 : f32
    %188 = vector.broadcast %cst_202 : f32 to vector<512x8xf32>
    %189 = arith.maximumf %187, %188 : vector<512x8xf32>
    %190 = vector.shape_cast %189 : vector<512x8xf32> to vector<2x16x16x8xf32>
    %c0_203 = arith.constant 0 : index
    %c0_204 = arith.constant 0 : index
    %c0_205 = arith.constant 0 : index
    %c0_206 = arith.constant 0 : index
    %191 = vector.load %arg7[%c0_203, %c0_204, %c0_205, %c0_206] : memref<2x16x16x8xf32, #tpu.memory_space<vmem>>, vector<2x16x16x8xf32>
    tpu.vector_store %arg7[%c0_203, %c0_204, %c0_205, %c0_206], %190 {strides = array<i32>} : memref<2x16x16x8xf32, #tpu.memory_space<vmem>>, vector<2x16x16x8xf32>,
    return
  }
}

</mosaic_0001>

<llo_original>
// kernel: double_conv.1
$region0: #{double_conv.1}
  #allocation0 [shape = 'u32[]', space=smem, size = 0x4, offset = 0x4, fixed_abs, tag = 'smem constant byte address 0x4 - core index']
  #allocation1 [shape = 'u32[144,128]{1,0:T(1,128)}', space=vmem, size = 0x12000, scoped, tag = 'internal scratch']
  #allocation2 [shape = 'f32[2,18,18,4]{3,2,1,0:T(8,128)}', space=vmem, size = 0x6c000, scoped, tag = 'scratch operand']
  #allocation3 [shape = 'f32[2,18,18,8]{3,2,1,0:T(8,128)}', space=vmem, size = 0x6c000, scoped, tag = 'scratch operand']
  %s0 = inlined_call_operand.vmem [shape: f32[2,16,16,4], index: 0, kind: input, shape index: {}]
  %s1 = inlined_call_operand.vmem [shape: bf16[9,4,8], index: 1, kind: input, shape index: {}]
  %s2 = inlined_call_operand.vmem [shape: f32[1,8], index: 2, kind: input, shape index: {}]
  %s3 = inlined_call_operand.vmem [shape: f32[1,8], index: 3, kind: input, shape index: {}]
  %s4 = inlined_call_operand.vmem [shape: bf16[9,8,8], index: 4, kind: input, shape index: {}]
  %s5 = inlined_call_operand.vmem [shape: f32[1,8], index: 5, kind: input, shape index: {}]
  %s6 = inlined_call_operand.vmem [shape: f32[1,8], index: 6, kind: input, shape index: {}]
  %s7 = inlined_call_operand.vmem [shape: f32[2,16,16,8], index: 7, kind: output, shape index: {}]
  %s8 = sld [smem:[#allocation0]]
  $region38: #{double_conv.1} parent=0
    _
  %s10 = ssub.s32 1, %s8
  %s11 = scalar_select 0, %s10, %s8
  // Predicated region
  $region2: #{double_conv.1} parent=0 // pred_check
    _
  $region3: #{double_conv.1} parent=0 // pred_check_branch
    %13 = sbr.rel (0) target = $region5
  $region4: #{double_conv.1} parent=0 // pred_region
    _
  $region5: #{double_conv.1} parent=0 // pred_fallthru
    _
  // Predicated region
  $region6: #{double_conv.1} parent=0 // pred_check
    _
  $region7: #{double_conv.1} parent=0 // pred_check_branch
    %15 = sbr.rel (0) target = $region9
  $region8: #{double_conv.1} parent=0 // pred_region
    _
  $region9: #{double_conv.1} parent=0 // pred_fallthru
    _
  // Predicated region
  $region10: #{double_conv.1} parent=0 // pred_check
    _
  $region11: #{double_conv.1} parent=0 // pred_check_branch
    %17 = sbr.rel (0) target = $region13
  $region12: #{double_conv.1} parent=0 // pred_region
    _
  $region13: #{double_conv.1} parent=0 // pred_fallthru
    _
  // Predicated region
  $region14: #{double_conv.1} parent=0 // pred_check
    _
  $region15: #{double_conv.1} parent=0 // pred_check_branch
    %19 = sbr.rel (0) target = $region17
  $region16: #{double_conv.1} parent=0 // pred_region
    _
  $region17: #{double_conv.1} parent=0 // pred_fallthru
    _
  // Predicated region
  $region18: #{double_conv.1} parent=0 // pred_check
    _
  $region19: #{double_conv.1} parent=0 // pred_check_branch
    %21 = sbr.rel (0) target = $region21
  $region20: #{double_conv.1} parent=0 // pred_region
    _
  $region21: #{double_conv.1} parent=0 // pred_fallthru
    _
  // Predicated region
  $region22: #{double_conv.1} parent=0 // pred_check
    _
  $region23: #{double_conv.1} parent=0 // pred_check_branch
    %23 = sbr.rel (0) target = $region25
  $region24: #{double_conv.1} parent=0 // pred_region
    _
  $region25: #{double_conv.1} parent=0 // pred_fallthru
    _
  // Predicated region
  $region26: #{double_conv.1} parent=0 // pred_check
    _
  $region27: #{double_conv.1} parent=0 // pred_check_branch
    %25 = sbr.rel (0) target = $region29
  $region28: #{double_conv.1} parent=0 // pred_region
    _
  $region29: #{double_conv.1} parent=0 // pred_fallthru
    _
  %vm27 = vcmask 31744
  %28 = vst.msk [vmem:[#allocation2] sm:$0xff] %vm27, 0.0
  %29 = vst.msk [vmem:[#allocation2 + $0x8] sm:$0xff] %vm27, 0.0
  %vm30 = vcmask 25600
  %31 = vst.msk [vmem:[#allocation2 + $0x10] sm:$0x3] %vm30, 0.0
  %32 = vst.msk [vmem:[#allocation2 + $0x1b0] sm:$0xff] %vm27, 0.0
  %33 = vst.msk [vmem:[#allocation2 + $0x1b8] sm:$0xff] %vm27, 0.0
  %34 = vst.msk [vmem:[#allocation2 + $0x1c0] sm:$0x3] %vm30, 0.0
  %s35 = scalar_lea.vmem [#allocation2], 408
  %36 = vst.msk [vmem:[%s35] sm:$0xff] %vm27, 0.0
  %37 = vst.msk [vmem:[%s35 + $0x8] sm:$0xff] %vm27, 0.0
  %38 = vst.msk [vmem:[%s35 + $0x10] sm:$0x3] %vm30, 0.0
  %39 = vst.msk [vmem:[%s35 + $0x1b0] sm:$0xff] %vm27, 0.0
  %40 = vst.msk [vmem:[%s35 + $0x1b8] sm:$0xff] %vm27, 0.0
  %41 = vst.msk [vmem:[%s35 + $0x1c0] sm:$0x3] %vm30, 0.0
  %s42 = scalar_lea.vmem [#allocation2], 24
  %vm43 = vcmask 24576
  %44 = vst.msk [vmem:[%s42] sm:$0x1] %vm43, 0.0
  %45 = vst.msk [vmem:[%s42 + $0x18] sm:$0x1] %vm43, 0.0
  %46 = vst.msk [vmem:[%s42 + $0x30] sm:$0x1] %vm43, 0.0
  %47 = vst.msk [vmem:[%s42 + $0x48] sm:$0x1] %vm43, 0.0
  %48 = vst.msk [vmem:[%s42 + $0x60] sm:$0x1] %vm43, 0.0
  %49 = vst.msk [vmem:[%s42 + $0x78] sm:$0x1] %vm43, 0.0
  %50 = vst.msk [vmem:[%s42 + $0x90] sm:$0x1] %vm43, 0.0
  %51 = vst.msk [vmem:[%s42 + $0xa8] sm:$0x1] %vm43, 0.0
  %52 = vst.msk [vmem:[%s42 + $0xc0] sm:$0x1] %vm43, 0.0
  %53 = vst.msk [vmem:[%s42 + $0xd8] sm:$0x1] %vm43, 0.0
  %54 = vst.msk [vmem:[%s42 + $0xf0] sm:$0x1] %vm43, 0.0
  %55 = vst.msk [vmem:[%s42 + $0x108] sm:$0x1] %vm43, 0.0
  %56 = vst.msk [vmem:[%s42 + $0x120] sm:$0x1] %vm43, 0.0
  %57 = vst.msk [vmem:[%s42 + $0x138] sm:$0x1] %vm43, 0.0
  %58 = vst.msk [vmem:[%s42 + $0x150] sm:$0x1] %vm43, 0.0
  %59 = vst.msk [vmem:[%s42 + $0x168] sm:$0x1] %vm43, 0.0
  %60 = vst.msk [vmem:[%s42 + $0x1b0] sm:$0x1] %vm43, 0.0
  %61 = vst.msk [vmem:[%s42 + $0x1c8] sm:$0x1] %vm43, 0.0
  %62 = vst.msk [vmem:[%s42 + $0x1e0] sm:$0x1] %vm43, 0.0
  %63 = vst.msk [vmem:[%s42 + $0x1f8] sm:$0x1] %vm43, 0.0
  %64 = vst.msk [vmem:[%s42 + $0x210] sm:$0x1] %vm43, 0.0
  %65 = vst.msk [vmem:[%s42 + $0x228] sm:$0x1] %vm43, 0.0
  %66 = vst.msk [vmem:[%s42 + $0x240] sm:$0x1] %vm43, 0.0
  %67 = vst.msk [vmem:[%s42 + $0x258] sm:$0x1] %vm43, 0.0
  %68 = vst.msk [vmem:[%s42 + $0x270] sm:$0x1] %vm43, 0.0
  %69 = vst.msk [vmem:[%s42 + $0x288] sm:$0x1] %vm43, 0.0
  %70 = vst.msk [vmem:[%s42 + $0x2a0] sm:$0x1] %vm43, 0.0
  %71 = vst.msk [vmem:[%s42 + $0x2b8] sm:$0x1] %vm43, 0.0
  %72 = vst.msk [vmem:[%s42 + $0x2d0] sm:$0x1] %vm43, 0.0
  %73 = vst.msk [vmem:[%s42 + $0x2e8] sm:$0x1] %vm43, 0.0
  %74 = vst.msk [vmem:[%s42 + $0x300] sm:$0x1] %vm43, 0.0
  %75 = vst.msk [vmem:[%s42 + $0x318] sm:$0x1] %vm43, 0.0
  %76 = vst.msk [vmem:[%s42 + $0x11] sm:$0x1] %vm43, 0.0
  %77 = vst.msk [vmem:[%s42 + $0x29] sm:$0x1] %vm43, 0.0
  %78 = vst.msk [vmem:[%s42 + $0x41] sm:$0x1] %vm43, 0.0
  %79 = vst.msk [vmem:[%s42 + $0x59] sm:$0x1] %vm43, 0.0
  %80 = vst.msk [vmem:[%s42 + $0x71] sm:$0x1] %vm43, 0.0
  %81 = vst.msk [vmem:[%s42 + $0x89] sm:$0x1] %vm43, 0.0
  %82 = vst.msk [vmem:[%s42 + $0xa1] sm:$0x1] %vm43, 0.0
  %83 = vst.msk [vmem:[%s42 + $0xb9] sm:$0x1] %vm43, 0.0
  %84 = vst.msk [vmem:[%s42 + $0xd1] sm:$0x1] %vm43, 0.0
  %85 = vst.msk [vmem:[%s42 + $0xe9] sm:$0x1] %vm43, 0.0
  %86 = vst.msk [vmem:[%s42 + $0x101] sm:$0x1] %vm43, 0.0
  %87 = vst.msk [vmem:[%s42 + $0x119] sm:$0x1] %vm43, 0.0
  %88 = vst.msk [vmem:[%s42 + $0x131] sm:$0x1] %vm43, 0.0
  %89 = vst.msk [vmem:[%s42 + $0x149] sm:$0x1] %vm43, 0.0
  %90 = vst.msk [vmem:[%s42 + $0x161] sm:$0x1] %vm43, 0.0
  %91 = vst.msk [vmem:[%s42 + $0x179] sm:$0x1] %vm43, 0.0
  %92 = vst.msk [vmem:[%s42 + $0x1c1] sm:$0x1] %vm43, 0.0
  %93 = vst.msk [vmem:[%s42 + $0x1d9] sm:$0x1] %vm43, 0.0
  %94 = vst.msk [vmem:[%s42 + $0x1f1] sm:$0x1] %vm43, 0.0
  %95 = vst.msk [vmem:[%s42 + $0x209] sm:$0x1] %vm43, 0.0
  %96 = vst.msk [vmem:[%s42 + $0x221] sm:$0x1] %vm43, 0.0
  %97 = vst.msk [vmem:[%s42 + $0x239] sm:$0x1] %vm43, 0.0
  %98 = vst.msk [vmem:[%s42 + $0x251] sm:$0x1] %vm43, 0.0
  %99 = vst.msk [vmem:[%s42 + $0x269] sm:$0x1] %vm43, 0.0
  %100 = vst.msk [vmem:[%s42 + $0x281] sm:$0x1] %vm43, 0.0
  %101 = vst.msk [vmem:[%s42 + $0x299] sm:$0x1] %vm43, 0.0
  %102 = vst.msk [vmem:[%s42 + $0x2b1] sm:$0x1] %vm43, 0.0
  %103 = vst.msk [vmem:[%s42 + $0x2c9] sm:$0x1] %vm43, 0.0
  %104 = vst.msk [vmem:[%s42 + $0x2e1] sm:$0x1] %vm43, 0.0
  %105 = vst.msk [vmem:[%s42 + $0x2f9] sm:$0x1] %vm43, 0.0
  %106 = vst.msk [vmem:[%s42 + $0x311] sm:$0x1] %vm43, 0.0
  %107 = vst.msk [vmem:[%s42 + $0x329] sm:$0x1] %vm43, 0.0
  %v108 = vld [vmem:[%s0] sm:$0xff]
  %v109 = vld [vmem:[%s0 + $0x8] sm:$0xff]
  %v110 = vld [vmem:[%s0 + $0x10] sm:$0xff]
  %v111 = vld [vmem:[%s0 + $0x18] sm:$0xff]
  %v112 = vld [vmem:[%s0 + $0x20] sm:$0xff]
  %v113 = vld [vmem:[%s0 + $0x28] sm:$0xff]
  %v114 = vld [vmem:[%s0 + $0x30] sm:$0xff]
  %v115 = vld [vmem:[%s0 + $0x38] sm:$0xff]
  %v116 = vld [vmem:[%s0 + $0x40] sm:$0xff]
  %v117 = vld [vmem:[%s0 + $0x48] sm:$0xff]
  %v118 = vld [vmem:[%s0 + $0x50] sm:$0xff]
  %v119 = vld [vmem:[%s0 + $0x58] sm:$0xff]
  %v120 = vld [vmem:[%s0 + $0x60] sm:$0xff]
  %v121 = vld [vmem:[%s0 + $0x68] sm:$0xff]
  %v122 = vld [vmem:[%s0 + $0x70] sm:$0xff]
  %v123 = vld [vmem:[%s0 + $0x78] sm:$0xff]
  %v124 = vld [vmem:[%s0 + $0x80] sm:$0xff]
  %v125 = vld [vmem:[%s0 + $0x88] sm:$0xff]
  %v126 = vld [vmem:[%s0 + $0x90] sm:$0xff]
  %v127 = vld [vmem:[%s0 + $0x98] sm:$0xff]
  %v128 = vld [vmem:[%s0 + $0xa0] sm:$0xff]
  %v129 = vld [vmem:[%s0 + $0xa8] sm:$0xff]
  %v130 = vld [vmem:[%s0 + $0xb0] sm:$0xff]
  %v131 = vld [vmem:[%s0 + $0xb8] sm:$0xff]
  %v132 = vld [vmem:[%s0 + $0xc0] sm:$0xff]
  %v133 = vld [vmem:[%s0 + $0xc8] sm:$0xff]
  %v134 = vld [vmem:[%s0 + $0xd0] sm:$0xff]
  %v135 = vld [vmem:[%s0 + $0xd8] sm:$0xff]
  %v136 = vld [vmem:[%s0 + $0xe0] sm:$0xff]
  %v137 = vld [vmem:[%s0 + $0xe8] sm:$0xff]
  %v138 = vld [vmem:[%s0 + $0xf0] sm:$0xff]
  %v139 = vld [vmem:[%s0 + $0xf8] sm:$0xff]
  %v140 = vld [vmem:[%s0 + $0x100] sm:$0xff]
  %v141 = vld [vmem:[%s0 + $0x108] sm:$0xff]
  %v142 = vld [vmem:[%s0 + $0x110] sm:$0xff]
  %v143 = vld [vmem:[%s0 + $0x118] sm:$0xff]
  %v144 = vld [vmem:[%s0 + $0x120] sm:$0xff]
  %v145 = vld [vmem:[%s0 + $0x128] sm:$0xff]
  %v146 = vld [vmem:[%s0 + $0x130] sm:$0xff]
  %v147 = vld [vmem:[%s0 + $0x138] sm:$0xff]
  %v148 = vld [vmem:[%s0 + $0x140] sm:$0xff]
  %v149 = vld [vmem:[%s0 + $0x148] sm:$0xff]
  %v150 = vld [vmem:[%s0 + $0x150] sm:$0xff]
  %v151 = vld [vmem:[%s0 + $0x158] sm:$0xff]
  %v152 = vld [vmem:[%s0 + $0x160] sm:$0xff]
  %v153 = vld [vmem:[%s0 + $0x168] sm:$0xff]
  %v154 = vld [vmem:[%s0 + $0x170] sm:$0xff]
  %v155 = vld [vmem:[%s0 + $0x178] sm:$0xff]
  %v156 = vld [vmem:[%s0 + $0x180] sm:$0xff]
  %v157 = vld [vmem:[%s0 + $0x188] sm:$0xff]
  %v158 = vld [vmem:[%s0 + $0x190] sm:$0xff]
  %v159 = vld [vmem:[%s0 + $0x198] sm:$0xff]
  %v160 = vld [vmem:[%s0 + $0x1a0] sm:$0xff]
  %v161 = vld [vmem:[%s0 + $0x1a8] sm:$0xff]
  %v162 = vld [vmem:[%s0 + $0x1b0] sm:$0xff]
  %v163 = vld [vmem:[%s0 + $0x1b8] sm:$0xff]
  %v164 = vld [vmem:[%s0 + $0x1c0] sm:$0xff]
  %v165 = vld [vmem:[%s0 + $0x1c8] sm:$0xff]
  %v166 = vld [vmem:[%s0 + $0x1d0] sm:$0xff]
  %v167 = vld [vmem:[%s0 + $0x1d8] sm:$0xff]
  %v168 = vld [vmem:[%s0 + $0x1e0] sm:$0xff]
  %v169 = vld [vmem:[%s0 + $0x1e8] sm:$0xff]
  %v170 = vld [vmem:[%s0 + $0x1f0] sm:$0xff]
  %v171 = vld [vmem:[%s0 + $0x1f8] sm:$0xff]
  %172 = vst.msk [vmem:[%s42 + $0x1] sm:$0xff] %vm27, %v108
  %173 = vst.msk [vmem:[%s42 + $0x9] sm:$0xff] %vm27, %v109
  %174 = vst.msk [vmem:[%s42 + $0x19] sm:$0xff] %vm27, %v110
  %175 = vst.msk [vmem:[%s42 + $0x21] sm:$0xff] %vm27, %v111
  %176 = vst.msk [vmem:[%s42 + $0x31] sm:$0xff] %vm27, %v112
  %177 = vst.msk [vmem:[%s42 + $0x39] sm:$0xff] %vm27, %v113
  %178 = vst.msk [vmem:[%s42 + $0x49] sm:$0xff] %vm27, %v114
  %179 = vst.msk [vmem:[%s42 + $0x51] sm:$0xff] %vm27, %v115
  %180 = vst.msk [vmem:[%s42 + $0x61] sm:$0xff] %vm27, %v116
  %181 = vst.msk [vmem:[%s42 + $0x69] sm:$0xff] %vm27, %v117
  %182 = vst.msk [vmem:[%s42 + $0x79] sm:$0xff] %vm27, %v118
  %183 = vst.msk [vmem:[%s42 + $0x81] sm:$0xff] %vm27, %v119
  %184 = vst.msk [vmem:[%s42 + $0x91] sm:$0xff] %vm27, %v120
  %185 = vst.msk [vmem:[%s42 + $0x99] sm:$0xff] %vm27, %v121
  %186 = vst.msk [vmem:[%s42 + $0xa9] sm:$0xff] %vm27, %v122
  %187 = vst.msk [vmem:[%s42 + $0xb1] sm:$0xff] %vm27, %v123
  %188 = vst.msk [vmem:[%s42 + $0xc1] sm:$0xff] %vm27, %v124
  %189 = vst.msk [vmem:[%s42 + $0xc9] sm:$0xff] %vm27, %v125
  %190 = vst.msk [vmem:[%s42 + $0xd9] sm:$0xff] %vm27, %v126
  %191 = vst.msk [vmem:[%s42 + $0xe1] sm:$0xff] %vm27, %v127
  %192 = vst.msk [vmem:[%s42 + $0xf1] sm:$0xff] %vm27, %v128
  %193 = vst.msk [vmem:[%s42 + $0xf9] sm:$0xff] %vm27, %v129
  %194 = vst.msk [vmem:[%s42 + $0x109] sm:$0xff] %vm27, %v130
  %195 = vst.msk [vmem:[%s42 + $0x111] sm:$0xff] %vm27, %v131
  %196 = vst.msk [vmem:[%s42 + $0x121] sm:$0xff] %vm27, %v132
  %197 = vst.msk [vmem:[%s42 + $0x129] sm:$0xff] %vm27, %v133
  %198 = vst.msk [vmem:[%s42 + $0x139] sm:$0xff] %vm27, %v134
  %199 = vst.msk [vmem:[%s42 + $0x141] sm:$0xff] %vm27, %v135
  %200 = vst.msk [vmem:[%s42 + $0x151] sm:$0xff] %vm27, %v136
  %201 = vst.msk [vmem:[%s42 + $0x159] sm:$0xff] %vm27, %v137
  %202 = vst.msk [vmem:[%s42 + $0x169] sm:$0xff] %vm27, %v138
  %203 = vst.msk [vmem:[%s42 + $0x171] sm:$0xff] %vm27, %v139
  %204 = vst.msk [vmem:[%s42 + $0x1b1] sm:$0xff] %vm27, %v140
  %205 = vst.msk [vmem:[%s42 + $0x1b9] sm:$0xff] %vm27, %v141
  %206 = vst.msk [vmem:[%s42 + $0x1c9] sm:$0xff] %vm27, %v142
  %207 = vst.msk [vmem:[%s42 + $0x1d1] sm:$0xff] %vm27, %v143
  %208 = vst.msk [vmem:[%s42 + $0x1e1] sm:$0xff] %vm27, %v144
  %209 = vst.msk [vmem:[%s42 + $0x1e9] sm:$0xff] %vm27, %v145
  %210 = vst.msk [vmem:[%s42 + $0x1f9] sm:$0xff] %vm27, %v146
  %211 = vst.msk [vmem:[%s42 + $0x201] sm:$0xff] %vm27, %v147
  %212 = vst.msk [vmem:[%s42 + $0x211] sm:$0xff] %vm27, %v148
  %213 = vst.msk [vmem:[%s42 + $0x219] sm:$0xff] %vm27, %v149
  %214 = vst.msk [vmem:[%s42 + $0x229] sm:$0xff] %vm27, %v150
  %215 = vst.msk [vmem:[%s42 + $0x231] sm:$0xff] %vm27, %v151
  %216 = vst.msk [vmem:[%s42 + $0x241] sm:$0xff] %vm27, %v152
  %217 = vst.msk [vmem:[%s42 + $0x249] sm:$0xff] %vm27, %v153
  %218 = vst.msk [vmem:[%s42 + $0x259] sm:$0xff] %vm27, %v154
  %219 = vst.msk [vmem:[%s42 + $0x261] sm:$0xff] %vm27, %v155
  %220 = vst.msk [vmem:[%s42 + $0x271] sm:$0xff] %vm27, %v156
  %221 = vst.msk [vmem:[%s42 + $0x279] sm:$0xff] %vm27, %v157
  %222 = vst.msk [vmem:[%s42 + $0x289] sm:$0xff] %vm27, %v158
  %223 = vst.msk [vmem:[%s42 + $0x291] sm:$0xff] %vm27, %v159
  %224 = vst.msk [vmem:[%s42 + $0x2a1] sm:$0xff] %vm27, %v160
  %225 = vst.msk [vmem:[%s42 + $0x2a9] sm:$0xff] %vm27, %v161
  %226 = vst.msk [vmem:[%s42 + $0x2b9] sm:$0xff] %vm27, %v162
  %227 = vst.msk [vmem:[%s42 + $0x2c1] sm:$0xff] %vm27, %v163
  %228 = vst.msk [vmem:[%s42 + $0x2d1] sm:$0xff] %vm27, %v164
  %229 = vst.msk [vmem:[%s42 + $0x2d9] sm:$0xff] %vm27, %v165
  %230 = vst.msk [vmem:[%s42 + $0x2e9] sm:$0xff] %vm27, %v166
  %231 = vst.msk [vmem:[%s42 + $0x2f1] sm:$0xff] %vm27, %v167
  %232 = vst.msk [vmem:[%s42 + $0x301] sm:$0xff] %vm27, %v168
  %233 = vst.msk [vmem:[%s42 + $0x309] sm:$0xff] %vm27, %v169
  %234 = vst.msk [vmem:[%s42 + $0x319] sm:$0xff] %vm27, %v170
  %235 = vst.msk [vmem:[%s42 + $0x321] sm:$0xff] %vm27, %v171
  %v236 = vld [vmem:[#allocation2] sm:$0xff]
  %v237 = vld [vmem:[#allocation2 + $0x8] sm:$0xff]
  %v238 = vld [vmem:[#allocation2 + $0x18] sm:$0xff]
  %v239 = vld [vmem:[#allocation2 + $0x20] sm:$0xff]
  %v240 = vld [vmem:[#allocation2 + $0x30] sm:$0xff]
  %v241 = vld [vmem:[#allocation2 + $0x38] sm:$0xff]
  %v242 = vld [vmem:[#allocation2 + $0x48] sm:$0xff]
  %v243 = vld [vmem:[#allocation2 + $0x50] sm:$0xff]
  %v244 = vld [vmem:[#allocation2 + $0x60] sm:$0xff]
  %v245 = vld [vmem:[#allocation2 + $0x68] sm:$0xff]
  %v246 = vld [vmem:[#allocation2 + $0x78] sm:$0xff]
  %v247 = vld [vmem:[#allocation2 + $0x80] sm:$0xff]
  %v248 = vld [vmem:[#allocation2 + $0x90] sm:$0xff]
  %v249 = vld [vmem:[#allocation2 + $0x98] sm:$0xff]
  %v250 = vld [vmem:[#allocation2 + $0xa8] sm:$0xff]
  %v251 = vld [vmem:[#allocation2 + $0xb0] sm:$0xff]
  %v252 = vld [vmem:[#allocation2 + $0xc0] sm:$0xff]
  %v253 = vld [vmem:[#allocation2 + $0xc8] sm:$0xff]
  %v254 = vld [vmem:[#allocation2 + $0xd8] sm:$0xff]
  %v255 = vld [vmem:[#allocation2 + $0xe0] sm:$0xff]
  %v256 = vld [vmem:[#allocation2 + $0xf0] sm:$0xff]
  %v257 = vld [vmem:[#allocation2 + $0xf8] sm:$0xff]
  %v258 = vld [vmem:[#allocation2 + $0x108] sm:$0xff]
  %v259 = vld [vmem:[#allocation2 + $0x110] sm:$0xff]
  %v260 = vld [vmem:[#allocation2 + $0x120] sm:$0xff]
  %v261 = vld [vmem:[#allocation2 + $0x128] sm:$0xff]
  %v262 = vld [vmem:[#allocation2 + $0x138] sm:$0xff]
  %v263 = vld [vmem:[#allocation2 + $0x140] sm:$0xff]
  %v264 = vld [vmem:[#allocation2 + $0x150] sm:$0xff]
  %v265 = vld [vmem:[#allocation2 + $0x158] sm:$0xff]
  %v266 = vld [vmem:[#allocation2 + $0x168] sm:$0xff]
  %v267 = vld [vmem:[#allocation2 + $0x170] sm:$0xff]
  %v268 = vld [vmem:[#allocation2 + $0x1b0] sm:$0xff]
  %v269 = vld [vmem:[#allocation2 + $0x1b8] sm:$0xff]
  %v270 = vld [vmem:[#allocation2 + $0x1c8] sm:$0xff]
  %v271 = vld [vmem:[#allocation2 + $0x1d0] sm:$0xff]
  %v272 = vld [vmem:[#allocation2 + $0x1e0] sm:$0xff]
  %v273 = vld [vmem:[#allocation2 + $0x1e8] sm:$0xff]
  %v274 = vld [vmem:[#allocation2 + $0x1f8] sm:$0xff]
  %v275 = vld [vmem:[#allocation2 + $0x200] sm:$0xff]
  %v276 = vld [vmem:[#allocation2 + $0x210] sm:$0xff]
  %v277 = vld [vmem:[#allocation2 + $0x218] sm:$0xff]
  %v278 = vld [vmem:[#allocation2 + $0x228] sm:$0xff]
  %v279 = vld [vmem:[#allocation2 + $0x230] sm:$0xff]
  %v280 = vld [vmem:[#allocation2 + $0x240] sm:$0xff]
  %v281 = vld [vmem:[#allocation2 + $0x248] sm:$0xff]
  %v282 = vld [vmem:[#allocation2 + $0x258] sm:$0xff]
  %v283 = vld [vmem:[#allocation2 + $0x260] sm:$0xff]
  %v284 = vld [vmem:[#allocation2 + $0x270] sm:$0xff]
  %v285 = vld [vmem:[#allocation2 + $0x278] sm:$0xff]
  %v286 = vld [vmem:[#allocation2 + $0x288] sm:$0xff]
  %v287 = vld [vmem:[#allocation2 + $0x290] sm:$0xff]
  %v288 = vld [vmem:[#allocation2 + $0x2a0] sm:$0xff]
  %v289 = vld [vmem:[#allocation2 + $0x2a8] sm:$0xff]
  %v290 = vld [vmem:[#allocation2 + $0x2b8] sm:$0xff]
  %v291 = vld [vmem:[#allocation2 + $0x2c0] sm:$0xff]
  %v292 = vld [vmem:[#allocation2 + $0x2d0] sm:$0xff]
  %v293 = vld [vmem:[#allocation2 + $0x2d8] sm:$0xff]
  %v294 = vld [vmem:[#allocation2 + $0x2e8] sm:$0xff]
  %v295 = vld [vmem:[#allocation2 + $0x2f0] sm:$0xff]
  %v296 = vld [vmem:[#allocation2 + $0x300] sm:$0xff]
  %v297 = vld [vmem:[#allocation2 + $0x308] sm:$0xff]
  %v298 = vld [vmem:[#allocation2 + $0x318] sm:$0xff]
  %v299 = vld [vmem:[#allocation2 + $0x320] sm:$0xff]
  %v300 = vpack.c.bf16 %v237, %v236
  %v301 = vpack.c.bf16 %v239, %v238
  %v302 = vpack.c.bf16 %v241, %v240
  %v303 = vpack.c.bf16 %v243, %v242
  %v304 = vpack.c.bf16 %v245, %v244
  %v305 = vpack.c.bf16 %v247, %v246
  %v306 = vpack.c.bf16 %v249, %v248
  %v307 = vpack.c.bf16 %v251, %v250
  %v308 = vpack.c.bf16 %v253, %v252
  %v309 = vpack.c.bf16 %v255, %v254
  %v310 = vpack.c.bf16 %v257, %v256
  %v311 = vpack.c.bf16 %v259, %v258
  %v312 = vpack.c.bf16 %v261, %v260
  %v313 = vpack.c.bf16 %v263, %v262
  %v314 = vpack.c.bf16 %v265, %v264
  %v315 = vpack.c.bf16 %v267, %v266
  %v316 = vpack.c.bf16 %v269, %v268
  %v317 = vpack.c.bf16 %v271, %v270
  %v318 = vpack.c.bf16 %v273, %v272
  %v319 = vpack.c.bf16 %v275, %v274
  %v320 = vpack.c.bf16 %v277, %v276
  %v321 = vpack.c.bf16 %v279, %v278
  %v322 = vpack.c.bf16 %v281, %v280
  %v323 = vpack.c.bf16 %v283, %v282
  %v324 = vpack.c.bf16 %v285, %v284
  %v325 = vpack.c.bf16 %v287, %v286
  %v326 = vpack.c.bf16 %v289, %v288
  %v327 = vpack.c.bf16 %v291, %v290
  %v328 = vpack.c.bf16 %v293, %v292
  %v329 = vpack.c.bf16 %v295, %v294
  %v330 = vpack.c.bf16 %v297, %v296
  %v331 = vpack.c.bf16 %v299, %v298
  %v332 = vld [vmem:[%s1] sm:$0x3]
  %v333 = vld [vmem:[#allocation2 + $0x1] sm:$0xff]
  %v334 = vld [vmem:[#allocation2 + $0x9] sm:$0xff]
  %v335 = vld [vmem:[#allocation2 + $0x19] sm:$0xff]
  %v336 = vld [vmem:[#allocation2 + $0x21] sm:$0xff]
  %v337 = vld [vmem:[#allocation2 + $0x31] sm:$0xff]
  %v338 = vld [vmem:[#allocation2 + $0x39] sm:$0xff]
  %v339 = vld [vmem:[#allocation2 + $0x49] sm:$0xff]
  %v340 = vld [vmem:[#allocation2 + $0x51] sm:$0xff]
  %v341 = vld [vmem:[#allocation2 + $0x61] sm:$0xff]
  %v342 = vld [vmem:[#allocation2 + $0x69] sm:$0xff]
  %v343 = vld [vmem:[#allocation2 + $0x79] sm:$0xff]
  %v344 = vld [vmem:[#allocation2 + $0x81] sm:$0xff]
  %v345 = vld [vmem:[#allocation2 + $0x91] sm:$0xff]
  %v346 = vld [vmem:[#allocation2 + $0x99] sm:$0xff]
  %v347 = vld [vmem:[#allocation2 + $0xa9] sm:$0xff]
  %v348 = vld [vmem:[#allocation2 + $0xb1] sm:$0xff]
  %v349 = vld [vmem:[#allocation2 + $0xc1] sm:$0xff]
  %v350 = vld [vmem:[#allocation2 + $0xc9] sm:$0xff]
  %v351 = vld [vmem:[#allocation2 + $0xd9] sm:$0xff]
  %v352 = vld [vmem:[#allocation2 + $0xe1] sm:$0xff]
  %v353 = vld [vmem:[#allocation2 + $0xf1] sm:$0xff]
  %v354 = vld [vmem:[#allocation2 + $0xf9] sm:$0xff]
  %v355 = vld [vmem:[#allocation2 + $0x109] sm:$0xff]
  %v356 = vld [vmem:[#allocation2 + $0x111] sm:$0xff]
  %v357 = vld [vmem:[#allocation2 + $0x121] sm:$0xff]
  %v358 = vld [vmem:[#allocation2 + $0x129] sm:$0xff]
  %v359 = vld [vmem:[#allocation2 + $0x139] sm:$0xff]
  %v360 = vld [vmem:[#allocation2 + $0x141] sm:$0xff]
  %v361 = vld [vmem:[#allocation2 + $0x151] sm:$0xff]
  %v362 = vld [vmem:[#allocation2 + $0x159] sm:$0xff]
  %v363 = vld [vmem:[#allocation2 + $0x169] sm:$0xff]
  %v364 = vld [vmem:[#allocation2 + $0x171] sm:$0xff]
  %v365 = vld [vmem:[#allocation2 + $0x1b1] sm:$0xff]
  %v366 = vld [vmem:[#allocation2 + $0x1b9] sm:$0xff]
  %v367 = vld [vmem:[#allocation2 + $0x1c9] sm:$0xff]
  %v368 = vld [vmem:[#allocation2 + $0x1d1] sm:$0xff]
  %v369 = vld [vmem:[#allocation2 + $0x1e1] sm:$0xff]
  %v370 = vld [vmem:[#allocation2 + $0x1e9] sm:$0xff]
  %v371 = vld [vmem:[#allocation2 + $0x1f9] sm:$0xff]
  %v372 = vld [vmem:[#allocation2 + $0x201] sm:$0xff]
  %v373 = vld [vmem:[#allocation2 + $0x211] sm:$0xff]
  %v374 = vld [vmem:[#allocation2 + $0x219] sm:$0xff]
  %v375 = vld [vmem:[#allocation2 + $0x229] sm:$0xff]
  %v376 = vld [vmem:[#allocation2 + $0x231] sm:$0xff]
  %v377 = vld [vmem:[#allocation2 + $0x241] sm:$0xff]
  %v378 = vld [vmem:[#allocation2 + $0x249] sm:$0xff]
  %v379 = vld [vmem:[#allocation2 + $0x259] sm:$0xff]
  %v380 = vld [vmem:[#allocation2 + $0x261] sm:$0xff]
  %v381 = vld [vmem:[#allocation2 + $0x271] sm:$0xff]
  %v382 = vld [vmem:[#allocation2 + $0x279] sm:$0xff]
  %v383 = vld [vmem:[#allocation2 + $0x289] sm:$0xff]
  %v384 = vld [vmem:[#allocation2 + $0x291] sm:$0xff]
  %v385 = vld [vmem:[#allocation2 + $0x2a1] sm:$0xff]
  %v386 = vld [vmem:[#allocation2 + $0x2a9] sm:$0xff]
  %v387 = vld [vmem:[#allocation2 + $0x2b9] sm:$0xff]
  %v388 = vld [vmem:[#allocation2 + $0x2c1] sm:$0xff]
  %v389 = vld [vmem:[#allocation2 + $0x2d1] sm:$0xff]
  %v390 = vld [vmem:[#allocation2 + $0x2d9] sm:$0xff]
  %v391 = vld [vmem:[#allocation2 + $0x2e9] sm:$0xff]
  %v392 = vld [vmem:[#allocation2 + $0x2f1] sm:$0xff]
  %v393 = vld [vmem:[#allocation2 + $0x301] sm:$0xff]
  %v394 = vld [vmem:[#allocation2 + $0x309] sm:$0xff]
  %v395 = vld [vmem:[#allocation2 + $0x319] sm:$0xff]
  %v396 = vld [vmem:[#allocation2 + $0x321] sm:$0xff]
  %v397 = vpack.c.bf16 %v334, %v333
  %v398 = vpack.c.bf16 %v336, %v335
  %v399 = vpack.c.bf16 %v338, %v337
  %v400 = vpack.c.bf16 %v340, %v339
  %v401 = vpack.c.bf16 %v342, %v341
  %v402 = vpack.c.bf16 %v344, %v343
  %v403 = vpack.c.bf16 %v346, %v345
  %v404 = vpack.c.bf16 %v348, %v347
  %v405 = vpack.c.bf16 %v350, %v349
  %v406 = vpack.c.bf16 %v352, %v351
  %v407 = vpack.c.bf16 %v354, %v353
  %v408 = vpack.c.bf16 %v356, %v355
  %v409 = vpack.c.bf16 %v358, %v357
  %v410 = vpack.c.bf16 %v360, %v359
  %v411 = vpack.c.bf16 %v362, %v361
  %v412 = vpack.c.bf16 %v364, %v363
  %v413 = vpack.c.bf16 %v366, %v365
  %v414 = vpack.c.bf16 %v368, %v367
  %v415 = vpack.c.bf16 %v370, %v369
  %v416 = vpack.c.bf16 %v372, %v371
  %v417 = vpack.c.bf16 %v374, %v373
  %v418 = vpack.c.bf16 %v376, %v375
  %v419 = vpack.c.bf16 %v378, %v377
  %v420 = vpack.c.bf16 %v380, %v379
  %v421 = vpack.c.bf16 %v382, %v381
  %v422 = vpack.c.bf16 %v384, %v383
  %v423 = vpack.c.bf16 %v386, %v385
  %v424 = vpack.c.bf16 %v388, %v387
  %v425 = vpack.c.bf16 %v390, %v389
  %v426 = vpack.c.bf16 %v392, %v391
  %v427 = vpack.c.bf16 %v394, %v393
  %v428 = vpack.c.bf16 %v396, %v395
  %s429 = scalar_lea.vmem %s1, 2
  %v430 = vld [vmem:[%s429] sm:$0x3]
  %v432 = vsel %vm27, %v397, 0
  %v435 = vsel %vm27, %v398, 0
  %v438 = vsel %vm27, %v399, 0
  %v441 = vsel %vm27, %v400, 0
  %v444 = vsel %vm27, %v401, 0
  %v447 = vsel %vm27, %v402, 0
  %v450 = vsel %vm27, %v403, 0
  %v453 = vsel %vm27, %v404, 0
  %v456 = vsel %vm27, %v405, 0
  %v459 = vsel %vm27, %v406, 0
  %v462 = vsel %vm27, %v407, 0
  %v465 = vsel %vm27, %v408, 0
  %v468 = vsel %vm27, %v409, 0
  %v471 = vsel %vm27, %v410, 0
  %v474 = vsel %vm27, %v411, 0
  %v477 = vsel %vm27, %v412, 0
  %v480 = vsel %vm27, %v413, 0
  %v483 = vsel %vm27, %v414, 0
  %v486 = vsel %vm27, %v415, 0
  %v489 = vsel %vm27, %v416, 0
  %v492 = vsel %vm27, %v417, 0
  %v495 = vsel %vm27, %v418, 0
  %v498 = vsel %vm27, %v419, 0
  %v501 = vsel %vm27, %v420, 0
  %v504 = vsel %vm27, %v421, 0
  %v507 = vsel %vm27, %v422, 0
  %v510 = vsel %vm27, %v423, 0
  %v513 = vsel %vm27, %v424, 0
  %v516 = vsel %vm27, %v425, 0
  %v519 = vsel %vm27, %v426, 0
  %v522 = vsel %vm27, %v427, 0
  %v525 = vsel %vm27, %v428, 0
  %vm527 = vcmask 1041408
  %v529 = vsel %vm527, %v430, 0
  %531 = vmatprep.subr.bf16.mxu0 0
  %532 = vmatpush1.bf16.msra.mxu0 %v529
  %533 = vmatprep.subr.bf16.mxu0 0
  %534 = vmatpush1.bf16.msra.mxu0 0
  %535 = vmatprep.subr.bf16.mxu0 0
  %536 = vmatpush1.bf16.msra.mxu0 0
  %537 = vmatprep.subr.bf16.mxu0 0
  %538 = vmatpush1.bf16.msra.mxu0 0
  %539 = vmatprep.subr.bf16.mxu0 0
  %540 = vmatpush1.bf16.msra.mxu0 0
  %541 = vmatprep.subr.bf16.mxu0 0
  %542 = vmatpush1.bf16.msra.mxu0 0
  %543 = vmatprep.subr.bf16.mxu0 0
  %544 = vmatpush1.bf16.msra.mxu0 0
  %545 = vmatprep.subr.bf16.mxu0 0
  %546 = vmatpush1.bf16.msra.mxu0 0
  %547 = vmatprep.subr.bf16.mxu0 0
  %548 = vmatpush1.bf16.msra.mxu0 0
  %549 = vmatprep.subr.bf16.mxu0 0
  %550 = vmatpush1.bf16.msra.mxu0 0
  %551 = vmatprep.subr.bf16.mxu0 0
  %552 = vmatpush1.bf16.msra.mxu0 0
  %553 = vmatprep.subr.bf16.mxu0 0
  %554 = vmatpush1.bf16.msra.mxu0 0
  %555 = vmatprep.subr.bf16.mxu0 0
  %556 = vmatpush1.bf16.msra.mxu0 0
  %557 = vmatprep.subr.bf16.mxu0 0
  %558 = vmatpush1.bf16.msra.mxu0 0
  %559 = vmatprep.subr.bf16.mxu0 0
  %560 = vmatpush1.bf16.msra.mxu0 0
  %561 = vmatprep.subr.bf16.mxu0 0
  %562 = vmatpush1.bf16.msra.mxu0 0
  %563 = vmatprep.mubr.bf16.mxu0 0
  %564 = vmatmul.mubr.bf16.gmra.mrb[0].mxu0 %v432
  %v565 = vpop.f32.mrb[0].mxu0
  %v566 = vadd.f32 0.0, %v565
  %v567 = vpop.f32.mrb[0].mxu0
  %v568 = vpop.f32.mrb[0].mxu0
  %v569 = vadd.f32 0.0, %v568
  %v570 = vpop.f32.mrb[0].mxu0
  %571 = vmatprep.mubr.bf16.mxu0 0
  %572 = vmatmul.mubr.bf16.gmra.mrb[0].mxu0 %v435
  %v573 = vpop.f32.mrb[0].mxu0
  %v574 = vadd.f32 0.0, %v573
  %v575 = vpop.f32.mrb[0].mxu0
  %v576 = vpop.f32.mrb[0].mxu0
  %v577 = vadd.f32 0.0, %v576
  %v578 = vpop.f32.mrb[0].mxu0
  %579 = vmatprep.mubr.bf16.mxu0 0
  %580 = vmatmul.mubr.bf16.gmra.mrb[0].mxu0 %v438
  %v581 = vpop.f32.mrb[0].mxu0
  %v582 = vadd.f32 0.0, %v581
  %v583 = vpop.f32.mrb[0].mxu0
  %v584 = vpop.f32.mrb[0].mxu0
  %v585 = vadd.f32 0.0, %v584
  %v586 = vpop.f32.mrb[0].mxu0
  %587 = vmatprep.mubr.bf16.mxu0 0
  %588 = vmatmul.mubr.bf16.gmra.mrb[0].mxu0 %v441
  %v589 = vpop.f32.mrb[0].mxu0
  %v590 = vadd.f32 0.0, %v589
  %v591 = vpop.f32.mrb[0].mxu0
  %v592 = vpop.f32.mrb[0].mxu0
  %v593 = vadd.f32 0.0, %v592
  %v594 = vpop.f32.mrb[0].mxu0
  %595 = vmatprep.mubr.bf16.mxu0 0
  %596 = vmatmul.mubr.bf16.gmra.mrb[0].mxu0 %v444
  %v597 = vpop.f32.mrb[0].mxu0
  %v598 = vadd.f32 0.0, %v597
  %v599 = vpop.f32.mrb[0].mxu0
  %v600 = vpop.f32.mrb[0].mxu0
  %v601 = vadd.f32 0.0, %v600
  %v602 = vpop.f32.mrb[0].mxu0
  %603 = vmatprep.mubr.bf16.mxu0 0
  %604 = vmatmul.mubr.bf16.gmra.mrb[0].mxu0 %v447
  %v605 = vpop.f32.mrb[0].mxu0
  %v606 = vadd.f32 0.0, %v605
  %v607 = vpop.f32.mrb[0].mxu0
  %v608 = vpop.f32.mrb[0].mxu0
  %v609 = vadd.f32 0.0, %v608
  %v610 = vpop.f32.mrb[0].mxu0
  %611 = vmatprep.mubr.bf16.mxu0 0
  %612 = vmatmul.mubr.bf16.gmra.mrb[0].mxu0 %v450
  %v613 = vpop.f32.mrb[0].mxu0
  %v614 = vadd.f32 0.0, %v613
  %v615 = vpop.f32.mrb[0].mxu0
  %v616 = vpop.f32.mrb[0].mxu0
  %v617 = vadd.f32 0.0, %v616
  %v618 = vpop.f32.mrb[0].mxu0
  %619 = vmatprep.mubr.bf16.mxu0 0
  %620 = vmatmul.mubr.bf16.gmra.mrb[0].mxu0 %v453
  %v621 = vpop.f32.mrb[0].mxu0
  %v622 = vadd.f32 0.0, %v621
  %v623 = vpop.f32.mrb[0].mxu0
  %v624 = vpop.f32.mrb[0].mxu0
  %v625 = vadd.f32 0.0, %v624
  %v626 = vpop.f32.mrb[0].mxu0
  %627 = vmatprep.mubr.bf16.mxu0 0
  %628 = vmatmul.mubr.bf16.gmra.mrb[0].mxu0 %v456
  %v629 = vpop.f32.mrb[0].mxu0
  %v630 = vadd.f32 0.0, %v629
  %v631 = vpop.f32.mrb[0].mxu0
  %v632 = vpop.f32.mrb[0].mxu0
  %v633 = vadd.f32 0.0, %v632
  %v634 = vpop.f32.mrb[0].mxu0
  %635 = vmatprep.mubr.bf16.mxu0 0
  %636 = vmatmul.mubr.bf16.gmra.mrb[0].mxu0 %v459
  %v637 = vpop.f32.mrb[0].mxu0
  %v638 = vadd.f32 0.0, %v637
  %v639 = vpop.f32.mrb[0].mxu0
  %v640 = vpop.f32.mrb[0].mxu0
  %v641 = vadd.f32 0.0, %v640
  %v642 = vpop.f32.mrb[0].mxu0
  %643 = vmatprep.mubr.bf16.mxu0 0
  %644 = vmatmul.mubr.bf16.gmra.mrb[0].mxu0 %v462
  %v645 = vpop.f32.mrb[0].mxu0
  %v646 = vadd.f32 0.0, %v645
  %v647 = vpop.f32.mrb[0].mxu0
  %v648 = vpop.f32.mrb[0].mxu0
  %v649 = vadd.f32 0.0, %v648
  %v650 = vpop.f32.mrb[0].mxu0
  %651 = vmatprep.mubr.bf16.mxu0 0
  %652 = vmatmul.mubr.bf16.gmra.mrb[0].mxu0 %v465
  %v653 = vpop.f32.mrb[0].mxu0
  %v654 = vadd.f32 0.0, %v653
  %v655 = vpop.f32.mrb[0].mxu0
  %v656 = vpop.f32.mrb[0].mxu0
  %v657 = vadd.f32 0.0, %v656
  %v658 = vpop.f32.mrb[0].mxu0
  %659 = vmatprep.mubr.bf16.mxu0 0
  %660 = vmatmul.mubr.bf16.gmra.mrb[0].mxu0 %v468
  %v661 = vpop.f32.mrb[0].mxu0
  %v662 = vadd.f32 0.0, %v661
  %v663 = vpop.f32.mrb[0].mxu0
  %v664 = vpop.f32.mrb[0].mxu0
  %v665 = vadd.f32 0.0, %v664
  %v666 = vpop.f32.mrb[0].mxu0
  %667 = vmatprep.mubr.bf16.mxu0 0
  %668 = vmatmul.mubr.bf16.gmra.mrb[0].mxu0 %v471
  %v669 = vpop.f32.mrb[0].mxu0
  %v670 = vadd.f32 0.0, %v669
  %v671 = vpop.f32.mrb[0].mxu0
  %v672 = vpop.f32.mrb[0].mxu0
  %v673 = vadd.f32 0.0, %v672
  %v674 = vpop.f32.mrb[0].mxu0
  %675 = vmatprep.mubr.bf16.mxu0 0
  %676 = vmatmul.mubr.bf16.gmra.mrb[0].mxu0 %v474
  %v677 = vpop.f32.mrb[0].mxu0
  %v678 = vadd.f32 0.0, %v677
  %v679 = vpop.f32.mrb[0].mxu0
  %v680 = vpop.f32.mrb[0].mxu0
  %v681 = vadd.f32 0.0, %v680
  %v682 = vpop.f32.mrb[0].mxu0
  %683 = vmatprep.mubr.bf16.mxu0 0
  %684 = vmatmul.mubr.bf16.gmra.mrb[0].mxu0 %v477
  %v685 = vpop.f32.mrb[0].mxu0
  %v686 = vadd.f32 0.0, %v685
  %v687 = vpop.f32.mrb[0].mxu0
  %v688 = vpop.f32.mrb[0].mxu0
  %v689 = vadd.f32 0.0, %v688
  %v690 = vpop.f32.mrb[0].mxu0
  %691 = vmatprep.mubr.bf16.mxu0 0
  %692 = vmatmul.mubr.bf16.gmra.mrb[0].mxu0 %v480
  %v693 = vpop.f32.mrb[0].mxu0
  %v694 = vadd.f32 0.0, %v693
  %v695 = vpop.f32.mrb[0].mxu0
  %v696 = vpop.f32.mrb[0].mxu0
  %v697 = vadd.f32 0.0, %v696
  %v698 = vpop.f32.mrb[0].mxu0
  %699 = vmatprep.mubr.bf16.mxu0 0
  %700 = vmatmul.mubr.bf16.gmra.mrb[0].mxu0 %v483
  %v701 = vpop.f32.mrb[0].mxu0
  %v702 = vadd.f32 0.0, %v701
  %v703 = vpop.f32.mrb[0].mxu0
  %v704 = vpop.f32.mrb[0].mxu0
  %v705 = vadd.f32 0.0, %v704
  %v706 = vpop.f32.mrb[0].mxu0
  %707 = vmatprep.mubr.bf16.mxu0 0
  %708 = vmatmul.mubr.bf16.gmra.mrb[0].mxu0 %v486
  %v709 = vpop.f32.mrb[0].mxu0
  %v710 = vadd.f32 0.0, %v709
  %v711 = vpop.f32.mrb[0].mxu0
  %v712 = vpop.f32.mrb[0].mxu0
  %v713 = vadd.f32 0.0, %v712
  %v714 = vpop.f32.mrb[0].mxu0
  %715 = vmatprep.mubr.bf16.mxu0 0
  %716 = vmatmul.mubr.bf16.gmra.mrb[0].mxu0 %v489
  %v717 = vpop.f32.mrb[0].mxu0
  %v718 = vadd.f32 0.0, %v717
  %v719 = vpop.f32.mrb[0].mxu0
  %v720 = vpop.f32.mrb[0].mxu0
  %v721 = vadd.f32 0.0, %v720
  %v722 = vpop.f32.mrb[0].mxu0
  %723 = vmatprep.mubr.bf16.mxu0 0
  %724 = vmatmul.mubr.bf16.gmra.mrb[0].mxu0 %v492
  %v725 = vpop.f32.mrb[0].mxu0
  %v726 = vadd.f32 0.0, %v725
  %v727 = vpop.f32.mrb[0].mxu0
  %v728 = vpop.f32.mrb[0].mxu0
  %v729 = vadd.f32 0.0, %v728
  %v730 = vpop.f32.mrb[0].mxu0
  %731 = vmatprep.mubr.bf16.mxu0 0
  %732 = vmatmul.mubr.bf16.gmra.mrb[0].mxu0 %v495
  %v733 = vpop.f32.mrb[0].mxu0
  %v734 = vadd.f32 0.0, %v733
  %v735 = vpop.f32.mrb[0].mxu0
  %v736 = vpop.f32.mrb[0].mxu0
  %v737 = vadd.f32 0.0, %v736
  %v738 = vpop.f32.mrb[0].mxu0
  %739 = vmatprep.mubr.bf16.mxu0 0
  %740 = vmatmul.mubr.bf16.gmra.mrb[0].mxu0 %v498
  %v741 = vpop.f32.mrb[0].mxu0
  %v742 = vadd.f32 0.0, %v741
  %v743 = vpop.f32.mrb[0].mxu0
  %v744 = vpop.f32.mrb[0].mxu0
  %v745 = vadd.f32 0.0, %v744
  %v746 = vpop.f32.mrb[0].mxu0
  %747 = vmatprep.mubr.bf16.mxu0 0
  %748 = vmatmul.mubr.bf16.gmra.mrb[0].mxu0 %v501
  %v749 = vpop.f32.mrb[0].mxu0
  %v750 = vadd.f32 0.0, %v749
  %v751 = vpop.f32.mrb[0].mxu0
  %v752 = vpop.f32.mrb[0].mxu0
  %v753 = vadd.f32 0.0, %v752
  %v754 = vpop.f32.mrb[0].mxu0
  %755 = vmatprep.mubr.bf16.mxu0 0
  %756 = vmatmul.mubr.bf16.gmra.mrb[0].mxu0 %v504
  %v757 = vpop.f32.mrb[0].mxu0
  %v758 = vadd.f32 0.0, %v757
  %v759 = vpop.f32.mrb[0].mxu0
  %v760 = vpop.f32.mrb[0].mxu0
  %v761 = vadd.f32 0.0, %v760
  %v762 = vpop.f32.mrb[0].mxu0
  %763 = vmatprep.mubr.bf16.mxu0 0
  %764 = vmatmul.mubr.bf16.gmra.mrb[0].mxu0 %v507
  %v765 = vpop.f32.mrb[0].mxu0
  %v766 = vadd.f32 0.0, %v765
  %v767 = vpop.f32.mrb[0].mxu0
  %v768 = vpop.f32.mrb[0].mxu0
  %v769 = vadd.f32 0.0, %v768
  %v770 = vpop.f32.mrb[0].mxu0
  %771 = vmatprep.mubr.bf16.mxu0 0
  %772 = vmatmul.mubr.bf16.gmra.mrb[0].mxu0 %v510
  %v773 = vpop.f32.mrb[0].mxu0
  %v774 = vadd.f32 0.0, %v773
  %v775 = vpop.f32.mrb[0].mxu0
  %v776 = vpop.f32.mrb[0].mxu0
  %v777 = vadd.f32 0.0, %v776
  %v778 = vpop.f32.mrb[0].mxu0
  %779 = vmatprep.mubr.bf16.mxu0 0
  %780 = vmatmul.mubr.bf16.gmra.mrb[0].mxu0 %v513
  %v781 = vpop.f32.mrb[0].mxu0
  %v782 = vadd.f32 0.0, %v781
  %v783 = vpop.f32.mrb[0].mxu0
  %v784 = vpop.f32.mrb[0].mxu0
  %v785 = vadd.f32 0.0, %v784
  %v786 = vpop.f32.mrb[0].mxu0
  %787 = vmatprep.mubr.bf16.mxu0 0
  %788 = vmatmul.mubr.bf16.gmra.mrb[0].mxu0 %v516
  %v789 = vpop.f32.mrb[0].mxu0
  %v790 = vadd.f32 0.0, %v789
  %v791 = vpop.f32.mrb[0].mxu0
  %v792 = vpop.f32.mrb[0].mxu0
  %v793 = vadd.f32 0.0, %v792
  %v794 = vpop.f32.mrb[0].mxu0
  %795 = vmatprep.mubr.bf16.mxu0 0
  %796 = vmatmul.mubr.bf16.gmra.mrb[0].mxu0 %v519
  %v797 = vpop.f32.mrb[0].mxu0
  %v798 = vadd.f32 0.0, %v797
  %v799 = vpop.f32.mrb[0].mxu0
  %v800 = vpop.f32.mrb[0].mxu0
  %v801 = vadd.f32 0.0, %v800
  %v802 = vpop.f32.mrb[0].mxu0
  %803 = vmatprep.mubr.bf16.mxu0 0
  %804 = vmatmul.mubr.bf16.gmra.mrb[0].mxu0 %v522
  %v805 = vpop.f32.mrb[0].mxu0
  %v806 = vadd.f32 0.0, %v805
  %v807 = vpop.f32.mrb[0].mxu0
  %v808 = vpop.f32.mrb[0].mxu0
  %v809 = vadd.f32 0.0, %v808
  %v810 = vpop.f32.mrb[0].mxu0
  %811 = vmatprep.mubr.bf16.mxu0 0
  %812 = vmatmul.mubr.bf16.gmra.mrb[0].mxu0 %v525
  %v813 = vpop.f32.mrb[0].mxu0
  %v814 = vadd.f32 0.0, %v813
  %v815 = vpop.f32.mrb[0].mxu0
  %v816 = vpop.f32.mrb[0].mxu0
  %v817 = vadd.f32 0.0, %v816
  %v818 = vpop.f32.mrb[0].mxu0
  %819 = vdwg.mxu0
  %v821 = vsel %vm27, %v300, 0
  %v824 = vsel %vm27, %v301, 0
  %v827 = vsel %vm27, %v302, 0
  %v830 = vsel %vm27, %v303, 0
  %v833 = vsel %vm27, %v304, 0
  %v836 = vsel %vm27, %v305, 0
  %v839 = vsel %vm27, %v306, 0
  %v842 = vsel %vm27, %v307, 0
  %v845 = vsel %vm27, %v308, 0
  %v848 = vsel %vm27, %v309, 0
  %v851 = vsel %vm27, %v310, 0
  %v854 = vsel %vm27, %v311, 0
  %v857 = vsel %vm27, %v312, 0
  %v860 = vsel %vm27, %v313, 0
  %v863 = vsel %vm27, %v314, 0
  %v866 = vsel %vm27, %v315, 0
  %v869 = vsel %vm27, %v316, 0
  %v872 = vsel %vm27, %v317, 0
  %v875 = vsel %vm27, %v318, 0
  %v878 = vsel %vm27, %v319, 0
  %v881 = vsel %vm27, %v320, 0
  %v884 = vsel %vm27, %v321, 0
  %v887 = vsel %vm27, %v322, 0
  %v890 = vsel %vm27, %v323, 0
  %v893 = vsel %vm27, %v324, 0
  %v896 = vsel %vm27, %v325, 0
  %v899 = vsel %vm27, %v326, 0
  %v902 = vsel %vm27, %v327, 0
  %v905 = vsel %vm27, %v328, 0
  %v908 = vsel %vm27, %v329, 0
  %v911 = vsel %vm27, %v330, 0
  %v914 = vsel %vm27, %v331, 0
  %v917 = vsel %vm527, %v332, 0
  %919 = vmatprep.subr.bf16.mxu0 0
  %920 = vmatpush1.bf16.msra.mxu0 %v917
  %921 = vmatprep.subr.bf16.mxu0 0
  %922 = vmatpush1.bf16.msra.mxu0 0
  %923 = vmatprep.subr.bf16.mxu0 0
  %924 = vmatpush1.bf16.msra.mxu0 0
  %925 = vmatprep.subr.bf16.mxu0 0
  %926 = vmatpush1.bf16.msra.mxu0 0
  %927 = vmatprep.subr.bf16.mxu0 0
  %928 = vmatpush1.bf16.msra.mxu0 0
  %929 = vmatprep.subr.bf16.mxu0 0
  %930 = vmatpush1.bf16.msra.mxu0 0
  %931 = vmatprep.subr.bf16.mxu0 0
  %932 = vmatpush1.bf16.msra.mxu0 0
  %933 = vmatprep.subr.bf16.mxu0 0
  %934 = vmatpush1.bf16.msra.mxu0 0
  %935 = vmatprep.subr.bf16.mxu0 0
  %936 = vmatpush1.bf16.msra.mxu0 0
  %937 = vmatprep.subr.bf16.mxu0 0
  %938 = vmatpush1.bf16.msra.mxu0 0
  %939 = vmatprep.subr.bf16.mxu0 0
  %940 = vmatpush1.bf16.msra.mxu0 0
  %941 = vmatprep.subr.bf16.mxu0 0
  %942 = vmatpush1.bf16.msra.mxu0 0
  %943 = vmatprep.subr.bf16.mxu0 0
  %944 = vmatpush1.bf16.msra.mxu0 0
  %945 = vmatprep.subr.bf16.mxu0 0
  %946 = vmatpush1.bf16.msra.mxu0 0
  %947 = vmatprep.subr.bf16.mxu0 0
  %948 = vmatpush1.bf16.msra.mxu0 0
  %949 = vmatprep.subr.bf16.mxu0 0
  %950 = vmatpush1.bf16.msra.mxu0 0
  %951 = vmatprep.mubr.bf16.mxu0 0
  %952 = vmatmul.mubr.bf16.gmra.mrb[0].mxu0 %v821
  %v953 = vpop.f32.mrb[0].mxu0
  %v954 = vadd.f32 %v566, %v953
  %v955 = vpop.f32.mrb[0].mxu0
  %v956 = vpop.f32.mrb[0].mxu0
  %v957 = vadd.f32 %v569, %v956
  %v958 = vpop.f32.mrb[0].mxu0
  %959 = vmatprep.mubr.bf16.mxu0 0
  %960 = vmatmul.mubr.bf16.gmra.mrb[0].mxu0 %v824
  %v961 = vpop.f32.mrb[0].mxu0
  %v962 = vadd.f32 %v574, %v961
  %v963 = vpop.f32.mrb[0].mxu0
  %v964 = vpop.f32.mrb[0].mxu0
  %v965 = vadd.f32 %v577, %v964
  %v966 = vpop.f32.mrb[0].mxu0
  %967 = vmatprep.mubr.bf16.mxu0 0
  %968 = vmatmul.mubr.bf16.gmra.mrb[0].mxu0 %v827
  %v969 = vpop.f32.mrb[0].mxu0
  %v970 = vadd.f32 %v582, %v969
  %v971 = vpop.f32.mrb[0].mxu0
  %v972 = vpop.f32.mrb[0].mxu0
  %v973 = vadd.f32 %v585, %v972
  %v974 = vpop.f32.mrb[0].mxu0
  %975 = vmatprep.mubr.bf16.mxu0 0
  %976 = vmatmul.mubr.bf16.gmra.mrb[0].mxu0 %v830
  %v977 = vpop.f32.mrb[0].mxu0
  %v978 = vadd.f32 %v590, %v977
  %v979 = vpop.f32.mrb[0].mxu0
  %v980 = vpop.f32.mrb[0].mxu0
  %v981 = vadd.f32 %v593, %v980
  %v982 = vpop.f32.mrb[0].mxu0
  %983 = vmatprep.mubr.bf16.mxu0 0
  %984 = vmatmul.mubr.bf16.gmra.mrb[0].mxu0 %v833
  %v985 = vpop.f32.mrb[0].mxu0
  %v986 = vadd.f32 %v598, %v985
  %v987 = vpop.f32.mrb[0].mxu0
  %v988 = vpop.f32.mrb[0].mxu0
  %v989 = vadd.f32 %v601, %v988
  %v990 = vpop.f32.mrb[0].mxu0
  %991 = vmatprep.mubr.bf16.mxu0 0
  %992 = vmatmul.mubr.bf16.gmra.mrb[0].mxu0 %v836
  %v993 = vpop.f32.mrb[0].mxu0
  %v994 = vadd.f32 %v606, %v993
  %v995 = vpop.f32.mrb[0].mxu0
  %v996 = vpop.f32.mrb[0].mxu0
  %v997 = vadd.f32 %v609, %v996
  %v998 = vpop.f32.mrb[0].mxu0
  %999 = vmatprep.mubr.bf16.mxu0 0
  %1000 = vmatmul.mubr.bf16.gmra.mrb[0].mxu0 %v839
  %v1001 = vpop.f32.mrb[0].mxu0
  %v1002 = vadd.f32 %v614, %v1001
  %v1003 = vpop.f32.mrb[0].mxu0
  %v1004 = vpop.f32.mrb[0].mxu0
  %v1005 = vadd.f32 %v617, %v1004
  %v1006 = vpop.f32.mrb[0].mxu0
  %1007 = vmatprep.mubr.bf16.mxu0 0
  %1008 = vmatmul.mubr.bf16.gmra.mrb[0].mxu0 %v842
  %v1009 = vpop.f32.mrb[0].mxu0
  %v1010 = vadd.f32 %v622, %v1009
  %v1011 = vpop.f32.mrb[0].mxu0
  %v1012 = vpop.f32.mrb[0].mxu0
  %v1013 = vadd.f32 %v625, %v1012
  %v1014 = vpop.f32.mrb[0].mxu0
  %1015 = vmatprep.mubr.bf16.mxu0 0
  %1016 = vmatmul.mubr.bf16.gmra.mrb[0].mxu0 %v845
  %v1017 = vpop.f32.mrb[0].mxu0
  %v1018 = vadd.f32 %v630, %v1017
  %v1019 = vpop.f32.mrb[0].mxu0
  %v1020 = vpop.f32.mrb[0].mxu0
  %v1021 = vadd.f32 %v633, %v1020
  %v1022 = vpop.f32.mrb[0].mxu0
  %1023 = vmatprep.mubr.bf16.mxu0 0
  %1024 = vmatmul.mubr.bf16.gmra.mrb[0].mxu0 %v848
  %v1025 = vpop.f32.mrb[0].mxu0
  %v1026 = vadd.f32 %v638, %v1025
  %v1027 = vpop.f32.mrb[0].mxu0
  %v1028 = vpop.f32.mrb[0].mxu0
  %v1029 = vadd.f32 %v641, %v1028
  %v1030 = vpop.f32.mrb[0].mxu0
  %1031 = vmatprep.mubr.bf16.mxu0 0
  %1032 = vmatmul.mubr.bf16.gmra.mrb[0].mxu0 %v851
  %v1033 = vpop.f32.mrb[0].mxu0
  %v1034 = vadd.f32 %v646, %v1033
  %v1035 = vpop.f32.mrb[0].mxu0
  %v1036 = vpop.f32.mrb[0].mxu0
  %v1037 = vadd.f32 %v649, %v1036
  %v1038 = vpop.f32.mrb[0].mxu0
  %1039 = vmatprep.mubr.bf16.mxu0 0
  %1040 = vmatmul.mubr.bf16.gmra.mrb[0].mxu0 %v854
  %v1041 = vpop.f32.mrb[0].mxu0
  %v1042 = vadd.f32 %v654, %v1041
  %v1043 = vpop.f32.mrb[0].mxu0
  %v1044 = vpop.f32.mrb[0].mxu0
  %v1045 = vadd.f32 %v657, %v1044
  %v1046 = vpop.f32.mrb[0].mxu0
  %1047 = vmatprep.mubr.bf16.mxu0 0
  %1048 = vmatmul.mubr.bf16.gmra.mrb[0].mxu0 %v857
  %v1049 = vpop.f32.mrb[0].mxu0
  %v1050 = vadd.f32 %v662, %v1049
  %v1051 = vpop.f32.mrb[0].mxu0
  %v1052 = vpop.f32.mrb[0].mxu0
  %v1053 = vadd.f32 %v665, %v1052
  %v1054 = vpop.f32.mrb[0].mxu0
  %1055 = vmatprep.mubr.bf16.mxu0 0
  %1056 = vmatmul.mubr.bf16.gmra.mrb[0].mxu0 %v860
  %v1057 = vpop.f32.mrb[0].mxu0
  %v1058 = vadd.f32 %v670, %v1057
  %v1059 = vpop.f32.mrb[0].mxu0
  %v1060 = vpop.f32.mrb[0].mxu0
  %v1061 = vadd.f32 %v673, %v1060
  %v1062 = vpop.f32.mrb[0].mxu0
  %1063 = vmatprep.mubr.bf16.mxu0 0
  %1064 = vmatmul.mubr.bf16.gmra.mrb[0].mxu0 %v863
  %v1065 = vpop.f32.mrb[0].mxu0
  %v1066 = vadd.f32 %v678, %v1065
  %v1067 = vpop.f32.mrb[0].mxu0
  %v1068 = vpop.f32.mrb[0].mxu0
  %v1069 = vadd.f32 %v681, %v1068
  %v1070 = vpop.f32.mrb[0].mxu0
  %1071 = vmatprep.mubr.bf16.mxu0 0
  %1072 = vmatmul.mubr.bf16.gmra.mrb[0].mxu0 %v866
  %v1073 = vpop.f32.mrb[0].mxu0
  %v1074 = vadd.f32 %v686, %v1073
  %v1075 = vpop.f32.mrb[0].mxu0
  %v1076 = vpop.f32.mrb[0].mxu0
  %v1077 = vadd.f32 %v689, %v1076
  %v1078 = vpop.f32.mrb[0].mxu0
  %1079 = vmatprep.mubr.bf16.mxu0 0
  %1080 = vmatmul.mubr.bf16.gmra.mrb[0].mxu0 %v869
  %v1081 = vpop.f32.mrb[0].mxu0
  %v1082 = vadd.f32 %v694, %v1081
  %v1083 = vpop.f32.mrb[0].mxu0
  %v1084 = vpop.f32.mrb[0].mxu0
  %v1085 = vadd.f32 %v697, %v1084
  %v1086 = vpop.f32.mrb[0].mxu0
  %1087 = vmatprep.mubr.bf16.mxu0 0
  %1088 = vmatmul.mubr.bf16.gmra.mrb[0].mxu0 %v872
  %v1089 = vpop.f32.mrb[0].mxu0
  %v1090 = vadd.f32 %v702, %v1089
  %v1091 = vpop.f32.mrb[0].mxu0
  %v1092 = vpop.f32.mrb[0].mxu0
  %v1093 = vadd.f32 %v705, %v1092
  %v1094 = vpop.f32.mrb[0].mxu0
  %1095 = vmatprep.mubr.bf16.mxu0 0
  %1096 = vmatmul.mubr.bf16.gmra.mrb[0].mxu0 %v875
  %v1097 = vpop.f32.mrb[0].mxu0
  %v1098 = vadd.f32 %v710, %v1097
  %v1099 = vpop.f32.mrb[0].mxu0
  %v1100 = vpop.f32.mrb[0].mxu0
  %v1101 = vadd.f32 %v713, %v1100
  %v1102 = vpop.f32.mrb[0].mxu0
  %1103 = vmatprep.mubr.bf16.mxu0 0
  %1104 = vmatmul.mubr.bf16.gmra.mrb[0].mxu0 %v878
  %v1105 = vpop.f32.mrb[0].mxu0
  %v1106 = vadd.f32 %v718, %v1105
  %v1107 = vpop.f32.mrb[0].mxu0
  %v1108 = vpop.f32.mrb[0].mxu0
  %v1109 = vadd.f32 %v721, %v1108
  %v1110 = vpop.f32.mrb[0].mxu0
  %1111 = vmatprep.mubr.bf16.mxu0 0
  %1112 = vmatmul.mubr.bf16.gmra.mrb[0].mxu0 %v881
  %v1113 = vpop.f32.mrb[0].mxu0
  %v1114 = vadd.f32 %v726, %v1113
  %v1115 = vpop.f32.mrb[0].mxu0
  %v1116 = vpop.f32.mrb[0].mxu0
  %v1117 = vadd.f32 %v729, %v1116
  %v1118 = vpop.f32.mrb[0].mxu0
  %1119 = vmatprep.mubr.bf16.mxu0 0
  %1120 = vmatmul.mubr.bf16.gmra.mrb[0].mxu0 %v884
  %v1121 = vpop.f32.mrb[0].mxu0
  %v1122 = vadd.f32 %v734, %v1121
  %v1123 = vpop.f32.mrb[0].mxu0
  %v1124 = vpop.f32.mrb[0].mxu0
  %v1125 = vadd.f32 %v737, %v1124
  %v1126 = vpop.f32.mrb[0].mxu0
  %1127 = vmatprep.mubr.bf16.mxu0 0
  %1128 = vmatmul.mubr.bf16.gmra.mrb[0].mxu0 %v887
  %v1129 = vpop.f32.mrb[0].mxu0
  %v1130 = vadd.f32 %v742, %v1129
  %v1131 = vpop.f32.mrb[0].mxu0
  %v1132 = vpop.f32.mrb[0].mxu0
  %v1133 = vadd.f32 %v745, %v1132
  %v1134 = vpop.f32.mrb[0].mxu0
  %1135 = vmatprep.mubr.bf16.mxu0 0
  %1136 = vmatmul.mubr.bf16.gmra.mrb[0].mxu0 %v890
  %v1137 = vpop.f32.mrb[0].mxu0
  %v1138 = vadd.f32 %v750, %v1137
  %v1139 = vpop.f32.mrb[0].mxu0
  %v1140 = vpop.f32.mrb[0].mxu0
  %v1141 = vadd.f32 %v753, %v1140
  %v1142 = vpop.f32.mrb[0].mxu0
  %1143 = vmatprep.mubr.bf16.mxu0 0
  %1144 = vmatmul.mubr.bf16.gmra.mrb[0].mxu0 %v893
  %v1145 = vpop.f32.mrb[0].mxu0
  %v1146 = vadd.f32 %v758, %v1145
  %v1147 = vpop.f32.mrb[0].mxu0
  %v1148 = vpop.f32.mrb[0].mxu0
  %v1149 = vadd.f32 %v761, %v1148
  %v1150 = vpop.f32.mrb[0].mxu0
  %1151 = vmatprep.mubr.bf16.mxu0 0
  %1152 = vmatmul.mubr.bf16.gmra.mrb[0].mxu0 %v896
  %v1153 = vpop.f32.mrb[0].mxu0
  %v1154 = vadd.f32 %v766, %v1153
  %v1155 = vpop.f32.mrb[0].mxu0
  %v1156 = vpop.f32.mrb[0].mxu0
  %v1157 = vadd.f32 %v769, %v1156
  %v1158 = vpop.f32.mrb[0].mxu0
  %1159 = vmatprep.mubr.bf16.mxu0 0
  %1160 = vmatmul.mubr.bf16.gmra.mrb[0].mxu0 %v899
  %v1161 = vpop.f32.mrb[0].mxu0
  %v1162 = vadd.f32 %v774, %v1161
  %v1163 = vpop.f32.mrb[0].mxu0
  %v1164 = vpop.f32.mrb[0].mxu0
  %v1165 = vadd.f32 %v777, %v1164
  %v1166 = vpop.f32.mrb[0].mxu0
  %1167 = vmatprep.mubr.bf16.mxu0 0
  %1168 = vmatmul.mubr.bf16.gmra.mrb[0].mxu0 %v902
  %v1169 = vpop.f32.mrb[0].mxu0
  %v1170 = vadd.f32 %v782, %v1169
  %v1171 = vpop.f32.mrb[0].mxu0
  %v1172 = vpop.f32.mrb[0].mxu0
  %v1173 = vadd.f32 %v785, %v1172
  %v1174 = vpop.f32.mrb[0].mxu0
  %1175 = vmatprep.mubr.bf16.mxu0 0
  %1176 = vmatmul.mubr.bf16.gmra.mrb[0].mxu0 %v905
  %v1177 = vpop.f32.mrb[0].mxu0
  %v1178 = vadd.f32 %v790, %v1177
  %v1179 = vpop.f32.mrb[0].mxu0
  %v1180 = vpop.f32.mrb[0].mxu0
  %v1181 = vadd.f32 %v793, %v1180
  %v1182 = vpop.f32.mrb[0].mxu0
  %1183 = vmatprep.mubr.bf16.mxu0 0
  %1184 = vmatmul.mubr.bf16.gmra.mrb[0].mxu0 %v908
  %v1185 = vpop.f32.mrb[0].mxu0
  %v1186 = vadd.f32 %v798, %v1185
  %v1187 = vpop.f32.mrb[0].mxu0
  %v1188 = vpop.f32.mrb[0].mxu0
  %v1189 = vadd.f32 %v801, %v1188
  %v1190 = vpop.f32.mrb[0].mxu0
  %1191 = vmatprep.mubr.bf16.mxu0 0
  %1192 = vmatmul.mubr.bf16.gmra.mrb[0].mxu0 %v911
  %v1193 = vpop.f32.mrb[0].mxu0
  %v1194 = vadd.f32 %v806, %v1193
  %v1195 = vpop.f32.mrb[0].mxu0
  %v1196 = vpop.f32.mrb[0].mxu0
  %v1197 = vadd.f32 %v809, %v1196
  %v1198 = vpop.f32.mrb[0].mxu0
  %1199 = vmatprep.mubr.bf16.mxu0 0
  %1200 = vmatmul.mubr.bf16.gmra.mrb[0].mxu0 %v914
  %v1201 = vpop.f32.mrb[0].mxu0
  %v1202 = vadd.f32 %v814, %v1201
  %v1203 = vpop.f32.mrb[0].mxu0
  %v1204 = vpop.f32.mrb[0].mxu0
  %v1205 = vadd.f32 %v817, %v1204
  %v1206 = vpop.f32.mrb[0].mxu0
  %1207 = vdwg.mxu0
  %v1208 = vld [vmem:[#allocation2 + $0x2] sm:$0xff]
  %v1209 = vld [vmem:[#allocation2 + $0xa] sm:$0xff]
  %v1210 = vld [vmem:[#allocation2 + $0x1a] sm:$0xff]
  %v1211 = vld [vmem:[#allocation2 + $0x22] sm:$0xff]
  %v1212 = vld [vmem:[#allocation2 + $0x32] sm:$0xff]
  %v1213 = vld [vmem:[#allocation2 + $0x3a] sm:$0xff]
  %v1214 = vld [vmem:[#allocation2 + $0x4a] sm:$0xff]
  %v1215 = vld [vmem:[#allocation2 + $0x52] sm:$0xff]
  %v1216 = vld [vmem:[#allocation2 + $0x62] sm:$0xff]
  %v1217 = vld [vmem:[#allocation2 + $0x6a] sm:$0xff]
  %v1218 = vld [vmem:[#allocation2 + $0x7a] sm:$0xff]
  %v1219 = vld [vmem:[#allocation2 + $0x82] sm:$0xff]
  %v1220 = vld [vmem:[#allocation2 + $0x92] sm:$0xff]
  %v1221 = vld [vmem:[#allocation2 + $0x9a] sm:$0xff]
  %v1222 = vld [vmem:[#allocation2 + $0xaa] sm:$0xff]
  %v1223 = vld [vmem:[#allocation2 + $0xb2] sm:$0xff]
  %v1224 = vld [vmem:[#allocation2 + $0xc2] sm:$0xff]
  %v1225 = vld [vmem:[#allocation2 + $0xca] sm:$0xff]
  %v1226 = vld [vmem:[#allocation2 + $0xda] sm:$0xff]
  %v1227 = vld [vmem:[#allocation2 + $0xe2] sm:$0xff]
  %v1228 = vld [vmem:[#allocation2 + $0xf2] sm:$0xff]
  %v1229 = vld [vmem:[#allocation2 + $0xfa] sm:$0xff]
  %v1230 = vld [vmem:[#allocation2 + $0x10a] sm:$0xff]
  %v1231 = vld [vmem:[#allocation2 + $0x112] sm:$0xff]
  %v1232 = vld [vmem:[#allocation2 + $0x122] sm:$0xff]
  %v1233 = vld [vmem:[#allocation2 + $0x12a] sm:$0xff]
  %v1234 = vld [vmem:[#allocation2 + $0x13a] sm:$0xff]
  %v1235 = vld [vmem:[#allocation2 + $0x142] sm:$0xff]
  %v1236 = vld [vmem:[#allocation2 + $0x152] sm:$0xff]
  %v1237 = vld [vmem:[#allocation2 + $0x15a] sm:$0xff]
  %v1238 = vld [vmem:[#allocation2 + $0x16a] sm:$0xff]
  %v1239 = vld [vmem:[#allocation2 + $0x172] sm:$0xff]
  %v1240 = vld [vmem:[#allocation2 + $0x1b2] sm:$0xff]
  %v1241 = vld [vmem:[#allocation2 + $0x1ba] sm:$0xff]
  %v1242 = vld [vmem:[#allocation2 + $0x1ca] sm:$0xff]
  %v1243 = vld [vmem:[#allocation2 + $0x1d2] sm:$0xff]
  %v1244 = vld [vmem:[#allocation2 + $0x1e2] sm:$0xff]
  %v1245 = vld [vmem:[#allocation2 + $0x1ea] sm:$0xff]
  %v1246 = vld [vmem:[#allocation2 + $0x1fa] sm:$0xff]
  %v1247 = vld [vmem:[#allocation2 + $0x202] sm:$0xff]
  %v1248 = vld [vmem:[#allocation2 + $0x212] sm:$0xff]
  %v1249 = vld [vmem:[#allocation2 + $0x21a] sm:$0xff]
  %v1250 = vld [vmem:[#allocation2 + $0x22a] sm:$0xff]
  %v1251 = vld [vmem:[#allocation2 + $0x232] sm:$0xff]
  %v1252 = vld [vmem:[#allocation2 + $0x242] sm:$0xff]
  %v1253 = vld [vmem:[#allocation2 + $0x24a] sm:$0xff]
  %v1254 = vld [vmem:[#allocation2 + $0x25a] sm:$0xff]
  %v1255 = vld [vmem:[#allocation2 + $0x262] sm:$0xff]
  %v1256 = vld [vmem:[#allocation2 + $0x272] sm:$0xff]
  %v1257 = vld [vmem:[#allocation2 + $0x27a] sm:$0xff]
  %v1258 = vld [vmem:[#allocation2 + $0x28a] sm:$0xff]
  %v1259 = vld [vmem:[#allocation2 + $0x292] sm:$0xff]
  %v1260 = vld [vmem:[#allocation2 + $0x2a2] sm:$0xff]
  %v1261 = vld [vmem:[#allocation2 + $0x2aa] sm:$0xff]
  %v1262 = vld [vmem:[#allocation2 + $0x2ba] sm:$0xff]
  %v1263 = vld [vmem:[#allocation2 + $0x2c2] sm:$0xff]
  %v1264 = vld [vmem:[#allocation2 + $0x2d2] sm:$0xff]
  %v1265 = vld [vmem:[#allocation2 + $0x2da] sm:$0xff]
  %v1266 = vld [vmem:[#allocation2 + $0x2ea] sm:$0xff]
  %v1267 = vld [vmem:[#allocation2 + $0x2f2] sm:$0xff]
  %v1268 = vld [vmem:[#allocation2 + $0x302] sm:$0xff]
  %v1269 = vld [vmem:[#allocation2 + $0x30a] sm:$0xff]
  %v1270 = vld [vmem:[#allocation2 + $0x31a] sm:$0xff]
  %v1271 = vld [vmem:[#allocation2 + $0x322] sm:$0xff]
  %v1272 = vpack.c.bf16 %v1209, %v1208
  %v1273 = vpack.c.bf16 %v1211, %v1210
  %v1274 = vpack.c.bf16 %v1213, %v1212
  %v1275 = vpack.c.bf16 %v1215, %v1214
  %v1276 = vpack.c.bf16 %v1217, %v1216
  %v1277 = vpack.c.bf16 %v1219, %v1218
  %v1278 = vpack.c.bf16 %v1221, %v1220
  %v1279 = vpack.c.bf16 %v1223, %v1222
  %v1280 = vpack.c.bf16 %v1225, %v1224
  %v1281 = vpack.c.bf16 %v1227, %v1226
  %v1282 = vpack.c.bf16 %v1229, %v1228
  %v1283 = vpack.c.bf16 %v1231, %v1230
  %v1284 = vpack.c.bf16 %v1233, %v1232
  %v1285 = vpack.c.bf16 %v1235, %v1234
  %v1286 = vpack.c.bf16 %v1237, %v1236
  %v1287 = vpack.c.bf16 %v1239, %v1238
  %v1288 = vpack.c.bf16 %v1241, %v1240
  %v1289 = vpack.c.bf16 %v1243, %v1242
  %v1290 = vpack.c.bf16 %v1245, %v1244
  %v1291 = vpack.c.bf16 %v1247, %v1246
  %v1292 = vpack.c.bf16 %v1249, %v1248
  %v1293 = vpack.c.bf16 %v1251, %v1250
  %v1294 = vpack.c.bf16 %v1253, %v1252
  %v1295 = vpack.c.bf16 %v1255, %v1254
  %v1296 = vpack.c.bf16 %v1257, %v1256
  %v1297 = vpack.c.bf16 %v1259, %v1258
  %v1298 = vpack.c.bf16 %v1261, %v1260
  %v1299 = vpack.c.bf16 %v1263, %v1262
  %v1300 = vpack.c.bf16 %v1265, %v1264
  %v1301 = vpack.c.bf16 %v1267, %v1266
  %v1302 = vpack.c.bf16 %v1269, %v1268
  %v1303 = vpack.c.bf16 %v1271, %v1270
  %s1304 = scalar_lea.vmem %s1, 4
  %v1305 = vld [vmem:[%s1304] sm:$0x3]
  %v1307 = vsel %vm27, %v1272, 0
  %v1310 = vsel %vm27, %v1273, 0
  %v1313 = vsel %vm27, %v1274, 0
  %v1316 = vsel %vm27, %v1275, 0
  %v1319 = vsel %vm27, %v1276, 0
  %v1322 = vsel %vm27, %v1277, 0
  %v1325 = vsel %vm27, %v1278, 0
  %v1328 = vsel %vm27, %v1279, 0
  %v1331 = vsel %vm27, %v1280, 0
  %v1334 = vsel %vm27, %v1281, 0
  %v1337 = vsel %vm27, %v1282, 0
  %v1340 = vsel %vm27, %v1283, 0
  %v1343 = vsel %vm27, %v1284, 0
  %v1346 = vsel %vm27, %v1285, 0
  %v1349 = vsel %vm27, %v1286, 0
  %v1352 = vsel %vm27, %v1287, 0
  %v1355 = vsel %vm27, %v1288, 0
  %v1358 = vsel %vm27, %v1289, 0
  %v1361 = vsel %vm27, %v1290, 0
  %v1364 = vsel %vm27, %v1291, 0
  %v1367 = vsel %vm27, %v1292, 0
  %v1370 = vsel %vm27, %v1293, 0
  %v1373 = vsel %vm27, %v1294, 0
  %v1376 = vsel %vm27, %v1295, 0
  %v1379 = vsel %vm27, %v1296, 0
  %v1382 = vsel %vm27, %v1297, 0
  %v1385 = vsel %vm27, %v1298, 0
  %v1388 = vsel %vm27, %v1299, 0
  %v1391 = vsel %vm27, %v1300, 0
  %v1394 = vsel %vm27, %v1301, 0
  %v1397 = vsel %vm27, %v1302, 0
  %v1400 = vsel %vm27, %v1303, 0
  %v1403 = vsel %vm527, %v1305, 0
  %1405 = vmatprep.subr.bf16.mxu0 0
  %1406 = vmatpush1.bf16.msra.mxu0 %v1403
  %1407 = vmatprep.subr.bf16.mxu0 0
  %1408 = vmatpush1.bf16.msra.mxu0 0
  %1409 = vmatprep.subr.bf16.mxu0 0
  %1410 = vmatpush1.bf16.msra.mxu0 0
  %1411 = vmatprep.subr.bf16.mxu0 0
  %1412 = vmatpush1.bf16.msra.mxu0 0
  %1413 = vmatprep.subr.bf16.mxu0 0
  %1414 = vmatpush1.bf16.msra.mxu0 0
  %1415 = vmatprep.subr.bf16.mxu0 0
  %1416 = vmatpush1.bf16.msra.mxu0 0
  %1417 = vmatprep.subr.bf16.mxu0 0
  %1418 = vmatpush1.bf16.msra.mxu0 0
  %1419 = vmatprep.subr.bf16.mxu0 0
  %1420 = vmatpush1.bf16.msra.mxu0 0
  %1421 = vmatprep.subr.bf16.mxu0 0
  %1422 = vmatpush1.bf16.msra.mxu0 0
  %1423 = vmatprep.subr.bf16.mxu0 0
  %1424 = vmatpush1.bf16.msra.mxu0 0
  %1425 = vmatprep.subr.bf16.mxu0 0
  %1426 = vmatpush1.bf16.msra.mxu0 0
  %1427 = vmatprep.subr.bf16.mxu0 0
  %1428 = vmatpush1.bf16.msra.mxu0 0
  %1429 = vmatprep.subr.bf16.mxu0 0
  %1430 = vmatpush1.bf16.msra.mxu0 0
  %1431 = vmatprep.subr.bf16.mxu0 0
  %1432 = vmatpush1.bf16.msra.mxu0 0
  %1433 = vmatprep.subr.bf16.mxu0 0
  %1434 = vmatpush1.bf16.msra.mxu0 0
  %1435 = vmatprep.subr.bf16.mxu0 0
  %1436 = vmatpush1.bf16.msra.mxu0 0
  %1437 = vmatprep.mubr.bf16.mxu0 0
  %1438 = vmatmul.mubr.bf16.gmra.mrb[0].mxu0 %v1307
  %v1439 = vpop.f32.mrb[0].mxu0
  %v1440 = vadd.f32 0.0, %v1439
  %v1441 = vpop.f32.mrb[0].mxu0
  %v1442 = vpop.f32.mrb[0].mxu0
  %v1443 = vadd.f32 0.0, %v1442
  %v1444 = vpop.f32.mrb[0].mxu0
  %1445 = vmatprep.mubr.bf16.mxu0 0
  %1446 = vmatmul.mubr.bf16.gmra.mrb[0].mxu0 %v1310
  %v1447 = vpop.f32.mrb[0].mxu0
  %v1448 = vadd.f32 0.0, %v1447
  %v1449 = vpop.f32.mrb[0].mxu0
  %v1450 = vpop.f32.mrb[0].mxu0
  %v1451 = vadd.f32 0.0, %v1450
  %v1452 = vpop.f32.mrb[0].mxu0
  %1453 = vmatprep.mubr.bf16.mxu0 0
  %1454 = vmatmul.mubr.bf16.gmra.mrb[0].mxu0 %v1313
  %v1455 = vpop.f32.mrb[0].mxu0
  %v1456 = vadd.f32 0.0, %v1455
  %v1457 = vpop.f32.mrb[0].mxu0
  %v1458 = vpop.f32.mrb[0].mxu0
  %v1459 = vadd.f32 0.0, %v1458
  %v1460 = vpop.f32.mrb[0].mxu0
  %1461 = vmatprep.mubr.bf16.mxu0 0
  %1462 = vmatmul.mubr.bf16.gmra.mrb[0].mxu0 %v1316
  %v1463 = vpop.f32.mrb[0].mxu0
  %v1464 = vadd.f32 0.0, %v1463
  %v1465 = vpop.f32.mrb[0].mxu0
  %v1466 = vpop.f32.mrb[0].mxu0
  %v1467 = vadd.f32 0.0, %v1466
  %v1468 = vpop.f32.mrb[0].mxu0
  %1469 = vmatprep.mubr.bf16.mxu0 0
  %1470 = vmatmul.mubr.bf16.gmra.mrb[0].mxu0 %v1319
  %v1471 = vpop.f32.mrb[0].mxu0
  %v1472 = vadd.f32 0.0, %v1471
  %v1473 = vpop.f32.mrb[0].mxu0
  %v1474 = vpop.f32.mrb[0].mxu0
  %v1475 = vadd.f32 0.0, %v1474
  %v1476 = vpop.f32.mrb[0].mxu0
  %1477 = vmatprep.mubr.bf16.mxu0 0
  %1478 = vmatmul.mubr.bf16.gmra.mrb[0].mxu0 %v1322
  %v1479 = vpop.f32.mrb[0].mxu0
  %v1480 = vadd.f32 0.0, %v1479
  %v1481 = vpop.f32.mrb[0].mxu0
  %v1482 = vpop.f32.mrb[0].mxu0
  %v1483 = vadd.f32 0.0, %v1482
  %v1484 = vpop.f32.mrb[0].mxu0
  %1485 = vmatprep.mubr.bf16.mxu0 0
  %1486 = vmatmul.mubr.bf16.gmra.mrb[0].mxu0 %v1325
  %v1487 = vpop.f32.mrb[0].mxu0
  %v1488 = vadd.f32 0.0, %v1487
  %v1489 = vpop.f32.mrb[0].mxu0
  %v1490 = vpop.f32.mrb[0].mxu0
  %v1491 = vadd.f32 0.0, %v1490
  %v1492 = vpop.f32.mrb[0].mxu0
  %1493 = vmatprep.mubr.bf16.mxu0 0
  %1494 = vmatmul.mubr.bf16.gmra.mrb[0].mxu0 %v1328
  %v1495 = vpop.f32.mrb[0].mxu0
  %v1496 = vadd.f32 0.0, %v1495
  %v1497 = vpop.f32.mrb[0].mxu0
  %v1498 = vpop.f32.mrb[0].mxu0
  %v1499 = vadd.f32 0.0, %v1498
  %v1500 = vpop.f32.mrb[0].mxu0
  %1501 = vmatprep.mubr.bf16.mxu0 0
  %1502 = vmatmul.mubr.bf16.gmra.mrb[0].mxu0 %v1331
  %v1503 = vpop.f32.mrb[0].mxu0
  %v1504 = vadd.f32 0.0, %v1503
  %v1505 = vpop.f32.mrb[0].mxu0
  %v1506 = vpop.f32.mrb[0].mxu0
  %v1507 = vadd.f32 0.0, %v1506
  %v1508 = vpop.f32.mrb[0].mxu0
  %1509 = vmatprep.mubr.bf16.mxu0 0
  %1510 = vmatmul.mubr.bf16.gmra.mrb[0].mxu0 %v1334
  %v1511 = vpop.f32.mrb[0].mxu0
  %v1512 = vadd.f32 0.0, %v1511
  %v1513 = vpop.f32.mrb[0].mxu0
  %v1514 = vpop.f32.mrb[0].mxu0
  %v1515 = vadd.f32 0.0, %v1514
  %v1516 = vpop.f32.mrb[0].mxu0
  %1517 = vmatprep.mubr.bf16.mxu0 0
  %1518 = vmatmul.mubr.bf16.gmra.mrb[0].mxu0 %v1337
  %v1519 = vpop.f32.mrb[0].mxu0
  %v1520 = vadd.f32 0.0, %v1519
  %v1521 = vpop.f32.mrb[0].mxu0
  %v1522 = vpop.f32.mrb[0].mxu0
  %v1523 = vadd.f32 0.0, %v1522
  %v1524 = vpop.f32.mrb[0].mxu0
  %1525 = vmatprep.mubr.bf16.mxu0 0
  %1526 = vmatmul.mubr.bf16.gmra.mrb[0].mxu0 %v1340
  %v1527 = vpop.f32.mrb[0].mxu0
  %v1528 = vadd.f32 0.0, %v1527
  %v1529 = vpop.f32.mrb[0].mxu0
  %v1530 = vpop.f32.mrb[0].mxu0
  %v1531 = vadd.f32 0.0, %v1530
  %v1532 = vpop.f32.mrb[0].mxu0
  %1533 = vmatprep.mubr.bf16.mxu0 0
  %1534 = vmatmul.mubr.bf16.gmra.mrb[0].mxu0 %v1343
  %v1535 = vpop.f32.mrb[0].mxu0
  %v1536 = vadd.f32 0.0, %v1535
  %v1537 = vpop.f32.mrb[0].mxu0
  %v1538 = vpop.f32.mrb[0].mxu0
  %v1539 = vadd.f32 0.0, %v1538
  %v1540 = vpop.f32.mrb[0].mxu0
  %1541 = vmatprep.mubr.bf16.mxu0 0
  %1542 = vmatmul.mubr.bf16.gmra.mrb[0].mxu0 %v1346
  %v1543 = vpop.f32.mrb[0].mxu0
  %v1544 = vadd.f32 0.0, %v1543
  %v1545 = vpop.f32.mrb[0].mxu0
  %v1546 = vpop.f32.mrb[0].mxu0
  %v1547 = vadd.f32 0.0, %v1546
  %v1548 = vpop.f32.mrb[0].mxu0
  %1549 = vmatprep.mubr.bf16.mxu0 0
  %1550 = vmatmul.mubr.bf16.gmra.mrb[0].mxu0 %v1349
  %v1551 = vpop.f32.mrb[0].mxu0
  %v1552 = vadd.f32 0.0, %v1551
  %v1553 = vpop.f32.mrb[0].mxu0
  %v1554 = vpop.f32.mrb[0].mxu0
  %v1555 = vadd.f32 0.0, %v1554
  %v1556 = vpop.f32.mrb[0].mxu0
  %1557 = vmatprep.mubr.bf16.mxu0 0
  %1558 = vmatmul.mubr.bf16.gmra.mrb[0].mxu0 %v1352
  %v1559 = vpop.f32.mrb[0].mxu0
  %v1560 = vadd.f32 0.0, %v1559
  %v1561 = vpop.f32.mrb[0].mxu0
  %v1562 = vpop.f32.mrb[0].mxu0
  %v1563 = vadd.f32 0.0, %v1562
  %v1564 = vpop.f32.mrb[0].mxu0
  %1565 = vmatprep.mubr.bf16.mxu0 0
  %1566 = vmatmul.mubr.bf16.gmra.mrb[0].mxu0 %v1355
  %v1567 = vpop.f32.mrb[0].mxu0
  %v1568 = vadd.f32 0.0, %v1567
  %v1569 = vpop.f32.mrb[0].mxu0
  %v1570 = vpop.f32.mrb[0].mxu0
  %v1571 = vadd.f32 0.0, %v1570
  %v1572 = vpop.f32.mrb[0].mxu0
  %1573 = vmatprep.mubr.bf16.mxu0 0
  %1574 = vmatmul.mubr.bf16.gmra.mrb[0].mxu0 %v1358
  %v1575 = vpop.f32.mrb[0].mxu0
  %v1576 = vadd.f32 0.0, %v1575
  %v1577 = vpop.f32.mrb[0].mxu0
  %v1578 = vpop.f32.mrb[0].mxu0
  %v1579 = vadd.f32 0.0, %v1578
  %v1580 = vpop.f32.mrb[0].mxu0
  %1581 = vmatprep.mubr.bf16.mxu0 0
  %1582 = vmatmul.mubr.bf16.gmra.mrb[0].mxu0 %v1361
  %v1583 = vpop.f32.mrb[0].mxu0
  %v1584 = vadd.f32 0.0, %v1583
  %v1585 = vpop.f32.mrb[0].mxu0
  %v1586 = vpop.f32.mrb[0].mxu0
  %v1587 = vadd.f32 0.0, %v1586
  %v1588 = vpop.f32.mrb[0].mxu0
  %1589 = vmatprep.mubr.bf16.mxu0 0
  %1590 = vmatmul.mubr.bf16.gmra.mrb[0].mxu0 %v1364
  %v1591 = vpop.f32.mrb[0].mxu0
  %v1592 = vadd.f32 0.0, %v1591
  %v1593 = vpop.f32.mrb[0].mxu0
  %v1594 = vpop.f32.mrb[0].mxu0
  %v1595 = vadd.f32 0.0, %v1594
  %v1596 = vpop.f32.mrb[0].mxu0
  %1597 = vmatprep.mubr.bf16.mxu0 0
  %1598 = vmatmul.mubr.bf16.gmra.mrb[0].mxu0 %v1367
  %v1599 = vpop.f32.mrb[0].mxu0
  %v1600 = vadd.f32 0.0, %v1599
  %v1601 = vpop.f32.mrb[0].mxu0
  %v1602 = vpop.f32.mrb[0].mxu0
  %v1603 = vadd.f32 0.0, %v1602
  %v1604 = vpop.f32.mrb[0].mxu0
  %1605 = vmatprep.mubr.bf16.mxu0 0
  %1606 = vmatmul.mubr.bf16.gmra.mrb[0].mxu0 %v1370
  %v1607 = vpop.f32.mrb[0].mxu0
  %v1608 = vadd.f32 0.0, %v1607
  %v1609 = vpop.f32.mrb[0].mxu0
  %v1610 = vpop.f32.mrb[0].mxu0
  %v1611 = vadd.f32 0.0, %v1610
  %v1612 = vpop.f32.mrb[0].mxu0
  %1613 = vmatprep.mubr.bf16.mxu0 0
  %1614 = vmatmul.mubr.bf16.gmra.mrb[0].mxu0 %v1373
  %v1615 = vpop.f32.mrb[0].mxu0
  %v1616 = vadd.f32 0.0, %v1615
  %v1617 = vpop.f32.mrb[0].mxu0
  %v1618 = vpop.f32.mrb[0].mxu0
  %v1619 = vadd.f32 0.0, %v1618
  %v1620 = vpop.f32.mrb[0].mxu0
  %1621 = vmatprep.mubr.bf16.mxu0 0
  %1622 = vmatmul.mubr.bf16.gmra.mrb[0].mxu0 %v1376
  %v1623 = vpop.f32.mrb[0].mxu0
  %v1624 = vadd.f32 0.0, %v1623
  %v1625 = vpop.f32.mrb[0].mxu0
  %v1626 = vpop.f32.mrb[0].mxu0
  %v1627 = vadd.f32 0.0, %v1626
  %v1628 = vpop.f32.mrb[0].mxu0
  %1629 = vmatprep.mubr.bf16.mxu0 0
  %1630 = vmatmul.mubr.bf16.gmra.mrb[0].mxu0 %v1379
  %v1631 = vpop.f32.mrb[0].mxu0
  %v1632 = vadd.f32 0.0, %v1631
  %v1633 = vpop.f32.mrb[0].mxu0
  %v1634 = vpop.f32.mrb[0].mxu0
  %v1635 = vadd.f32 0.0, %v1634
  %v1636 = vpop.f32.mrb[0].mxu0
  %1637 = vmatprep.mubr.bf16.mxu0 0
  %1638 = vmatmul.mubr.bf16.gmra.mrb[0].mxu0 %v1382
  %v1639 = vpop.f32.mrb[0].mxu0
  %v1640 = vadd.f32 0.0, %v1639
  %v1641 = vpop.f32.mrb[0].mxu0
  %v1642 = vpop.f32.mrb[0].mxu0
  %v1643 = vadd.f32 0.0, %v1642
  %v1644 = vpop.f32.mrb[0].mxu0
  %1645 = vmatprep.mubr.bf16.mxu0 0
  %1646 = vmatmul.mubr.bf16.gmra.mrb[0].mxu0 %v1385
  %v1647 = vpop.f32.mrb[0].mxu0
  %v1648 = vadd.f32 0.0, %v1647
  %v1649 = vpop.f32.mrb[0].mxu0
  %v1650 = vpop.f32.mrb[0].mxu0
  %v1651 = vadd.f32 0.0, %v1650
  %v1652 = vpop.f32.mrb[0].mxu0
  %1653 = vmatprep.mubr.bf16.mxu0 0
  %1654 = vmatmul.mubr.bf16.gmra.mrb[0].mxu0 %v1388
  %v1655 = vpop.f32.mrb[0].mxu0
  %v1656 = vadd.f32 0.0, %v1655
  %v1657 = vpop.f32.mrb[0].mxu0
  %v1658 = vpop.f32.mrb[0].mxu0
  %v1659 = vadd.f32 0.0, %v1658
  %v1660 = vpop.f32.mrb[0].mxu0
  %1661 = vmatprep.mubr.bf16.mxu0 0
  %1662 = vmatmul.mubr.bf16.gmra.mrb[0].mxu0 %v1391
  %v1663 = vpop.f32.mrb[0].mxu0
  %v1664 = vadd.f32 0.0, %v1663
  %v1665 = vpop.f32.mrb[0].mxu0
  %v1666 = vpop.f32.mrb[0].mxu0
  %v1667 = vadd.f32 0.0, %v1666
  %v1668 = vpop.f32.mrb[0].mxu0
  %1669 = vmatprep.mubr.bf16.mxu0 0
  %1670 = vmatmul.mubr.bf16.gmra.mrb[0].mxu0 %v1394
  %v1671 = vpop.f32.mrb[0].mxu0
  %v1672 = vadd.f32 0.0, %v1671
  %v1673 = vpop.f32.mrb[0].mxu0
  %v1674 = vpop.f32.mrb[0].mxu0
  %v1675 = vadd.f32 0.0, %v1674
  %v1676 = vpop.f32.mrb[0].mxu0
  %1677 = vmatprep.mubr.bf16.mxu0 0
  %1678 = vmatmul.mubr.bf16.gmra.mrb[0].mxu0 %v1397
  %v1679 = vpop.f32.mrb[0].mxu0
  %v1680 = vadd.f32 0.0, %v1679
  %v1681 = vpop.f32.mrb[0].mxu0
  %v1682 = vpop.f32.mrb[0].mxu0
  %v1683 = vadd.f32 0.0, %v1682
  %v1684 = vpop.f32.mrb[0].mxu0
  %1685 = vmatprep.mubr.bf16.mxu0 0
  %1686 = vmatmul.mubr.bf16.gmra.mrb[0].mxu0 %v1400
  %v1687 = vpop.f32.mrb[0].mxu0
  %v1688 = vadd.f32 0.0, %v1687
  %v1689 = vpop.f32.mrb[0].mxu0
  %v1690 = vpop.f32.mrb[0].mxu0
  %v1691 = vadd.f32 0.0, %v1690
  %v1692 = vpop.f32.mrb[0].mxu0
  %1693 = vdwg.mxu0
  %v1694 = vadd.f32 %v954, %v1440
  %v1695 = vadd.f32 %v957, %v1443
  %v1696 = vadd.f32 %v962, %v1448
  %v1697 = vadd.f32 %v965, %v1451
  %v1698 = vadd.f32 %v970, %v1456
  %v1699 = vadd.f32 %v973, %v1459
  %v1700 = vadd.f32 %v978, %v1464
  %v1701 = vadd.f32 %v981, %v1467
  %v1702 = vadd.f32 %v986, %v1472
  %v1703 = vadd.f32 %v989, %v1475
  %v1704 = vadd.f32 %v994, %v1480
  %v1705 = vadd.f32 %v997, %v1483
  %v1706 = vadd.f32 %v1002, %v1488
  %v1707 = vadd.f32 %v1005, %v1491
  %v1708 = vadd.f32 %v1010, %v1496
  %v1709 = vadd.f32 %v1013, %v1499
  %v1710 = vadd.f32 %v1018, %v1504
  %v1711 = vadd.f32 %v1021, %v1507
  %v1712 = vadd.f32 %v1026, %v1512
  %v1713 = vadd.f32 %v1029, %v1515
  %v1714 = vadd.f32 %v1034, %v1520
  %v1715 = vadd.f32 %v1037, %v1523
  %v1716 = vadd.f32 %v1042, %v1528
  %v1717 = vadd.f32 %v1045, %v1531
  %v1718 = vadd.f32 %v1050, %v1536
  %v1719 = vadd.f32 %v1053, %v1539
  %v1720 = vadd.f32 %v1058, %v1544
  %v1721 = vadd.f32 %v1061, %v1547
  %v1722 = vadd.f32 %v1066, %v1552
  %v1723 = vadd.f32 %v1069, %v1555
  %v1724 = vadd.f32 %v1074, %v1560
  %v1725 = vadd.f32 %v1077, %v1563
  %v1726 = vadd.f32 %v1082, %v1568
  %v1727 = vadd.f32 %v1085, %v1571
  %v1728 = vadd.f32 %v1090, %v1576
  %v1729 = vadd.f32 %v1093, %v1579
  %v1730 = vadd.f32 %v1098, %v1584
  %v1731 = vadd.f32 %v1101, %v1587
  %v1732 = vadd.f32 %v1106, %v1592
  %v1733 = vadd.f32 %v1109, %v1595
  %v1734 = vadd.f32 %v1114, %v1600
  %v1735 = vadd.f32 %v1117, %v1603
  %v1736 = vadd.f32 %v1122, %v1608
  %v1737 = vadd.f32 %v1125, %v1611
  %v1738 = vadd.f32 %v1130, %v1616
  %v1739 = vadd.f32 %v1133, %v1619
  %v1740 = vadd.f32 %v1138, %v1624
  %v1741 = vadd.f32 %v1141, %v1627
  %v1742 = vadd.f32 %v1146, %v1632
  %v1743 = vadd.f32 %v1149, %v1635
  %v1744 = vadd.f32 %v1154, %v1640
  %v1745 = vadd.f32 %v1157, %v1643
  %v1746 = vadd.f32 %v1162, %v1648
  %v1747 = vadd.f32 %v1165, %v1651
  %v1748 = vadd.f32 %v1170, %v1656
  %v1749 = vadd.f32 %v1173, %v1659
  %v1750 = vadd.f32 %v1178, %v1664
  %v1751 = vadd.f32 %v1181, %v1667
  %v1752 = vadd.f32 %v1186, %v1672
  %v1753 = vadd.f32 %v1189, %v1675
  %v1754 = vadd.f32 %v1194, %v1680
  %v1755 = vadd.f32 %v1197, %v1683
  %v1756 = vadd.f32 %v1202, %v1688
  %v1757 = vadd.f32 %v1205, %v1691
  %v1758 = vld [vmem:[%s42] sm:$0xff]
  %v1759 = vld [vmem:[%s42 + $0x8] sm:$0xff]
  %v1760 = vld [vmem:[%s42 + $0x18] sm:$0xff]
  %v1761 = vld [vmem:[%s42 + $0x20] sm:$0xff]
  %v1762 = vld [vmem:[%s42 + $0x30] sm:$0xff]
  %v1763 = vld [vmem:[%s42 + $0x38] sm:$0xff]
  %v1764 = vld [vmem:[%s42 + $0x48] sm:$0xff]
  %v1765 = vld [vmem:[%s42 + $0x50] sm:$0xff]
  %v1766 = vld [vmem:[%s42 + $0x60] sm:$0xff]
  %v1767 = vld [vmem:[%s42 + $0x68] sm:$0xff]
  %v1768 = vld [vmem:[%s42 + $0x78] sm:$0xff]
  %v1769 = vld [vmem:[%s42 + $0x80] sm:$0xff]
  %v1770 = vld [vmem:[%s42 + $0x90] sm:$0xff]
  %v1771 = vld [vmem:[%s42 + $0x98] sm:$0xff]
  %v1772 = vld [vmem:[%s42 + $0xa8] sm:$0xff]
  %v1773 = vld [vmem:[%s42 + $0xb0] sm:$0xff]
  %v1774 = vld [vmem:[%s42 + $0xc0] sm:$0xff]
  %v1775 = vld [vmem:[%s42 + $0xc8] sm:$0xff]
  %v1776 = vld [vmem:[%s42 + $0xd8] sm:$0xff]
  %v1777 = vld [vmem:[%s42 + $0xe0] sm:$0xff]
  %v1778 = vld [vmem:[%s42 + $0xf0] sm:$0xff]
  %v1779 = vld [vmem:[%s42 + $0xf8] sm:$0xff]
  %v1780 = vld [vmem:[%s42 + $0x108] sm:$0xff]
  %v1781 = vld [vmem:[%s42 + $0x110] sm:$0xff]
  %v1782 = vld [vmem:[%s42 + $0x120] sm:$0xff]
  %v1783 = vld [vmem:[%s42 + $0x128] sm:$0xff]
  %v1784 = vld [vmem:[%s42 + $0x138] sm:$0xff]
  %v1785 = vld [vmem:[%s42 + $0x140] sm:$0xff]
  %v1786 = vld [vmem:[%s42 + $0x150] sm:$0xff]
  %v1787 = vld [vmem:[%s42 + $0x158] sm:$0xff]
  %v1788 = vld [vmem:[%s42 + $0x168] sm:$0xff]
  %v1789 = vld [vmem:[%s42 + $0x170] sm:$0xff]
  %v1790 = vld [vmem:[%s42 + $0x1b0] sm:$0xff]
  %v1791 = vld [vmem:[%s42 + $0x1b8] sm:$0xff]
  %v1792 = vld [vmem:[%s42 + $0x1c8] sm:$0xff]
  %v1793 = vld [vmem:[%s42 + $0x1d0] sm:$0xff]
  %v1794 = vld [vmem:[%s42 + $0x1e0] sm:$0xff]
  %v1795 = vld [vmem:[%s42 + $0x1e8] sm:$0xff]
  %v1796 = vld [vmem:[%s42 + $0x1f8] sm:$0xff]
  %v1797 = vld [vmem:[%s42 + $0x200] sm:$0xff]
  %v1798 = vld [vmem:[%s42 + $0x210] sm:$0xff]
  %v1799 = vld [vmem:[%s42 + $0x218] sm:$0xff]
  %v1800 = vld [vmem:[%s42 + $0x228] sm:$0xff]
  %v1801 = vld [vmem:[%s42 + $0x230] sm:$0xff]
  %v1802 = vld [vmem:[%s42 + $0x240] sm:$0xff]
  %v1803 = vld [vmem:[%s42 + $0x248] sm:$0xff]
  %v1804 = vld [vmem:[%s42 + $0x258] sm:$0xff]
  %v1805 = vld [vmem:[%s42 + $0x260] sm:$0xff]
  %v1806 = vld [vmem:[%s42 + $0x270] sm:$0xff]
  %v1807 = vld [vmem:[%s42 + $0x278] sm:$0xff]
  %v1808 = vld [vmem:[%s42 + $0x288] sm:$0xff]
  %v1809 = vld [vmem:[%s42 + $0x290] sm:$0xff]
  %v1810 = vld [vmem:[%s42 + $0x2a0] sm:$0xff]
  %v1811 = vld [vmem:[%s42 + $0x2a8] sm:$0xff]
  %v1812 = vld [vmem:[%s42 + $0x2b8] sm:$0xff]
  %v1813 = vld [vmem:[%s42 + $0x2c0] sm:$0xff]
  %v1814 = vld [vmem:[%s42 + $0x2d0] sm:$0xff]
  %v1815 = vld [vmem:[%s42 + $0x2d8] sm:$0xff]
  %v1816 = vld [vmem:[%s42 + $0x2e8] sm:$0xff]
  %v1817 = vld [vmem:[%s42 + $0x2f0] sm:$0xff]
  %v1818 = vld [vmem:[%s42 + $0x300] sm:$0xff]
  %v1819 = vld [vmem:[%s42 + $0x308] sm:$0xff]
  %v1820 = vld [vmem:[%s42 + $0x318] sm:$0xff]
  %v1821 = vld [vmem:[%s42 + $0x320] sm:$0xff]
  %v1822 = vpack.c.bf16 %v1759, %v1758
  %v1823 = vpack.c.bf16 %v1761, %v1760
  %v1824 = vpack.c.bf16 %v1763, %v1762
  %v1825 = vpack.c.bf16 %v1765, %v1764
  %v1826 = vpack.c.bf16 %v1767, %v1766
  %v1827 = vpack.c.bf16 %v1769, %v1768
  %v1828 = vpack.c.bf16 %v1771, %v1770
  %v1829 = vpack.c.bf16 %v1773, %v1772
  %v1830 = vpack.c.bf16 %v1775, %v1774
  %v1831 = vpack.c.bf16 %v1777, %v1776
  %v1832 = vpack.c.bf16 %v1779, %v1778
  %v1833 = vpack.c.bf16 %v1781, %v1780
  %v1834 = vpack.c.bf16 %v1783, %v1782
  %v1835 = vpack.c.bf16 %v1785, %v1784
  %v1836 = vpack.c.bf16 %v1787, %v1786
  %v1837 = vpack.c.bf16 %v1789, %v1788
  %v1838 = vpack.c.bf16 %v1791, %v1790
  %v1839 = vpack.c.bf16 %v1793, %v1792
  %v1840 = vpack.c.bf16 %v1795, %v1794
  %v1841 = vpack.c.bf16 %v1797, %v1796
  %v1842 = vpack.c.bf16 %v1799, %v1798
  %v1843 = vpack.c.bf16 %v1801, %v1800
  %v1844 = vpack.c.bf16 %v1803, %v1802
  %v1845 = vpack.c.bf16 %v1805, %v1804
  %v1846 = vpack.c.bf16 %v1807, %v1806
  %v1847 = vpack.c.bf16 %v1809, %v1808
  %v1848 = vpack.c.bf16 %v1811, %v1810
  %v1849 = vpack.c.bf16 %v1813, %v1812
  %v1850 = vpack.c.bf16 %v1815, %v1814
  %v1851 = vpack.c.bf16 %v1817, %v1816
  %v1852 = vpack.c.bf16 %v1819, %v1818
  %v1853 = vpack.c.bf16 %v1821, %v1820
  %s1854 = scalar_lea.vmem %s1, 6
  %v1855 = vld [vmem:[%s1854] sm:$0x3]
  %v1857 = vsel %vm27, %v1822, 0
  %v1860 = vsel %vm27, %v1823, 0
  %v1863 = vsel %vm27, %v1824, 0
  %v1866 = vsel %vm27, %v1825, 0
  %v1869 = vsel %vm27, %v1826, 0
  %v1872 = vsel %vm27, %v1827, 0
  %v1875 = vsel %vm27, %v1828, 0
  %v1878 = vsel %vm27, %v1829, 0
  %v1881 = vsel %vm27, %v1830, 0
  %v1884 = vsel %vm27, %v1831, 0
  %v1887 = vsel %vm27, %v1832, 0
  %v1890 = vsel %vm27, %v1833, 0
  %v1893 = vsel %vm27, %v1834, 0
  %v1896 = vsel %vm27, %v1835, 0
  %v1899 = vsel %vm27, %v1836, 0
  %v1902 = vsel %vm27, %v1837, 0
  %v1905 = vsel %vm27, %v1838, 0
  %v1908 = vsel %vm27, %v1839, 0
  %v1911 = vsel %vm27, %v1840, 0
  %v1914 = vsel %vm27, %v1841, 0
  %v1917 = vsel %vm27, %v1842, 0
  %v1920 = vsel %vm27, %v1843, 0
  %v1923 = vsel %vm27, %v1844, 0
  %v1926 = vsel %vm27, %v1845, 0
  %v1929 = vsel %vm27, %v1846, 0
  %v1932 = vsel %vm27, %v1847, 0
  %v1935 = vsel %vm27, %v1848, 0
  %v1938 = vsel %vm27, %v1849, 0
  %v1941 = vsel %vm27, %v1850, 0
  %v1944 = vsel %vm27, %v1851, 0
  %v1947 = vsel %vm27, %v1852, 0
  %v1950 = vsel %vm27, %v1853, 0
  %v1953 = vsel %vm527, %v1855, 0
  %1955 = vmatprep.subr.bf16.mxu0 0
  %1956 = vmatpush1.bf16.msra.mxu0 %v1953
  %1957 = vmatprep.subr.bf16.mxu0 0
  %1958 = vmatpush1.bf16.msra.mxu0 0
  %1959 = vmatprep.subr.bf16.mxu0 0
  %1960 = vmatpush1.bf16.msra.mxu0 0
  %1961 = vmatprep.subr.bf16.mxu0 0
  %1962 = vmatpush1.bf16.msra.mxu0 0
  %1963 = vmatprep.subr.bf16.mxu0 0
  %1964 = vmatpush1.bf16.msra.mxu0 0
  %1965 = vmatprep.subr.bf16.mxu0 0
  %1966 = vmatpush1.bf16.msra.mxu0 0
  %1967 = vmatprep.subr.bf16.mxu0 0
  %1968 = vmatpush1.bf16.msra.mxu0 0
  %1969 = vmatprep.subr.bf16.mxu0 0
  %1970 = vmatpush1.bf16.msra.mxu0 0
  %1971 = vmatprep.subr.bf16.mxu0 0
  %1972 = vmatpush1.bf16.msra.mxu0 0
  %1973 = vmatprep.subr.bf16.mxu0 0
  %1974 = vmatpush1.bf16.msra.mxu0 0
  %1975 = vmatprep.subr.bf16.mxu0 0
  %1976 = vmatpush1.bf16.msra.mxu0 0
  %1977 = vmatprep.subr.bf16.mxu0 0
  %1978 = vmatpush1.bf16.msra.mxu0 0
  %1979 = vmatprep.subr.bf16.mxu0 0
  %1980 = vmatpush1.bf16.msra.mxu0 0
  %1981 = vmatprep.subr.bf16.mxu0 0
  %1982 = vmatpush1.bf16.msra.mxu0 0
  %1983 = vmatprep.subr.bf16.mxu0 0
  %1984 = vmatpush1.bf16.msra.mxu0 0
  %1985 = vmatprep.subr.bf16.mxu0 0
  %1986 = vmatpush1.bf16.msra.mxu0 0
  %1987 = vmatprep.mubr.bf16.mxu0 0
  %1988 = vmatmul.mubr.bf16.gmra.mrb[0].mxu0 %v1857
  %v1989 = vpop.f32.mrb[0].mxu0
  %v1990 = vadd.f32 0.0, %v1989
  %v1991 = vpop.f32.mrb[0].mxu0
  %v1992 = vpop.f32.mrb[0].mxu0
  %v1993 = vadd.f32 0.0, %v1992
  %v1994 = vpop.f32.mrb[0].mxu0
  %1995 = vmatprep.mubr.bf16.mxu0 0
  %1996 = vmatmul.mubr.bf16.gmra.mrb[0].mxu0 %v1860
  %v1997 = vpop.f32.mrb[0].mxu0
  %v1998 = vadd.f32 0.0, %v1997
  %v1999 = vpop.f32.mrb[0].mxu0
  %v2000 = vpop.f32.mrb[0].mxu0
  %v2001 = vadd.f32 0.0, %v2000
  %v2002 = vpop.f32.mrb[0].mxu0
  %2003 = vmatprep.mubr.bf16.mxu0 0
  %2004 = vmatmul.mubr.bf16.gmra.mrb[0].mxu0 %v1863
  %v2005 = vpop.f32.mrb[0].mxu0
  %v2006 = vadd.f32 0.0, %v2005
  %v2007 = vpop.f32.mrb[0].mxu0
  %v2008 = vpop.f32.mrb[0].mxu0
  %v2009 = vadd.f32 0.0, %v2008
  %v2010 = vpop.f32.mrb[0].mxu0
  %2011 = vmatprep.mubr.bf16.mxu0 0
  %2012 = vmatmul.mubr.bf16.gmra.mrb[0].mxu0 %v1866
  %v2013 = vpop.f32.mrb[0].mxu0
  %v2014 = vadd.f32 0.0, %v2013
  %v2015 = vpop.f32.mrb[0].mxu0
  %v2016 = vpop.f32.mrb[0].mxu0
  %v2017 = vadd.f32 0.0, %v2016
  %v2018 = vpop.f32.mrb[0].mxu0
  %2019 = vmatprep.mubr.bf16.mxu0 0
  %2020 = vmatmul.mubr.bf16.gmra.mrb[0].mxu0 %v1869
  %v2021 = vpop.f32.mrb[0].mxu0
  %v2022 = vadd.f32 0.0, %v2021
  %v2023 = vpop.f32.mrb[0].mxu0
  %v2024 = vpop.f32.mrb[0].mxu0
  %v2025 = vadd.f32 0.0, %v2024
  %v2026 = vpop.f32.mrb[0].mxu0
  %2027 = vmatprep.mubr.bf16.mxu0 0
  %2028 = vmatmul.mubr.bf16.gmra.mrb[0].mxu0 %v1872
  %v2029 = vpop.f32.mrb[0].mxu0
  %v2030 = vadd.f32 0.0, %v2029
  %v2031 = vpop.f32.mrb[0].mxu0
  %v2032 = vpop.f32.mrb[0].mxu0
  %v2033 = vadd.f32 0.0, %v2032
  %v2034 = vpop.f32.mrb[0].mxu0
  %2035 = vmatprep.mubr.bf16.mxu0 0
  %2036 = vmatmul.mubr.bf16.gmra.mrb[0].mxu0 %v1875
  %v2037 = vpop.f32.mrb[0].mxu0
  %v2038 = vadd.f32 0.0, %v2037
  %v2039 = vpop.f32.mrb[0].mxu0
  %v2040 = vpop.f32.mrb[0].mxu0
  %v2041 = vadd.f32 0.0, %v2040
  %v2042 = vpop.f32.mrb[0].mxu0
  %2043 = vmatprep.mubr.bf16.mxu0 0
  %2044 = vmatmul.mubr.bf16.gmra.mrb[0].mxu0 %v1878
  %v2045 = vpop.f32.mrb[0].mxu0
  %v2046 = vadd.f32 0.0, %v2045
  %v2047 = vpop.f32.mrb[0].mxu0
  %v2048 = vpop.f32.mrb[0].mxu0
  %v2049 = vadd.f32 0.0, %v2048
  %v2050 = vpop.f32.mrb[0].mxu0
  %2051 = vmatprep.mubr.bf16.mxu0 0
  %2052 = vmatmul.mubr.bf16.gmra.mrb[0].mxu0 %v1881
  %v2053 = vpop.f32.mrb[0].mxu0
  %v2054 = vadd.f32 0.0, %v2053
  %v2055 = vpop.f32.mrb[0].mxu0
  %v2056 = vpop.f32.mrb[0].mxu0
  %v2057 = vadd.f32 0.0, %v2056
  %v2058 = vpop.f32.mrb[0].mxu0
  %2059 = vmatprep.mubr.bf16.mxu0 0
  %2060 = vmatmul.mubr.bf16.gmra.mrb[0].mxu0 %v1884
  %v2061 = vpop.f32.mrb[0].mxu0
  %v2062 = vadd.f32 0.0, %v2061
  %v2063 = vpop.f32.mrb[0].mxu0
  %v2064 = vpop.f32.mrb[0].mxu0
  %v2065 = vadd.f32 0.0, %v2064
  %v2066 = vpop.f32.mrb[0].mxu0
  %2067 = vmatprep.mubr.bf16.mxu0 0
  %2068 = vmatmul.mubr.bf16.gmra.mrb[0].mxu0 %v1887
  %v2069 = vpop.f32.mrb[0].mxu0
  %v2070 = vadd.f32 0.0, %v2069
  %v2071 = vpop.f32.mrb[0].mxu0
  %v2072 = vpop.f32.mrb[0].mxu0
  %v2073 = vadd.f32 0.0, %v2072
  %v2074 = vpop.f32.mrb[0].mxu0
  %2075 = vmatprep.mubr.bf16.mxu0 0
  %2076 = vmatmul.mubr.bf16.gmra.mrb[0].mxu0 %v1890
  %v2077 = vpop.f32.mrb[0].mxu0
  %v2078 = vadd.f32 0.0, %v2077
  %v2079 = vpop.f32.mrb[0].mxu0
  %v2080 = vpop.f32.mrb[0].mxu0
  %v2081 = vadd.f32 0.0, %v2080
  %v2082 = vpop.f32.mrb[0].mxu0
  %2083 = vmatprep.mubr.bf16.mxu0 0
  %2084 = vmatmul.mubr.bf16.gmra.mrb[0].mxu0 %v1893
  %v2085 = vpop.f32.mrb[0].mxu0
  %v2086 = vadd.f32 0.0, %v2085
  %v2087 = vpop.f32.mrb[0].mxu0
  %v2088 = vpop.f32.mrb[0].mxu0
  %v2089 = vadd.f32 0.0, %v2088
  %v2090 = vpop.f32.mrb[0].mxu0
  %2091 = vmatprep.mubr.bf16.mxu0 0
  %2092 = vmatmul.mubr.bf16.gmra.mrb[0].mxu0 %v1896
  %v2093 = vpop.f32.mrb[0].mxu0
  %v2094 = vadd.f32 0.0, %v2093
  %v2095 = vpop.f32.mrb[0].mxu0
  %v2096 = vpop.f32.mrb[0].mxu0
  %v2097 = vadd.f32 0.0, %v2096
  %v2098 = vpop.f32.mrb[0].mxu0
  %2099 = vmatprep.mubr.bf16.mxu0 0
  %2100 = vmatmul.mubr.bf16.gmra.mrb[0].mxu0 %v1899
  %v2101 = vpop.f32.mrb[0].mxu0
  %v2102 = vadd.f32 0.0, %v2101
  %v2103 = vpop.f32.mrb[0].mxu0
  %v2104 = vpop.f32.mrb[0].mxu0
  %v2105 = vadd.f32 0.0, %v2104
  %v2106 = vpop.f32.mrb[0].mxu0
  %2107 = vmatprep.mubr.bf16.mxu0 0
  %2108 = vmatmul.mubr.bf16.gmra.mrb[0].mxu0 %v1902
  %v2109 = vpop.f32.mrb[0].mxu0
  %v2110 = vadd.f32 0.0, %v2109
  %v2111 = vpop.f32.mrb[0].mxu0
  %v2112 = vpop.f32.mrb[0].mxu0
  %v2113 = vadd.f32 0.0, %v2112
  %v2114 = vpop.f32.mrb[0].mxu0
  %2115 = vmatprep.mubr.bf16.mxu0 0
  %2116 = vmatmul.mubr.bf16.gmra.mrb[0].mxu0 %v1905
  %v2117 = vpop.f32.mrb[0].mxu0
  %v2118 = vadd.f32 0.0, %v2117
  %v2119 = vpop.f32.mrb[0].mxu0
  %v2120 = vpop.f32.mrb[0].mxu0
  %v2121 = vadd.f32 0.0, %v2120
  %v2122 = vpop.f32.mrb[0].mxu0
  %2123 = vmatprep.mubr.bf16.mxu0 0
  %2124 = vmatmul.mubr.bf16.gmra.mrb[0].mxu0 %v1908
  %v2125 = vpop.f32.mrb[0].mxu0
  %v2126 = vadd.f32 0.0, %v2125
  %v2127 = vpop.f32.mrb[0].mxu0
  %v2128 = vpop.f32.mrb[0].mxu0
  %v2129 = vadd.f32 0.0, %v2128
  %v2130 = vpop.f32.mrb[0].mxu0
  %2131 = vmatprep.mubr.bf16.mxu0 0
  %2132 = vmatmul.mubr.bf16.gmra.mrb[0].mxu0 %v1911
  %v2133 = vpop.f32.mrb[0].mxu0
  %v2134 = vadd.f32 0.0, %v2133
  %v2135 = vpop.f32.mrb[0].mxu0
  %v2136 = vpop.f32.mrb[0].mxu0
  %v2137 = vadd.f32 0.0, %v2136
  %v2138 = vpop.f32.mrb[0].mxu0
  %2139 = vmatprep.mubr.bf16.mxu0 0
  %2140 = vmatmul.mubr.bf16.gmra.mrb[0].mxu0 %v1914
  %v2141 = vpop.f32.mrb[0].mxu0
  %v2142 = vadd.f32 0.0, %v2141
  %v2143 = vpop.f32.mrb[0].mxu0
  %v2144 = vpop.f32.mrb[0].mxu0
  %v2145 = vadd.f32 0.0, %v2144
  %v2146 = vpop.f32.mrb[0].mxu0
  %2147 = vmatprep.mubr.bf16.mxu0 0
  %2148 = vmatmul.mubr.bf16.gmra.mrb[0].mxu0 %v1917
  %v2149 = vpop.f32.mrb[0].mxu0
  %v2150 = vadd.f32 0.0, %v2149
  %v2151 = vpop.f32.mrb[0].mxu0
  %v2152 = vpop.f32.mrb[0].mxu0
  %v2153 = vadd.f32 0.0, %v2152
  %v2154 = vpop.f32.mrb[0].mxu0
  %2155 = vmatprep.mubr.bf16.mxu0 0
  %2156 = vmatmul.mubr.bf16.gmra.mrb[0].mxu0 %v1920
  %v2157 = vpop.f32.mrb[0].mxu0
  %v2158 = vadd.f32 0.0, %v2157
  %v2159 = vpop.f32.mrb[0].mxu0
  %v2160 = vpop.f32.mrb[0].mxu0
  %v2161 = vadd.f32 0.0, %v2160
  %v2162 = vpop.f32.mrb[0].mxu0
  %2163 = vmatprep.mubr.bf16.mxu0 0
  %2164 = vmatmul.mubr.bf16.gmra.mrb[0].mxu0 %v1923
  %v2165 = vpop.f32.mrb[0].mxu0
  %v2166 = vadd.f32 0.0, %v2165
  %v2167 = vpop.f32.mrb[0].mxu0
  %v2168 = vpop.f32.mrb[0].mxu0
  %v2169 = vadd.f32 0.0, %v2168
  %v2170 = vpop.f32.mrb[0].mxu0
  %2171 = vmatprep.mubr.bf16.mxu0 0
  %2172 = vmatmul.mubr.bf16.gmra.mrb[0].mxu0 %v1926
  %v2173 = vpop.f32.mrb[0].mxu0
  %v2174 = vadd.f32 0.0, %v2173
  %v2175 = vpop.f32.mrb[0].mxu0
  %v2176 = vpop.f32.mrb[0].mxu0
  %v2177 = vadd.f32 0.0, %v2176
  %v2178 = vpop.f32.mrb[0].mxu0
  %2179 = vmatprep.mubr.bf16.mxu0 0
  %2180 = vmatmul.mubr.bf16.gmra.mrb[0].mxu0 %v1929
  %v2181 = vpop.f32.mrb[0].mxu0
  %v2182 = vadd.f32 0.0, %v2181
  %v2183 = vpop.f32.mrb[0].mxu0
  %v2184 = vpop.f32.mrb[0].mxu0
  %v2185 = vadd.f32 0.0, %v2184
  %v2186 = vpop.f32.mrb[0].mxu0
  %2187 = vmatprep.mubr.bf16.mxu0 0
  %2188 = vmatmul.mubr.bf16.gmra.mrb[0].mxu0 %v1932
  %v2189 = vpop.f32.mrb[0].mxu0
  %v2190 = vadd.f32 0.0, %v2189
  %v2191 = vpop.f32.mrb[0].mxu0
  %v2192 = vpop.f32.mrb[0].mxu0
  %v2193 = vadd.f32 0.0, %v2192
  %v2194 = vpop.f32.mrb[0].mxu0
  %2195 = vmatprep.mubr.bf16.mxu0 0
  %2196 = vmatmul.mubr.bf16.gmra.mrb[0].mxu0 %v1935
  %v2197 = vpop.f32.mrb[0].mxu0
  %v2198 = vadd.f32 0.0, %v2197
  %v2199 = vpop.f32.mrb[0].mxu0
  %v2200 = vpop.f32.mrb[0].mxu0
  %v2201 = vadd.f32 0.0, %v2200
  %v2202 = vpop.f32.mrb[0].mxu0
  %2203 = vmatprep.mubr.bf16.mxu0 0
  %2204 = vmatmul.mubr.bf16.gmra.mrb[0].mxu0 %v1938
  %v2205 = vpop.f32.mrb[0].mxu0
  %v2206 = vadd.f32 0.0, %v2205
  %v2207 = vpop.f32.mrb[0].mxu0
  %v2208 = vpop.f32.mrb[0].mxu0
  %v2209 = vadd.f32 0.0, %v2208
  %v2210 = vpop.f32.mrb[0].mxu0
  %2211 = vmatprep.mubr.bf16.mxu0 0
  %2212 = vmatmul.mubr.bf16.gmra.mrb[0].mxu0 %v1941
  %v2213 = vpop.f32.mrb[0].mxu0
  %v2214 = vadd.f32 0.0, %v2213
  %v2215 = vpop.f32.mrb[0].mxu0
  %v2216 = vpop.f32.mrb[0].mxu0
  %v2217 = vadd.f32 0.0, %v2216
  %v2218 = vpop.f32.mrb[0].mxu0
  %2219 = vmatprep.mubr.bf16.mxu0 0
  %2220 = vmatmul.mubr.bf16.gmra.mrb[0].mxu0 %v1944
  %v2221 = vpop.f32.mrb[0].mxu0
  %v2222 = vadd.f32 0.0, %v2221
  %v2223 = vpop.f32.mrb[0].mxu0
  %v2224 = vpop.f32.mrb[0].mxu0
  %v2225 = vadd.f32 0.0, %v2224
  %v2226 = vpop.f32.mrb[0].mxu0
  %2227 = vmatprep.mubr.bf16.mxu0 0
  %2228 = vmatmul.mubr.bf16.gmra.mrb[0].mxu0 %v1947
  %v2229 = vpop.f32.mrb[0].mxu0
  %v2230 = vadd.f32 0.0, %v2229
  %v2231 = vpop.f32.mrb[0].mxu0
  %v2232 = vpop.f32.mrb[0].mxu0
  %v2233 = vadd.f32 0.0, %v2232
  %v2234 = vpop.f32.mrb[0].mxu0
  %2235 = vmatprep.mubr.bf16.mxu0 0
  %2236 = vmatmul.mubr.bf16.gmra.mrb[0].mxu0 %v1950
  %v2237 = vpop.f32.mrb[0].mxu0
  %v2238 = vadd.f32 0.0, %v2237
  %v2239 = vpop.f32.mrb[0].mxu0
  %v2240 = vpop.f32.mrb[0].mxu0
  %v2241 = vadd.f32 0.0, %v2240
  %v2242 = vpop.f32.mrb[0].mxu0
  %2243 = vdwg.mxu0
  %v2244 = vadd.f32 %v1694, %v1990
  %v2245 = vadd.f32 %v1695, %v1993
  %v2246 = vadd.f32 %v1696, %v1998
  %v2247 = vadd.f32 %v1697, %v2001
  %v2248 = vadd.f32 %v1698, %v2006
  %v2249 = vadd.f32 %v1699, %v2009
  %v2250 = vadd.f32 %v1700, %v2014
  %v2251 = vadd.f32 %v1701, %v2017
  %v2252 = vadd.f32 %v1702, %v2022
  %v2253 = vadd.f32 %v1703, %v2025
  %v2254 = vadd.f32 %v1704, %v2030
  %v2255 = vadd.f32 %v1705, %v2033
  %v2256 = vadd.f32 %v1706, %v2038
  %v2257 = vadd.f32 %v1707, %v2041
  %v2258 = vadd.f32 %v1708, %v2046
  %v2259 = vadd.f32 %v1709, %v2049
  %v2260 = vadd.f32 %v1710, %v2054
  %v2261 = vadd.f32 %v1711, %v2057
  %v2262 = vadd.f32 %v1712, %v2062
  %v2263 = vadd.f32 %v1713, %v2065
  %v2264 = vadd.f32 %v1714, %v2070
  %v2265 = vadd.f32 %v1715, %v2073
  %v2266 = vadd.f32 %v1716, %v2078
  %v2267 = vadd.f32 %v1717, %v2081
  %v2268 = vadd.f32 %v1718, %v2086
  %v2269 = vadd.f32 %v1719, %v2089
  %v2270 = vadd.f32 %v1720, %v2094
  %v2271 = vadd.f32 %v1721, %v2097
  %v2272 = vadd.f32 %v1722, %v2102
  %v2273 = vadd.f32 %v1723, %v2105
  %v2274 = vadd.f32 %v1724, %v2110
  %v2275 = vadd.f32 %v1725, %v2113
  %v2276 = vadd.f32 %v1726, %v2118
  %v2277 = vadd.f32 %v1727, %v2121
  %v2278 = vadd.f32 %v1728, %v2126
  %v2279 = vadd.f32 %v1729, %v2129
  %v2280 = vadd.f32 %v1730, %v2134
  %v2281 = vadd.f32 %v1731, %v2137
  %v2282 = vadd.f32 %v1732, %v2142
  %v2283 = vadd.f32 %v1733, %v2145
  %v2284 = vadd.f32 %v1734, %v2150
  %v2285 = vadd.f32 %v1735, %v2153
  %v2286 = vadd.f32 %v1736, %v2158
  %v2287 = vadd.f32 %v1737, %v2161
  %v2288 = vadd.f32 %v1738, %v2166
  %v2289 = vadd.f32 %v1739, %v2169
  %v2290 = vadd.f32 %v1740, %v2174
  %v2291 = vadd.f32 %v1741, %v2177
  %v2292 = vadd.f32 %v1742, %v2182
  %v2293 = vadd.f32 %v1743, %v2185
  %v2294 = vadd.f32 %v1744, %v2190
  %v2295 = vadd.f32 %v1745, %v2193
  %v2296 = vadd.f32 %v1746, %v2198
  %v2297 = vadd.f32 %v1747, %v2201
  %v2298 = vadd.f32 %v1748, %v2206
  %v2299 = vadd.f32 %v1749, %v2209
  %v2300 = vadd.f32 %v1750, %v2214
  %v2301 = vadd.f32 %v1751, %v2217
  %v2302 = vadd.f32 %v1752, %v2222
  %v2303 = vadd.f32 %v1753, %v2225
  %v2304 = vadd.f32 %v1754, %v2230
  %v2305 = vadd.f32 %v1755, %v2233
  %v2306 = vadd.f32 %v1756, %v2238
  %v2307 = vadd.f32 %v1757, %v2241
  %v2308 = vld [vmem:[%s42 + $0x1] sm:$0xff]
  %v2309 = vld [vmem:[%s42 + $0x9] sm:$0xff]
  %v2310 = vld [vmem:[%s42 + $0x19] sm:$0xff]
  %v2311 = vld [vmem:[%s42 + $0x21] sm:$0xff]
  %v2312 = vld [vmem:[%s42 + $0x31] sm:$0xff]
  %v2313 = vld [vmem:[%s42 + $0x39] sm:$0xff]
  %v2314 = vld [vmem:[%s42 + $0x49] sm:$0xff]
  %v2315 = vld [vmem:[%s42 + $0x51] sm:$0xff]
  %v2316 = vld [vmem:[%s42 + $0x61] sm:$0xff]
  %v2317 = vld [vmem:[%s42 + $0x69] sm:$0xff]
  %v2318 = vld [vmem:[%s42 + $0x79] sm:$0xff]
  %v2319 = vld [vmem:[%s42 + $0x81] sm:$0xff]
  %v2320 = vld [vmem:[%s42 + $0x91] sm:$0xff]
  %v2321 = vld [vmem:[%s42 + $0x99] sm:$0xff]
  %v2322 = vld [vmem:[%s42 + $0xa9] sm:$0xff]
  %v2323 = vld [vmem:[%s42 + $0xb1] sm:$0xff]
  %v2324 = vld [vmem:[%s42 + $0xc1] sm:$0xff]
  %v2325 = vld [vmem:[%s42 + $0xc9] sm:$0xff]
  %v2326 = vld [vmem:[%s42 + $0xd9] sm:$0xff]
  %v2327 = vld [vmem:[%s42 + $0xe1] sm:$0xff]
  %v2328 = vld [vmem:[%s42 + $0xf1] sm:$0xff]
  %v2329 = vld [vmem:[%s42 + $0xf9] sm:$0xff]
  %v2330 = vld [vmem:[%s42 + $0x109] sm:$0xff]
  %v2331 = vld [vmem:[%s42 + $0x111] sm:$0xff]
  %v2332 = vld [vmem:[%s42 + $0x121] sm:$0xff]
  %v2333 = vld [vmem:[%s42 + $0x129] sm:$0xff]
  %v2334 = vld [vmem:[%s42 + $0x139] sm:$0xff]
  %v2335 = vld [vmem:[%s42 + $0x141] sm:$0xff]
  %v2336 = vld [vmem:[%s42 + $0x151] sm:$0xff]
  %v2337 = vld [vmem:[%s42 + $0x159] sm:$0xff]
  %v2338 = vld [vmem:[%s42 + $0x169] sm:$0xff]
  %v2339 = vld [vmem:[%s42 + $0x171] sm:$0xff]
  %v2340 = vld [vmem:[%s42 + $0x1b1] sm:$0xff]
  %v2341 = vld [vmem:[%s42 + $0x1b9] sm:$0xff]
  %v2342 = vld [vmem:[%s42 + $0x1c9] sm:$0xff]
  %v2343 = vld [vmem:[%s42 + $0x1d1] sm:$0xff]
  %v2344 = vld [vmem:[%s42 + $0x1e1] sm:$0xff]
  %v2345 = vld [vmem:[%s42 + $0x1e9] sm:$0xff]
  %v2346 = vld [vmem:[%s42 + $0x1f9] sm:$0xff]
  %v2347 = vld [vmem:[%s42 + $0x201] sm:$0xff]
  %v2348 = vld [vmem:[%s42 + $0x211] sm:$0xff]
  %v2349 = vld [vmem:[%s42 + $0x219] sm:$0xff]
  %v2350 = vld [vmem:[%s42 + $0x229] sm:$0xff]
  %v2351 = vld [vmem:[%s42 + $0x231] sm:$0xff]
  %v2352 = vld [vmem:[%s42 + $0x241] sm:$0xff]
  %v2353 = vld [vmem:[%s42 + $0x249] sm:$0xff]
  %v2354 = vld [vmem:[%s42 + $0x259] sm:$0xff]
  %v2355 = vld [vmem:[%s42 + $0x261] sm:$0xff]
  %v2356 = vld [vmem:[%s42 + $0x271] sm:$0xff]
  %v2357 = vld [vmem:[%s42 + $0x279] sm:$0xff]
  %v2358 = vld [vmem:[%s42 + $0x289] sm:$0xff]
  %v2359 = vld [vmem:[%s42 + $0x291] sm:$0xff]
  %v2360 = vld [vmem:[%s42 + $0x2a1] sm:$0xff]
  %v2361 = vld [vmem:[%s42 + $0x2a9] sm:$0xff]
  %v2362 = vld [vmem:[%s42 + $0x2b9] sm:$0xff]
  %v2363 = vld [vmem:[%s42 + $0x2c1] sm:$0xff]
  %v2364 = vld [vmem:[%s42 + $0x2d1] sm:$0xff]
  %v2365 = vld [vmem:[%s42 + $0x2d9] sm:$0xff]
  %v2366 = vld [vmem:[%s42 + $0x2e9] sm:$0xff]
  %v2367 = vld [vmem:[%s42 + $0x2f1] sm:$0xff]
  %v2368 = vld [vmem:[%s42 + $0x301] sm:$0xff]
  %v2369 = vld [vmem:[%s42 + $0x309] sm:$0xff]
  %v2370 = vld [vmem:[%s42 + $0x319] sm:$0xff]
  %v2371 = vld [vmem:[%s42 + $0x321] sm:$0xff]
  %v2372 = vpack.c.bf16 %v2309, %v2308
  %v2373 = vpack.c.bf16 %v2311, %v2310
  %v2374 = vpack.c.bf16 %v2313, %v2312
  %v2375 = vpack.c.bf16 %v2315, %v2314
  %v2376 = vpack.c.bf16 %v2317, %v2316
  %v2377 = vpack.c.bf16 %v2319, %v2318
  %v2378 = vpack.c.bf16 %v2321, %v2320
  %v2379 = vpack.c.bf16 %v2323, %v2322
  %v2380 = vpack.c.bf16 %v2325, %v2324
  %v2381 = vpack.c.bf16 %v2327, %v2326
  %v2382 = vpack.c.bf16 %v2329, %v2328
  %v2383 = vpack.c.bf16 %v2331, %v2330
  %v2384 = vpack.c.bf16 %v2333, %v2332
  %v2385 = vpack.c.bf16 %v2335, %v2334
  %v2386 = vpack.c.bf16 %v2337, %v2336
  %v2387 = vpack.c.bf16 %v2339, %v2338
  %v2388 = vpack.c.bf16 %v2341, %v2340
  %v2389 = vpack.c.bf16 %v2343, %v2342
  %v2390 = vpack.c.bf16 %v2345, %v2344
  %v2391 = vpack.c.bf16 %v2347, %v2346
  %v2392 = vpack.c.bf16 %v2349, %v2348
  %v2393 = vpack.c.bf16 %v2351, %v2350
  %v2394 = vpack.c.bf16 %v2353, %v2352
  %v2395 = vpack.c.bf16 %v2355, %v2354
  %v2396 = vpack.c.bf16 %v2357, %v2356
  %v2397 = vpack.c.bf16 %v2359, %v2358
  %v2398 = vpack.c.bf16 %v2361, %v2360
  %v2399 = vpack.c.bf16 %v2363, %v2362
  %v2400 = vpack.c.bf16 %v2365, %v2364
  %v2401 = vpack.c.bf16 %v2367, %v2366
  %v2402 = vpack.c.bf16 %v2369, %v2368
  %v2403 = vpack.c.bf16 %v2371, %v2370
  %s2404 = scalar_lea.vmem %s1, 8
  %v2405 = vld [vmem:[%s2404] sm:$0x3]
  %v2407 = vsel %vm27, %v2372, 0
  %v2410 = vsel %vm27, %v2373, 0
  %v2413 = vsel %vm27, %v2374, 0
  %v2416 = vsel %vm27, %v2375, 0
  %v2419 = vsel %vm27, %v2376, 0
  %v2422 = vsel %vm27, %v2377, 0
  %v2425 = vsel %vm27, %v2378, 0
  %v2428 = vsel %vm27, %v2379, 0
  %v2431 = vsel %vm27, %v2380, 0
  %v2434 = vsel %vm27, %v2381, 0
  %v2437 = vsel %vm27, %v2382, 0
  %v2440 = vsel %vm27, %v2383, 0
  %v2443 = vsel %vm27, %v2384, 0
  %v2446 = vsel %vm27, %v2385, 0
  %v2449 = vsel %vm27, %v2386, 0
  %v2452 = vsel %vm27, %v2387, 0
  %v2455 = vsel %vm27, %v2388, 0
  %v2458 = vsel %vm27, %v2389, 0
  %v2461 = vsel %vm27, %v2390, 0
  %v2464 = vsel %vm27, %v2391, 0
  %v2467 = vsel %vm27, %v2392, 0
  %v2470 = vsel %vm27, %v2393, 0
  %v2473 = vsel %vm27, %v2394, 0
  %v2476 = vsel %vm27, %v2395, 0
  %v2479 = vsel %vm27, %v2396, 0
  %v2482 = vsel %vm27, %v2397, 0
  %v2485 = vsel %vm27, %v2398, 0
  %v2488 = vsel %vm27, %v2399, 0
  %v2491 = vsel %vm27, %v2400, 0
  %v2494 = vsel %vm27, %v2401, 0
  %v2497 = vsel %vm27, %v2402, 0
  %v2500 = vsel %vm27, %v2403, 0
  %v2503 = vsel %vm527, %v2405, 0
  %2505 = vmatprep.subr.bf16.mxu0 0
  %2506 = vmatpush1.bf16.msra.mxu0 %v2503
  %2507 = vmatprep.subr.bf16.mxu0 0
  %2508 = vmatpush1.bf16.msra.mxu0 0
  %2509 = vmatprep.subr.bf16.mxu0 0
  %2510 = vmatpush1.bf16.msra.mxu0 0
  %2511 = vmatprep.subr.bf16.mxu0 0
  %2512 = vmatpush1.bf16.msra.mxu0 0
  %2513 = vmatprep.subr.bf16.mxu0 0
  %2514 = vmatpush1.bf16.msra.mxu0 0
  %2515 = vmatprep.subr.bf16.mxu0 0
  %2516 = vmatpush1.bf16.msra.mxu0 0
  %2517 = vmatprep.subr.bf16.mxu0 0
  %2518 = vmatpush1.bf16.msra.mxu0 0
  %2519 = vmatprep.subr.bf16.mxu0 0
  %2520 = vmatpush1.bf16.msra.mxu0 0
  %2521 = vmatprep.subr.bf16.mxu0 0
  %2522 = vmatpush1.bf16.msra.mxu0 0
  %2523 = vmatprep.subr.bf16.mxu0 0
  %2524 = vmatpush1.bf16.msra.mxu0 0
  %2525 = vmatprep.subr.bf16.mxu0 0
  %2526 = vmatpush1.bf16.msra.mxu0 0
  %2527 = vmatprep.subr.bf16.mxu0 0
  %2528 = vmatpush1.bf16.msra.mxu0 0
  %2529 = vmatprep.subr.bf16.mxu0 0
  %2530 = vmatpush1.bf16.msra.mxu0 0
  %2531 = vmatprep.subr.bf16.mxu0 0
  %2532 = vmatpush1.bf16.msra.mxu0 0
  %2533 = vmatprep.subr.bf16.mxu0 0
  %2534 = vmatpush1.bf16.msra.mxu0 0
  %2535 = vmatprep.subr.bf16.mxu0 0
  %2536 = vmatpush1.bf16.msra.mxu0 0
  %2537 = vmatprep.mubr.bf16.mxu0 0
  %2538 = vmatmul.mubr.bf16.gmra.mrb[0].mxu0 %v2407
  %v2539 = vpop.f32.mrb[0].mxu0
  %v2540 = vadd.f32 0.0, %v2539
  %v2541 = vpop.f32.mrb[0].mxu0
  %v2542 = vpop.f32.mrb[0].mxu0
  %v2543 = vadd.f32 0.0, %v2542
  %v2544 = vpop.f32.mrb[0].mxu0
  %2545 = vmatprep.mubr.bf16.mxu0 0
  %2546 = vmatmul.mubr.bf16.gmra.mrb[0].mxu0 %v2410
  %v2547 = vpop.f32.mrb[0].mxu0
  %v2548 = vadd.f32 0.0, %v2547
  %v2549 = vpop.f32.mrb[0].mxu0
  %v2550 = vpop.f32.mrb[0].mxu0
  %v2551 = vadd.f32 0.0, %v2550
  %v2552 = vpop.f32.mrb[0].mxu0
  %2553 = vmatprep.mubr.bf16.mxu0 0
  %2554 = vmatmul.mubr.bf16.gmra.mrb[0].mxu0 %v2413
  %v2555 = vpop.f32.mrb[0].mxu0
  %v2556 = vadd.f32 0.0, %v2555
  %v2557 = vpop.f32.mrb[0].mxu0
  %v2558 = vpop.f32.mrb[0].mxu0
  %v2559 = vadd.f32 0.0, %v2558
  %v2560 = vpop.f32.mrb[0].mxu0
  %2561 = vmatprep.mubr.bf16.mxu0 0
  %2562 = vmatmul.mubr.bf16.gmra.mrb[0].mxu0 %v2416
  %v2563 = vpop.f32.mrb[0].mxu0
  %v2564 = vadd.f32 0.0, %v2563
  %v2565 = vpop.f32.mrb[0].mxu0
  %v2566 = vpop.f32.mrb[0].mxu0
  %v2567 = vadd.f32 0.0, %v2566
  %v2568 = vpop.f32.mrb[0].mxu0
  %2569 = vmatprep.mubr.bf16.mxu0 0
  %2570 = vmatmul.mubr.bf16.gmra.mrb[0].mxu0 %v2419
  %v2571 = vpop.f32.mrb[0].mxu0
  %v2572 = vadd.f32 0.0, %v2571
  %v2573 = vpop.f32.mrb[0].mxu0
  %v2574 = vpop.f32.mrb[0].mxu0
  %v2575 = vadd.f32 0.0, %v2574
  %v2576 = vpop.f32.mrb[0].mxu0
  %2577 = vmatprep.mubr.bf16.mxu0 0
  %2578 = vmatmul.mubr.bf16.gmra.mrb[0].mxu0 %v2422
  %v2579 = vpop.f32.mrb[0].mxu0
  %v2580 = vadd.f32 0.0, %v2579
  %v2581 = vpop.f32.mrb[0].mxu0
  %v2582 = vpop.f32.mrb[0].mxu0
  %v2583 = vadd.f32 0.0, %v2582
  %v2584 = vpop.f32.mrb[0].mxu0
  %2585 = vmatprep.mubr.bf16.mxu0 0
  %2586 = vmatmul.mubr.bf16.gmra.mrb[0].mxu0 %v2425
  %v2587 = vpop.f32.mrb[0].mxu0
  %v2588 = vadd.f32 0.0, %v2587
  %v2589 = vpop.f32.mrb[0].mxu0
  %v2590 = vpop.f32.mrb[0].mxu0
  %v2591 = vadd.f32 0.0, %v2590
  %v2592 = vpop.f32.mrb[0].mxu0
  %2593 = vmatprep.mubr.bf16.mxu0 0
  %2594 = vmatmul.mubr.bf16.gmra.mrb[0].mxu0 %v2428
  %v2595 = vpop.f32.mrb[0].mxu0
  %v2596 = vadd.f32 0.0, %v2595
  %v2597 = vpop.f32.mrb[0].mxu0
  %v2598 = vpop.f32.mrb[0].mxu0
  %v2599 = vadd.f32 0.0, %v2598
  %v2600 = vpop.f32.mrb[0].mxu0
  %2601 = vmatprep.mubr.bf16.mxu0 0
  %2602 = vmatmul.mubr.bf16.gmra.mrb[0].mxu0 %v2431
  %v2603 = vpop.f32.mrb[0].mxu0
  %v2604 = vadd.f32 0.0, %v2603
  %v2605 = vpop.f32.mrb[0].mxu0
  %v2606 = vpop.f32.mrb[0].mxu0
  %v2607 = vadd.f32 0.0, %v2606
  %v2608 = vpop.f32.mrb[0].mxu0
  %2609 = vmatprep.mubr.bf16.mxu0 0
  %2610 = vmatmul.mubr.bf16.gmra.mrb[0].mxu0 %v2434
  %v2611 = vpop.f32.mrb[0].mxu0
  %v2612 = vadd.f32 0.0, %v2611
  %v2613 = vpop.f32.mrb[0].mxu0
  %v2614 = vpop.f32.mrb[0].mxu0
  %v2615 = vadd.f32 0.0, %v2614
  %v2616 = vpop.f32.mrb[0].mxu0
  %2617 = vmatprep.mubr.bf16.mxu0 0
  %2618 = vmatmul.mubr.bf16.gmra.mrb[0].mxu0 %v2437
  %v2619 = vpop.f32.mrb[0].mxu0
  %v2620 = vadd.f32 0.0, %v2619
  %v2621 = vpop.f32.mrb[0].mxu0
  %v2622 = vpop.f32.mrb[0].mxu0
  %v2623 = vadd.f32 0.0, %v2622
  %v2624 = vpop.f32.mrb[0].mxu0
  %2625 = vmatprep.mubr.bf16.mxu0 0
  %2626 = vmatmul.mubr.bf16.gmra.mrb[0].mxu0 %v2440
  %v2627 = vpop.f32.mrb[0].mxu0
  %v2628 = vadd.f32 0.0, %v2627
  %v2629 = vpop.f32.mrb[0].mxu0
  %v2630 = vpop.f32.mrb[0].mxu0
  %v2631 = vadd.f32 0.0, %v2630
  %v2632 = vpop.f32.mrb[0].mxu0
  %2633 = vmatprep.mubr.bf16.mxu0 0
  %2634 = vmatmul.mubr.bf16.gmra.mrb[0].mxu0 %v2443
  %v2635 = vpop.f32.mrb[0].mxu0
  %v2636 = vadd.f32 0.0, %v2635
  %v2637 = vpop.f32.mrb[0].mxu0
  %v2638 = vpop.f32.mrb[0].mxu0
  %v2639 = vadd.f32 0.0, %v2638
  %v2640 = vpop.f32.mrb[0].mxu0
  %2641 = vmatprep.mubr.bf16.mxu0 0
  %2642 = vmatmul.mubr.bf16.gmra.mrb[0].mxu0 %v2446
  %v2643 = vpop.f32.mrb[0].mxu0
  %v2644 = vadd.f32 0.0, %v2643
  %v2645 = vpop.f32.mrb[0].mxu0
  %v2646 = vpop.f32.mrb[0].mxu0
  %v2647 = vadd.f32 0.0, %v2646
  %v2648 = vpop.f32.mrb[0].mxu0
  %2649 = vmatprep.mubr.bf16.mxu0 0
  %2650 = vmatmul.mubr.bf16.gmra.mrb[0].mxu0 %v2449
  %v2651 = vpop.f32.mrb[0].mxu0
  %v2652 = vadd.f32 0.0, %v2651
  %v2653 = vpop.f32.mrb[0].mxu0
  %v2654 = vpop.f32.mrb[0].mxu0
  %v2655 = vadd.f32 0.0, %v2654
  %v2656 = vpop.f32.mrb[0].mxu0
  %2657 = vmatprep.mubr.bf16.mxu0 0
  %2658 = vmatmul.mubr.bf16.gmra.mrb[0].mxu0 %v2452
  %v2659 = vpop.f32.mrb[0].mxu0
  %v2660 = vadd.f32 0.0, %v2659
  %v2661 = vpop.f32.mrb[0].mxu0
  %v2662 = vpop.f32.mrb[0].mxu0
  %v2663 = vadd.f32 0.0, %v2662
  %v2664 = vpop.f32.mrb[0].mxu0
  %2665 = vmatprep.mubr.bf16.mxu0 0
  %2666 = vmatmul.mubr.bf16.gmra.mrb[0].mxu0 %v2455
  %v2667 = vpop.f32.mrb[0].mxu0
  %v2668 = vadd.f32 0.0, %v2667
  %v2669 = vpop.f32.mrb[0].mxu0
  %v2670 = vpop.f32.mrb[0].mxu0
  %v2671 = vadd.f32 0.0, %v2670
  %v2672 = vpop.f32.mrb[0].mxu0
  %2673 = vmatprep.mubr.bf16.mxu0 0
  %2674 = vmatmul.mubr.bf16.gmra.mrb[0].mxu0 %v2458
  %v2675 = vpop.f32.mrb[0].mxu0
  %v2676 = vadd.f32 0.0, %v2675
  %v2677 = vpop.f32.mrb[0].mxu0
  %v2678 = vpop.f32.mrb[0].mxu0
  %v2679 = vadd.f32 0.0, %v2678
  %v2680 = vpop.f32.mrb[0].mxu0
  %2681 = vmatprep.mubr.bf16.mxu0 0
  %2682 = vmatmul.mubr.bf16.gmra.mrb[0].mxu0 %v2461
  %v2683 = vpop.f32.mrb[0].mxu0
  %v2684 = vadd.f32 0.0, %v2683
  %v2685 = vpop.f32.mrb[0].mxu0
  %v2686 = vpop.f32.mrb[0].mxu0
  %v2687 = vadd.f32 0.0, %v2686
  %v2688 = vpop.f32.mrb[0].mxu0
  %2689 = vmatprep.mubr.bf16.mxu0 0
  %2690 = vmatmul.mubr.bf16.gmra.mrb[0].mxu0 %v2464
  %v2691 = vpop.f32.mrb[0].mxu0
  %v2692 = vadd.f32 0.0, %v2691
  %v2693 = vpop.f32.mrb[0].mxu0
  %v2694 = vpop.f32.mrb[0].mxu0
  %v2695 = vadd.f32 0.0, %v2694
  %v2696 = vpop.f32.mrb[0].mxu0
  %2697 = vmatprep.mubr.bf16.mxu0 0
  %2698 = vmatmul.mubr.bf16.gmra.mrb[0].mxu0 %v2467
  %v2699 = vpop.f32.mrb[0].mxu0
  %v2700 = vadd.f32 0.0, %v2699
  %v2701 = vpop.f32.mrb[0].mxu0
  %v2702 = vpop.f32.mrb[0].mxu0
  %v2703 = vadd.f32 0.0, %v2702
  %v2704 = vpop.f32.mrb[0].mxu0
  %2705 = vmatprep.mubr.bf16.mxu0 0
  %2706 = vmatmul.mubr.bf16.gmra.mrb[0].mxu0 %v2470
  %v2707 = vpop.f32.mrb[0].mxu0
  %v2708 = vadd.f32 0.0, %v2707
  %v2709 = vpop.f32.mrb[0].mxu0
  %v2710 = vpop.f32.mrb[0].mxu0
  %v2711 = vadd.f32 0.0, %v2710
  %v2712 = vpop.f32.mrb[0].mxu0
  %2713 = vmatprep.mubr.bf16.mxu0 0
  %2714 = vmatmul.mubr.bf16.gmra.mrb[0].mxu0 %v2473
  %v2715 = vpop.f32.mrb[0].mxu0
  %v2716 = vadd.f32 0.0, %v2715
  %v2717 = vpop.f32.mrb[0].mxu0
  %v2718 = vpop.f32.mrb[0].mxu0
  %v2719 = vadd.f32 0.0, %v2718
  %v2720 = vpop.f32.mrb[0].mxu0
  %2721 = vmatprep.mubr.bf16.mxu0 0
  %2722 = vmatmul.mubr.bf16.gmra.mrb[0].mxu0 %v2476
  %v2723 = vpop.f32.mrb[0].mxu0
  %v2724 = vadd.f32 0.0, %v2723
  %v2725 = vpop.f32.mrb[0].mxu0
  %v2726 = vpop.f32.mrb[0].mxu0
  %v2727 = vadd.f32 0.0, %v2726
  %v2728 = vpop.f32.mrb[0].mxu0
  %2729 = vmatprep.mubr.bf16.mxu0 0
  %2730 = vmatmul.mubr.bf16.gmra.mrb[0].mxu0 %v2479
  %v2731 = vpop.f32.mrb[0].mxu0
  %v2732 = vadd.f32 0.0, %v2731
  %v2733 = vpop.f32.mrb[0].mxu0
  %v2734 = vpop.f32.mrb[0].mxu0
  %v2735 = vadd.f32 0.0, %v2734
  %v2736 = vpop.f32.mrb[0].mxu0
  %2737 = vmatprep.mubr.bf16.mxu0 0
  %2738 = vmatmul.mubr.bf16.gmra.mrb[0].mxu0 %v2482
  %v2739 = vpop.f32.mrb[0].mxu0
  %v2740 = vadd.f32 0.0, %v2739
  %v2741 = vpop.f32.mrb[0].mxu0
  %v2742 = vpop.f32.mrb[0].mxu0
  %v2743 = vadd.f32 0.0, %v2742
  %v2744 = vpop.f32.mrb[0].mxu0
  %2745 = vmatprep.mubr.bf16.mxu0 0
  %2746 = vmatmul.mubr.bf16.gmra.mrb[0].mxu0 %v2485
  %v2747 = vpop.f32.mrb[0].mxu0
  %v2748 = vadd.f32 0.0, %v2747
  %v2749 = vpop.f32.mrb[0].mxu0
  %v2750 = vpop.f32.mrb[0].mxu0
  %v2751 = vadd.f32 0.0, %v2750
  %v2752 = vpop.f32.mrb[0].mxu0
  %2753 = vmatprep.mubr.bf16.mxu0 0
  %2754 = vmatmul.mubr.bf16.gmra.mrb[0].mxu0 %v2488
  %v2755 = vpop.f32.mrb[0].mxu0
  %v2756 = vadd.f32 0.0, %v2755
  %v2757 = vpop.f32.mrb[0].mxu0
  %v2758 = vpop.f32.mrb[0].mxu0
  %v2759 = vadd.f32 0.0, %v2758
  %v2760 = vpop.f32.mrb[0].mxu0
  %2761 = vmatprep.mubr.bf16.mxu0 0
  %2762 = vmatmul.mubr.bf16.gmra.mrb[0].mxu0 %v2491
  %v2763 = vpop.f32.mrb[0].mxu0
  %v2764 = vadd.f32 0.0, %v2763
  %v2765 = vpop.f32.mrb[0].mxu0
  %v2766 = vpop.f32.mrb[0].mxu0
  %v2767 = vadd.f32 0.0, %v2766
  %v2768 = vpop.f32.mrb[0].mxu0
  %2769 = vmatprep.mubr.bf16.mxu0 0
  %2770 = vmatmul.mubr.bf16.gmra.mrb[0].mxu0 %v2494
  %v2771 = vpop.f32.mrb[0].mxu0
  %v2772 = vadd.f32 0.0, %v2771
  %v2773 = vpop.f32.mrb[0].mxu0
  %v2774 = vpop.f32.mrb[0].mxu0
  %v2775 = vadd.f32 0.0, %v2774
  %v2776 = vpop.f32.mrb[0].mxu0
  %2777 = vmatprep.mubr.bf16.mxu0 0
  %2778 = vmatmul.mubr.bf16.gmra.mrb[0].mxu0 %v2497
  %v2779 = vpop.f32.mrb[0].mxu0
  %v2780 = vadd.f32 0.0, %v2779
  %v2781 = vpop.f32.mrb[0].mxu0
  %v2782 = vpop.f32.mrb[0].mxu0
  %v2783 = vadd.f32 0.0, %v2782
  %v2784 = vpop.f32.mrb[0].mxu0
  %2785 = vmatprep.mubr.bf16.mxu0 0
  %2786 = vmatmul.mubr.bf16.gmra.mrb[0].mxu0 %v2500
  %v2787 = vpop.f32.mrb[0].mxu0
  %v2788 = vadd.f32 0.0, %v2787
  %v2789 = vpop.f32.mrb[0].mxu0
  %v2790 = vpop.f32.mrb[0].mxu0
  %v2791 = vadd.f32 0.0, %v2790
  %v2792 = vpop.f32.mrb[0].mxu0
  %2793 = vdwg.mxu0
  %v2794 = vadd.f32 %v2244, %v2540
  %v2795 = vadd.f32 %v2245, %v2543
  %v2796 = vadd.f32 %v2246, %v2548
  %v2797 = vadd.f32 %v2247, %v2551
  %v2798 = vadd.f32 %v2248, %v2556
  %v2799 = vadd.f32 %v2249, %v2559
  %v2800 = vadd.f32 %v2250, %v2564
  %v2801 = vadd.f32 %v2251, %v2567
  %v2802 = vadd.f32 %v2252, %v2572
  %v2803 = vadd.f32 %v2253, %v2575
  %v2804 = vadd.f32 %v2254, %v2580
  %v2805 = vadd.f32 %v2255, %v2583
  %v2806 = vadd.f32 %v2256, %v2588
  %v2807 = vadd.f32 %v2257, %v2591
  %v2808 = vadd.f32 %v2258, %v2596
  %v2809 = vadd.f32 %v2259, %v2599
  %v2810 = vadd.f32 %v2260, %v2604
  %v2811 = vadd.f32 %v2261, %v2607
  %v2812 = vadd.f32 %v2262, %v2612
  %v2813 = vadd.f32 %v2263, %v2615
  %v2814 = vadd.f32 %v2264, %v2620
  %v2815 = vadd.f32 %v2265, %v2623
  %v2816 = vadd.f32 %v2266, %v2628
  %v2817 = vadd.f32 %v2267, %v2631
  %v2818 = vadd.f32 %v2268, %v2636
  %v2819 = vadd.f32 %v2269, %v2639
  %v2820 = vadd.f32 %v2270, %v2644
  %v2821 = vadd.f32 %v2271, %v2647
  %v2822 = vadd.f32 %v2272, %v2652
  %v2823 = vadd.f32 %v2273, %v2655
  %v2824 = vadd.f32 %v2274, %v2660
  %v2825 = vadd.f32 %v2275, %v2663
  %v2826 = vadd.f32 %v2276, %v2668
  %v2827 = vadd.f32 %v2277, %v2671
  %v2828 = vadd.f32 %v2278, %v2676
  %v2829 = vadd.f32 %v2279, %v2679
  %v2830 = vadd.f32 %v2280, %v2684
  %v2831 = vadd.f32 %v2281, %v2687
  %v2832 = vadd.f32 %v2282, %v2692
  %v2833 = vadd.f32 %v2283, %v2695
  %v2834 = vadd.f32 %v2284, %v2700
  %v2835 = vadd.f32 %v2285, %v2703
  %v2836 = vadd.f32 %v2286, %v2708
  %v2837 = vadd.f32 %v2287, %v2711
  %v2838 = vadd.f32 %v2288, %v2716
  %v2839 = vadd.f32 %v2289, %v2719
  %v2840 = vadd.f32 %v2290, %v2724
  %v2841 = vadd.f32 %v2291, %v2727
  %v2842 = vadd.f32 %v2292, %v2732
  %v2843 = vadd.f32 %v2293, %v2735
  %v2844 = vadd.f32 %v2294, %v2740
  %v2845 = vadd.f32 %v2295, %v2743
  %v2846 = vadd.f32 %v2296, %v2748
  %v2847 = vadd.f32 %v2297, %v2751
  %v2848 = vadd.f32 %v2298, %v2756
  %v2849 = vadd.f32 %v2299, %v2759
  %v2850 = vadd.f32 %v2300, %v2764
  %v2851 = vadd.f32 %v2301, %v2767
  %v2852 = vadd.f32 %v2302, %v2772
  %v2853 = vadd.f32 %v2303, %v2775
  %v2854 = vadd.f32 %v2304, %v2780
  %v2855 = vadd.f32 %v2305, %v2783
  %v2856 = vadd.f32 %v2306, %v2788
  %v2857 = vadd.f32 %v2307, %v2791
  %v2858 = vld [vmem:[%s42 + $0x2] sm:$0xff]
  %v2859 = vld [vmem:[%s42 + $0xa] sm:$0xff]
  %v2860 = vld [vmem:[%s42 + $0x1a] sm:$0xff]
  %v2861 = vld [vmem:[%s42 + $0x22] sm:$0xff]
  %v2862 = vld [vmem:[%s42 + $0x32] sm:$0xff]
  %v2863 = vld [vmem:[%s42 + $0x3a] sm:$0xff]
  %v2864 = vld [vmem:[%s42 + $0x4a] sm:$0xff]
  %v2865 = vld [vmem:[%s42 + $0x52] sm:$0xff]
  %v2866 = vld [vmem:[%s42 + $0x62] sm:$0xff]
  %v2867 = vld [vmem:[%s42 + $0x6a] sm:$0xff]
  %v2868 = vld [vmem:[%s42 + $0x7a] sm:$0xff]
  %v2869 = vld [vmem:[%s42 + $0x82] sm:$0xff]
  %v2870 = vld [vmem:[%s42 + $0x92] sm:$0xff]
  %v2871 = vld [vmem:[%s42 + $0x9a] sm:$0xff]
  %v2872 = vld [vmem:[%s42 + $0xaa] sm:$0xff]
  %v2873 = vld [vmem:[%s42 + $0xb2] sm:$0xff]
  %v2874 = vld [vmem:[%s42 + $0xc2] sm:$0xff]
  %v2875 = vld [vmem:[%s42 + $0xca] sm:$0xff]
  %v2876 = vld [vmem:[%s42 + $0xda] sm:$0xff]
  %v2877 = vld [vmem:[%s42 + $0xe2] sm:$0xff]
  %v2878 = vld [vmem:[%s42 + $0xf2] sm:$0xff]
  %v2879 = vld [vmem:[%s42 + $0xfa] sm:$0xff]
  %v2880 = vld [vmem:[%s42 + $0x10a] sm:$0xff]
  %v2881 = vld [vmem:[%s42 + $0x112] sm:$0xff]
  %v2882 = vld [vmem:[%s42 + $0x122] sm:$0xff]
  %v2883 = vld [vmem:[%s42 + $0x12a] sm:$0xff]
  %v2884 = vld [vmem:[%s42 + $0x13a] sm:$0xff]
  %v2885 = vld [vmem:[%s42 + $0x142] sm:$0xff]
  %v2886 = vld [vmem:[%s42 + $0x152] sm:$0xff]
  %v2887 = vld [vmem:[%s42 + $0x15a] sm:$0xff]
  %v2888 = vld [vmem:[%s42 + $0x16a] sm:$0xff]
  %v2889 = vld [vmem:[%s42 + $0x172] sm:$0xff]
  %v2890 = vld [vmem:[%s42 + $0x1b2] sm:$0xff]
  %v2891 = vld [vmem:[%s42 + $0x1ba] sm:$0xff]
  %v2892 = vld [vmem:[%s42 + $0x1ca] sm:$0xff]
  %v2893 = vld [vmem:[%s42 + $0x1d2] sm:$0xff]
  %v2894 = vld [vmem:[%s42 + $0x1e2] sm:$0xff]
  %v2895 = vld [vmem:[%s42 + $0x1ea] sm:$0xff]
  %v2896 = vld [vmem:[%s42 + $0x1fa] sm:$0xff]
  %v2897 = vld [vmem:[%s42 + $0x202] sm:$0xff]
  %v2898 = vld [vmem:[%s42 + $0x212] sm:$0xff]
  %v2899 = vld [vmem:[%s42 + $0x21a] sm:$0xff]
  %v2900 = vld [vmem:[%s42 + $0x22a] sm:$0xff]
  %v2901 = vld [vmem:[%s42 + $0x232] sm:$0xff]
  %v2902 = vld [vmem:[%s42 + $0x242] sm:$0xff]
  %v2903 = vld [vmem:[%s42 + $0x24a] sm:$0xff]
  %v2904 = vld [vmem:[%s42 + $0x25a] sm:$0xff]
  %v2905 = vld [vmem:[%s42 + $0x262] sm:$0xff]
  %v2906 = vld [vmem:[%s42 + $0x272] sm:$0xff]
  %v2907 = vld [vmem:[%s42 + $0x27a] sm:$0xff]
  %v2908 = vld [vmem:[%s42 + $0x28a] sm:$0xff]
  %v2909 = vld [vmem:[%s42 + $0x292] sm:$0xff]
  %v2910 = vld [vmem:[%s42 + $0x2a2] sm:$0xff]
  %v2911 = vld [vmem:[%s42 + $0x2aa] sm:$0xff]
  %v2912 = vld [vmem:[%s42 + $0x2ba] sm:$0xff]
  %v2913 = vld [vmem:[%s42 + $0x2c2] sm:$0xff]
  %v2914 = vld [vmem:[%s42 + $0x2d2] sm:$0xff]
  %v2915 = vld [vmem:[%s42 + $0x2da] sm:$0xff]
  %v2916 = vld [vmem:[%s42 + $0x2ea] sm:$0xff]
  %v2917 = vld [vmem:[%s42 + $0x2f2] sm:$0xff]
  %v2918 = vld [vmem:[%s42 + $0x302] sm:$0xff]
  %v2919 = vld [vmem:[%s42 + $0x30a] sm:$0xff]
  %v2920 = vld [vmem:[%s42 + $0x31a] sm:$0xff]
  %v2921 = vld [vmem:[%s42 + $0x322] sm:$0xff]
  %v2922 = vpack.c.bf16 %v2859, %v2858
  %v2923 = vpack.c.bf16 %v2861, %v2860
  %v2924 = vpack.c.bf16 %v2863, %v2862
  %v2925 = vpack.c.bf16 %v2865, %v2864
  %v2926 = vpack.c.bf16 %v2867, %v2866
  %v2927 = vpack.c.bf16 %v2869, %v2868
  %v2928 = vpack.c.bf16 %v2871, %v2870
  %v2929 = vpack.c.bf16 %v2873, %v2872
  %v2930 = vpack.c.bf16 %v2875, %v2874
  %v2931 = vpack.c.bf16 %v2877, %v2876
  %v2932 = vpack.c.bf16 %v2879, %v2878
  %v2933 = vpack.c.bf16 %v2881, %v2880
  %v2934 = vpack.c.bf16 %v2883, %v2882
  %v2935 = vpack.c.bf16 %v2885, %v2884
  %v2936 = vpack.c.bf16 %v2887, %v2886
  %v2937 = vpack.c.bf16 %v2889, %v2888
  %v2938 = vpack.c.bf16 %v2891, %v2890
  %v2939 = vpack.c.bf16 %v2893, %v2892
  %v2940 = vpack.c.bf16 %v2895, %v2894
  %v2941 = vpack.c.bf16 %v2897, %v2896
  %v2942 = vpack.c.bf16 %v2899, %v2898
  %v2943 = vpack.c.bf16 %v2901, %v2900
  %v2944 = vpack.c.bf16 %v2903, %v2902
  %v2945 = vpack.c.bf16 %v2905, %v2904
  %v2946 = vpack.c.bf16 %v2907, %v2906
  %v2947 = vpack.c.bf16 %v2909, %v2908
  %v2948 = vpack.c.bf16 %v2911, %v2910
  %v2949 = vpack.c.bf16 %v2913, %v2912
  %v2950 = vpack.c.bf16 %v2915, %v2914
  %v2951 = vpack.c.bf16 %v2917, %v2916
  %v2952 = vpack.c.bf16 %v2919, %v2918
  %v2953 = vpack.c.bf16 %v2921, %v2920
  %s2954 = scalar_lea.vmem %s1, 10
  %v2955 = vld [vmem:[%s2954] sm:$0x3]
  %v2957 = vsel %vm27, %v2922, 0
  %v2960 = vsel %vm27, %v2923, 0
  %v2963 = vsel %vm27, %v2924, 0
  %v2966 = vsel %vm27, %v2925, 0
  %v2969 = vsel %vm27, %v2926, 0
  %v2972 = vsel %vm27, %v2927, 0
  %v2975 = vsel %vm27, %v2928, 0
  %v2978 = vsel %vm27, %v2929, 0
  %v2981 = vsel %vm27, %v2930, 0
  %v2984 = vsel %vm27, %v2931, 0
  %v2987 = vsel %vm27, %v2932, 0
  %v2990 = vsel %vm27, %v2933, 0
  %v2993 = vsel %vm27, %v2934, 0
  %v2996 = vsel %vm27, %v2935, 0
  %v2999 = vsel %vm27, %v2936, 0
  %v3002 = vsel %vm27, %v2937, 0
  %v3005 = vsel %vm27, %v2938, 0
  %v3008 = vsel %vm27, %v2939, 0
  %v3011 = vsel %vm27, %v2940, 0
  %v3014 = vsel %vm27, %v2941, 0
  %v3017 = vsel %vm27, %v2942, 0
  %v3020 = vsel %vm27, %v2943, 0
  %v3023 = vsel %vm27, %v2944, 0
  %v3026 = vsel %vm27, %v2945, 0
  %v3029 = vsel %vm27, %v2946, 0
  %v3032 = vsel %vm27, %v2947, 0
  %v3035 = vsel %vm27, %v2948, 0
  %v3038 = vsel %vm27, %v2949, 0
  %v3041 = vsel %vm27, %v2950, 0
  %v3044 = vsel %vm27, %v2951, 0
  %v3047 = vsel %vm27, %v2952, 0
  %v3050 = vsel %vm27, %v2953, 0
  %v3053 = vsel %vm527, %v2955, 0
  %3055 = vmatprep.subr.bf16.mxu0 0
  %3056 = vmatpush1.bf16.msra.mxu0 %v3053
  %3057 = vmatprep.subr.bf16.mxu0 0
  %3058 = vmatpush1.bf16.msra.mxu0 0
  %3059 = vmatprep.subr.bf16.mxu0 0
  %3060 = vmatpush1.bf16.msra.mxu0 0
  %3061 = vmatprep.subr.bf16.mxu0 0
  %3062 = vmatpush1.bf16.msra.mxu0 0
  %3063 = vmatprep.subr.bf16.mxu0 0
  %3064 = vmatpush1.bf16.msra.mxu0 0
  %3065 = vmatprep.subr.bf16.mxu0 0
  %3066 = vmatpush1.bf16.msra.mxu0 0
  %3067 = vmatprep.subr.bf16.mxu0 0
  %3068 = vmatpush1.bf16.msra.mxu0 0
  %3069 = vmatprep.subr.bf16.mxu0 0
  %3070 = vmatpush1.bf16.msra.mxu0 0
  %3071 = vmatprep.subr.bf16.mxu0 0
  %3072 = vmatpush1.bf16.msra.mxu0 0
  %3073 = vmatprep.subr.bf16.mxu0 0
  %3074 = vmatpush1.bf16.msra.mxu0 0
  %3075 = vmatprep.subr.bf16.mxu0 0
  %3076 = vmatpush1.bf16.msra.mxu0 0
  %3077 = vmatprep.subr.bf16.mxu0 0
  %3078 = vmatpush1.bf16.msra.mxu0 0
  %3079 = vmatprep.subr.bf16.mxu0 0
  %3080 = vmatpush1.bf16.msra.mxu0 0
  %3081 = vmatprep.subr.bf16.mxu0 0
  %3082 = vmatpush1.bf16.msra.mxu0 0
  %3083 = vmatprep.subr.bf16.mxu0 0
  %3084 = vmatpush1.bf16.msra.mxu0 0
  %3085 = vmatprep.subr.bf16.mxu0 0
  %3086 = vmatpush1.bf16.msra.mxu0 0
  %3087 = vmatprep.mubr.bf16.mxu0 0
  %3088 = vmatmul.mubr.bf16.gmra.mrb[0].mxu0 %v2957
  %v3089 = vpop.f32.mrb[0].mxu0
  %v3090 = vadd.f32 0.0, %v3089
  %v3091 = vpop.f32.mrb[0].mxu0
  %v3092 = vpop.f32.mrb[0].mxu0
  %v3093 = vadd.f32 0.0, %v3092
  %v3094 = vpop.f32.mrb[0].mxu0
  %3095 = vmatprep.mubr.bf16.mxu0 0
  %3096 = vmatmul.mubr.bf16.gmra.mrb[0].mxu0 %v2960
  %v3097 = vpop.f32.mrb[0].mxu0
  %v3098 = vadd.f32 0.0, %v3097
  %v3099 = vpop.f32.mrb[0].mxu0
  %v3100 = vpop.f32.mrb[0].mxu0
  %v3101 = vadd.f32 0.0, %v3100
  %v3102 = vpop.f32.mrb[0].mxu0
  %3103 = vmatprep.mubr.bf16.mxu0 0
  %3104 = vmatmul.mubr.bf16.gmra.mrb[0].mxu0 %v2963
  %v3105 = vpop.f32.mrb[0].mxu0
  %v3106 = vadd.f32 0.0, %v3105
  %v3107 = vpop.f32.mrb[0].mxu0
  %v3108 = vpop.f32.mrb[0].mxu0
  %v3109 = vadd.f32 0.0, %v3108
  %v3110 = vpop.f32.mrb[0].mxu0
  %3111 = vmatprep.mubr.bf16.mxu0 0
  %3112 = vmatmul.mubr.bf16.gmra.mrb[0].mxu0 %v2966
  %v3113 = vpop.f32.mrb[0].mxu0
  %v3114 = vadd.f32 0.0, %v3113
  %v3115 = vpop.f32.mrb[0].mxu0
  %v3116 = vpop.f32.mrb[0].mxu0
  %v3117 = vadd.f32 0.0, %v3116
  %v3118 = vpop.f32.mrb[0].mxu0
  %3119 = vmatprep.mubr.bf16.mxu0 0
  %3120 = vmatmul.mubr.bf16.gmra.mrb[0].mxu0 %v2969
  %v3121 = vpop.f32.mrb[0].mxu0
  %v3122 = vadd.f32 0.0, %v3121
  %v3123 = vpop.f32.mrb[0].mxu0
  %v3124 = vpop.f32.mrb[0].mxu0
  %v3125 = vadd.f32 0.0, %v3124
  %v3126 = vpop.f32.mrb[0].mxu0
  %3127 = vmatprep.mubr.bf16.mxu0 0
  %3128 = vmatmul.mubr.bf16.gmra.mrb[0].mxu0 %v2972
  %v3129 = vpop.f32.mrb[0].mxu0
  %v3130 = vadd.f32 0.0, %v3129
  %v3131 = vpop.f32.mrb[0].mxu0
  %v3132 = vpop.f32.mrb[0].mxu0
  %v3133 = vadd.f32 0.0, %v3132
  %v3134 = vpop.f32.mrb[0].mxu0
  %3135 = vmatprep.mubr.bf16.mxu0 0
  %3136 = vmatmul.mubr.bf16.gmra.mrb[0].mxu0 %v2975
  %v3137 = vpop.f32.mrb[0].mxu0
  %v3138 = vadd.f32 0.0, %v3137
  %v3139 = vpop.f32.mrb[0].mxu0
  %v3140 = vpop.f32.mrb[0].mxu0
  %v3141 = vadd.f32 0.0, %v3140
  %v3142 = vpop.f32.mrb[0].mxu0
  %3143 = vmatprep.mubr.bf16.mxu0 0
  %3144 = vmatmul.mubr.bf16.gmra.mrb[0].mxu0 %v2978
  %v3145 = vpop.f32.mrb[0].mxu0
  %v3146 = vadd.f32 0.0, %v3145
  %v3147 = vpop.f32.mrb[0].mxu0
  %v3148 = vpop.f32.mrb[0].mxu0
  %v3149 = vadd.f32 0.0, %v3148
  %v3150 = vpop.f32.mrb[0].mxu0
  %3151 = vmatprep.mubr.bf16.mxu0 0
  %3152 = vmatmul.mubr.bf16.gmra.mrb[0].mxu0 %v2981
  %v3153 = vpop.f32.mrb[0].mxu0
  %v3154 = vadd.f32 0.0, %v3153
  %v3155 = vpop.f32.mrb[0].mxu0
  %v3156 = vpop.f32.mrb[0].mxu0
  %v3157 = vadd.f32 0.0, %v3156
  %v3158 = vpop.f32.mrb[0].mxu0
  %3159 = vmatprep.mubr.bf16.mxu0 0
  %3160 = vmatmul.mubr.bf16.gmra.mrb[0].mxu0 %v2984
  %v3161 = vpop.f32.mrb[0].mxu0
  %v3162 = vadd.f32 0.0, %v3161
  %v3163 = vpop.f32.mrb[0].mxu0
  %v3164 = vpop.f32.mrb[0].mxu0
  %v3165 = vadd.f32 0.0, %v3164
  %v3166 = vpop.f32.mrb[0].mxu0
  %3167 = vmatprep.mubr.bf16.mxu0 0
  %3168 = vmatmul.mubr.bf16.gmra.mrb[0].mxu0 %v2987
  %v3169 = vpop.f32.mrb[0].mxu0
  %v3170 = vadd.f32 0.0, %v3169
  %v3171 = vpop.f32.mrb[0].mxu0
  %v3172 = vpop.f32.mrb[0].mxu0
  %v3173 = vadd.f32 0.0, %v3172
  %v3174 = vpop.f32.mrb[0].mxu0
  %3175 = vmatprep.mubr.bf16.mxu0 0
  %3176 = vmatmul.mubr.bf16.gmra.mrb[0].mxu0 %v2990
  %v3177 = vpop.f32.mrb[0].mxu0
  %v3178 = vadd.f32 0.0, %v3177
  %v3179 = vpop.f32.mrb[0].mxu0
  %v3180 = vpop.f32.mrb[0].mxu0
  %v3181 = vadd.f32 0.0, %v3180
  %v3182 = vpop.f32.mrb[0].mxu0
  %3183 = vmatprep.mubr.bf16.mxu0 0
  %3184 = vmatmul.mubr.bf16.gmra.mrb[0].mxu0 %v2993
  %v3185 = vpop.f32.mrb[0].mxu0
  %v3186 = vadd.f32 0.0, %v3185
  %v3187 = vpop.f32.mrb[0].mxu0
  %v3188 = vpop.f32.mrb[0].mxu0
  %v3189 = vadd.f32 0.0, %v3188
  %v3190 = vpop.f32.mrb[0].mxu0
  %3191 = vmatprep.mubr.bf16.mxu0 0
  %3192 = vmatmul.mubr.bf16.gmra.mrb[0].mxu0 %v2996
  %v3193 = vpop.f32.mrb[0].mxu0
  %v3194 = vadd.f32 0.0, %v3193
  %v3195 = vpop.f32.mrb[0].mxu0
  %v3196 = vpop.f32.mrb[0].mxu0
  %v3197 = vadd.f32 0.0, %v3196
  %v3198 = vpop.f32.mrb[0].mxu0
  %3199 = vmatprep.mubr.bf16.mxu0 0
  %3200 = vmatmul.mubr.bf16.gmra.mrb[0].mxu0 %v2999
  %v3201 = vpop.f32.mrb[0].mxu0
  %v3202 = vadd.f32 0.0, %v3201
  %v3203 = vpop.f32.mrb[0].mxu0
  %v3204 = vpop.f32.mrb[0].mxu0
  %v3205 = vadd.f32 0.0, %v3204
  %v3206 = vpop.f32.mrb[0].mxu0
  %3207 = vmatprep.mubr.bf16.mxu0 0
  %3208 = vmatmul.mubr.bf16.gmra.mrb[0].mxu0 %v3002
  %v3209 = vpop.f32.mrb[0].mxu0
  %v3210 = vadd.f32 0.0, %v3209
  %v3211 = vpop.f32.mrb[0].mxu0
  %v3212 = vpop.f32.mrb[0].mxu0
  %v3213 = vadd.f32 0.0, %v3212
  %v3214 = vpop.f32.mrb[0].mxu0
  %3215 = vmatprep.mubr.bf16.mxu0 0
  %3216 = vmatmul.mubr.bf16.gmra.mrb[0].mxu0 %v3005
  %v3217 = vpop.f32.mrb[0].mxu0
  %v3218 = vadd.f32 0.0, %v3217
  %v3219 = vpop.f32.mrb[0].mxu0
  %v3220 = vpop.f32.mrb[0].mxu0
  %v3221 = vadd.f32 0.0, %v3220
  %v3222 = vpop.f32.mrb[0].mxu0
  %3223 = vmatprep.mubr.bf16.mxu0 0
  %3224 = vmatmul.mubr.bf16.gmra.mrb[0].mxu0 %v3008
  %v3225 = vpop.f32.mrb[0].mxu0
  %v3226 = vadd.f32 0.0, %v3225
  %v3227 = vpop.f32.mrb[0].mxu0
  %v3228 = vpop.f32.mrb[0].mxu0
  %v3229 = vadd.f32 0.0, %v3228
  %v3230 = vpop.f32.mrb[0].mxu0
  %3231 = vmatprep.mubr.bf16.mxu0 0
  %3232 = vmatmul.mubr.bf16.gmra.mrb[0].mxu0 %v3011
  %v3233 = vpop.f32.mrb[0].mxu0
  %v3234 = vadd.f32 0.0, %v3233
  %v3235 = vpop.f32.mrb[0].mxu0
  %v3236 = vpop.f32.mrb[0].mxu0
  %v3237 = vadd.f32 0.0, %v3236
  %v3238 = vpop.f32.mrb[0].mxu0
  %3239 = vmatprep.mubr.bf16.mxu0 0
  %3240 = vmatmul.mubr.bf16.gmra.mrb[0].mxu0 %v3014
  %v3241 = vpop.f32.mrb[0].mxu0
  %v3242 = vadd.f32 0.0, %v3241
  %v3243 = vpop.f32.mrb[0].mxu0
  %v3244 = vpop.f32.mrb[0].mxu0
  %v3245 = vadd.f32 0.0, %v3244
  %v3246 = vpop.f32.mrb[0].mxu0
  %3247 = vmatprep.mubr.bf16.mxu0 0
  %3248 = vmatmul.mubr.bf16.gmra.mrb[0].mxu0 %v3017
  %v3249 = vpop.f32.mrb[0].mxu0
  %v3250 = vadd.f32 0.0, %v3249
  %v3251 = vpop.f32.mrb[0].mxu0
  %v3252 = vpop.f32.mrb[0].mxu0
  %v3253 = vadd.f32 0.0, %v3252
  %v3254 = vpop.f32.mrb[0].mxu0
  %3255 = vmatprep.mubr.bf16.mxu0 0
  %3256 = vmatmul.mubr.bf16.gmra.mrb[0].mxu0 %v3020
  %v3257 = vpop.f32.mrb[0].mxu0
  %v3258 = vadd.f32 0.0, %v3257
  %v3259 = vpop.f32.mrb[0].mxu0
  %v3260 = vpop.f32.mrb[0].mxu0
  %v3261 = vadd.f32 0.0, %v3260
  %v3262 = vpop.f32.mrb[0].mxu0
  %3263 = vmatprep.mubr.bf16.mxu0 0
  %3264 = vmatmul.mubr.bf16.gmra.mrb[0].mxu0 %v3023
  %v3265 = vpop.f32.mrb[0].mxu0
  %v3266 = vadd.f32 0.0, %v3265
  %v3267 = vpop.f32.mrb[0].mxu0
  %v3268 = vpop.f32.mrb[0].mxu0
  %v3269 = vadd.f32 0.0, %v3268
  %v3270 = vpop.f32.mrb[0].mxu0
  %3271 = vmatprep.mubr.bf16.mxu0 0
  %3272 = vmatmul.mubr.bf16.gmra.mrb[0].mxu0 %v3026
  %v3273 = vpop.f32.mrb[0].mxu0
  %v3274 = vadd.f32 0.0, %v3273
  %v3275 = vpop.f32.mrb[0].mxu0
  %v3276 = vpop.f32.mrb[0].mxu0
  %v3277 = vadd.f32 0.0, %v3276
  %v3278 = vpop.f32.mrb[0].mxu0
  %3279 = vmatprep.mubr.bf16.mxu0 0
  %3280 = vmatmul.mubr.bf16.gmra.mrb[0].mxu0 %v3029
  %v3281 = vpop.f32.mrb[0].mxu0
  %v3282 = vadd.f32 0.0, %v3281
  %v3283 = vpop.f32.mrb[0].mxu0
  %v3284 = vpop.f32.mrb[0].mxu0
  %v3285 = vadd.f32 0.0, %v3284
  %v3286 = vpop.f32.mrb[0].mxu0
  %3287 = vmatprep.mubr.bf16.mxu0 0
  %3288 = vmatmul.mubr.bf16.gmra.mrb[0].mxu0 %v3032
  %v3289 = vpop.f32.mrb[0].mxu0
  %v3290 = vadd.f32 0.0, %v3289
  %v3291 = vpop.f32.mrb[0].mxu0
  %v3292 = vpop.f32.mrb[0].mxu0
  %v3293 = vadd.f32 0.0, %v3292
  %v3294 = vpop.f32.mrb[0].mxu0
  %3295 = vmatprep.mubr.bf16.mxu0 0
  %3296 = vmatmul.mubr.bf16.gmra.mrb[0].mxu0 %v3035
  %v3297 = vpop.f32.mrb[0].mxu0
  %v3298 = vadd.f32 0.0, %v3297
  %v3299 = vpop.f32.mrb[0].mxu0
  %v3300 = vpop.f32.mrb[0].mxu0
  %v3301 = vadd.f32 0.0, %v3300
  %v3302 = vpop.f32.mrb[0].mxu0
  %3303 = vmatprep.mubr.bf16.mxu0 0
  %3304 = vmatmul.mubr.bf16.gmra.mrb[0].mxu0 %v3038
  %v3305 = vpop.f32.mrb[0].mxu0
  %v3306 = vadd.f32 0.0, %v3305
  %v3307 = vpop.f32.mrb[0].mxu0
  %v3308 = vpop.f32.mrb[0].mxu0
  %v3309 = vadd.f32 0.0, %v3308
  %v3310 = vpop.f32.mrb[0].mxu0
  %3311 = vmatprep.mubr.bf16.mxu0 0
  %3312 = vmatmul.mubr.bf16.gmra.mrb[0].mxu0 %v3041
  %v3313 = vpop.f32.mrb[0].mxu0
  %v3314 = vadd.f32 0.0, %v3313
  %v3315 = vpop.f32.mrb[0].mxu0
  %v3316 = vpop.f32.mrb[0].mxu0
  %v3317 = vadd.f32 0.0, %v3316
  %v3318 = vpop.f32.mrb[0].mxu0
  %3319 = vmatprep.mubr.bf16.mxu0 0
  %3320 = vmatmul.mubr.bf16.gmra.mrb[0].mxu0 %v3044
  %v3321 = vpop.f32.mrb[0].mxu0
  %v3322 = vadd.f32 0.0, %v3321
  %v3323 = vpop.f32.mrb[0].mxu0
  %v3324 = vpop.f32.mrb[0].mxu0
  %v3325 = vadd.f32 0.0, %v3324
  %v3326 = vpop.f32.mrb[0].mxu0
  %3327 = vmatprep.mubr.bf16.mxu0 0
  %3328 = vmatmul.mubr.bf16.gmra.mrb[0].mxu0 %v3047
  %v3329 = vpop.f32.mrb[0].mxu0
  %v3330 = vadd.f32 0.0, %v3329
  %v3331 = vpop.f32.mrb[0].mxu0
  %v3332 = vpop.f32.mrb[0].mxu0
  %v3333 = vadd.f32 0.0, %v3332
  %v3334 = vpop.f32.mrb[0].mxu0
  %3335 = vmatprep.mubr.bf16.mxu0 0
  %3336 = vmatmul.mubr.bf16.gmra.mrb[0].mxu0 %v3050
  %v3337 = vpop.f32.mrb[0].mxu0
  %v3338 = vadd.f32 0.0, %v3337
  %v3339 = vpop.f32.mrb[0].mxu0
  %v3340 = vpop.f32.mrb[0].mxu0
  %v3341 = vadd.f32 0.0, %v3340
  %v3342 = vpop.f32.mrb[0].mxu0
  %3343 = vdwg.mxu0
  %v3344 = vadd.f32 %v2794, %v3090
  %v3345 = vadd.f32 %v2795, %v3093
  %v3346 = vadd.f32 %v2796, %v3098
  %v3347 = vadd.f32 %v2797, %v3101
  %v3348 = vadd.f32 %v2798, %v3106
  %v3349 = vadd.f32 %v2799, %v3109
  %v3350 = vadd.f32 %v2800, %v3114
  %v3351 = vadd.f32 %v2801, %v3117
  %v3352 = vadd.f32 %v2802, %v3122
  %v3353 = vadd.f32 %v2803, %v3125
  %v3354 = vadd.f32 %v2804, %v3130
  %v3355 = vadd.f32 %v2805, %v3133
  %v3356 = vadd.f32 %v2806, %v3138
  %v3357 = vadd.f32 %v2807, %v3141
  %v3358 = vadd.f32 %v2808, %v3146
  %v3359 = vadd.f32 %v2809, %v3149
  %v3360 = vadd.f32 %v2810, %v3154
  %v3361 = vadd.f32 %v2811, %v3157
  %v3362 = vadd.f32 %v2812, %v3162
  %v3363 = vadd.f32 %v2813, %v3165
  %v3364 = vadd.f32 %v2814, %v3170
  %v3365 = vadd.f32 %v2815, %v3173
  %v3366 = vadd.f32 %v2816, %v3178
  %v3367 = vadd.f32 %v2817, %v3181
  %v3368 = vadd.f32 %v2818, %v3186
  %v3369 = vadd.f32 %v2819, %v3189
  %v3370 = vadd.f32 %v2820, %v3194
  %v3371 = vadd.f32 %v2821, %v3197
  %v3372 = vadd.f32 %v2822, %v3202
  %v3373 = vadd.f32 %v2823, %v3205
  %v3374 = vadd.f32 %v2824, %v3210
  %v3375 = vadd.f32 %v2825, %v3213
  %v3376 = vadd.f32 %v2826, %v3218
  %v3377 = vadd.f32 %v2827, %v3221
  %v3378 = vadd.f32 %v2828, %v3226
  %v3379 = vadd.f32 %v2829, %v3229
  %v3380 = vadd.f32 %v2830, %v3234
  %v3381 = vadd.f32 %v2831, %v3237
  %v3382 = vadd.f32 %v2832, %v3242
  %v3383 = vadd.f32 %v2833, %v3245
  %v3384 = vadd.f32 %v2834, %v3250
  %v3385 = vadd.f32 %v2835, %v3253
  %v3386 = vadd.f32 %v2836, %v3258
  %v3387 = vadd.f32 %v2837, %v3261
  %v3388 = vadd.f32 %v2838, %v3266
  %v3389 = vadd.f32 %v2839, %v3269
  %v3390 = vadd.f32 %v2840, %v3274
  %v3391 = vadd.f32 %v2841, %v3277
  %v3392 = vadd.f32 %v2842, %v3282
  %v3393 = vadd.f32 %v2843, %v3285
  %v3394 = vadd.f32 %v2844, %v3290
  %v3395 = vadd.f32 %v2845, %v3293
  %v3396 = vadd.f32 %v2846, %v3298
  %v3397 = vadd.f32 %v2847, %v3301
  %v3398 = vadd.f32 %v2848, %v3306
  %v3399 = vadd.f32 %v2849, %v3309
  %v3400 = vadd.f32 %v2850, %v3314
  %v3401 = vadd.f32 %v2851, %v3317
  %v3402 = vadd.f32 %v2852, %v3322
  %v3403 = vadd.f32 %v2853, %v3325
  %v3404 = vadd.f32 %v2854, %v3330
  %v3405 = vadd.f32 %v2855, %v3333
  %v3406 = vadd.f32 %v2856, %v3338
  %v3407 = vadd.f32 %v2857, %v3341
  %s3408 = scalar_lea.vmem [#allocation2], 48
  %v3409 = vld [vmem:[%s3408] sm:$0xff]
  %v3410 = vld [vmem:[%s3408 + $0x8] sm:$0xff]
  %v3411 = vld [vmem:[%s3408 + $0x18] sm:$0xff]
  %v3412 = vld [vmem:[%s3408 + $0x20] sm:$0xff]
  %v3413 = vld [vmem:[%s3408 + $0x30] sm:$0xff]
  %v3414 = vld [vmem:[%s3408 + $0x38] sm:$0xff]
  %v3415 = vld [vmem:[%s3408 + $0x48] sm:$0xff]
  %v3416 = vld [vmem:[%s3408 + $0x50] sm:$0xff]
  %v3417 = vld [vmem:[%s3408 + $0x60] sm:$0xff]
  %v3418 = vld [vmem:[%s3408 + $0x68] sm:$0xff]
  %v3419 = vld [vmem:[%s3408 + $0x78] sm:$0xff]
  %v3420 = vld [vmem:[%s3408 + $0x80] sm:$0xff]
  %v3421 = vld [vmem:[%s3408 + $0x90] sm:$0xff]
  %v3422 = vld [vmem:[%s3408 + $0x98] sm:$0xff]
  %v3423 = vld [vmem:[%s3408 + $0xa8] sm:$0xff]
  %v3424 = vld [vmem:[%s3408 + $0xb0] sm:$0xff]
  %v3425 = vld [vmem:[%s3408 + $0xc0] sm:$0xff]
  %v3426 = vld [vmem:[%s3408 + $0xc8] sm:$0xff]
  %v3427 = vld [vmem:[%s3408 + $0xd8] sm:$0xff]
  %v3428 = vld [vmem:[%s3408 + $0xe0] sm:$0xff]
  %v3429 = vld [vmem:[%s3408 + $0xf0] sm:$0xff]
  %v3430 = vld [vmem:[%s3408 + $0xf8] sm:$0xff]
  %v3431 = vld [vmem:[%s3408 + $0x108] sm:$0xff]
  %v3432 = vld [vmem:[%s3408 + $0x110] sm:$0xff]
  %v3433 = vld [vmem:[%s3408 + $0x120] sm:$0xff]
  %v3434 = vld [vmem:[%s3408 + $0x128] sm:$0xff]
  %v3435 = vld [vmem:[%s3408 + $0x138] sm:$0xff]
  %v3436 = vld [vmem:[%s3408 + $0x140] sm:$0xff]
  %v3437 = vld [vmem:[%s3408 + $0x150] sm:$0xff]
  %v3438 = vld [vmem:[%s3408 + $0x158] sm:$0xff]
  %v3439 = vld [vmem:[%s3408 + $0x168] sm:$0xff]
  %v3440 = vld [vmem:[%s3408 + $0x170] sm:$0xff]
  %v3441 = vld [vmem:[%s3408 + $0x1b0] sm:$0xff]
  %v3442 = vld [vmem:[%s3408 + $0x1b8] sm:$0xff]
  %v3443 = vld [vmem:[%s3408 + $0x1c8] sm:$0xff]
  %v3444 = vld [vmem:[%s3408 + $0x1d0] sm:$0xff]
  %v3445 = vld [vmem:[%s3408 + $0x1e0] sm:$0xff]
  %v3446 = vld [vmem:[%s3408 + $0x1e8] sm:$0xff]
  %v3447 = vld [vmem:[%s3408 + $0x1f8] sm:$0xff]
  %v3448 = vld [vmem:[%s3408 + $0x200] sm:$0xff]
  %v3449 = vld [vmem:[%s3408 + $0x210] sm:$0xff]
  %v3450 = vld [vmem:[%s3408 + $0x218] sm:$0xff]
  %v3451 = vld [vmem:[%s3408 + $0x228] sm:$0xff]
  %v3452 = vld [vmem:[%s3408 + $0x230] sm:$0xff]
  %v3453 = vld [vmem:[%s3408 + $0x240] sm:$0xff]
  %v3454 = vld [vmem:[%s3408 + $0x248] sm:$0xff]
  %v3455 = vld [vmem:[%s3408 + $0x258] sm:$0xff]
  %v3456 = vld [vmem:[%s3408 + $0x260] sm:$0xff]
  %v3457 = vld [vmem:[%s3408 + $0x270] sm:$0xff]
  %v3458 = vld [vmem:[%s3408 + $0x278] sm:$0xff]
  %v3459 = vld [vmem:[%s3408 + $0x288] sm:$0xff]
  %v3460 = vld [vmem:[%s3408 + $0x290] sm:$0xff]
  %v3461 = vld [vmem:[%s3408 + $0x2a0] sm:$0xff]
  %v3462 = vld [vmem:[%s3408 + $0x2a8] sm:$0xff]
  %v3463 = vld [vmem:[%s3408 + $0x2b8] sm:$0xff]
  %v3464 = vld [vmem:[%s3408 + $0x2c0] sm:$0xff]
  %v3465 = vld [vmem:[%s3408 + $0x2d0] sm:$0xff]
  %v3466 = vld [vmem:[%s3408 + $0x2d8] sm:$0xff]
  %v3467 = vld [vmem:[%s3408 + $0x2e8] sm:$0xff]
  %v3468 = vld [vmem:[%s3408 + $0x2f0] sm:$0xff]
  %v3469 = vld [vmem:[%s3408 + $0x300] sm:$0xff]
  %v3470 = vld [vmem:[%s3408 + $0x308] sm:$0xff]
  %v3471 = vld [vmem:[%s3408 + $0x318] sm:$0xff]
  %v3472 = vld [vmem:[%s3408 + $0x320] sm:$0xff]
  %v3473 = vpack.c.bf16 %v3410, %v3409
  %v3474 = vpack.c.bf16 %v3412, %v3411
  %v3475 = vpack.c.bf16 %v3414, %v3413
  %v3476 = vpack.c.bf16 %v3416, %v3415
  %v3477 = vpack.c.bf16 %v3418, %v3417
  %v3478 = vpack.c.bf16 %v3420, %v3419
  %v3479 = vpack.c.bf16 %v3422, %v3421
  %v3480 = vpack.c.bf16 %v3424, %v3423
  %v3481 = vpack.c.bf16 %v3426, %v3425
  %v3482 = vpack.c.bf16 %v3428, %v3427
  %v3483 = vpack.c.bf16 %v3430, %v3429
  %v3484 = vpack.c.bf16 %v3432, %v3431
  %v3485 = vpack.c.bf16 %v3434, %v3433
  %v3486 = vpack.c.bf16 %v3436, %v3435
  %v3487 = vpack.c.bf16 %v3438, %v3437
  %v3488 = vpack.c.bf16 %v3440, %v3439
  %v3489 = vpack.c.bf16 %v3442, %v3441
  %v3490 = vpack.c.bf16 %v3444, %v3443
  %v3491 = vpack.c.bf16 %v3446, %v3445
  %v3492 = vpack.c.bf16 %v3448, %v3447
  %v3493 = vpack.c.bf16 %v3450, %v3449
  %v3494 = vpack.c.bf16 %v3452, %v3451
  %v3495 = vpack.c.bf16 %v3454, %v3453
  %v3496 = vpack.c.bf16 %v3456, %v3455
  %v3497 = vpack.c.bf16 %v3458, %v3457
  %v3498 = vpack.c.bf16 %v3460, %v3459
  %v3499 = vpack.c.bf16 %v3462, %v3461
  %v3500 = vpack.c.bf16 %v3464, %v3463
  %v3501 = vpack.c.bf16 %v3466, %v3465
  %v3502 = vpack.c.bf16 %v3468, %v3467
  %v3503 = vpack.c.bf16 %v3470, %v3469
  %v3504 = vpack.c.bf16 %v3472, %v3471
  %s3505 = scalar_lea.vmem %s1, 12
  %v3506 = vld [vmem:[%s3505] sm:$0x3]
  %v3508 = vsel %vm27, %v3473, 0
  %v3511 = vsel %vm27, %v3474, 0
  %v3514 = vsel %vm27, %v3475, 0
  %v3517 = vsel %vm27, %v3476, 0
  %v3520 = vsel %vm27, %v3477, 0
  %v3523 = vsel %vm27, %v3478, 0
  %v3526 = vsel %vm27, %v3479, 0
  %v3529 = vsel %vm27, %v3480, 0
  %v3532 = vsel %vm27, %v3481, 0
  %v3535 = vsel %vm27, %v3482, 0
  %v3538 = vsel %vm27, %v3483, 0
  %v3541 = vsel %vm27, %v3484, 0
  %v3544 = vsel %vm27, %v3485, 0
  %v3547 = vsel %vm27, %v3486, 0
  %v3550 = vsel %vm27, %v3487, 0
  %v3553 = vsel %vm27, %v3488, 0
  %v3556 = vsel %vm27, %v3489, 0
  %v3559 = vsel %vm27, %v3490, 0
  %v3562 = vsel %vm27, %v3491, 0
  %v3565 = vsel %vm27, %v3492, 0
  %v3568 = vsel %vm27, %v3493, 0
  %v3571 = vsel %vm27, %v3494, 0
  %v3574 = vsel %vm27, %v3495, 0
  %v3577 = vsel %vm27, %v3496, 0
  %v3580 = vsel %vm27, %v3497, 0
  %v3583 = vsel %vm27, %v3498, 0
  %v3586 = vsel %vm27, %v3499, 0
  %v3589 = vsel %vm27, %v3500, 0
  %v3592 = vsel %vm27, %v3501, 0
  %v3595 = vsel %vm27, %v3502, 0
  %v3598 = vsel %vm27, %v3503, 0
  %v3601 = vsel %vm27, %v3504, 0
  %v3604 = vsel %vm527, %v3506, 0
  %3606 = vmatprep.subr.bf16.mxu0 0
  %3607 = vmatpush1.bf16.msra.mxu0 %v3604
  %3608 = vmatprep.subr.bf16.mxu0 0
  %3609 = vmatpush1.bf16.msra.mxu0 0
  %3610 = vmatprep.subr.bf16.mxu0 0
  %3611 = vmatpush1.bf16.msra.mxu0 0
  %3612 = vmatprep.subr.bf16.mxu0 0
  %3613 = vmatpush1.bf16.msra.mxu0 0
  %3614 = vmatprep.subr.bf16.mxu0 0
  %3615 = vmatpush1.bf16.msra.mxu0 0
  %3616 = vmatprep.subr.bf16.mxu0 0
  %3617 = vmatpush1.bf16.msra.mxu0 0
  %3618 = vmatprep.subr.bf16.mxu0 0
  %3619 = vmatpush1.bf16.msra.mxu0 0
  %3620 = vmatprep.subr.bf16.mxu0 0
  %3621 = vmatpush1.bf16.msra.mxu0 0
  %3622 = vmatprep.subr.bf16.mxu0 0
  %3623 = vmatpush1.bf16.msra.mxu0 0
  %3624 = vmatprep.subr.bf16.mxu0 0
  %3625 = vmatpush1.bf16.msra.mxu0 0
  %3626 = vmatprep.subr.bf16.mxu0 0
  %3627 = vmatpush1.bf16.msra.mxu0 0
  %3628 = vmatprep.subr.bf16.mxu0 0
  %3629 = vmatpush1.bf16.msra.mxu0 0
  %3630 = vmatprep.subr.bf16.mxu0 0
  %3631 = vmatpush1.bf16.msra.mxu0 0
  %3632 = vmatprep.subr.bf16.mxu0 0
  %3633 = vmatpush1.bf16.msra.mxu0 0
  %3634 = vmatprep.subr.bf16.mxu0 0
  %3635 = vmatpush1.bf16.msra.mxu0 0
  %3636 = vmatprep.subr.bf16.mxu0 0
  %3637 = vmatpush1.bf16.msra.mxu0 0
  %3638 = vmatprep.mubr.bf16.mxu0 0
  %3639 = vmatmul.mubr.bf16.gmra.mrb[0].mxu0 %v3508
  %v3640 = vpop.f32.mrb[0].mxu0
  %v3641 = vadd.f32 0.0, %v3640
  %v3642 = vpop.f32.mrb[0].mxu0
  %v3643 = vpop.f32.mrb[0].mxu0
  %v3644 = vadd.f32 0.0, %v3643
  %v3645 = vpop.f32.mrb[0].mxu0
  %3646 = vmatprep.mubr.bf16.mxu0 0
  %3647 = vmatmul.mubr.bf16.gmra.mrb[0].mxu0 %v3511
  %v3648 = vpop.f32.mrb[0].mxu0
  %v3649 = vadd.f32 0.0, %v3648
  %v3650 = vpop.f32.mrb[0].mxu0
  %v3651 = vpop.f32.mrb[0].mxu0
  %v3652 = vadd.f32 0.0, %v3651
  %v3653 = vpop.f32.mrb[0].mxu0
  %3654 = vmatprep.mubr.bf16.mxu0 0
  %3655 = vmatmul.mubr.bf16.gmra.mrb[0].mxu0 %v3514
  %v3656 = vpop.f32.mrb[0].mxu0
  %v3657 = vadd.f32 0.0, %v3656
  %v3658 = vpop.f32.mrb[0].mxu0
  %v3659 = vpop.f32.mrb[0].mxu0
  %v3660 = vadd.f32 0.0, %v3659
  %v3661 = vpop.f32.mrb[0].mxu0
  %3662 = vmatprep.mubr.bf16.mxu0 0
  %3663 = vmatmul.mubr.bf16.gmra.mrb[0].mxu0 %v3517
  %v3664 = vpop.f32.mrb[0].mxu0
  %v3665 = vadd.f32 0.0, %v3664
  %v3666 = vpop.f32.mrb[0].mxu0
  %v3667 = vpop.f32.mrb[0].mxu0
  %v3668 = vadd.f32 0.0, %v3667
  %v3669 = vpop.f32.mrb[0].mxu0
  %3670 = vmatprep.mubr.bf16.mxu0 0
  %3671 = vmatmul.mubr.bf16.gmra.mrb[0].mxu0 %v3520
  %v3672 = vpop.f32.mrb[0].mxu0
  %v3673 = vadd.f32 0.0, %v3672
  %v3674 = vpop.f32.mrb[0].mxu0
  %v3675 = vpop.f32.mrb[0].mxu0
  %v3676 = vadd.f32 0.0, %v3675
  %v3677 = vpop.f32.mrb[0].mxu0
  %3678 = vmatprep.mubr.bf16.mxu0 0
  %3679 = vmatmul.mubr.bf16.gmra.mrb[0].mxu0 %v3523
  %v3680 = vpop.f32.mrb[0].mxu0
  %v3681 = vadd.f32 0.0, %v3680
  %v3682 = vpop.f32.mrb[0].mxu0
  %v3683 = vpop.f32.mrb[0].mxu0
  %v3684 = vadd.f32 0.0, %v3683
  %v3685 = vpop.f32.mrb[0].mxu0
  %3686 = vmatprep.mubr.bf16.mxu0 0
  %3687 = vmatmul.mubr.bf16.gmra.mrb[0].mxu0 %v3526
  %v3688 = vpop.f32.mrb[0].mxu0
  %v3689 = vadd.f32 0.0, %v3688
  %v3690 = vpop.f32.mrb[0].mxu0
  %v3691 = vpop.f32.mrb[0].mxu0
  %v3692 = vadd.f32 0.0, %v3691
  %v3693 = vpop.f32.mrb[0].mxu0
  %3694 = vmatprep.mubr.bf16.mxu0 0
  %3695 = vmatmul.mubr.bf16.gmra.mrb[0].mxu0 %v3529
  %v3696 = vpop.f32.mrb[0].mxu0
  %v3697 = vadd.f32 0.0, %v3696
  %v3698 = vpop.f32.mrb[0].mxu0
  %v3699 = vpop.f32.mrb[0].mxu0
  %v3700 = vadd.f32 0.0, %v3699
  %v3701 = vpop.f32.mrb[0].mxu0
  %3702 = vmatprep.mubr.bf16.mxu0 0
  %3703 = vmatmul.mubr.bf16.gmra.mrb[0].mxu0 %v3532
  %v3704 = vpop.f32.mrb[0].mxu0
  %v3705 = vadd.f32 0.0, %v3704
  %v3706 = vpop.f32.mrb[0].mxu0
  %v3707 = vpop.f32.mrb[0].mxu0
  %v3708 = vadd.f32 0.0, %v3707
  %v3709 = vpop.f32.mrb[0].mxu0
  %3710 = vmatprep.mubr.bf16.mxu0 0
  %3711 = vmatmul.mubr.bf16.gmra.mrb[0].mxu0 %v3535
  %v3712 = vpop.f32.mrb[0].mxu0
  %v3713 = vadd.f32 0.0, %v3712
  %v3714 = vpop.f32.mrb[0].mxu0
  %v3715 = vpop.f32.mrb[0].mxu0
  %v3716 = vadd.f32 0.0, %v3715
  %v3717 = vpop.f32.mrb[0].mxu0
  %3718 = vmatprep.mubr.bf16.mxu0 0
  %3719 = vmatmul.mubr.bf16.gmra.mrb[0].mxu0 %v3538
  %v3720 = vpop.f32.mrb[0].mxu0
  %v3721 = vadd.f32 0.0, %v3720
  %v3722 = vpop.f32.mrb[0].mxu0
  %v3723 = vpop.f32.mrb[0].mxu0
  %v3724 = vadd.f32 0.0, %v3723
  %v3725 = vpop.f32.mrb[0].mxu0
  %3726 = vmatprep.mubr.bf16.mxu0 0
  %3727 = vmatmul.mubr.bf16.gmra.mrb[0].mxu0 %v3541
  %v3728 = vpop.f32.mrb[0].mxu0
  %v3729 = vadd.f32 0.0, %v3728
  %v3730 = vpop.f32.mrb[0].mxu0
  %v3731 = vpop.f32.mrb[0].mxu0
  %v3732 = vadd.f32 0.0, %v3731
  %v3733 = vpop.f32.mrb[0].mxu0
  %3734 = vmatprep.mubr.bf16.mxu0 0
  %3735 = vmatmul.mubr.bf16.gmra.mrb[0].mxu0 %v3544
  %v3736 = vpop.f32.mrb[0].mxu0
  %v3737 = vadd.f32 0.0, %v3736
  %v3738 = vpop.f32.mrb[0].mxu0
  %v3739 = vpop.f32.mrb[0].mxu0
  %v3740 = vadd.f32 0.0, %v3739
  %v3741 = vpop.f32.mrb[0].mxu0
  %3742 = vmatprep.mubr.bf16.mxu0 0
  %3743 = vmatmul.mubr.bf16.gmra.mrb[0].mxu0 %v3547
  %v3744 = vpop.f32.mrb[0].mxu0
  %v3745 = vadd.f32 0.0, %v3744
  %v3746 = vpop.f32.mrb[0].mxu0
  %v3747 = vpop.f32.mrb[0].mxu0
  %v3748 = vadd.f32 0.0, %v3747
  %v3749 = vpop.f32.mrb[0].mxu0
  %3750 = vmatprep.mubr.bf16.mxu0 0
  %3751 = vmatmul.mubr.bf16.gmra.mrb[0].mxu0 %v3550
  %v3752 = vpop.f32.mrb[0].mxu0
  %v3753 = vadd.f32 0.0, %v3752
  %v3754 = vpop.f32.mrb[0].mxu0
  %v3755 = vpop.f32.mrb[0].mxu0
  %v3756 = vadd.f32 0.0, %v3755
  %v3757 = vpop.f32.mrb[0].mxu0
  %3758 = vmatprep.mubr.bf16.mxu0 0
  %3759 = vmatmul.mubr.bf16.gmra.mrb[0].mxu0 %v3553
  %v3760 = vpop.f32.mrb[0].mxu0
  %v3761 = vadd.f32 0.0, %v3760
  %v3762 = vpop.f32.mrb[0].mxu0
  %v3763 = vpop.f32.mrb[0].mxu0
  %v3764 = vadd.f32 0.0, %v3763
  %v3765 = vpop.f32.mrb[0].mxu0
  %3766 = vmatprep.mubr.bf16.mxu0 0
  %3767 = vmatmul.mubr.bf16.gmra.mrb[0].mxu0 %v3556
  %v3768 = vpop.f32.mrb[0].mxu0
  %v3769 = vadd.f32 0.0, %v3768
  %v3770 = vpop.f32.mrb[0].mxu0
  %v3771 = vpop.f32.mrb[0].mxu0
  %v3772 = vadd.f32 0.0, %v3771
  %v3773 = vpop.f32.mrb[0].mxu0
  %3774 = vmatprep.mubr.bf16.mxu0 0
  %3775 = vmatmul.mubr.bf16.gmra.mrb[0].mxu0 %v3559
  %v3776 = vpop.f32.mrb[0].mxu0
  %v3777 = vadd.f32 0.0, %v3776
  %v3778 = vpop.f32.mrb[0].mxu0
  %v3779 = vpop.f32.mrb[0].mxu0
  %v3780 = vadd.f32 0.0, %v3779
  %v3781 = vpop.f32.mrb[0].mxu0
  %3782 = vmatprep.mubr.bf16.mxu0 0
  %3783 = vmatmul.mubr.bf16.gmra.mrb[0].mxu0 %v3562
  %v3784 = vpop.f32.mrb[0].mxu0
  %v3785 = vadd.f32 0.0, %v3784
  %v3786 = vpop.f32.mrb[0].mxu0
  %v3787 = vpop.f32.mrb[0].mxu0
  %v3788 = vadd.f32 0.0, %v3787
  %v3789 = vpop.f32.mrb[0].mxu0
  %3790 = vmatprep.mubr.bf16.mxu0 0
  %3791 = vmatmul.mubr.bf16.gmra.mrb[0].mxu0 %v3565
  %v3792 = vpop.f32.mrb[0].mxu0
  %v3793 = vadd.f32 0.0, %v3792
  %v3794 = vpop.f32.mrb[0].mxu0
  %v3795 = vpop.f32.mrb[0].mxu0
  %v3796 = vadd.f32 0.0, %v3795
  %v3797 = vpop.f32.mrb[0].mxu0
  %3798 = vmatprep.mubr.bf16.mxu0 0
  %3799 = vmatmul.mubr.bf16.gmra.mrb[0].mxu0 %v3568
  %v3800 = vpop.f32.mrb[0].mxu0
  %v3801 = vadd.f32 0.0, %v3800
  %v3802 = vpop.f32.mrb[0].mxu0
  %v3803 = vpop.f32.mrb[0].mxu0
  %v3804 = vadd.f32 0.0, %v3803
  %v3805 = vpop.f32.mrb[0].mxu0
  %3806 = vmatprep.mubr.bf16.mxu0 0
  %3807 = vmatmul.mubr.bf16.gmra.mrb[0].mxu0 %v3571
  %v3808 = vpop.f32.mrb[0].mxu0
  %v3809 = vadd.f32 0.0, %v3808
  %v3810 = vpop.f32.mrb[0].mxu0
  %v3811 = vpop.f32.mrb[0].mxu0
  %v3812 = vadd.f32 0.0, %v3811
  %v3813 = vpop.f32.mrb[0].mxu0
  %3814 = vmatprep.mubr.bf16.mxu0 0
  %3815 = vmatmul.mubr.bf16.gmra.mrb[0].mxu0 %v3574
  %v3816 = vpop.f32.mrb[0].mxu0
  %v3817 = vadd.f32 0.0, %v3816
  %v3818 = vpop.f32.mrb[0].mxu0
  %v3819 = vpop.f32.mrb[0].mxu0
  %v3820 = vadd.f32 0.0, %v3819
  %v3821 = vpop.f32.mrb[0].mxu0
  %3822 = vmatprep.mubr.bf16.mxu0 0
  %3823 = vmatmul.mubr.bf16.gmra.mrb[0].mxu0 %v3577
  %v3824 = vpop.f32.mrb[0].mxu0
  %v3825 = vadd.f32 0.0, %v3824
  %v3826 = vpop.f32.mrb[0].mxu0
  %v3827 = vpop.f32.mrb[0].mxu0
  %v3828 = vadd.f32 0.0, %v3827
  %v3829 = vpop.f32.mrb[0].mxu0
  %3830 = vmatprep.mubr.bf16.mxu0 0
  %3831 = vmatmul.mubr.bf16.gmra.mrb[0].mxu0 %v3580
  %v3832 = vpop.f32.mrb[0].mxu0
  %v3833 = vadd.f32 0.0, %v3832
  %v3834 = vpop.f32.mrb[0].mxu0
  %v3835 = vpop.f32.mrb[0].mxu0
  %v3836 = vadd.f32 0.0, %v3835
  %v3837 = vpop.f32.mrb[0].mxu0
  %3838 = vmatprep.mubr.bf16.mxu0 0
  %3839 = vmatmul.mubr.bf16.gmra.mrb[0].mxu0 %v3583
  %v3840 = vpop.f32.mrb[0].mxu0
  %v3841 = vadd.f32 0.0, %v3840
  %v3842 = vpop.f32.mrb[0].mxu0
  %v3843 = vpop.f32.mrb[0].mxu0
  %v3844 = vadd.f32 0.0, %v3843
  %v3845 = vpop.f32.mrb[0].mxu0
  %3846 = vmatprep.mubr.bf16.mxu0 0
  %3847 = vmatmul.mubr.bf16.gmra.mrb[0].mxu0 %v3586
  %v3848 = vpop.f32.mrb[0].mxu0
  %v3849 = vadd.f32 0.0, %v3848
  %v3850 = vpop.f32.mrb[0].mxu0
  %v3851 = vpop.f32.mrb[0].mxu0
  %v3852 = vadd.f32 0.0, %v3851
  %v3853 = vpop.f32.mrb[0].mxu0
  %3854 = vmatprep.mubr.bf16.mxu0 0
  %3855 = vmatmul.mubr.bf16.gmra.mrb[0].mxu0 %v3589
  %v3856 = vpop.f32.mrb[0].mxu0
  %v3857 = vadd.f32 0.0, %v3856
  %v3858 = vpop.f32.mrb[0].mxu0
  %v3859 = vpop.f32.mrb[0].mxu0
  %v3860 = vadd.f32 0.0, %v3859
  %v3861 = vpop.f32.mrb[0].mxu0
  %3862 = vmatprep.mubr.bf16.mxu0 0
  %3863 = vmatmul.mubr.bf16.gmra.mrb[0].mxu0 %v3592
  %v3864 = vpop.f32.mrb[0].mxu0
  %v3865 = vadd.f32 0.0, %v3864
  %v3866 = vpop.f32.mrb[0].mxu0
  %v3867 = vpop.f32.mrb[0].mxu0
  %v3868 = vadd.f32 0.0, %v3867
  %v3869 = vpop.f32.mrb[0].mxu0
  %3870 = vmatprep.mubr.bf16.mxu0 0
  %3871 = vmatmul.mubr.bf16.gmra.mrb[0].mxu0 %v3595
  %v3872 = vpop.f32.mrb[0].mxu0
  %v3873 = vadd.f32 0.0, %v3872
  %v3874 = vpop.f32.mrb[0].mxu0
  %v3875 = vpop.f32.mrb[0].mxu0
  %v3876 = vadd.f32 0.0, %v3875
  %v3877 = vpop.f32.mrb[0].mxu0
  %3878 = vmatprep.mubr.bf16.mxu0 0
  %3879 = vmatmul.mubr.bf16.gmra.mrb[0].mxu0 %v3598
  %v3880 = vpop.f32.mrb[0].mxu0
  %v3881 = vadd.f32 0.0, %v3880
  %v3882 = vpop.f32.mrb[0].mxu0
  %v3883 = vpop.f32.mrb[0].mxu0
  %v3884 = vadd.f32 0.0, %v3883
  %v3885 = vpop.f32.mrb[0].mxu0
  %3886 = vmatprep.mubr.bf16.mxu0 0
  %3887 = vmatmul.mubr.bf16.gmra.mrb[0].mxu0 %v3601
  %v3888 = vpop.f32.mrb[0].mxu0
  %v3889 = vadd.f32 0.0, %v3888
  %v3890 = vpop.f32.mrb[0].mxu0
  %v3891 = vpop.f32.mrb[0].mxu0
  %v3892 = vadd.f32 0.0, %v3891
  %v3893 = vpop.f32.mrb[0].mxu0
  %3894 = vdwg.mxu0
  %v3895 = vadd.f32 %v3344, %v3641
  %v3896 = vadd.f32 %v3345, %v3644
  %v3897 = vadd.f32 %v3346, %v3649
  %v3898 = vadd.f32 %v3347, %v3652
  %v3899 = vadd.f32 %v3348, %v3657
  %v3900 = vadd.f32 %v3349, %v3660
  %v3901 = vadd.f32 %v3350, %v3665
  %v3902 = vadd.f32 %v3351, %v3668
  %v3903 = vadd.f32 %v3352, %v3673
  %v3904 = vadd.f32 %v3353, %v3676
  %v3905 = vadd.f32 %v3354, %v3681
  %v3906 = vadd.f32 %v3355, %v3684
  %v3907 = vadd.f32 %v3356, %v3689
  %v3908 = vadd.f32 %v3357, %v3692
  %v3909 = vadd.f32 %v3358, %v3697
  %v3910 = vadd.f32 %v3359, %v3700
  %v3911 = vadd.f32 %v3360, %v3705
  %v3912 = vadd.f32 %v3361, %v3708
  %v3913 = vadd.f32 %v3362, %v3713
  %v3914 = vadd.f32 %v3363, %v3716
  %v3915 = vadd.f32 %v3364, %v3721
  %v3916 = vadd.f32 %v3365, %v3724
  %v3917 = vadd.f32 %v3366, %v3729
  %v3918 = vadd.f32 %v3367, %v3732
  %v3919 = vadd.f32 %v3368, %v3737
  %v3920 = vadd.f32 %v3369, %v3740
  %v3921 = vadd.f32 %v3370, %v3745
  %v3922 = vadd.f32 %v3371, %v3748
  %v3923 = vadd.f32 %v3372, %v3753
  %v3924 = vadd.f32 %v3373, %v3756
  %v3925 = vadd.f32 %v3374, %v3761
  %v3926 = vadd.f32 %v3375, %v3764
  %v3927 = vadd.f32 %v3376, %v3769
  %v3928 = vadd.f32 %v3377, %v3772
  %v3929 = vadd.f32 %v3378, %v3777
  %v3930 = vadd.f32 %v3379, %v3780
  %v3931 = vadd.f32 %v3380, %v3785
  %v3932 = vadd.f32 %v3381, %v3788
  %v3933 = vadd.f32 %v3382, %v3793
  %v3934 = vadd.f32 %v3383, %v3796
  %v3935 = vadd.f32 %v3384, %v3801
  %v3936 = vadd.f32 %v3385, %v3804
  %v3937 = vadd.f32 %v3386, %v3809
  %v3938 = vadd.f32 %v3387, %v3812
  %v3939 = vadd.f32 %v3388, %v3817
  %v3940 = vadd.f32 %v3389, %v3820
  %v3941 = vadd.f32 %v3390, %v3825
  %v3942 = vadd.f32 %v3391, %v3828
  %v3943 = vadd.f32 %v3392, %v3833
  %v3944 = vadd.f32 %v3393, %v3836
  %v3945 = vadd.f32 %v3394, %v3841
  %v3946 = vadd.f32 %v3395, %v3844
  %v3947 = vadd.f32 %v3396, %v3849
  %v3948 = vadd.f32 %v3397, %v3852
  %v3949 = vadd.f32 %v3398, %v3857
  %v3950 = vadd.f32 %v3399, %v3860
  %v3951 = vadd.f32 %v3400, %v3865
  %v3952 = vadd.f32 %v3401, %v3868
  %v3953 = vadd.f32 %v3402, %v3873
  %v3954 = vadd.f32 %v3403, %v3876
  %v3955 = vadd.f32 %v3404, %v3881
  %v3956 = vadd.f32 %v3405, %v3884
  %v3957 = vadd.f32 %v3406, %v3889
  %v3958 = vadd.f32 %v3407, %v3892
  %v3959 = vld [vmem:[%s3408 + $0x1] sm:$0xff]
  %v3960 = vld [vmem:[%s3408 + $0x9] sm:$0xff]
  %v3961 = vld [vmem:[%s3408 + $0x19] sm:$0xff]
  %v3962 = vld [vmem:[%s3408 + $0x21] sm:$0xff]
  %v3963 = vld [vmem:[%s3408 + $0x31] sm:$0xff]
  %v3964 = vld [vmem:[%s3408 + $0x39] sm:$0xff]
  %v3965 = vld [vmem:[%s3408 + $0x49] sm:$0xff]
  %v3966 = vld [vmem:[%s3408 + $0x51] sm:$0xff]
  %v3967 = vld [vmem:[%s3408 + $0x61] sm:$0xff]
  %v3968 = vld [vmem:[%s3408 + $0x69] sm:$0xff]
  %v3969 = vld [vmem:[%s3408 + $0x79] sm:$0xff]
  %v3970 = vld [vmem:[%s3408 + $0x81] sm:$0xff]
  %v3971 = vld [vmem:[%s3408 + $0x91] sm:$0xff]
  %v3972 = vld [vmem:[%s3408 + $0x99] sm:$0xff]
  %v3973 = vld [vmem:[%s3408 + $0xa9] sm:$0xff]
  %v3974 = vld [vmem:[%s3408 + $0xb1] sm:$0xff]
  %v3975 = vld [vmem:[%s3408 + $0xc1] sm:$0xff]
  %v3976 = vld [vmem:[%s3408 + $0xc9] sm:$0xff]
  %v3977 = vld [vmem:[%s3408 + $0xd9] sm:$0xff]
  %v3978 = vld [vmem:[%s3408 + $0xe1] sm:$0xff]
  %v3979 = vld [vmem:[%s3408 + $0xf1] sm:$0xff]
  %v3980 = vld [vmem:[%s3408 + $0xf9] sm:$0xff]
  %v3981 = vld [vmem:[%s3408 + $0x109] sm:$0xff]
  %v3982 = vld [vmem:[%s3408 + $0x111] sm:$0xff]
  %v3983 = vld [vmem:[%s3408 + $0x121] sm:$0xff]
  %v3984 = vld [vmem:[%s3408 + $0x129] sm:$0xff]
  %v3985 = vld [vmem:[%s3408 + $0x139] sm:$0xff]
  %v3986 = vld [vmem:[%s3408 + $0x141] sm:$0xff]
  %v3987 = vld [vmem:[%s3408 + $0x151] sm:$0xff]
  %v3988 = vld [vmem:[%s3408 + $0x159] sm:$0xff]
  %v3989 = vld [vmem:[%s3408 + $0x169] sm:$0xff]
  %v3990 = vld [vmem:[%s3408 + $0x171] sm:$0xff]
  %v3991 = vld [vmem:[%s3408 + $0x1b1] sm:$0xff]
  %v3992 = vld [vmem:[%s3408 + $0x1b9] sm:$0xff]
  %v3993 = vld [vmem:[%s3408 + $0x1c9] sm:$0xff]
  %v3994 = vld [vmem:[%s3408 + $0x1d1] sm:$0xff]
  %v3995 = vld [vmem:[%s3408 + $0x1e1] sm:$0xff]
  %v3996 = vld [vmem:[%s3408 + $0x1e9] sm:$0xff]
  %v3997 = vld [vmem:[%s3408 + $0x1f9] sm:$0xff]
  %v3998 = vld [vmem:[%s3408 + $0x201] sm:$0xff]
  %v3999 = vld [vmem:[%s3408 + $0x211] sm:$0xff]
  %v4000 = vld [vmem:[%s3408 + $0x219] sm:$0xff]
  %v4001 = vld [vmem:[%s3408 + $0x229] sm:$0xff]
  %v4002 = vld [vmem:[%s3408 + $0x231] sm:$0xff]
  %v4003 = vld [vmem:[%s3408 + $0x241] sm:$0xff]
  %v4004 = vld [vmem:[%s3408 + $0x249] sm:$0xff]
  %v4005 = vld [vmem:[%s3408 + $0x259] sm:$0xff]
  %v4006 = vld [vmem:[%s3408 + $0x261] sm:$0xff]
  %v4007 = vld [vmem:[%s3408 + $0x271] sm:$0xff]
  %v4008 = vld [vmem:[%s3408 + $0x279] sm:$0xff]
  %v4009 = vld [vmem:[%s3408 + $0x289] sm:$0xff]
  %v4010 = vld [vmem:[%s3408 + $0x291] sm:$0xff]
  %v4011 = vld [vmem:[%s3408 + $0x2a1] sm:$0xff]
  %v4012 = vld [vmem:[%s3408 + $0x2a9] sm:$0xff]
  %v4013 = vld [vmem:[%s3408 + $0x2b9] sm:$0xff]
  %v4014 = vld [vmem:[%s3408 + $0x2c1] sm:$0xff]
  %v4015 = vld [vmem:[%s3408 + $0x2d1] sm:$0xff]
  %v4016 = vld [vmem:[%s3408 + $0x2d9] sm:$0xff]
  %v4017 = vld [vmem:[%s3408 + $0x2e9] sm:$0xff]
  %v4018 = vld [vmem:[%s3408 + $0x2f1] sm:$0xff]
  %v4019 = vld [vmem:[%s3408 + $0x301] sm:$0xff]
  %v4020 = vld [vmem:[%s3408 + $0x309] sm:$0xff]
  %v4021 = vld [vmem:[%s3408 + $0x319] sm:$0xff]
  %v4022 = vld [vmem:[%s3408 + $0x321] sm:$0xff]
  %v4023 = vpack.c.bf16 %v3960, %v3959
  %v4024 = vpack.c.bf16 %v3962, %v3961
  %v4025 = vpack.c.bf16 %v3964, %v3963
  %v4026 = vpack.c.bf16 %v3966, %v3965
  %v4027 = vpack.c.bf16 %v3968, %v3967
  %v4028 = vpack.c.bf16 %v3970, %v3969
  %v4029 = vpack.c.bf16 %v3972, %v3971
  %v4030 = vpack.c.bf16 %v3974, %v3973
  %v4031 = vpack.c.bf16 %v3976, %v3975
  %v4032 = vpack.c.bf16 %v3978, %v3977
  %v4033 = vpack.c.bf16 %v3980, %v3979
  %v4034 = vpack.c.bf16 %v3982, %v3981
  %v4035 = vpack.c.bf16 %v3984, %v3983
  %v4036 = vpack.c.bf16 %v3986, %v3985
  %v4037 = vpack.c.bf16 %v3988, %v3987
  %v4038 = vpack.c.bf16 %v3990, %v3989
  %v4039 = vpack.c.bf16 %v3992, %v3991
  %v4040 = vpack.c.bf16 %v3994, %v3993
  %v4041 = vpack.c.bf16 %v3996, %v3995
  %v4042 = vpack.c.bf16 %v3998, %v3997
  %v4043 = vpack.c.bf16 %v4000, %v3999
  %v4044 = vpack.c.bf16 %v4002, %v4001
  %v4045 = vpack.c.bf16 %v4004, %v4003
  %v4046 = vpack.c.bf16 %v4006, %v4005
  %v4047 = vpack.c.bf16 %v4008, %v4007
  %v4048 = vpack.c.bf16 %v4010, %v4009
  %v4049 = vpack.c.bf16 %v4012, %v4011
  %v4050 = vpack.c.bf16 %v4014, %v4013
  %v4051 = vpack.c.bf16 %v4016, %v4015
  %v4052 = vpack.c.bf16 %v4018, %v4017
  %v4053 = vpack.c.bf16 %v4020, %v4019
  %v4054 = vpack.c.bf16 %v4022, %v4021
  %s4055 = scalar_lea.vmem %s1, 14
  %v4056 = vld [vmem:[%s4055] sm:$0x3]
  %v4058 = vsel %vm27, %v4023, 0
  %v4061 = vsel %vm27, %v4024, 0
  %v4064 = vsel %vm27, %v4025, 0
  %v4067 = vsel %vm27, %v4026, 0
  %v4070 = vsel %vm27, %v4027, 0
  %v4073 = vsel %vm27, %v4028, 0
  %v4076 = vsel %vm27, %v4029, 0
  %v4079 = vsel %vm27, %v4030, 0
  %v4082 = vsel %vm27, %v4031, 0
  %v4085 = vsel %vm27, %v4032, 0
  %v4088 = vsel %vm27, %v4033, 0
  %v4091 = vsel %vm27, %v4034, 0
  %v4094 = vsel %vm27, %v4035, 0
  %v4097 = vsel %vm27, %v4036, 0
  %v4100 = vsel %vm27, %v4037, 0
  %v4103 = vsel %vm27, %v4038, 0
  %v4106 = vsel %vm27, %v4039, 0
  %v4109 = vsel %vm27, %v4040, 0
  %v4112 = vsel %vm27, %v4041, 0
  %v4115 = vsel %vm27, %v4042, 0
  %v4118 = vsel %vm27, %v4043, 0
  %v4121 = vsel %vm27, %v4044, 0
  %v4124 = vsel %vm27, %v4045, 0
  %v4127 = vsel %vm27, %v4046, 0
  %v4130 = vsel %vm27, %v4047, 0
  %v4133 = vsel %vm27, %v4048, 0
  %v4136 = vsel %vm27, %v4049, 0
  %v4139 = vsel %vm27, %v4050, 0
  %v4142 = vsel %vm27, %v4051, 0
  %v4145 = vsel %vm27, %v4052, 0
  %v4148 = vsel %vm27, %v4053, 0
  %v4151 = vsel %vm27, %v4054, 0
  %v4154 = vsel %vm527, %v4056, 0
  %4156 = vmatprep.subr.bf16.mxu0 0
  %4157 = vmatpush1.bf16.msra.mxu0 %v4154
  %4158 = vmatprep.subr.bf16.mxu0 0
  %4159 = vmatpush1.bf16.msra.mxu0 0
  %4160 = vmatprep.subr.bf16.mxu0 0
  %4161 = vmatpush1.bf16.msra.mxu0 0
  %4162 = vmatprep.subr.bf16.mxu0 0
  %4163 = vmatpush1.bf16.msra.mxu0 0
  %4164 = vmatprep.subr.bf16.mxu0 0
  %4165 = vmatpush1.bf16.msra.mxu0 0
  %4166 = vmatprep.subr.bf16.mxu0 0
  %4167 = vmatpush1.bf16.msra.mxu0 0
  %4168 = vmatprep.subr.bf16.mxu0 0
  %4169 = vmatpush1.bf16.msra.mxu0 0
  %4170 = vmatprep.subr.bf16.mxu0 0
  %4171 = vmatpush1.bf16.msra.mxu0 0
  %4172 = vmatprep.subr.bf16.mxu0 0
  %4173 = vmatpush1.bf16.msra.mxu0 0
  %4174 = vmatprep.subr.bf16.mxu0 0
  %4175 = vmatpush1.bf16.msra.mxu0 0
  %4176 = vmatprep.subr.bf16.mxu0 0
  %4177 = vmatpush1.bf16.msra.mxu0 0
  %4178 = vmatprep.subr.bf16.mxu0 0
  %4179 = vmatpush1.bf16.msra.mxu0 0
  %4180 = vmatprep.subr.bf16.mxu0 0
  %4181 = vmatpush1.bf16.msra.mxu0 0
  %4182 = vmatprep.subr.bf16.mxu0 0
  %4183 = vmatpush1.bf16.msra.mxu0 0
  %4184 = vmatprep.subr.bf16.mxu0 0
  %4185 = vmatpush1.bf16.msra.mxu0 0
  %4186 = vmatprep.subr.bf16.mxu0 0
  %4187 = vmatpush1.bf16.msra.mxu0 0
  %4188 = vmatprep.mubr.bf16.mxu0 0
  %4189 = vmatmul.mubr.bf16.gmra.mrb[0].mxu0 %v4058
  %v4190 = vpop.f32.mrb[0].mxu0
  %v4191 = vadd.f32 0.0, %v4190
  %v4192 = vpop.f32.mrb[0].mxu0
  %v4193 = vpop.f32.mrb[0].mxu0
  %v4194 = vadd.f32 0.0, %v4193
  %v4195 = vpop.f32.mrb[0].mxu0
  %4196 = vmatprep.mubr.bf16.mxu0 0
  %4197 = vmatmul.mubr.bf16.gmra.mrb[0].mxu0 %v4061
  %v4198 = vpop.f32.mrb[0].mxu0
  %v4199 = vadd.f32 0.0, %v4198
  %v4200 = vpop.f32.mrb[0].mxu0
  %v4201 = vpop.f32.mrb[0].mxu0
  %v4202 = vadd.f32 0.0, %v4201
  %v4203 = vpop.f32.mrb[0].mxu0
  %4204 = vmatprep.mubr.bf16.mxu0 0
  %4205 = vmatmul.mubr.bf16.gmra.mrb[0].mxu0 %v4064
  %v4206 = vpop.f32.mrb[0].mxu0
  %v4207 = vadd.f32 0.0, %v4206
  %v4208 = vpop.f32.mrb[0].mxu0
  %v4209 = vpop.f32.mrb[0].mxu0
  %v4210 = vadd.f32 0.0, %v4209
  %v4211 = vpop.f32.mrb[0].mxu0
  %4212 = vmatprep.mubr.bf16.mxu0 0
  %4213 = vmatmul.mubr.bf16.gmra.mrb[0].mxu0 %v4067
  %v4214 = vpop.f32.mrb[0].mxu0
  %v4215 = vadd.f32 0.0, %v4214
  %v4216 = vpop.f32.mrb[0].mxu0
  %v4217 = vpop.f32.mrb[0].mxu0
  %v4218 = vadd.f32 0.0, %v4217
  %v4219 = vpop.f32.mrb[0].mxu0
  %4220 = vmatprep.mubr.bf16.mxu0 0
  %4221 = vmatmul.mubr.bf16.gmra.mrb[0].mxu0 %v4070
  %v4222 = vpop.f32.mrb[0].mxu0
  %v4223 = vadd.f32 0.0, %v4222
  %v4224 = vpop.f32.mrb[0].mxu0
  %v4225 = vpop.f32.mrb[0].mxu0
  %v4226 = vadd.f32 0.0, %v4225
  %v4227 = vpop.f32.mrb[0].mxu0
  %4228 = vmatprep.mubr.bf16.mxu0 0
  %4229 = vmatmul.mubr.bf16.gmra.mrb[0].mxu0 %v4073
  %v4230 = vpop.f32.mrb[0].mxu0
  %v4231 = vadd.f32 0.0, %v4230
  %v4232 = vpop.f32.mrb[0].mxu0
  %v4233 = vpop.f32.mrb[0].mxu0
  %v4234 = vadd.f32 0.0, %v4233
  %v4235 = vpop.f32.mrb[0].mxu0
  %4236 = vmatprep.mubr.bf16.mxu0 0
  %4237 = vmatmul.mubr.bf16.gmra.mrb[0].mxu0 %v4076
  %v4238 = vpop.f32.mrb[0].mxu0
  %v4239 = vadd.f32 0.0, %v4238
  %v4240 = vpop.f32.mrb[0].mxu0
  %v4241 = vpop.f32.mrb[0].mxu0
  %v4242 = vadd.f32 0.0, %v4241
  %v4243 = vpop.f32.mrb[0].mxu0
  %4244 = vmatprep.mubr.bf16.mxu0 0
  %4245 = vmatmul.mubr.bf16.gmra.mrb[0].mxu0 %v4079
  %v4246 = vpop.f32.mrb[0].mxu0
  %v4247 = vadd.f32 0.0, %v4246
  %v4248 = vpop.f32.mrb[0].mxu0
  %v4249 = vpop.f32.mrb[0].mxu0
  %v4250 = vadd.f32 0.0, %v4249
  %v4251 = vpop.f32.mrb[0].mxu0
  %4252 = vmatprep.mubr.bf16.mxu0 0
  %4253 = vmatmul.mubr.bf16.gmra.mrb[0].mxu0 %v4082
  %v4254 = vpop.f32.mrb[0].mxu0
  %v4255 = vadd.f32 0.0, %v4254
  %v4256 = vpop.f32.mrb[0].mxu0
  %v4257 = vpop.f32.mrb[0].mxu0
  %v4258 = vadd.f32 0.0, %v4257
  %v4259 = vpop.f32.mrb[0].mxu0
  %4260 = vmatprep.mubr.bf16.mxu0 0
  %4261 = vmatmul.mubr.bf16.gmra.mrb[0].mxu0 %v4085
  %v4262 = vpop.f32.mrb[0].mxu0
  %v4263 = vadd.f32 0.0, %v4262
  %v4264 = vpop.f32.mrb[0].mxu0
  %v4265 = vpop.f32.mrb[0].mxu0
  %v4266 = vadd.f32 0.0, %v4265
  %v4267 = vpop.f32.mrb[0].mxu0
  %4268 = vmatprep.mubr.bf16.mxu0 0
  %4269 = vmatmul.mubr.bf16.gmra.mrb[0].mxu0 %v4088
  %v4270 = vpop.f32.mrb[0].mxu0
  %v4271 = vadd.f32 0.0, %v4270
  %v4272 = vpop.f32.mrb[0].mxu0
  %v4273 = vpop.f32.mrb[0].mxu0
  %v4274 = vadd.f32 0.0, %v4273
  %v4275 = vpop.f32.mrb[0].mxu0
  %4276 = vmatprep.mubr.bf16.mxu0 0
  %4277 = vmatmul.mubr.bf16.gmra.mrb[0].mxu0 %v4091
  %v4278 = vpop.f32.mrb[0].mxu0
  %v4279 = vadd.f32 0.0, %v4278
  %v4280 = vpop.f32.mrb[0].mxu0
  %v4281 = vpop.f32.mrb[0].mxu0
  %v4282 = vadd.f32 0.0, %v4281
  %v4283 = vpop.f32.mrb[0].mxu0
  %4284 = vmatprep.mubr.bf16.mxu0 0
  %4285 = vmatmul.mubr.bf16.gmra.mrb[0].mxu0 %v4094
  %v4286 = vpop.f32.mrb[0].mxu0
  %v4287 = vadd.f32 0.0, %v4286
  %v4288 = vpop.f32.mrb[0].mxu0
  %v4289 = vpop.f32.mrb[0].mxu0
  %v4290 = vadd.f32 0.0, %v4289
  %v4291 = vpop.f32.mrb[0].mxu0
  %4292 = vmatprep.mubr.bf16.mxu0 0
  %4293 = vmatmul.mubr.bf16.gmra.mrb[0].mxu0 %v4097
  %v4294 = vpop.f32.mrb[0].mxu0
  %v4295 = vadd.f32 0.0, %v4294
  %v4296 = vpop.f32.mrb[0].mxu0
  %v4297 = vpop.f32.mrb[0].mxu0
  %v4298 = vadd.f32 0.0, %v4297
  %v4299 = vpop.f32.mrb[0].mxu0
  %4300 = vmatprep.mubr.bf16.mxu0 0
  %4301 = vmatmul.mubr.bf16.gmra.mrb[0].mxu0 %v4100
  %v4302 = vpop.f32.mrb[0].mxu0
  %v4303 = vadd.f32 0.0, %v4302
  %v4304 = vpop.f32.mrb[0].mxu0
  %v4305 = vpop.f32.mrb[0].mxu0
  %v4306 = vadd.f32 0.0, %v4305
  %v4307 = vpop.f32.mrb[0].mxu0
  %4308 = vmatprep.mubr.bf16.mxu0 0
  %4309 = vmatmul.mubr.bf16.gmra.mrb[0].mxu0 %v4103
  %v4310 = vpop.f32.mrb[0].mxu0
  %v4311 = vadd.f32 0.0, %v4310
  %v4312 = vpop.f32.mrb[0].mxu0
  %v4313 = vpop.f32.mrb[0].mxu0
  %v4314 = vadd.f32 0.0, %v4313
  %v4315 = vpop.f32.mrb[0].mxu0
  %4316 = vmatprep.mubr.bf16.mxu0 0
  %4317 = vmatmul.mubr.bf16.gmra.mrb[0].mxu0 %v4106
  %v4318 = vpop.f32.mrb[0].mxu0
  %v4319 = vadd.f32 0.0, %v4318
  %v4320 = vpop.f32.mrb[0].mxu0
  %v4321 = vpop.f32.mrb[0].mxu0
  %v4322 = vadd.f32 0.0, %v4321
  %v4323 = vpop.f32.mrb[0].mxu0
  %4324 = vmatprep.mubr.bf16.mxu0 0
  %4325 = vmatmul.mubr.bf16.gmra.mrb[0].mxu0 %v4109
  %v4326 = vpop.f32.mrb[0].mxu0
  %v4327 = vadd.f32 0.0, %v4326
  %v4328 = vpop.f32.mrb[0].mxu0
  %v4329 = vpop.f32.mrb[0].mxu0
  %v4330 = vadd.f32 0.0, %v4329
  %v4331 = vpop.f32.mrb[0].mxu0
  %4332 = vmatprep.mubr.bf16.mxu0 0
  %4333 = vmatmul.mubr.bf16.gmra.mrb[0].mxu0 %v4112
  %v4334 = vpop.f32.mrb[0].mxu0
  %v4335 = vadd.f32 0.0, %v4334
  %v4336 = vpop.f32.mrb[0].mxu0
  %v4337 = vpop.f32.mrb[0].mxu0
  %v4338 = vadd.f32 0.0, %v4337
  %v4339 = vpop.f32.mrb[0].mxu0
  %4340 = vmatprep.mubr.bf16.mxu0 0
  %4341 = vmatmul.mubr.bf16.gmra.mrb[0].mxu0 %v4115
  %v4342 = vpop.f32.mrb[0].mxu0
  %v4343 = vadd.f32 0.0, %v4342
  %v4344 = vpop.f32.mrb[0].mxu0
  %v4345 = vpop.f32.mrb[0].mxu0
  %v4346 = vadd.f32 0.0, %v4345
  %v4347 = vpop.f32.mrb[0].mxu0
  %4348 = vmatprep.mubr.bf16.mxu0 0
  %4349 = vmatmul.mubr.bf16.gmra.mrb[0].mxu0 %v4118
  %v4350 = vpop.f32.mrb[0].mxu0
  %v4351 = vadd.f32 0.0, %v4350
  %v4352 = vpop.f32.mrb[0].mxu0
  %v4353 = vpop.f32.mrb[0].mxu0
  %v4354 = vadd.f32 0.0, %v4353
  %v4355 = vpop.f32.mrb[0].mxu0
  %4356 = vmatprep.mubr.bf16.mxu0 0
  %4357 = vmatmul.mubr.bf16.gmra.mrb[0].mxu0 %v4121
  %v4358 = vpop.f32.mrb[0].mxu0
  %v4359 = vadd.f32 0.0, %v4358
  %v4360 = vpop.f32.mrb[0].mxu0
  %v4361 = vpop.f32.mrb[0].mxu0
  %v4362 = vadd.f32 0.0, %v4361
  %v4363 = vpop.f32.mrb[0].mxu0
  %4364 = vmatprep.mubr.bf16.mxu0 0
  %4365 = vmatmul.mubr.bf16.gmra.mrb[0].mxu0 %v4124
  %v4366 = vpop.f32.mrb[0].mxu0
  %v4367 = vadd.f32 0.0, %v4366
  %v4368 = vpop.f32.mrb[0].mxu0
  %v4369 = vpop.f32.mrb[0].mxu0
  %v4370 = vadd.f32 0.0, %v4369
  %v4371 = vpop.f32.mrb[0].mxu0
  %4372 = vmatprep.mubr.bf16.mxu0 0
  %4373 = vmatmul.mubr.bf16.gmra.mrb[0].mxu0 %v4127
  %v4374 = vpop.f32.mrb[0].mxu0
  %v4375 = vadd.f32 0.0, %v4374
  %v4376 = vpop.f32.mrb[0].mxu0
  %v4377 = vpop.f32.mrb[0].mxu0
  %v4378 = vadd.f32 0.0, %v4377
  %v4379 = vpop.f32.mrb[0].mxu0
  %4380 = vmatprep.mubr.bf16.mxu0 0
  %4381 = vmatmul.mubr.bf16.gmra.mrb[0].mxu0 %v4130
  %v4382 = vpop.f32.mrb[0].mxu0
  %v4383 = vadd.f32 0.0, %v4382
  %v4384 = vpop.f32.mrb[0].mxu0
  %v4385 = vpop.f32.mrb[0].mxu0
  %v4386 = vadd.f32 0.0, %v4385
  %v4387 = vpop.f32.mrb[0].mxu0
  %4388 = vmatprep.mubr.bf16.mxu0 0
  %4389 = vmatmul.mubr.bf16.gmra.mrb[0].mxu0 %v4133
  %v4390 = vpop.f32.mrb[0].mxu0
  %v4391 = vadd.f32 0.0, %v4390
  %v4392 = vpop.f32.mrb[0].mxu0
  %v4393 = vpop.f32.mrb[0].mxu0
  %v4394 = vadd.f32 0.0, %v4393
  %v4395 = vpop.f32.mrb[0].mxu0
  %4396 = vmatprep.mubr.bf16.mxu0 0
  %4397 = vmatmul.mubr.bf16.gmra.mrb[0].mxu0 %v4136
  %v4398 = vpop.f32.mrb[0].mxu0
  %v4399 = vadd.f32 0.0, %v4398
  %v4400 = vpop.f32.mrb[0].mxu0
  %v4401 = vpop.f32.mrb[0].mxu0
  %v4402 = vadd.f32 0.0, %v4401
  %v4403 = vpop.f32.mrb[0].mxu0
  %4404 = vmatprep.mubr.bf16.mxu0 0
  %4405 = vmatmul.mubr.bf16.gmra.mrb[0].mxu0 %v4139
  %v4406 = vpop.f32.mrb[0].mxu0
  %v4407 = vadd.f32 0.0, %v4406
  %v4408 = vpop.f32.mrb[0].mxu0
  %v4409 = vpop.f32.mrb[0].mxu0
  %v4410 = vadd.f32 0.0, %v4409
  %v4411 = vpop.f32.mrb[0].mxu0
  %4412 = vmatprep.mubr.bf16.mxu0 0
  %4413 = vmatmul.mubr.bf16.gmra.mrb[0].mxu0 %v4142
  %v4414 = vpop.f32.mrb[0].mxu0
  %v4415 = vadd.f32 0.0, %v4414
  %v4416 = vpop.f32.mrb[0].mxu0
  %v4417 = vpop.f32.mrb[0].mxu0
  %v4418 = vadd.f32 0.0, %v4417
  %v4419 = vpop.f32.mrb[0].mxu0
  %4420 = vmatprep.mubr.bf16.mxu0 0
  %4421 = vmatmul.mubr.bf16.gmra.mrb[0].mxu0 %v4145
  %v4422 = vpop.f32.mrb[0].mxu0
  %v4423 = vadd.f32 0.0, %v4422
  %v4424 = vpop.f32.mrb[0].mxu0
  %v4425 = vpop.f32.mrb[0].mxu0
  %v4426 = vadd.f32 0.0, %v4425
  %v4427 = vpop.f32.mrb[0].mxu0
  %4428 = vmatprep.mubr.bf16.mxu0 0
  %4429 = vmatmul.mubr.bf16.gmra.mrb[0].mxu0 %v4148
  %v4430 = vpop.f32.mrb[0].mxu0
  %v4431 = vadd.f32 0.0, %v4430
  %v4432 = vpop.f32.mrb[0].mxu0
  %v4433 = vpop.f32.mrb[0].mxu0
  %v4434 = vadd.f32 0.0, %v4433
  %v4435 = vpop.f32.mrb[0].mxu0
  %4436 = vmatprep.mubr.bf16.mxu0 0
  %4437 = vmatmul.mubr.bf16.gmra.mrb[0].mxu0 %v4151
  %v4438 = vpop.f32.mrb[0].mxu0
  %v4439 = vadd.f32 0.0, %v4438
  %v4440 = vpop.f32.mrb[0].mxu0
  %v4441 = vpop.f32.mrb[0].mxu0
  %v4442 = vadd.f32 0.0, %v4441
  %v4443 = vpop.f32.mrb[0].mxu0
  %4444 = vdwg.mxu0
  %v4445 = vadd.f32 %v3895, %v4191
  %v4446 = vadd.f32 %v3896, %v4194
  %v4447 = vadd.f32 %v3897, %v4199
  %v4448 = vadd.f32 %v3898, %v4202
  %v4449 = vadd.f32 %v3899, %v4207
  %v4450 = vadd.f32 %v3900, %v4210
  %v4451 = vadd.f32 %v3901, %v4215
  %v4452 = vadd.f32 %v3902, %v4218
  %v4453 = vadd.f32 %v3903, %v4223
  %v4454 = vadd.f32 %v3904, %v4226
  %v4455 = vadd.f32 %v3905, %v4231
  %v4456 = vadd.f32 %v3906, %v4234
  %v4457 = vadd.f32 %v3907, %v4239
  %v4458 = vadd.f32 %v3908, %v4242
  %v4459 = vadd.f32 %v3909, %v4247
  %v4460 = vadd.f32 %v3910, %v4250
  %v4461 = vadd.f32 %v3911, %v4255
  %v4462 = vadd.f32 %v3912, %v4258
  %v4463 = vadd.f32 %v3913, %v4263
  %v4464 = vadd.f32 %v3914, %v4266
  %v4465 = vadd.f32 %v3915, %v4271
  %v4466 = vadd.f32 %v3916, %v4274
  %v4467 = vadd.f32 %v3917, %v4279
  %v4468 = vadd.f32 %v3918, %v4282
  %v4469 = vadd.f32 %v3919, %v4287
  %v4470 = vadd.f32 %v3920, %v4290
  %v4471 = vadd.f32 %v3921, %v4295
  %v4472 = vadd.f32 %v3922, %v4298
  %v4473 = vadd.f32 %v3923, %v4303
  %v4474 = vadd.f32 %v3924, %v4306
  %v4475 = vadd.f32 %v3925, %v4311
  %v4476 = vadd.f32 %v3926, %v4314
  %v4477 = vadd.f32 %v3927, %v4319
  %v4478 = vadd.f32 %v3928, %v4322
  %v4479 = vadd.f32 %v3929, %v4327
  %v4480 = vadd.f32 %v3930, %v4330
  %v4481 = vadd.f32 %v3931, %v4335
  %v4482 = vadd.f32 %v3932, %v4338
  %v4483 = vadd.f32 %v3933, %v4343
  %v4484 = vadd.f32 %v3934, %v4346
  %v4485 = vadd.f32 %v3935, %v4351
  %v4486 = vadd.f32 %v3936, %v4354
  %v4487 = vadd.f32 %v3937, %v4359
  %v4488 = vadd.f32 %v3938, %v4362
  %v4489 = vadd.f32 %v3939, %v4367
  %v4490 = vadd.f32 %v3940, %v4370
  %v4491 = vadd.f32 %v3941, %v4375
  %v4492 = vadd.f32 %v3942, %v4378
  %v4493 = vadd.f32 %v3943, %v4383
  %v4494 = vadd.f32 %v3944, %v4386
  %v4495 = vadd.f32 %v3945, %v4391
  %v4496 = vadd.f32 %v3946, %v4394
  %v4497 = vadd.f32 %v3947, %v4399
  %v4498 = vadd.f32 %v3948, %v4402
  %v4499 = vadd.f32 %v3949, %v4407
  %v4500 = vadd.f32 %v3950, %v4410
  %v4501 = vadd.f32 %v3951, %v4415
  %v4502 = vadd.f32 %v3952, %v4418
  %v4503 = vadd.f32 %v3953, %v4423
  %v4504 = vadd.f32 %v3954, %v4426
  %v4505 = vadd.f32 %v3955, %v4431
  %v4506 = vadd.f32 %v3956, %v4434
  %v4507 = vadd.f32 %v3957, %v4439
  %v4508 = vadd.f32 %v3958, %v4442
  %v4509 = vld [vmem:[%s3408 + $0x2] sm:$0xff]
  %v4510 = vld [vmem:[%s3408 + $0xa] sm:$0xff]
  %v4511 = vld [vmem:[%s3408 + $0x1a] sm:$0xff]
  %v4512 = vld [vmem:[%s3408 + $0x22] sm:$0xff]
  %v4513 = vld [vmem:[%s3408 + $0x32] sm:$0xff]
  %v4514 = vld [vmem:[%s3408 + $0x3a] sm:$0xff]
  %v4515 = vld [vmem:[%s3408 + $0x4a] sm:$0xff]
  %v4516 = vld [vmem:[%s3408 + $0x52] sm:$0xff]
  %v4517 = vld [vmem:[%s3408 + $0x62] sm:$0xff]
  %v4518 = vld [vmem:[%s3408 + $0x6a] sm:$0xff]
  %v4519 = vld [vmem:[%s3408 + $0x7a] sm:$0xff]
  %v4520 = vld [vmem:[%s3408 + $0x82] sm:$0xff]
  %v4521 = vld [vmem:[%s3408 + $0x92] sm:$0xff]
  %v4522 = vld [vmem:[%s3408 + $0x9a] sm:$0xff]
  %v4523 = vld [vmem:[%s3408 + $0xaa] sm:$0xff]
  %v4524 = vld [vmem:[%s3408 + $0xb2] sm:$0xff]
  %v4525 = vld [vmem:[%s3408 + $0xc2] sm:$0xff]
  %v4526 = vld [vmem:[%s3408 + $0xca] sm:$0xff]
  %v4527 = vld [vmem:[%s3408 + $0xda] sm:$0xff]
  %v4528 = vld [vmem:[%s3408 + $0xe2] sm:$0xff]
  %v4529 = vld [vmem:[%s3408 + $0xf2] sm:$0xff]
  %v4530 = vld [vmem:[%s3408 + $0xfa] sm:$0xff]
  %v4531 = vld [vmem:[%s3408 + $0x10a] sm:$0xff]
  %v4532 = vld [vmem:[%s3408 + $0x112] sm:$0xff]
  %v4533 = vld [vmem:[%s3408 + $0x122] sm:$0xff]
  %v4534 = vld [vmem:[%s3408 + $0x12a] sm:$0xff]
  %v4535 = vld [vmem:[%s3408 + $0x13a] sm:$0xff]
  %v4536 = vld [vmem:[%s3408 + $0x142] sm:$0xff]
  %v4537 = vld [vmem:[%s3408 + $0x152] sm:$0xff]
  %v4538 = vld [vmem:[%s3408 + $0x15a] sm:$0xff]
  %v4539 = vld [vmem:[%s3408 + $0x16a] sm:$0xff]
  %v4540 = vld [vmem:[%s3408 + $0x172] sm:$0xff]
  %v4541 = vld [vmem:[%s3408 + $0x1b2] sm:$0xff]
  %v4542 = vld [vmem:[%s3408 + $0x1ba] sm:$0xff]
  %v4543 = vld [vmem:[%s3408 + $0x1ca] sm:$0xff]
  %v4544 = vld [vmem:[%s3408 + $0x1d2] sm:$0xff]
  %v4545 = vld [vmem:[%s3408 + $0x1e2] sm:$0xff]
  %v4546 = vld [vmem:[%s3408 + $0x1ea] sm:$0xff]
  %v4547 = vld [vmem:[%s3408 + $0x1fa] sm:$0xff]
  %v4548 = vld [vmem:[%s3408 + $0x202] sm:$0xff]
  %v4549 = vld [vmem:[%s3408 + $0x212] sm:$0xff]
  %v4550 = vld [vmem:[%s3408 + $0x21a] sm:$0xff]
  %v4551 = vld [vmem:[%s3408 + $0x22a] sm:$0xff]
  %v4552 = vld [vmem:[%s3408 + $0x232] sm:$0xff]
  %v4553 = vld [vmem:[%s3408 + $0x242] sm:$0xff]
  %v4554 = vld [vmem:[%s3408 + $0x24a] sm:$0xff]
  %v4555 = vld [vmem:[%s3408 + $0x25a] sm:$0xff]
  %v4556 = vld [vmem:[%s3408 + $0x262] sm:$0xff]
  %v4557 = vld [vmem:[%s3408 + $0x272] sm:$0xff]
  %v4558 = vld [vmem:[%s3408 + $0x27a] sm:$0xff]
  %v4559 = vld [vmem:[%s3408 + $0x28a] sm:$0xff]
  %v4560 = vld [vmem:[%s3408 + $0x292] sm:$0xff]
  %v4561 = vld [vmem:[%s3408 + $0x2a2] sm:$0xff]
  %v4562 = vld [vmem:[%s3408 + $0x2aa] sm:$0xff]
  %v4563 = vld [vmem:[%s3408 + $0x2ba] sm:$0xff]
  %v4564 = vld [vmem:[%s3408 + $0x2c2] sm:$0xff]
  %v4565 = vld [vmem:[%s3408 + $0x2d2] sm:$0xff]
  %v4566 = vld [vmem:[%s3408 + $0x2da] sm:$0xff]
  %v4567 = vld [vmem:[%s3408 + $0x2ea] sm:$0xff]
  %v4568 = vld [vmem:[%s3408 + $0x2f2] sm:$0xff]
  %v4569 = vld [vmem:[%s3408 + $0x302] sm:$0xff]
  %v4570 = vld [vmem:[%s3408 + $0x30a] sm:$0xff]
  %v4571 = vld [vmem:[%s3408 + $0x31a] sm:$0xff]
  %v4572 = vld [vmem:[%s3408 + $0x322] sm:$0xff]
  %v4573 = vpack.c.bf16 %v4510, %v4509
  %v4574 = vpack.c.bf16 %v4512, %v4511
  %v4575 = vpack.c.bf16 %v4514, %v4513
  %v4576 = vpack.c.bf16 %v4516, %v4515
  %v4577 = vpack.c.bf16 %v4518, %v4517
  %v4578 = vpack.c.bf16 %v4520, %v4519
  %v4579 = vpack.c.bf16 %v4522, %v4521
  %v4580 = vpack.c.bf16 %v4524, %v4523
  %v4581 = vpack.c.bf16 %v4526, %v4525
  %v4582 = vpack.c.bf16 %v4528, %v4527
  %v4583 = vpack.c.bf16 %v4530, %v4529
  %v4584 = vpack.c.bf16 %v4532, %v4531
  %v4585 = vpack.c.bf16 %v4534, %v4533
  %v4586 = vpack.c.bf16 %v4536, %v4535
  %v4587 = vpack.c.bf16 %v4538, %v4537
  %v4588 = vpack.c.bf16 %v4540, %v4539
  %v4589 = vpack.c.bf16 %v4542, %v4541
  %v4590 = vpack.c.bf16 %v4544, %v4543
  %v4591 = vpack.c.bf16 %v4546, %v4545
  %v4592 = vpack.c.bf16 %v4548, %v4547
  %v4593 = vpack.c.bf16 %v4550, %v4549
  %v4594 = vpack.c.bf16 %v4552, %v4551
  %v4595 = vpack.c.bf16 %v4554, %v4553
  %v4596 = vpack.c.bf16 %v4556, %v4555
  %v4597 = vpack.c.bf16 %v4558, %v4557
  %v4598 = vpack.c.bf16 %v4560, %v4559
  %v4599 = vpack.c.bf16 %v4562, %v4561
  %v4600 = vpack.c.bf16 %v4564, %v4563
  %v4601 = vpack.c.bf16 %v4566, %v4565
  %v4602 = vpack.c.bf16 %v4568, %v4567
  %v4603 = vpack.c.bf16 %v4570, %v4569
  %v4604 = vpack.c.bf16 %v4572, %v4571
  %s4605 = scalar_lea.vmem %s1, 16
  %v4606 = vld [vmem:[%s4605] sm:$0x3]
  %v4608 = vsel %vm27, %v4573, 0
  %v4611 = vsel %vm27, %v4574, 0
  %v4614 = vsel %vm27, %v4575, 0
  %v4617 = vsel %vm27, %v4576, 0
  %v4620 = vsel %vm27, %v4577, 0
  %v4623 = vsel %vm27, %v4578, 0
  %v4626 = vsel %vm27, %v4579, 0
  %v4629 = vsel %vm27, %v4580, 0
  %v4632 = vsel %vm27, %v4581, 0
  %v4635 = vsel %vm27, %v4582, 0
  %v4638 = vsel %vm27, %v4583, 0
  %v4641 = vsel %vm27, %v4584, 0
  %v4644 = vsel %vm27, %v4585, 0
  %v4647 = vsel %vm27, %v4586, 0
  %v4650 = vsel %vm27, %v4587, 0
  %v4653 = vsel %vm27, %v4588, 0
  %v4656 = vsel %vm27, %v4589, 0
  %v4659 = vsel %vm27, %v4590, 0
  %v4662 = vsel %vm27, %v4591, 0
  %v4665 = vsel %vm27, %v4592, 0
  %v4668 = vsel %vm27, %v4593, 0
  %v4671 = vsel %vm27, %v4594, 0
  %v4674 = vsel %vm27, %v4595, 0
  %v4677 = vsel %vm27, %v4596, 0
  %v4680 = vsel %vm27, %v4597, 0
  %v4683 = vsel %vm27, %v4598, 0
  %v4686 = vsel %vm27, %v4599, 0
  %v4689 = vsel %vm27, %v4600, 0
  %v4692 = vsel %vm27, %v4601, 0
  %v4695 = vsel %vm27, %v4602, 0
  %v4698 = vsel %vm27, %v4603, 0
  %v4701 = vsel %vm27, %v4604, 0
  %v4704 = vsel %vm527, %v4606, 0
  %4706 = vmatprep.subr.bf16.mxu0 0
  %4707 = vmatpush1.bf16.msra.mxu0 %v4704
  %4708 = vmatprep.subr.bf16.mxu0 0
  %4709 = vmatpush1.bf16.msra.mxu0 0
  %4710 = vmatprep.subr.bf16.mxu0 0
  %4711 = vmatpush1.bf16.msra.mxu0 0
  %4712 = vmatprep.subr.bf16.mxu0 0
  %4713 = vmatpush1.bf16.msra.mxu0 0
  %4714 = vmatprep.subr.bf16.mxu0 0
  %4715 = vmatpush1.bf16.msra.mxu0 0
  %4716 = vmatprep.subr.bf16.mxu0 0
  %4717 = vmatpush1.bf16.msra.mxu0 0
  %4718 = vmatprep.subr.bf16.mxu0 0
  %4719 = vmatpush1.bf16.msra.mxu0 0
  %4720 = vmatprep.subr.bf16.mxu0 0
  %4721 = vmatpush1.bf16.msra.mxu0 0
  %4722 = vmatprep.subr.bf16.mxu0 0
  %4723 = vmatpush1.bf16.msra.mxu0 0
  %4724 = vmatprep.subr.bf16.mxu0 0
  %4725 = vmatpush1.bf16.msra.mxu0 0
  %4726 = vmatprep.subr.bf16.mxu0 0
  %4727 = vmatpush1.bf16.msra.mxu0 0
  %4728 = vmatprep.subr.bf16.mxu0 0
  %4729 = vmatpush1.bf16.msra.mxu0 0
  %4730 = vmatprep.subr.bf16.mxu0 0
  %4731 = vmatpush1.bf16.msra.mxu0 0
  %4732 = vmatprep.subr.bf16.mxu0 0
  %4733 = vmatpush1.bf16.msra.mxu0 0
  %4734 = vmatprep.subr.bf16.mxu0 0
  %4735 = vmatpush1.bf16.msra.mxu0 0
  %4736 = vmatprep.subr.bf16.mxu0 0
  %4737 = vmatpush1.bf16.msra.mxu0 0
  %4738 = vmatprep.mubr.bf16.mxu0 0
  %4739 = vmatmul.mubr.bf16.gmra.mrb[0].mxu0 %v4608
  %v4740 = vpop.f32.mrb[0].mxu0
  %v4741 = vadd.f32 0.0, %v4740
  %v4742 = vpop.f32.mrb[0].mxu0
  %v4743 = vpop.f32.mrb[0].mxu0
  %v4744 = vadd.f32 0.0, %v4743
  %v4745 = vpop.f32.mrb[0].mxu0
  %4746 = vmatprep.mubr.bf16.mxu0 0
  %4747 = vmatmul.mubr.bf16.gmra.mrb[0].mxu0 %v4611
  %v4748 = vpop.f32.mrb[0].mxu0
  %v4749 = vadd.f32 0.0, %v4748
  %v4750 = vpop.f32.mrb[0].mxu0
  %v4751 = vpop.f32.mrb[0].mxu0
  %v4752 = vadd.f32 0.0, %v4751
  %v4753 = vpop.f32.mrb[0].mxu0
  %4754 = vmatprep.mubr.bf16.mxu0 0
  %4755 = vmatmul.mubr.bf16.gmra.mrb[0].mxu0 %v4614
  %v4756 = vpop.f32.mrb[0].mxu0
  %v4757 = vadd.f32 0.0, %v4756
  %v4758 = vpop.f32.mrb[0].mxu0
  %v4759 = vpop.f32.mrb[0].mxu0
  %v4760 = vadd.f32 0.0, %v4759
  %v4761 = vpop.f32.mrb[0].mxu0
  %4762 = vmatprep.mubr.bf16.mxu0 0
  %4763 = vmatmul.mubr.bf16.gmra.mrb[0].mxu0 %v4617
  %v4764 = vpop.f32.mrb[0].mxu0
  %v4765 = vadd.f32 0.0, %v4764
  %v4766 = vpop.f32.mrb[0].mxu0
  %v4767 = vpop.f32.mrb[0].mxu0
  %v4768 = vadd.f32 0.0, %v4767
  %v4769 = vpop.f32.mrb[0].mxu0
  %4770 = vmatprep.mubr.bf16.mxu0 0
  %4771 = vmatmul.mubr.bf16.gmra.mrb[0].mxu0 %v4620
  %v4772 = vpop.f32.mrb[0].mxu0
  %v4773 = vadd.f32 0.0, %v4772
  %v4774 = vpop.f32.mrb[0].mxu0
  %v4775 = vpop.f32.mrb[0].mxu0
  %v4776 = vadd.f32 0.0, %v4775
  %v4777 = vpop.f32.mrb[0].mxu0
  %4778 = vmatprep.mubr.bf16.mxu0 0
  %4779 = vmatmul.mubr.bf16.gmra.mrb[0].mxu0 %v4623
  %v4780 = vpop.f32.mrb[0].mxu0
  %v4781 = vadd.f32 0.0, %v4780
  %v4782 = vpop.f32.mrb[0].mxu0
  %v4783 = vpop.f32.mrb[0].mxu0
  %v4784 = vadd.f32 0.0, %v4783
  %v4785 = vpop.f32.mrb[0].mxu0
  %4786 = vmatprep.mubr.bf16.mxu0 0
  %4787 = vmatmul.mubr.bf16.gmra.mrb[0].mxu0 %v4626
  %v4788 = vpop.f32.mrb[0].mxu0
  %v4789 = vadd.f32 0.0, %v4788
  %v4790 = vpop.f32.mrb[0].mxu0
  %v4791 = vpop.f32.mrb[0].mxu0
  %v4792 = vadd.f32 0.0, %v4791
  %v4793 = vpop.f32.mrb[0].mxu0
  %4794 = vmatprep.mubr.bf16.mxu0 0
  %4795 = vmatmul.mubr.bf16.gmra.mrb[0].mxu0 %v4629
  %v4796 = vpop.f32.mrb[0].mxu0
  %v4797 = vadd.f32 0.0, %v4796
  %v4798 = vpop.f32.mrb[0].mxu0
  %v4799 = vpop.f32.mrb[0].mxu0
  %v4800 = vadd.f32 0.0, %v4799
  %v4801 = vpop.f32.mrb[0].mxu0
  %4802 = vmatprep.mubr.bf16.mxu0 0
  %4803 = vmatmul.mubr.bf16.gmra.mrb[0].mxu0 %v4632
  %v4804 = vpop.f32.mrb[0].mxu0
  %v4805 = vadd.f32 0.0, %v4804
  %v4806 = vpop.f32.mrb[0].mxu0
  %v4807 = vpop.f32.mrb[0].mxu0
  %v4808 = vadd.f32 0.0, %v4807
  %v4809 = vpop.f32.mrb[0].mxu0
  %4810 = vmatprep.mubr.bf16.mxu0 0
  %4811 = vmatmul.mubr.bf16.gmra.mrb[0].mxu0 %v4635
  %v4812 = vpop.f32.mrb[0].mxu0
  %v4813 = vadd.f32 0.0, %v4812
  %v4814 = vpop.f32.mrb[0].mxu0
  %v4815 = vpop.f32.mrb[0].mxu0
  %v4816 = vadd.f32 0.0, %v4815
  %v4817 = vpop.f32.mrb[0].mxu0
  %4818 = vmatprep.mubr.bf16.mxu0 0
  %4819 = vmatmul.mubr.bf16.gmra.mrb[0].mxu0 %v4638
  %v4820 = vpop.f32.mrb[0].mxu0
  %v4821 = vadd.f32 0.0, %v4820
  %v4822 = vpop.f32.mrb[0].mxu0
  %v4823 = vpop.f32.mrb[0].mxu0
  %v4824 = vadd.f32 0.0, %v4823
  %v4825 = vpop.f32.mrb[0].mxu0
  %4826 = vmatprep.mubr.bf16.mxu0 0
  %4827 = vmatmul.mubr.bf16.gmra.mrb[0].mxu0 %v4641
  %v4828 = vpop.f32.mrb[0].mxu0
  %v4829 = vadd.f32 0.0, %v4828
  %v4830 = vpop.f32.mrb[0].mxu0
  %v4831 = vpop.f32.mrb[0].mxu0
  %v4832 = vadd.f32 0.0, %v4831
  %v4833 = vpop.f32.mrb[0].mxu0
  %4834 = vmatprep.mubr.bf16.mxu0 0
  %4835 = vmatmul.mubr.bf16.gmra.mrb[0].mxu0 %v4644
  %v4836 = vpop.f32.mrb[0].mxu0
  %v4837 = vadd.f32 0.0, %v4836
  %v4838 = vpop.f32.mrb[0].mxu0
  %v4839 = vpop.f32.mrb[0].mxu0
  %v4840 = vadd.f32 0.0, %v4839
  %v4841 = vpop.f32.mrb[0].mxu0
  %4842 = vmatprep.mubr.bf16.mxu0 0
  %4843 = vmatmul.mubr.bf16.gmra.mrb[0].mxu0 %v4647
  %v4844 = vpop.f32.mrb[0].mxu0
  %v4845 = vadd.f32 0.0, %v4844
  %v4846 = vpop.f32.mrb[0].mxu0
  %v4847 = vpop.f32.mrb[0].mxu0
  %v4848 = vadd.f32 0.0, %v4847
  %v4849 = vpop.f32.mrb[0].mxu0
  %4850 = vmatprep.mubr.bf16.mxu0 0
  %4851 = vmatmul.mubr.bf16.gmra.mrb[0].mxu0 %v4650
  %v4852 = vpop.f32.mrb[0].mxu0
  %v4853 = vadd.f32 0.0, %v4852
  %v4854 = vpop.f32.mrb[0].mxu0
  %v4855 = vpop.f32.mrb[0].mxu0
  %v4856 = vadd.f32 0.0, %v4855
  %v4857 = vpop.f32.mrb[0].mxu0
  %4858 = vmatprep.mubr.bf16.mxu0 0
  %4859 = vmatmul.mubr.bf16.gmra.mrb[0].mxu0 %v4653
  %v4860 = vpop.f32.mrb[0].mxu0
  %v4861 = vadd.f32 0.0, %v4860
  %v4862 = vpop.f32.mrb[0].mxu0
  %v4863 = vpop.f32.mrb[0].mxu0
  %v4864 = vadd.f32 0.0, %v4863
  %v4865 = vpop.f32.mrb[0].mxu0
  %4866 = vmatprep.mubr.bf16.mxu0 0
  %4867 = vmatmul.mubr.bf16.gmra.mrb[0].mxu0 %v4656
  %v4868 = vpop.f32.mrb[0].mxu0
  %v4869 = vadd.f32 0.0, %v4868
  %v4870 = vpop.f32.mrb[0].mxu0
  %v4871 = vpop.f32.mrb[0].mxu0
  %v4872 = vadd.f32 0.0, %v4871
  %v4873 = vpop.f32.mrb[0].mxu0
  %4874 = vmatprep.mubr.bf16.mxu0 0
  %4875 = vmatmul.mubr.bf16.gmra.mrb[0].mxu0 %v4659
  %v4876 = vpop.f32.mrb[0].mxu0
  %v4877 = vadd.f32 0.0, %v4876
  %v4878 = vpop.f32.mrb[0].mxu0
  %v4879 = vpop.f32.mrb[0].mxu0
  %v4880 = vadd.f32 0.0, %v4879
  %v4881 = vpop.f32.mrb[0].mxu0
  %4882 = vmatprep.mubr.bf16.mxu0 0
  %4883 = vmatmul.mubr.bf16.gmra.mrb[0].mxu0 %v4662
  %v4884 = vpop.f32.mrb[0].mxu0
  %v4885 = vadd.f32 0.0, %v4884
  %v4886 = vpop.f32.mrb[0].mxu0
  %v4887 = vpop.f32.mrb[0].mxu0
  %v4888 = vadd.f32 0.0, %v4887
  %v4889 = vpop.f32.mrb[0].mxu0
  %4890 = vmatprep.mubr.bf16.mxu0 0
  %4891 = vmatmul.mubr.bf16.gmra.mrb[0].mxu0 %v4665
  %v4892 = vpop.f32.mrb[0].mxu0
  %v4893 = vadd.f32 0.0, %v4892
  %v4894 = vpop.f32.mrb[0].mxu0
  %v4895 = vpop.f32.mrb[0].mxu0
  %v4896 = vadd.f32 0.0, %v4895
  %v4897 = vpop.f32.mrb[0].mxu0
  %4898 = vmatprep.mubr.bf16.mxu0 0
  %4899 = vmatmul.mubr.bf16.gmra.mrb[0].mxu0 %v4668
  %v4900 = vpop.f32.mrb[0].mxu0
  %v4901 = vadd.f32 0.0, %v4900
  %v4902 = vpop.f32.mrb[0].mxu0
  %v4903 = vpop.f32.mrb[0].mxu0
  %v4904 = vadd.f32 0.0, %v4903
  %v4905 = vpop.f32.mrb[0].mxu0
  %4906 = vmatprep.mubr.bf16.mxu0 0
  %4907 = vmatmul.mubr.bf16.gmra.mrb[0].mxu0 %v4671
  %v4908 = vpop.f32.mrb[0].mxu0
  %v4909 = vadd.f32 0.0, %v4908
  %v4910 = vpop.f32.mrb[0].mxu0
  %v4911 = vpop.f32.mrb[0].mxu0
  %v4912 = vadd.f32 0.0, %v4911
  %v4913 = vpop.f32.mrb[0].mxu0
  %4914 = vmatprep.mubr.bf16.mxu0 0
  %4915 = vmatmul.mubr.bf16.gmra.mrb[0].mxu0 %v4674
  %v4916 = vpop.f32.mrb[0].mxu0
  %v4917 = vadd.f32 0.0, %v4916
  %v4918 = vpop.f32.mrb[0].mxu0
  %v4919 = vpop.f32.mrb[0].mxu0
  %v4920 = vadd.f32 0.0, %v4919
  %v4921 = vpop.f32.mrb[0].mxu0
  %4922 = vmatprep.mubr.bf16.mxu0 0
  %4923 = vmatmul.mubr.bf16.gmra.mrb[0].mxu0 %v4677
  %v4924 = vpop.f32.mrb[0].mxu0
  %v4925 = vadd.f32 0.0, %v4924
  %v4926 = vpop.f32.mrb[0].mxu0
  %v4927 = vpop.f32.mrb[0].mxu0
  %v4928 = vadd.f32 0.0, %v4927
  %v4929 = vpop.f32.mrb[0].mxu0
  %4930 = vmatprep.mubr.bf16.mxu0 0
  %4931 = vmatmul.mubr.bf16.gmra.mrb[0].mxu0 %v4680
  %v4932 = vpop.f32.mrb[0].mxu0
  %v4933 = vadd.f32 0.0, %v4932
  %v4934 = vpop.f32.mrb[0].mxu0
  %v4935 = vpop.f32.mrb[0].mxu0
  %v4936 = vadd.f32 0.0, %v4935
  %v4937 = vpop.f32.mrb[0].mxu0
  %4938 = vmatprep.mubr.bf16.mxu0 0
  %4939 = vmatmul.mubr.bf16.gmra.mrb[0].mxu0 %v4683
  %v4940 = vpop.f32.mrb[0].mxu0
  %v4941 = vadd.f32 0.0, %v4940
  %v4942 = vpop.f32.mrb[0].mxu0
  %v4943 = vpop.f32.mrb[0].mxu0
  %v4944 = vadd.f32 0.0, %v4943
  %v4945 = vpop.f32.mrb[0].mxu0
  %4946 = vmatprep.mubr.bf16.mxu0 0
  %4947 = vmatmul.mubr.bf16.gmra.mrb[0].mxu0 %v4686
  %v4948 = vpop.f32.mrb[0].mxu0
  %v4949 = vadd.f32 0.0, %v4948
  %v4950 = vpop.f32.mrb[0].mxu0
  %v4951 = vpop.f32.mrb[0].mxu0
  %v4952 = vadd.f32 0.0, %v4951
  %v4953 = vpop.f32.mrb[0].mxu0
  %4954 = vmatprep.mubr.bf16.mxu0 0
  %4955 = vmatmul.mubr.bf16.gmra.mrb[0].mxu0 %v4689
  %v4956 = vpop.f32.mrb[0].mxu0
  %v4957 = vadd.f32 0.0, %v4956
  %v4958 = vpop.f32.mrb[0].mxu0
  %v4959 = vpop.f32.mrb[0].mxu0
  %v4960 = vadd.f32 0.0, %v4959
  %v4961 = vpop.f32.mrb[0].mxu0
  %4962 = vmatprep.mubr.bf16.mxu0 0
  %4963 = vmatmul.mubr.bf16.gmra.mrb[0].mxu0 %v4692
  %v4964 = vpop.f32.mrb[0].mxu0
  %v4965 = vadd.f32 0.0, %v4964
  %v4966 = vpop.f32.mrb[0].mxu0
  %v4967 = vpop.f32.mrb[0].mxu0
  %v4968 = vadd.f32 0.0, %v4967
  %v4969 = vpop.f32.mrb[0].mxu0
  %4970 = vmatprep.mubr.bf16.mxu0 0
  %4971 = vmatmul.mubr.bf16.gmra.mrb[0].mxu0 %v4695
  %v4972 = vpop.f32.mrb[0].mxu0
  %v4973 = vadd.f32 0.0, %v4972
  %v4974 = vpop.f32.mrb[0].mxu0
  %v4975 = vpop.f32.mrb[0].mxu0
  %v4976 = vadd.f32 0.0, %v4975
  %v4977 = vpop.f32.mrb[0].mxu0
  %4978 = vmatprep.mubr.bf16.mxu0 0
  %4979 = vmatmul.mubr.bf16.gmra.mrb[0].mxu0 %v4698
  %v4980 = vpop.f32.mrb[0].mxu0
  %v4981 = vadd.f32 0.0, %v4980
  %v4982 = vpop.f32.mrb[0].mxu0
  %v4983 = vpop.f32.mrb[0].mxu0
  %v4984 = vadd.f32 0.0, %v4983
  %v4985 = vpop.f32.mrb[0].mxu0
  %4986 = vmatprep.mubr.bf16.mxu0 0
  %4987 = vmatmul.mubr.bf16.gmra.mrb[0].mxu0 %v4701
  %v4988 = vpop.f32.mrb[0].mxu0
  %v4989 = vadd.f32 0.0, %v4988
  %v4990 = vpop.f32.mrb[0].mxu0
  %v4991 = vpop.f32.mrb[0].mxu0
  %v4992 = vadd.f32 0.0, %v4991
  %v4993 = vpop.f32.mrb[0].mxu0
  %4994 = vdwg.mxu0
  %v4995 = vadd.f32 %v4445, %v4741
  %v4996 = vadd.f32 %v4446, %v4744
  %v4997 = vadd.f32 %v4447, %v4749
  %v4998 = vadd.f32 %v4448, %v4752
  %v4999 = vadd.f32 %v4449, %v4757
  %v5000 = vadd.f32 %v4450, %v4760
  %v5001 = vadd.f32 %v4451, %v4765
  %v5002 = vadd.f32 %v4452, %v4768
  %v5003 = vadd.f32 %v4453, %v4773
  %v5004 = vadd.f32 %v4454, %v4776
  %v5005 = vadd.f32 %v4455, %v4781
  %v5006 = vadd.f32 %v4456, %v4784
  %v5007 = vadd.f32 %v4457, %v4789
  %v5008 = vadd.f32 %v4458, %v4792
  %v5009 = vadd.f32 %v4459, %v4797
  %v5010 = vadd.f32 %v4460, %v4800
  %v5011 = vadd.f32 %v4461, %v4805
  %v5012 = vadd.f32 %v4462, %v4808
  %v5013 = vadd.f32 %v4463, %v4813
  %v5014 = vadd.f32 %v4464, %v4816
  %v5015 = vadd.f32 %v4465, %v4821
  %v5016 = vadd.f32 %v4466, %v4824
  %v5017 = vadd.f32 %v4467, %v4829
  %v5018 = vadd.f32 %v4468, %v4832
  %v5019 = vadd.f32 %v4469, %v4837
  %v5020 = vadd.f32 %v4470, %v4840
  %v5021 = vadd.f32 %v4471, %v4845
  %v5022 = vadd.f32 %v4472, %v4848
  %v5023 = vadd.f32 %v4473, %v4853
  %v5024 = vadd.f32 %v4474, %v4856
  %v5025 = vadd.f32 %v4475, %v4861
  %v5026 = vadd.f32 %v4476, %v4864
  %v5027 = vadd.f32 %v4477, %v4869
  %v5028 = vadd.f32 %v4478, %v4872
  %v5029 = vadd.f32 %v4479, %v4877
  %v5030 = vadd.f32 %v4480, %v4880
  %v5031 = vadd.f32 %v4481, %v4885
  %v5032 = vadd.f32 %v4482, %v4888
  %v5033 = vadd.f32 %v4483, %v4893
  %v5034 = vadd.f32 %v4484, %v4896
  %v5035 = vadd.f32 %v4485, %v4901
  %v5036 = vadd.f32 %v4486, %v4904
  %v5037 = vadd.f32 %v4487, %v4909
  %v5038 = vadd.f32 %v4488, %v4912
  %v5039 = vadd.f32 %v4489, %v4917
  %v5040 = vadd.f32 %v4490, %v4920
  %v5041 = vadd.f32 %v4491, %v4925
  %v5042 = vadd.f32 %v4492, %v4928
  %v5043 = vadd.f32 %v4493, %v4933
  %v5044 = vadd.f32 %v4494, %v4936
  %v5045 = vadd.f32 %v4495, %v4941
  %v5046 = vadd.f32 %v4496, %v4944
  %v5047 = vadd.f32 %v4497, %v4949
  %v5048 = vadd.f32 %v4498, %v4952
  %v5049 = vadd.f32 %v4499, %v4957
  %v5050 = vadd.f32 %v4500, %v4960
  %v5051 = vadd.f32 %v4501, %v4965
  %v5052 = vadd.f32 %v4502, %v4968
  %v5053 = vadd.f32 %v4503, %v4973
  %v5054 = vadd.f32 %v4504, %v4976
  %v5055 = vadd.f32 %v4505, %v4981
  %v5056 = vadd.f32 %v4506, %v4984
  %v5057 = vadd.f32 %v4507, %v4989
  %v5058 = vadd.f32 %v4508, %v4992
  %v5059 = vld [vmem:[%s2] sm:$0x1]
  %v5060 = vld [vmem:[%s3] sm:$0x1]
  %vm5061 = vcmask 64512
  %v5062 = vsel %vm5061, %v4995, 0.0
  %v5063 = vsel %vm5061, %v4996, 0.0
  %v5064 = vadd.f32 %v5062, %v5063
  %v5065 = vsel %vm5061, %v4997, 0.0
  %v5066 = vadd.f32 %v5064, %v5065
  %v5067 = vsel %vm5061, %v4998, 0.0
  %v5068 = vadd.f32 %v5066, %v5067
  %v5069 = vsel %vm5061, %v4999, 0.0
  %v5070 = vadd.f32 %v5068, %v5069
  %v5071 = vsel %vm5061, %v5000, 0.0
  %v5072 = vadd.f32 %v5070, %v5071
  %v5073 = vsel %vm5061, %v5001, 0.0
  %v5074 = vadd.f32 %v5072, %v5073
  %v5075 = vsel %vm5061, %v5002, 0.0
  %v5076 = vadd.f32 %v5074, %v5075
  %v5077 = vsel %vm5061, %v5003, 0.0
  %v5078 = vadd.f32 %v5076, %v5077
  %v5079 = vsel %vm5061, %v5004, 0.0
  %v5080 = vadd.f32 %v5078, %v5079
  %v5081 = vsel %vm5061, %v5005, 0.0
  %v5082 = vadd.f32 %v5080, %v5081
  %v5083 = vsel %vm5061, %v5006, 0.0
  %v5084 = vadd.f32 %v5082, %v5083
  %v5085 = vsel %vm5061, %v5007, 0.0
  %v5086 = vadd.f32 %v5084, %v5085
  %v5087 = vsel %vm5061, %v5008, 0.0
  %v5088 = vadd.f32 %v5086, %v5087
  %v5089 = vsel %vm5061, %v5009, 0.0
  %v5090 = vadd.f32 %v5088, %v5089
  %v5091 = vsel %vm5061, %v5010, 0.0
  %v5092 = vadd.f32 %v5090, %v5091
  %v5093 = vsel %vm5061, %v5011, 0.0
  %v5094 = vadd.f32 %v5092, %v5093
  %v5095 = vsel %vm5061, %v5012, 0.0
  %v5096 = vadd.f32 %v5094, %v5095
  %v5097 = vsel %vm5061, %v5013, 0.0
  %v5098 = vadd.f32 %v5096, %v5097
  %v5099 = vsel %vm5061, %v5014, 0.0
  %v5100 = vadd.f32 %v5098, %v5099
  %v5101 = vsel %vm5061, %v5015, 0.0
  %v5102 = vadd.f32 %v5100, %v5101
  %v5103 = vsel %vm5061, %v5016, 0.0
  %v5104 = vadd.f32 %v5102, %v5103
  %v5105 = vsel %vm5061, %v5017, 0.0
  %v5106 = vadd.f32 %v5104, %v5105
  %v5107 = vsel %vm5061, %v5018, 0.0
  %v5108 = vadd.f32 %v5106, %v5107
  %v5109 = vsel %vm5061, %v5019, 0.0
  %v5110 = vadd.f32 %v5108, %v5109
  %v5111 = vsel %vm5061, %v5020, 0.0
  %v5112 = vadd.f32 %v5110, %v5111
  %v5113 = vsel %vm5061, %v5021, 0.0
  %v5114 = vadd.f32 %v5112, %v5113
  %v5115 = vsel %vm5061, %v5022, 0.0
  %v5116 = vadd.f32 %v5114, %v5115
  %v5117 = vsel %vm5061, %v5023, 0.0
  %v5118 = vadd.f32 %v5116, %v5117
  %v5119 = vsel %vm5061, %v5024, 0.0
  %v5120 = vadd.f32 %v5118, %v5119
  %v5121 = vsel %vm5061, %v5025, 0.0
  %v5122 = vadd.f32 %v5120, %v5121
  %v5123 = vsel %vm5061, %v5026, 0.0
  %v5124 = vadd.f32 %v5122, %v5123
  %v5125 = vsel %vm5061, %v5027, 0.0
  %v5126 = vadd.f32 %v5124, %v5125
  %v5127 = vsel %vm5061, %v5028, 0.0
  %v5128 = vadd.f32 %v5126, %v5127
  %v5129 = vsel %vm5061, %v5029, 0.0
  %v5130 = vadd.f32 %v5128, %v5129
  %v5131 = vsel %vm5061, %v5030, 0.0
  %v5132 = vadd.f32 %v5130, %v5131
  %v5133 = vsel %vm5061, %v5031, 0.0
  %v5134 = vadd.f32 %v5132, %v5133
  %v5135 = vsel %vm5061, %v5032, 0.0
  %v5136 = vadd.f32 %v5134, %v5135
  %v5137 = vsel %vm5061, %v5033, 0.0
  %v5138 = vadd.f32 %v5136, %v5137
  %v5139 = vsel %vm5061, %v5034, 0.0
  %v5140 = vadd.f32 %v5138, %v5139
  %v5141 = vsel %vm5061, %v5035, 0.0
  %v5142 = vadd.f32 %v5140, %v5141
  %v5143 = vsel %vm5061, %v5036, 0.0
  %v5144 = vadd.f32 %v5142, %v5143
  %v5145 = vsel %vm5061, %v5037, 0.0
  %v5146 = vadd.f32 %v5144, %v5145
  %v5147 = vsel %vm5061, %v5038, 0.0
  %v5148 = vadd.f32 %v5146, %v5147
  %v5149 = vsel %vm5061, %v5039, 0.0
  %v5150 = vadd.f32 %v5148, %v5149
  %v5151 = vsel %vm5061, %v5040, 0.0
  %v5152 = vadd.f32 %v5150, %v5151
  %v5153 = vsel %vm5061, %v5041, 0.0
  %v5154 = vadd.f32 %v5152, %v5153
  %v5155 = vsel %vm5061, %v5042, 0.0
  %v5156 = vadd.f32 %v5154, %v5155
  %v5157 = vsel %vm5061, %v5043, 0.0
  %v5158 = vadd.f32 %v5156, %v5157
  %v5159 = vsel %vm5061, %v5044, 0.0
  %v5160 = vadd.f32 %v5158, %v5159
  %v5161 = vsel %vm5061, %v5045, 0.0
  %v5162 = vadd.f32 %v5160, %v5161
  %v5163 = vsel %vm5061, %v5046, 0.0
  %v5164 = vadd.f32 %v5162, %v5163
  %v5165 = vsel %vm5061, %v5047, 0.0
  %v5166 = vadd.f32 %v5164, %v5165
  %v5167 = vsel %vm5061, %v5048, 0.0
  %v5168 = vadd.f32 %v5166, %v5167
  %v5169 = vsel %vm5061, %v5049, 0.0
  %v5170 = vadd.f32 %v5168, %v5169
  %v5171 = vsel %vm5061, %v5050, 0.0
  %v5172 = vadd.f32 %v5170, %v5171
  %v5173 = vsel %vm5061, %v5051, 0.0
  %v5174 = vadd.f32 %v5172, %v5173
  %v5175 = vsel %vm5061, %v5052, 0.0
  %v5176 = vadd.f32 %v5174, %v5175
  %v5177 = vsel %vm5061, %v5053, 0.0
  %v5178 = vadd.f32 %v5176, %v5177
  %v5179 = vsel %vm5061, %v5054, 0.0
  %v5180 = vadd.f32 %v5178, %v5179
  %v5181 = vsel %vm5061, %v5055, 0.0
  %v5182 = vadd.f32 %v5180, %v5181
  %v5183 = vsel %vm5061, %v5056, 0.0
  %v5184 = vadd.f32 %v5182, %v5183
  %v5185 = vsel %vm5061, %v5057, 0.0
  %v5186 = vadd.f32 %v5184, %v5185
  %v5187 = vsel %vm5061, %v5058, 0.0
  %v5188 = vadd.f32 %v5186, %v5187
  %v5189 = vrot.slane %v5188, 4
  %v5190 = vadd.f32 %v5188, %v5189
  %v5191 = vrot.slane %v5190, 2
  %v5192 = vadd.f32 %v5190, %v5191
  %v5193 = vrot.slane %v5192, 1
  %v5194 = vadd.f32 %v5192, %v5193
  %v5195 = vmul.f32 %v5194, 0.001953125
  %v5196 = vsub.f32 %v4995, %v5195
  %v5197 = vsub.f32 %v4996, %v5195
  %v5198 = vsub.f32 %v4997, %v5195
  %v5199 = vsub.f32 %v4998, %v5195
  %v5200 = vsub.f32 %v4999, %v5195
  %v5201 = vsub.f32 %v5000, %v5195
  %v5202 = vsub.f32 %v5001, %v5195
  %v5203 = vsub.f32 %v5002, %v5195
  %v5204 = vsub.f32 %v5003, %v5195
  %v5205 = vsub.f32 %v5004, %v5195
  %v5206 = vsub.f32 %v5005, %v5195
  %v5207 = vsub.f32 %v5006, %v5195
  %v5208 = vsub.f32 %v5007, %v5195
  %v5209 = vsub.f32 %v5008, %v5195
  %v5210 = vsub.f32 %v5009, %v5195
  %v5211 = vsub.f32 %v5010, %v5195
  %v5212 = vsub.f32 %v5011, %v5195
  %v5213 = vsub.f32 %v5012, %v5195
  %v5214 = vsub.f32 %v5013, %v5195
  %v5215 = vsub.f32 %v5014, %v5195
  %v5216 = vsub.f32 %v5015, %v5195
  %v5217 = vsub.f32 %v5016, %v5195
  %v5218 = vsub.f32 %v5017, %v5195
  %v5219 = vsub.f32 %v5018, %v5195
  %v5220 = vsub.f32 %v5019, %v5195
  %v5221 = vsub.f32 %v5020, %v5195
  %v5222 = vsub.f32 %v5021, %v5195
  %v5223 = vsub.f32 %v5022, %v5195
  %v5224 = vsub.f32 %v5023, %v5195
  %v5225 = vsub.f32 %v5024, %v5195
  %v5226 = vsub.f32 %v5025, %v5195
  %v5227 = vsub.f32 %v5026, %v5195
  %v5228 = vsub.f32 %v5027, %v5195
  %v5229 = vsub.f32 %v5028, %v5195
  %v5230 = vsub.f32 %v5029, %v5195
  %v5231 = vsub.f32 %v5030, %v5195
  %v5232 = vsub.f32 %v5031, %v5195
  %v5233 = vsub.f32 %v5032, %v5195
  %v5234 = vsub.f32 %v5033, %v5195
  %v5235 = vsub.f32 %v5034, %v5195
  %v5236 = vsub.f32 %v5035, %v5195
  %v5237 = vsub.f32 %v5036, %v5195
  %v5238 = vsub.f32 %v5037, %v5195
  %v5239 = vsub.f32 %v5038, %v5195
  %v5240 = vsub.f32 %v5039, %v5195
  %v5241 = vsub.f32 %v5040, %v5195
  %v5242 = vsub.f32 %v5041, %v5195
  %v5243 = vsub.f32 %v5042, %v5195
  %v5244 = vsub.f32 %v5043, %v5195
  %v5245 = vsub.f32 %v5044, %v5195
  %v5246 = vsub.f32 %v5045, %v5195
  %v5247 = vsub.f32 %v5046, %v5195
  %v5248 = vsub.f32 %v5047, %v5195
  %v5249 = vsub.f32 %v5048, %v5195
  %v5250 = vsub.f32 %v5049, %v5195
  %v5251 = vsub.f32 %v5050, %v5195
  %v5252 = vsub.f32 %v5051, %v5195
  %v5253 = vsub.f32 %v5052, %v5195
  %v5254 = vsub.f32 %v5053, %v5195
  %v5255 = vsub.f32 %v5054, %v5195
  %v5256 = vsub.f32 %v5055, %v5195
  %v5257 = vsub.f32 %v5056, %v5195
  %v5258 = vsub.f32 %v5057, %v5195
  %v5259 = vsub.f32 %v5058, %v5195
  %v5260 = vmul.f32 %v5196, %v5196
  %v5261 = vmul.f32 %v5197, %v5197
  %v5262 = vmul.f32 %v5198, %v5198
  %v5263 = vmul.f32 %v5199, %v5199
  %v5264 = vmul.f32 %v5200, %v5200
  %v5265 = vmul.f32 %v5201, %v5201
  %v5266 = vmul.f32 %v5202, %v5202
  %v5267 = vmul.f32 %v5203, %v5203
  %v5268 = vmul.f32 %v5204, %v5204
  %v5269 = vmul.f32 %v5205, %v5205
  %v5270 = vmul.f32 %v5206, %v5206
  %v5271 = vmul.f32 %v5207, %v5207
  %v5272 = vmul.f32 %v5208, %v5208
  %v5273 = vmul.f32 %v5209, %v5209
  %v5274 = vmul.f32 %v5210, %v5210
  %v5275 = vmul.f32 %v5211, %v5211
  %v5276 = vmul.f32 %v5212, %v5212
  %v5277 = vmul.f32 %v5213, %v5213
  %v5278 = vmul.f32 %v5214, %v5214
  %v5279 = vmul.f32 %v5215, %v5215
  %v5280 = vmul.f32 %v5216, %v5216
  %v5281 = vmul.f32 %v5217, %v5217
  %v5282 = vmul.f32 %v5218, %v5218
  %v5283 = vmul.f32 %v5219, %v5219
  %v5284 = vmul.f32 %v5220, %v5220
  %v5285 = vmul.f32 %v5221, %v5221
  %v5286 = vmul.f32 %v5222, %v5222
  %v5287 = vmul.f32 %v5223, %v5223
  %v5288 = vmul.f32 %v5224, %v5224
  %v5289 = vmul.f32 %v5225, %v5225
  %v5290 = vmul.f32 %v5226, %v5226
  %v5291 = vmul.f32 %v5227, %v5227
  %v5292 = vmul.f32 %v5228, %v5228
  %v5293 = vmul.f32 %v5229, %v5229
  %v5294 = vmul.f32 %v5230, %v5230
  %v5295 = vmul.f32 %v5231, %v5231
  %v5296 = vmul.f32 %v5232, %v5232
  %v5297 = vmul.f32 %v5233, %v5233
  %v5298 = vmul.f32 %v5234, %v5234
  %v5299 = vmul.f32 %v5235, %v5235
  %v5300 = vmul.f32 %v5236, %v5236
  %v5301 = vmul.f32 %v5237, %v5237
  %v5302 = vmul.f32 %v5238, %v5238
  %v5303 = vmul.f32 %v5239, %v5239
  %v5304 = vmul.f32 %v5240, %v5240
  %v5305 = vmul.f32 %v5241, %v5241
  %v5306 = vmul.f32 %v5242, %v5242
  %v5307 = vmul.f32 %v5243, %v5243
  %v5308 = vmul.f32 %v5244, %v5244
  %v5309 = vmul.f32 %v5245, %v5245
  %v5310 = vmul.f32 %v5246, %v5246
  %v5311 = vmul.f32 %v5247, %v5247
  %v5312 = vmul.f32 %v5248, %v5248
  %v5313 = vmul.f32 %v5249, %v5249
  %v5314 = vmul.f32 %v5250, %v5250
  %v5315 = vmul.f32 %v5251, %v5251
  %v5316 = vmul.f32 %v5252, %v5252
  %v5317 = vmul.f32 %v5253, %v5253
  %v5318 = vmul.f32 %v5254, %v5254
  %v5319 = vmul.f32 %v5255, %v5255
  %v5320 = vmul.f32 %v5256, %v5256
  %v5321 = vmul.f32 %v5257, %v5257
  %v5322 = vmul.f32 %v5258, %v5258
  %v5323 = vmul.f32 %v5259, %v5259
  %v5324 = vsel %vm5061, %v5260, 0.0
  %v5325 = vsel %vm5061, %v5261, 0.0
  %v5326 = vadd.f32 %v5324, %v5325
  %v5327 = vsel %vm5061, %v5262, 0.0
  %v5328 = vadd.f32 %v5326, %v5327
  %v5329 = vsel %vm5061, %v5263, 0.0
  %v5330 = vadd.f32 %v5328, %v5329
  %v5331 = vsel %vm5061, %v5264, 0.0
  %v5332 = vadd.f32 %v5330, %v5331
  %v5333 = vsel %vm5061, %v5265, 0.0
  %v5334 = vadd.f32 %v5332, %v5333
  %v5335 = vsel %vm5061, %v5266, 0.0
  %v5336 = vadd.f32 %v5334, %v5335
  %v5337 = vsel %vm5061, %v5267, 0.0
  %v5338 = vadd.f32 %v5336, %v5337
  %v5339 = vsel %vm5061, %v5268, 0.0
  %v5340 = vadd.f32 %v5338, %v5339
  %v5341 = vsel %vm5061, %v5269, 0.0
  %v5342 = vadd.f32 %v5340, %v5341
  %v5343 = vsel %vm5061, %v5270, 0.0
  %v5344 = vadd.f32 %v5342, %v5343
  %v5345 = vsel %vm5061, %v5271, 0.0
  %v5346 = vadd.f32 %v5344, %v5345
  %v5347 = vsel %vm5061, %v5272, 0.0
  %v5348 = vadd.f32 %v5346, %v5347
  %v5349 = vsel %vm5061, %v5273, 0.0
  %v5350 = vadd.f32 %v5348, %v5349
  %v5351 = vsel %vm5061, %v5274, 0.0
  %v5352 = vadd.f32 %v5350, %v5351
  %v5353 = vsel %vm5061, %v5275, 0.0
  %v5354 = vadd.f32 %v5352, %v5353
  %v5355 = vsel %vm5061, %v5276, 0.0
  %v5356 = vadd.f32 %v5354, %v5355
  %v5357 = vsel %vm5061, %v5277, 0.0
  %v5358 = vadd.f32 %v5356, %v5357
  %v5359 = vsel %vm5061, %v5278, 0.0
  %v5360 = vadd.f32 %v5358, %v5359
  %v5361 = vsel %vm5061, %v5279, 0.0
  %v5362 = vadd.f32 %v5360, %v5361
  %v5363 = vsel %vm5061, %v5280, 0.0
  %v5364 = vadd.f32 %v5362, %v5363
  %v5365 = vsel %vm5061, %v5281, 0.0
  %v5366 = vadd.f32 %v5364, %v5365
  %v5367 = vsel %vm5061, %v5282, 0.0
  %v5368 = vadd.f32 %v5366, %v5367
  %v5369 = vsel %vm5061, %v5283, 0.0
  %v5370 = vadd.f32 %v5368, %v5369
  %v5371 = vsel %vm5061, %v5284, 0.0
  %v5372 = vadd.f32 %v5370, %v5371
  %v5373 = vsel %vm5061, %v5285, 0.0
  %v5374 = vadd.f32 %v5372, %v5373
  %v5375 = vsel %vm5061, %v5286, 0.0
  %v5376 = vadd.f32 %v5374, %v5375
  %v5377 = vsel %vm5061, %v5287, 0.0
  %v5378 = vadd.f32 %v5376, %v5377
  %v5379 = vsel %vm5061, %v5288, 0.0
  %v5380 = vadd.f32 %v5378, %v5379
  %v5381 = vsel %vm5061, %v5289, 0.0
  %v5382 = vadd.f32 %v5380, %v5381
  %v5383 = vsel %vm5061, %v5290, 0.0
  %v5384 = vadd.f32 %v5382, %v5383
  %v5385 = vsel %vm5061, %v5291, 0.0
  %v5386 = vadd.f32 %v5384, %v5385
  %v5387 = vsel %vm5061, %v5292, 0.0
  %v5388 = vadd.f32 %v5386, %v5387
  %v5389 = vsel %vm5061, %v5293, 0.0
  %v5390 = vadd.f32 %v5388, %v5389
  %v5391 = vsel %vm5061, %v5294, 0.0
  %v5392 = vadd.f32 %v5390, %v5391
  %v5393 = vsel %vm5061, %v5295, 0.0
  %v5394 = vadd.f32 %v5392, %v5393
  %v5395 = vsel %vm5061, %v5296, 0.0
  %v5396 = vadd.f32 %v5394, %v5395
  %v5397 = vsel %vm5061, %v5297, 0.0
  %v5398 = vadd.f32 %v5396, %v5397
  %v5399 = vsel %vm5061, %v5298, 0.0
  %v5400 = vadd.f32 %v5398, %v5399
  %v5401 = vsel %vm5061, %v5299, 0.0
  %v5402 = vadd.f32 %v5400, %v5401
  %v5403 = vsel %vm5061, %v5300, 0.0
  %v5404 = vadd.f32 %v5402, %v5403
  %v5405 = vsel %vm5061, %v5301, 0.0
  %v5406 = vadd.f32 %v5404, %v5405
  %v5407 = vsel %vm5061, %v5302, 0.0
  %v5408 = vadd.f32 %v5406, %v5407
  %v5409 = vsel %vm5061, %v5303, 0.0
  %v5410 = vadd.f32 %v5408, %v5409
  %v5411 = vsel %vm5061, %v5304, 0.0
  %v5412 = vadd.f32 %v5410, %v5411
  %v5413 = vsel %vm5061, %v5305, 0.0
  %v5414 = vadd.f32 %v5412, %v5413
  %v5415 = vsel %vm5061, %v5306, 0.0
  %v5416 = vadd.f32 %v5414, %v5415
  %v5417 = vsel %vm5061, %v5307, 0.0
  %v5418 = vadd.f32 %v5416, %v5417
  %v5419 = vsel %vm5061, %v5308, 0.0
  %v5420 = vadd.f32 %v5418, %v5419
  %v5421 = vsel %vm5061, %v5309, 0.0
  %v5422 = vadd.f32 %v5420, %v5421
  %v5423 = vsel %vm5061, %v5310, 0.0
  %v5424 = vadd.f32 %v5422, %v5423
  %v5425 = vsel %vm5061, %v5311, 0.0
  %v5426 = vadd.f32 %v5424, %v5425
  %v5427 = vsel %vm5061, %v5312, 0.0
  %v5428 = vadd.f32 %v5426, %v5427
  %v5429 = vsel %vm5061, %v5313, 0.0
  %v5430 = vadd.f32 %v5428, %v5429
  %v5431 = vsel %vm5061, %v5314, 0.0
  %v5432 = vadd.f32 %v5430, %v5431
  %v5433 = vsel %vm5061, %v5315, 0.0
  %v5434 = vadd.f32 %v5432, %v5433
  %v5435 = vsel %vm5061, %v5316, 0.0
  %v5436 = vadd.f32 %v5434, %v5435
  %v5437 = vsel %vm5061, %v5317, 0.0
  %v5438 = vadd.f32 %v5436, %v5437
  %v5439 = vsel %vm5061, %v5318, 0.0
  %v5440 = vadd.f32 %v5438, %v5439
  %v5441 = vsel %vm5061, %v5319, 0.0
  %v5442 = vadd.f32 %v5440, %v5441
  %v5443 = vsel %vm5061, %v5320, 0.0
  %v5444 = vadd.f32 %v5442, %v5443
  %v5445 = vsel %vm5061, %v5321, 0.0
  %v5446 = vadd.f32 %v5444, %v5445
  %v5447 = vsel %vm5061, %v5322, 0.0
  %v5448 = vadd.f32 %v5446, %v5447
  %v5449 = vsel %vm5061, %v5323, 0.0
  %v5450 = vadd.f32 %v5448, %v5449
  %v5451 = vrot.slane %v5450, 4
  %v5452 = vadd.f32 %v5450, %v5451
  %v5453 = vrot.slane %v5452, 2
  %v5454 = vadd.f32 %v5452, %v5453
  %v5455 = vrot.slane %v5454, 1
  %v5456 = vadd.f32 %v5454, %v5455
  %v5457 = vmul.f32 %v5456, 0.001953125
  %v5458 = vadd.f32 %v5457, 1e-05
  %v5459 = vrsqrt.pop %v5458
  %v5460 = vmul.f32 %v5459, %v5059
  %v5461 = vlaneseq
  %v5462 = vshrl.u32 %v5461, 7
  %v5463 = vsub.s32 0, %v5462
  %v5464 = vrot.slane %v5460, %v5463
  %v5465 = vmul.f32 %v5196, %v5464
  %v5466 = vmul.f32 %v5197, %v5464
  %v5467 = vmul.f32 %v5198, %v5464
  %v5468 = vmul.f32 %v5199, %v5464
  %v5469 = vmul.f32 %v5200, %v5464
  %v5470 = vmul.f32 %v5201, %v5464
  %v5471 = vmul.f32 %v5202, %v5464
  %v5472 = vmul.f32 %v5203, %v5464
  %v5473 = vmul.f32 %v5204, %v5464
  %v5474 = vmul.f32 %v5205, %v5464
  %v5475 = vmul.f32 %v5206, %v5464
  %v5476 = vmul.f32 %v5207, %v5464
  %v5477 = vmul.f32 %v5208, %v5464
  %v5478 = vmul.f32 %v5209, %v5464
  %v5479 = vmul.f32 %v5210, %v5464
  %v5480 = vmul.f32 %v5211, %v5464
  %v5481 = vmul.f32 %v5212, %v5464
  %v5482 = vmul.f32 %v5213, %v5464
  %v5483 = vmul.f32 %v5214, %v5464
  %v5484 = vmul.f32 %v5215, %v5464
  %v5485 = vmul.f32 %v5216, %v5464
  %v5486 = vmul.f32 %v5217, %v5464
  %v5487 = vmul.f32 %v5218, %v5464
  %v5488 = vmul.f32 %v5219, %v5464
  %v5489 = vmul.f32 %v5220, %v5464
  %v5490 = vmul.f32 %v5221, %v5464
  %v5491 = vmul.f32 %v5222, %v5464
  %v5492 = vmul.f32 %v5223, %v5464
  %v5493 = vmul.f32 %v5224, %v5464
  %v5494 = vmul.f32 %v5225, %v5464
  %v5495 = vmul.f32 %v5226, %v5464
  %v5496 = vmul.f32 %v5227, %v5464
  %v5497 = vmul.f32 %v5228, %v5464
  %v5498 = vmul.f32 %v5229, %v5464
  %v5499 = vmul.f32 %v5230, %v5464
  %v5500 = vmul.f32 %v5231, %v5464
  %v5501 = vmul.f32 %v5232, %v5464
  %v5502 = vmul.f32 %v5233, %v5464
  %v5503 = vmul.f32 %v5234, %v5464
  %v5504 = vmul.f32 %v5235, %v5464
  %v5505 = vmul.f32 %v5236, %v5464
  %v5506 = vmul.f32 %v5237, %v5464
  %v5507 = vmul.f32 %v5238, %v5464
  %v5508 = vmul.f32 %v5239, %v5464
  %v5509 = vmul.f32 %v5240, %v5464
  %v5510 = vmul.f32 %v5241, %v5464
  %v5511 = vmul.f32 %v5242, %v5464
  %v5512 = vmul.f32 %v5243, %v5464
  %v5513 = vmul.f32 %v5244, %v5464
  %v5514 = vmul.f32 %v5245, %v5464
  %v5515 = vmul.f32 %v5246, %v5464
  %v5516 = vmul.f32 %v5247, %v5464
  %v5517 = vmul.f32 %v5248, %v5464
  %v5518 = vmul.f32 %v5249, %v5464
  %v5519 = vmul.f32 %v5250, %v5464
  %v5520 = vmul.f32 %v5251, %v5464
  %v5521 = vmul.f32 %v5252, %v5464
  %v5522 = vmul.f32 %v5253, %v5464
  %v5523 = vmul.f32 %v5254, %v5464
  %v5524 = vmul.f32 %v5255, %v5464
  %v5525 = vmul.f32 %v5256, %v5464
  %v5526 = vmul.f32 %v5257, %v5464
  %v5527 = vmul.f32 %v5258, %v5464
  %v5528 = vmul.f32 %v5259, %v5464
  %v5530 = vlaneseq
  %v5531 = vshrl.u32 %v5530, 7
  %v5532 = vsub.s32 0, %v5531
  %v5533 = vrot.slane %v5060, %v5532
  %v5535 = vadd.f32 %v5465, %v5533
  %v5536 = vadd.f32 %v5466, %v5533
  %v5537 = vadd.f32 %v5467, %v5533
  %v5538 = vadd.f32 %v5468, %v5533
  %v5539 = vadd.f32 %v5469, %v5533
  %v5540 = vadd.f32 %v5470, %v5533
  %v5541 = vadd.f32 %v5471, %v5533
  %v5542 = vadd.f32 %v5472, %v5533
  %v5543 = vadd.f32 %v5473, %v5533
  %v5544 = vadd.f32 %v5474, %v5533
  %v5545 = vadd.f32 %v5475, %v5533
  %v5546 = vadd.f32 %v5476, %v5533
  %v5547 = vadd.f32 %v5477, %v5533
  %v5548 = vadd.f32 %v5478, %v5533
  %v5549 = vadd.f32 %v5479, %v5533
  %v5550 = vadd.f32 %v5480, %v5533
  %v5551 = vadd.f32 %v5481, %v5533
  %v5552 = vadd.f32 %v5482, %v5533
  %v5553 = vadd.f32 %v5483, %v5533
  %v5554 = vadd.f32 %v5484, %v5533
  %v5555 = vadd.f32 %v5485, %v5533
  %v5556 = vadd.f32 %v5486, %v5533
  %v5557 = vadd.f32 %v5487, %v5533
  %v5558 = vadd.f32 %v5488, %v5533
  %v5559 = vadd.f32 %v5489, %v5533
  %v5560 = vadd.f32 %v5490, %v5533
  %v5561 = vadd.f32 %v5491, %v5533
  %v5562 = vadd.f32 %v5492, %v5533
  %v5563 = vadd.f32 %v5493, %v5533
  %v5564 = vadd.f32 %v5494, %v5533
  %v5565 = vadd.f32 %v5495, %v5533
  %v5566 = vadd.f32 %v5496, %v5533
  %v5567 = vadd.f32 %v5497, %v5533
  %v5568 = vadd.f32 %v5498, %v5533
  %v5569 = vadd.f32 %v5499, %v5533
  %v5570 = vadd.f32 %v5500, %v5533
  %v5571 = vadd.f32 %v5501, %v5533
  %v5572 = vadd.f32 %v5502, %v5533
  %v5573 = vadd.f32 %v5503, %v5533
  %v5574 = vadd.f32 %v5504, %v5533
  %v5575 = vadd.f32 %v5505, %v5533
  %v5576 = vadd.f32 %v5506, %v5533
  %v5577 = vadd.f32 %v5507, %v5533
  %v5578 = vadd.f32 %v5508, %v5533
  %v5579 = vadd.f32 %v5509, %v5533
  %v5580 = vadd.f32 %v5510, %v5533
  %v5581 = vadd.f32 %v5511, %v5533
  %v5582 = vadd.f32 %v5512, %v5533
  %v5583 = vadd.f32 %v5513, %v5533
  %v5584 = vadd.f32 %v5514, %v5533
  %v5585 = vadd.f32 %v5515, %v5533
  %v5586 = vadd.f32 %v5516, %v5533
  %v5587 = vadd.f32 %v5517, %v5533
  %v5588 = vadd.f32 %v5518, %v5533
  %v5589 = vadd.f32 %v5519, %v5533
  %v5590 = vadd.f32 %v5520, %v5533
  %v5591 = vadd.f32 %v5521, %v5533
  %v5592 = vadd.f32 %v5522, %v5533
  %v5593 = vadd.f32 %v5523, %v5533
  %v5594 = vadd.f32 %v5524, %v5533
  %v5595 = vadd.f32 %v5525, %v5533
  %v5596 = vadd.f32 %v5526, %v5533
  %v5597 = vadd.f32 %v5527, %v5533
  %v5598 = vadd.f32 %v5528, %v5533
  %v5599 = vmax.f32 %v5535, 0.0
  %v5600 = vmax.f32 %v5536, 0.0
  %v5601 = vmax.f32 %v5537, 0.0
  %v5602 = vmax.f32 %v5538, 0.0
  %v5603 = vmax.f32 %v5539, 0.0
  %v5604 = vmax.f32 %v5540, 0.0
  %v5605 = vmax.f32 %v5541, 0.0
  %v5606 = vmax.f32 %v5542, 0.0
  %v5607 = vmax.f32 %v5543, 0.0
  %v5608 = vmax.f32 %v5544, 0.0
  %v5609 = vmax.f32 %v5545, 0.0
  %v5610 = vmax.f32 %v5546, 0.0
  %v5611 = vmax.f32 %v5547, 0.0
  %v5612 = vmax.f32 %v5548, 0.0
  %v5613 = vmax.f32 %v5549, 0.0
  %v5614 = vmax.f32 %v5550, 0.0
  %v5615 = vmax.f32 %v5551, 0.0
  %v5616 = vmax.f32 %v5552, 0.0
  %v5617 = vmax.f32 %v5553, 0.0
  %v5618 = vmax.f32 %v5554, 0.0
  %v5619 = vmax.f32 %v5555, 0.0
  %v5620 = vmax.f32 %v5556, 0.0
  %v5621 = vmax.f32 %v5557, 0.0
  %v5622 = vmax.f32 %v5558, 0.0
  %v5623 = vmax.f32 %v5559, 0.0
  %v5624 = vmax.f32 %v5560, 0.0
  %v5625 = vmax.f32 %v5561, 0.0
  %v5626 = vmax.f32 %v5562, 0.0
  %v5627 = vmax.f32 %v5563, 0.0
  %v5628 = vmax.f32 %v5564, 0.0
  %v5629 = vmax.f32 %v5565, 0.0
  %v5630 = vmax.f32 %v5566, 0.0
  %v5631 = vmax.f32 %v5567, 0.0
  %v5632 = vmax.f32 %v5568, 0.0
  %v5633 = vmax.f32 %v5569, 0.0
  %v5634 = vmax.f32 %v5570, 0.0
  %v5635 = vmax.f32 %v5571, 0.0
  %v5636 = vmax.f32 %v5572, 0.0
  %v5637 = vmax.f32 %v5573, 0.0
  %v5638 = vmax.f32 %v5574, 0.0
  %v5639 = vmax.f32 %v5575, 0.0
  %v5640 = vmax.f32 %v5576, 0.0
  %v5641 = vmax.f32 %v5577, 0.0
  %v5642 = vmax.f32 %v5578, 0.0
  %v5643 = vmax.f32 %v5579, 0.0
  %v5644 = vmax.f32 %v5580, 0.0
  %v5645 = vmax.f32 %v5581, 0.0
  %v5646 = vmax.f32 %v5582, 0.0
  %v5647 = vmax.f32 %v5583, 0.0
  %v5648 = vmax.f32 %v5584, 0.0
  %v5649 = vmax.f32 %v5585, 0.0
  %v5650 = vmax.f32 %v5586, 0.0
  %v5651 = vmax.f32 %v5587, 0.0
  %v5652 = vmax.f32 %v5588, 0.0
  %v5653 = vmax.f32 %v5589, 0.0
  %v5654 = vmax.f32 %v5590, 0.0
  %v5655 = vmax.f32 %v5591, 0.0
  %v5656 = vmax.f32 %v5592, 0.0
  %v5657 = vmax.f32 %v5593, 0.0
  %v5658 = vmax.f32 %v5594, 0.0
  %v5659 = vmax.f32 %v5595, 0.0
  %v5660 = vmax.f32 %v5596, 0.0
  %v5661 = vmax.f32 %v5597, 0.0
  %v5662 = vmax.f32 %v5598, 0.0
  %5663 = vst.msk [vmem:[#allocation3] sm:$0xff] %vm5061, 0.0
  %5664 = vst.msk [vmem:[#allocation3 + $0x8] sm:$0xff] %vm5061, 0.0
  %vm5665 = vcmask 58368
  %5666 = vst.msk [vmem:[#allocation3 + $0x10] sm:$0x3] %vm5665, 0.0
  %5667 = vst.msk [vmem:[#allocation3 + $0x1b0] sm:$0xff] %vm5061, 0.0
  %5668 = vst.msk [vmem:[#allocation3 + $0x1b8] sm:$0xff] %vm5061, 0.0
  %5669 = vst.msk [vmem:[#allocation3 + $0x1c0] sm:$0x3] %vm5665, 0.0
  %s5670 = scalar_lea.vmem [#allocation3], 408
  %5671 = vst.msk [vmem:[%s5670] sm:$0xff] %vm5061, 0.0
  %5672 = vst.msk [vmem:[%s5670 + $0x8] sm:$0xff] %vm5061, 0.0
  %5673 = vst.msk [vmem:[%s5670 + $0x10] sm:$0x3] %vm5665, 0.0
  %5674 = vst.msk [vmem:[%s5670 + $0x1b0] sm:$0xff] %vm5061, 0.0
  %5675 = vst.msk [vmem:[%s5670 + $0x1b8] sm:$0xff] %vm5061, 0.0
  %5676 = vst.msk [vmem:[%s5670 + $0x1c0] sm:$0x3] %vm5665, 0.0
  %s5677 = scalar_lea.vmem [#allocation3], 24
  %vm5678 = vcmask 57344
  %5679 = vst.msk [vmem:[%s5677] sm:$0x1] %vm5678, 0.0
  %5680 = vst.msk [vmem:[%s5677 + $0x18] sm:$0x1] %vm5678, 0.0
  %5681 = vst.msk [vmem:[%s5677 + $0x30] sm:$0x1] %vm5678, 0.0
  %5682 = vst.msk [vmem:[%s5677 + $0x48] sm:$0x1] %vm5678, 0.0
  %5683 = vst.msk [vmem:[%s5677 + $0x60] sm:$0x1] %vm5678, 0.0
  %5684 = vst.msk [vmem:[%s5677 + $0x78] sm:$0x1] %vm5678, 0.0
  %5685 = vst.msk [vmem:[%s5677 + $0x90] sm:$0x1] %vm5678, 0.0
  %5686 = vst.msk [vmem:[%s5677 + $0xa8] sm:$0x1] %vm5678, 0.0
  %5687 = vst.msk [vmem:[%s5677 + $0xc0] sm:$0x1] %vm5678, 0.0
  %5688 = vst.msk [vmem:[%s5677 + $0xd8] sm:$0x1] %vm5678, 0.0
  %5689 = vst.msk [vmem:[%s5677 + $0xf0] sm:$0x1] %vm5678, 0.0
  %5690 = vst.msk [vmem:[%s5677 + $0x108] sm:$0x1] %vm5678, 0.0
  %5691 = vst.msk [vmem:[%s5677 + $0x120] sm:$0x1] %vm5678, 0.0
  %5692 = vst.msk [vmem:[%s5677 + $0x138] sm:$0x1] %vm5678, 0.0
  %5693 = vst.msk [vmem:[%s5677 + $0x150] sm:$0x1] %vm5678, 0.0
  %5694 = vst.msk [vmem:[%s5677 + $0x168] sm:$0x1] %vm5678, 0.0
  %5695 = vst.msk [vmem:[%s5677 + $0x1b0] sm:$0x1] %vm5678, 0.0
  %5696 = vst.msk [vmem:[%s5677 + $0x1c8] sm:$0x1] %vm5678, 0.0
  %5697 = vst.msk [vmem:[%s5677 + $0x1e0] sm:$0x1] %vm5678, 0.0
  %5698 = vst.msk [vmem:[%s5677 + $0x1f8] sm:$0x1] %vm5678, 0.0
  %5699 = vst.msk [vmem:[%s5677 + $0x210] sm:$0x1] %vm5678, 0.0
  %5700 = vst.msk [vmem:[%s5677 + $0x228] sm:$0x1] %vm5678, 0.0
  %5701 = vst.msk [vmem:[%s5677 + $0x240] sm:$0x1] %vm5678, 0.0
  %5702 = vst.msk [vmem:[%s5677 + $0x258] sm:$0x1] %vm5678, 0.0
  %5703 = vst.msk [vmem:[%s5677 + $0x270] sm:$0x1] %vm5678, 0.0
  %5704 = vst.msk [vmem:[%s5677 + $0x288] sm:$0x1] %vm5678, 0.0
  %5705 = vst.msk [vmem:[%s5677 + $0x2a0] sm:$0x1] %vm5678, 0.0
  %5706 = vst.msk [vmem:[%s5677 + $0x2b8] sm:$0x1] %vm5678, 0.0
  %5707 = vst.msk [vmem:[%s5677 + $0x2d0] sm:$0x1] %vm5678, 0.0
  %5708 = vst.msk [vmem:[%s5677 + $0x2e8] sm:$0x1] %vm5678, 0.0
  %5709 = vst.msk [vmem:[%s5677 + $0x300] sm:$0x1] %vm5678, 0.0
  %5710 = vst.msk [vmem:[%s5677 + $0x318] sm:$0x1] %vm5678, 0.0
  %5711 = vst.msk [vmem:[%s5677 + $0x11] sm:$0x1] %vm5678, 0.0
  %5712 = vst.msk [vmem:[%s5677 + $0x29] sm:$0x1] %vm5678, 0.0
  %5713 = vst.msk [vmem:[%s5677 + $0x41] sm:$0x1] %vm5678, 0.0
  %5714 = vst.msk [vmem:[%s5677 + $0x59] sm:$0x1] %vm5678, 0.0
  %5715 = vst.msk [vmem:[%s5677 + $0x71] sm:$0x1] %vm5678, 0.0
  %5716 = vst.msk [vmem:[%s5677 + $0x89] sm:$0x1] %vm5678, 0.0
  %5717 = vst.msk [vmem:[%s5677 + $0xa1] sm:$0x1] %vm5678, 0.0
  %5718 = vst.msk [vmem:[%s5677 + $0xb9] sm:$0x1] %vm5678, 0.0
  %5719 = vst.msk [vmem:[%s5677 + $0xd1] sm:$0x1] %vm5678, 0.0
  %5720 = vst.msk [vmem:[%s5677 + $0xe9] sm:$0x1] %vm5678, 0.0
  %5721 = vst.msk [vmem:[%s5677 + $0x101] sm:$0x1] %vm5678, 0.0
  %5722 = vst.msk [vmem:[%s5677 + $0x119] sm:$0x1] %vm5678, 0.0
  %5723 = vst.msk [vmem:[%s5677 + $0x131] sm:$0x1] %vm5678, 0.0
  %5724 = vst.msk [vmem:[%s5677 + $0x149] sm:$0x1] %vm5678, 0.0
  %5725 = vst.msk [vmem:[%s5677 + $0x161] sm:$0x1] %vm5678, 0.0
  %5726 = vst.msk [vmem:[%s5677 + $0x179] sm:$0x1] %vm5678, 0.0
  %5727 = vst.msk [vmem:[%s5677 + $0x1c1] sm:$0x1] %vm5678, 0.0
  %5728 = vst.msk [vmem:[%s5677 + $0x1d9] sm:$0x1] %vm5678, 0.0
  %5729 = vst.msk [vmem:[%s5677 + $0x1f1] sm:$0x1] %vm5678, 0.0
  %5730 = vst.msk [vmem:[%s5677 + $0x209] sm:$0x1] %vm5678, 0.0
  %5731 = vst.msk [vmem:[%s5677 + $0x221] sm:$0x1] %vm5678, 0.0
  %5732 = vst.msk [vmem:[%s5677 + $0x239] sm:$0x1] %vm5678, 0.0
  %5733 = vst.msk [vmem:[%s5677 + $0x251] sm:$0x1] %vm5678, 0.0
  %5734 = vst.msk [vmem:[%s5677 + $0x269] sm:$0x1] %vm5678, 0.0
  %5735 = vst.msk [vmem:[%s5677 + $0x281] sm:$0x1] %vm5678, 0.0
  %5736 = vst.msk [vmem:[%s5677 + $0x299] sm:$0x1] %vm5678, 0.0
  %5737 = vst.msk [vmem:[%s5677 + $0x2b1] sm:$0x1] %vm5678, 0.0
  %5738 = vst.msk [vmem:[%s5677 + $0x2c9] sm:$0x1] %vm5678, 0.0
  %5739 = vst.msk [vmem:[%s5677 + $0x2e1] sm:$0x1] %vm5678, 0.0
  %5740 = vst.msk [vmem:[%s5677 + $0x2f9] sm:$0x1] %vm5678, 0.0
  %5741 = vst.msk [vmem:[%s5677 + $0x311] sm:$0x1] %vm5678, 0.0
  %5742 = vst.msk [vmem:[%s5677 + $0x329] sm:$0x1] %vm5678, 0.0
  %5743 = vst.msk [vmem:[%s5677 + $0x1] sm:$0xff] %vm5061, %v5599
  %5744 = vst.msk [vmem:[%s5677 + $0x9] sm:$0xff] %vm5061, %v5600
  %5745 = vst.msk [vmem:[%s5677 + $0x19] sm:$0xff] %vm5061, %v5601
  %5746 = vst.msk [vmem:[%s5677 + $0x21] sm:$0xff] %vm5061, %v5602
  %5747 = vst.msk [vmem:[%s5677 + $0x31] sm:$0xff] %vm5061, %v5603
  %5748 = vst.msk [vmem:[%s5677 + $0x39] sm:$0xff] %vm5061, %v5604
  %5749 = vst.msk [vmem:[%s5677 + $0x49] sm:$0xff] %vm5061, %v5605
  %5750 = vst.msk [vmem:[%s5677 + $0x51] sm:$0xff] %vm5061, %v5606
  %5751 = vst.msk [vmem:[%s5677 + $0x61] sm:$0xff] %vm5061, %v5607
  %5752 = vst.msk [vmem:[%s5677 + $0x69] sm:$0xff] %vm5061, %v5608
  %5753 = vst.msk [vmem:[%s5677 + $0x79] sm:$0xff] %vm5061, %v5609
  %5754 = vst.msk [vmem:[%s5677 + $0x81] sm:$0xff] %vm5061, %v5610
  %5755 = vst.msk [vmem:[%s5677 + $0x91] sm:$0xff] %vm5061, %v5611
  %5756 = vst.msk [vmem:[%s5677 + $0x99] sm:$0xff] %vm5061, %v5612
  %5757 = vst.msk [vmem:[%s5677 + $0xa9] sm:$0xff] %vm5061, %v5613
  %5758 = vst.msk [vmem:[%s5677 + $0xb1] sm:$0xff] %vm5061, %v5614
  %5759 = vst.msk [vmem:[%s5677 + $0xc1] sm:$0xff] %vm5061, %v5615
  %5760 = vst.msk [vmem:[%s5677 + $0xc9] sm:$0xff] %vm5061, %v5616
  %5761 = vst.msk [vmem:[%s5677 + $0xd9] sm:$0xff] %vm5061, %v5617
  %5762 = vst.msk [vmem:[%s5677 + $0xe1] sm:$0xff] %vm5061, %v5618
  %5763 = vst.msk [vmem:[%s5677 + $0xf1] sm:$0xff] %vm5061, %v5619
  %5764 = vst.msk [vmem:[%s5677 + $0xf9] sm:$0xff] %vm5061, %v5620
  %5765 = vst.msk [vmem:[%s5677 + $0x109] sm:$0xff] %vm5061, %v5621
  %5766 = vst.msk [vmem:[%s5677 + $0x111] sm:$0xff] %vm5061, %v5622
  %5767 = vst.msk [vmem:[%s5677 + $0x121] sm:$0xff] %vm5061, %v5623
  %5768 = vst.msk [vmem:[%s5677 + $0x129] sm:$0xff] %vm5061, %v5624
  %5769 = vst.msk [vmem:[%s5677 + $0x139] sm:$0xff] %vm5061, %v5625
  %5770 = vst.msk [vmem:[%s5677 + $0x141] sm:$0xff] %vm5061, %v5626
  %5771 = vst.msk [vmem:[%s5677 + $0x151] sm:$0xff] %vm5061, %v5627
  %5772 = vst.msk [vmem:[%s5677 + $0x159] sm:$0xff] %vm5061, %v5628
  %5773 = vst.msk [vmem:[%s5677 + $0x169] sm:$0xff] %vm5061, %v5629
  %5774 = vst.msk [vmem:[%s5677 + $0x171] sm:$0xff] %vm5061, %v5630
  %5775 = vst.msk [vmem:[%s5677 + $0x1b1] sm:$0xff] %vm5061, %v5631
  %5776 = vst.msk [vmem:[%s5677 + $0x1b9] sm:$0xff] %vm5061, %v5632
  %5777 = vst.msk [vmem:[%s5677 + $0x1c9] sm:$0xff] %vm5061, %v5633
  %5778 = vst.msk [vmem:[%s5677 + $0x1d1] sm:$0xff] %vm5061, %v5634
  %5779 = vst.msk [vmem:[%s5677 + $0x1e1] sm:$0xff] %vm5061, %v5635
  %5780 = vst.msk [vmem:[%s5677 + $0x1e9] sm:$0xff] %vm5061, %v5636
  %5781 = vst.msk [vmem:[%s5677 + $0x1f9] sm:$0xff] %vm5061, %v5637
  %5782 = vst.msk [vmem:[%s5677 + $0x201] sm:$0xff] %vm5061, %v5638
  %5783 = vst.msk [vmem:[%s5677 + $0x211] sm:$0xff] %vm5061, %v5639
  %5784 = vst.msk [vmem:[%s5677 + $0x219] sm:$0xff] %vm5061, %v5640
  %5785 = vst.msk [vmem:[%s5677 + $0x229] sm:$0xff] %vm5061, %v5641
  %5786 = vst.msk [vmem:[%s5677 + $0x231] sm:$0xff] %vm5061, %v5642
  %5787 = vst.msk [vmem:[%s5677 + $0x241] sm:$0xff] %vm5061, %v5643
  %5788 = vst.msk [vmem:[%s5677 + $0x249] sm:$0xff] %vm5061, %v5644
  %5789 = vst.msk [vmem:[%s5677 + $0x259] sm:$0xff] %vm5061, %v5645
  %5790 = vst.msk [vmem:[%s5677 + $0x261] sm:$0xff] %vm5061, %v5646
  %5791 = vst.msk [vmem:[%s5677 + $0x271] sm:$0xff] %vm5061, %v5647
  %5792 = vst.msk [vmem:[%s5677 + $0x279] sm:$0xff] %vm5061, %v5648
  %5793 = vst.msk [vmem:[%s5677 + $0x289] sm:$0xff] %vm5061, %v5649
  %5794 = vst.msk [vmem:[%s5677 + $0x291] sm:$0xff] %vm5061, %v5650
  %5795 = vst.msk [vmem:[%s5677 + $0x2a1] sm:$0xff] %vm5061, %v5651
  %5796 = vst.msk [vmem:[%s5677 + $0x2a9] sm:$0xff] %vm5061, %v5652
  %5797 = vst.msk [vmem:[%s5677 + $0x2b9] sm:$0xff] %vm5061, %v5653
  %5798 = vst.msk [vmem:[%s5677 + $0x2c1] sm:$0xff] %vm5061, %v5654
  %5799 = vst.msk [vmem:[%s5677 + $0x2d1] sm:$0xff] %vm5061, %v5655
  %5800 = vst.msk [vmem:[%s5677 + $0x2d9] sm:$0xff] %vm5061, %v5656
  %5801 = vst.msk [vmem:[%s5677 + $0x2e9] sm:$0xff] %vm5061, %v5657
  %5802 = vst.msk [vmem:[%s5677 + $0x2f1] sm:$0xff] %vm5061, %v5658
  %5803 = vst.msk [vmem:[%s5677 + $0x301] sm:$0xff] %vm5061, %v5659
  %5804 = vst.msk [vmem:[%s5677 + $0x309] sm:$0xff] %vm5061, %v5660
  %5805 = vst.msk [vmem:[%s5677 + $0x319] sm:$0xff] %vm5061, %v5661
  %5806 = vst.msk [vmem:[%s5677 + $0x321] sm:$0xff] %vm5061, %v5662
  %v5807 = vld [vmem:[#allocation3] sm:$0xff]
  %v5808 = vld [vmem:[#allocation3 + $0x8] sm:$0xff]
  %v5809 = vld [vmem:[#allocation3 + $0x18] sm:$0xff]
  %v5810 = vld [vmem:[#allocation3 + $0x20] sm:$0xff]
  %v5811 = vld [vmem:[#allocation3 + $0x30] sm:$0xff]
  %v5812 = vld [vmem:[#allocation3 + $0x38] sm:$0xff]
  %v5813 = vld [vmem:[#allocation3 + $0x48] sm:$0xff]
  %v5814 = vld [vmem:[#allocation3 + $0x50] sm:$0xff]
  %v5815 = vld [vmem:[#allocation3 + $0x60] sm:$0xff]
  %v5816 = vld [vmem:[#allocation3 + $0x68] sm:$0xff]
  %v5817 = vld [vmem:[#allocation3 + $0x78] sm:$0xff]
  %v5818 = vld [vmem:[#allocation3 + $0x80] sm:$0xff]
  %v5819 = vld [vmem:[#allocation3 + $0x90] sm:$0xff]
  %v5820 = vld [vmem:[#allocation3 + $0x98] sm:$0xff]
  %v5821 = vld [vmem:[#allocation3 + $0xa8] sm:$0xff]
  %v5822 = vld [vmem:[#allocation3 + $0xb0] sm:$0xff]
  %v5823 = vld [vmem:[#allocation3 + $0xc0] sm:$0xff]
  %v5824 = vld [vmem:[#allocation3 + $0xc8] sm:$0xff]
  %v5825 = vld [vmem:[#allocation3 + $0xd8] sm:$0xff]
  %v5826 = vld [vmem:[#allocation3 + $0xe0] sm:$0xff]
  %v5827 = vld [vmem:[#allocation3 + $0xf0] sm:$0xff]
  %v5828 = vld [vmem:[#allocation3 + $0xf8] sm:$0xff]
  %v5829 = vld [vmem:[#allocation3 + $0x108] sm:$0xff]
  %v5830 = vld [vmem:[#allocation3 + $0x110] sm:$0xff]
  %v5831 = vld [vmem:[#allocation3 + $0x120] sm:$0xff]
  %v5832 = vld [vmem:[#allocation3 + $0x128] sm:$0xff]
  %v5833 = vld [vmem:[#allocation3 + $0x138] sm:$0xff]
  %v5834 = vld [vmem:[#allocation3 + $0x140] sm:$0xff]
  %v5835 = vld [vmem:[#allocation3 + $0x150] sm:$0xff]
  %v5836 = vld [vmem:[#allocation3 + $0x158] sm:$0xff]
  %v5837 = vld [vmem:[#allocation3 + $0x168] sm:$0xff]
  %v5838 = vld [vmem:[#allocation3 + $0x170] sm:$0xff]
  %v5839 = vld [vmem:[#allocation3 + $0x1b0] sm:$0xff]
  %v5840 = vld [vmem:[#allocation3 + $0x1b8] sm:$0xff]
  %v5841 = vld [vmem:[#allocation3 + $0x1c8] sm:$0xff]
  %v5842 = vld [vmem:[#allocation3 + $0x1d0] sm:$0xff]
  %v5843 = vld [vmem:[#allocation3 + $0x1e0] sm:$0xff]
  %v5844 = vld [vmem:[#allocation3 + $0x1e8] sm:$0xff]
  %v5845 = vld [vmem:[#allocation3 + $0x1f8] sm:$0xff]
  %v5846 = vld [vmem:[#allocation3 + $0x200] sm:$0xff]
  %v5847 = vld [vmem:[#allocation3 + $0x210] sm:$0xff]
  %v5848 = vld [vmem:[#allocation3 + $0x218] sm:$0xff]
  %v5849 = vld [vmem:[#allocation3 + $0x228] sm:$0xff]
  %v5850 = vld [vmem:[#allocation3 + $0x230] sm:$0xff]
  %v5851 = vld [vmem:[#allocation3 + $0x240] sm:$0xff]
  %v5852 = vld [vmem:[#allocation3 + $0x248] sm:$0xff]
  %v5853 = vld [vmem:[#allocation3 + $0x258] sm:$0xff]
  %v5854 = vld [vmem:[#allocation3 + $0x260] sm:$0xff]
  %v5855 = vld [vmem:[#allocation3 + $0x270] sm:$0xff]
  %v5856 = vld [vmem:[#allocation3 + $0x278] sm:$0xff]
  %v5857 = vld [vmem:[#allocation3 + $0x288] sm:$0xff]
  %v5858 = vld [vmem:[#allocation3 + $0x290] sm:$0xff]
  %v5859 = vld [vmem:[#allocation3 + $0x2a0] sm:$0xff]
  %v5860 = vld [vmem:[#allocation3 + $0x2a8] sm:$0xff]
  %v5861 = vld [vmem:[#allocation3 + $0x2b8] sm:$0xff]
  %v5862 = vld [vmem:[#allocation3 + $0x2c0] sm:$0xff]
  %v5863 = vld [vmem:[#allocation3 + $0x2d0] sm:$0xff]
  %v5864 = vld [vmem:[#allocation3 + $0x2d8] sm:$0xff]
  %v5865 = vld [vmem:[#allocation3 + $0x2e8] sm:$0xff]
  %v5866 = vld [vmem:[#allocation3 + $0x2f0] sm:$0xff]
  %v5867 = vld [vmem:[#allocation3 + $0x300] sm:$0xff]
  %v5868 = vld [vmem:[#allocation3 + $0x308] sm:$0xff]
  %v5869 = vld [vmem:[#allocation3 + $0x318] sm:$0xff]
  %v5870 = vld [vmem:[#allocation3 + $0x320] sm:$0xff]
  %v5871 = vpack.c.bf16 %v5808, %v5807
  %v5872 = vpack.c.bf16 %v5810, %v5809
  %v5873 = vpack.c.bf16 %v5812, %v5811
  %v5874 = vpack.c.bf16 %v5814, %v5813
  %v5875 = vpack.c.bf16 %v5816, %v5815
  %v5876 = vpack.c.bf16 %v5818, %v5817
  %v5877 = vpack.c.bf16 %v5820, %v5819
  %v5878 = vpack.c.bf16 %v5822, %v5821
  %v5879 = vpack.c.bf16 %v5824, %v5823
  %v5880 = vpack.c.bf16 %v5826, %v5825
  %v5881 = vpack.c.bf16 %v5828, %v5827
  %v5882 = vpack.c.bf16 %v5830, %v5829
  %v5883 = vpack.c.bf16 %v5832, %v5831
  %v5884 = vpack.c.bf16 %v5834, %v5833
  %v5885 = vpack.c.bf16 %v5836, %v5835
  %v5886 = vpack.c.bf16 %v5838, %v5837
  %v5887 = vpack.c.bf16 %v5840, %v5839
  %v5888 = vpack.c.bf16 %v5842, %v5841
  %v5889 = vpack.c.bf16 %v5844, %v5843
  %v5890 = vpack.c.bf16 %v5846, %v5845
  %v5891 = vpack.c.bf16 %v5848, %v5847
  %v5892 = vpack.c.bf16 %v5850, %v5849
  %v5893 = vpack.c.bf16 %v5852, %v5851
  %v5894 = vpack.c.bf16 %v5854, %v5853
  %v5895 = vpack.c.bf16 %v5856, %v5855
  %v5896 = vpack.c.bf16 %v5858, %v5857
  %v5897 = vpack.c.bf16 %v5860, %v5859
  %v5898 = vpack.c.bf16 %v5862, %v5861
  %v5899 = vpack.c.bf16 %v5864, %v5863
  %v5900 = vpack.c.bf16 %v5866, %v5865
  %v5901 = vpack.c.bf16 %v5868, %v5867
  %v5902 = vpack.c.bf16 %v5870, %v5869
  %v5903 = vld [vmem:[%s4] sm:$0xf]
  %v5904 = vld [vmem:[#allocation3 + $0x1] sm:$0xff]
  %v5905 = vld [vmem:[#allocation3 + $0x9] sm:$0xff]
  %v5906 = vld [vmem:[#allocation3 + $0x19] sm:$0xff]
  %v5907 = vld [vmem:[#allocation3 + $0x21] sm:$0xff]
  %v5908 = vld [vmem:[#allocation3 + $0x31] sm:$0xff]
  %v5909 = vld [vmem:[#allocation3 + $0x39] sm:$0xff]
  %v5910 = vld [vmem:[#allocation3 + $0x49] sm:$0xff]
  %v5911 = vld [vmem:[#allocation3 + $0x51] sm:$0xff]
  %v5912 = vld [vmem:[#allocation3 + $0x61] sm:$0xff]
  %v5913 = vld [vmem:[#allocation3 + $0x69] sm:$0xff]
  %v5914 = vld [vmem:[#allocation3 + $0x79] sm:$0xff]
  %v5915 = vld [vmem:[#allocation3 + $0x81] sm:$0xff]
  %v5916 = vld [vmem:[#allocation3 + $0x91] sm:$0xff]
  %v5917 = vld [vmem:[#allocation3 + $0x99] sm:$0xff]
  %v5918 = vld [vmem:[#allocation3 + $0xa9] sm:$0xff]
  %v5919 = vld [vmem:[#allocation3 + $0xb1] sm:$0xff]
  %v5920 = vld [vmem:[#allocation3 + $0xc1] sm:$0xff]
  %v5921 = vld [vmem:[#allocation3 + $0xc9] sm:$0xff]
  %v5922 = vld [vmem:[#allocation3 + $0xd9] sm:$0xff]
  %v5923 = vld [vmem:[#allocation3 + $0xe1] sm:$0xff]
  %v5924 = vld [vmem:[#allocation3 + $0xf1] sm:$0xff]
  %v5925 = vld [vmem:[#allocation3 + $0xf9] sm:$0xff]
  %v5926 = vld [vmem:[#allocation3 + $0x109] sm:$0xff]
  %v5927 = vld [vmem:[#allocation3 + $0x111] sm:$0xff]
  %v5928 = vld [vmem:[#allocation3 + $0x121] sm:$0xff]
  %v5929 = vld [vmem:[#allocation3 + $0x129] sm:$0xff]
  %v5930 = vld [vmem:[#allocation3 + $0x139] sm:$0xff]
  %v5931 = vld [vmem:[#allocation3 + $0x141] sm:$0xff]
  %v5932 = vld [vmem:[#allocation3 + $0x151] sm:$0xff]
  %v5933 = vld [vmem:[#allocation3 + $0x159] sm:$0xff]
  %v5934 = vld [vmem:[#allocation3 + $0x169] sm:$0xff]
  %v5935 = vld [vmem:[#allocation3 + $0x171] sm:$0xff]
  %v5936 = vld [vmem:[#allocation3 + $0x1b1] sm:$0xff]
  %v5937 = vld [vmem:[#allocation3 + $0x1b9] sm:$0xff]
  %v5938 = vld [vmem:[#allocation3 + $0x1c9] sm:$0xff]
  %v5939 = vld [vmem:[#allocation3 + $0x1d1] sm:$0xff]
  %v5940 = vld [vmem:[#allocation3 + $0x1e1] sm:$0xff]
  %v5941 = vld [vmem:[#allocation3 + $0x1e9] sm:$0xff]
  %v5942 = vld [vmem:[#allocation3 + $0x1f9] sm:$0xff]
  %v5943 = vld [vmem:[#allocation3 + $0x201] sm:$0xff]
  %v5944 = vld [vmem:[#allocation3 + $0x211] sm:$0xff]
  %v5945 = vld [vmem:[#allocation3 + $0x219] sm:$0xff]
  %v5946 = vld [vmem:[#allocation3 + $0x229] sm:$0xff]
  %v5947 = vld [vmem:[#allocation3 + $0x231] sm:$0xff]
  %v5948 = vld [vmem:[#allocation3 + $0x241] sm:$0xff]
  %v5949 = vld [vmem:[#allocation3 + $0x249] sm:$0xff]
  %v5950 = vld [vmem:[#allocation3 + $0x259] sm:$0xff]
  %v5951 = vld [vmem:[#allocation3 + $0x261] sm:$0xff]
  %v5952 = vld [vmem:[#allocation3 + $0x271] sm:$0xff]
  %v5953 = vld [vmem:[#allocation3 + $0x279] sm:$0xff]
  %v5954 = vld [vmem:[#allocation3 + $0x289] sm:$0xff]
  %v5955 = vld [vmem:[#allocation3 + $0x291] sm:$0xff]
  %v5956 = vld [vmem:[#allocation3 + $0x2a1] sm:$0xff]
  %v5957 = vld [vmem:[#allocation3 + $0x2a9] sm:$0xff]
  %v5958 = vld [vmem:[#allocation3 + $0x2b9] sm:$0xff]
  %v5959 = vld [vmem:[#allocation3 + $0x2c1] sm:$0xff]
  %v5960 = vld [vmem:[#allocation3 + $0x2d1] sm:$0xff]
  %v5961 = vld [vmem:[#allocation3 + $0x2d9] sm:$0xff]
  %v5962 = vld [vmem:[#allocation3 + $0x2e9] sm:$0xff]
  %v5963 = vld [vmem:[#allocation3 + $0x2f1] sm:$0xff]
  %v5964 = vld [vmem:[#allocation3 + $0x301] sm:$0xff]
  %v5965 = vld [vmem:[#allocation3 + $0x309] sm:$0xff]
  %v5966 = vld [vmem:[#allocation3 + $0x319] sm:$0xff]
  %v5967 = vld [vmem:[#allocation3 + $0x321] sm:$0xff]
  %v5968 = vpack.c.bf16 %v5905, %v5904
  %v5969 = vpack.c.bf16 %v5907, %v5906
  %v5970 = vpack.c.bf16 %v5909, %v5908
  %v5971 = vpack.c.bf16 %v5911, %v5910
  %v5972 = vpack.c.bf16 %v5913, %v5912
  %v5973 = vpack.c.bf16 %v5915, %v5914
  %v5974 = vpack.c.bf16 %v5917, %v5916
  %v5975 = vpack.c.bf16 %v5919, %v5918
  %v5976 = vpack.c.bf16 %v5921, %v5920
  %v5977 = vpack.c.bf16 %v5923, %v5922
  %v5978 = vpack.c.bf16 %v5925, %v5924
  %v5979 = vpack.c.bf16 %v5927, %v5926
  %v5980 = vpack.c.bf16 %v5929, %v5928
  %v5981 = vpack.c.bf16 %v5931, %v5930
  %v5982 = vpack.c.bf16 %v5933, %v5932
  %v5983 = vpack.c.bf16 %v5935, %v5934
  %v5984 = vpack.c.bf16 %v5937, %v5936
  %v5985 = vpack.c.bf16 %v5939, %v5938
  %v5986 = vpack.c.bf16 %v5941, %v5940
  %v5987 = vpack.c.bf16 %v5943, %v5942
  %v5988 = vpack.c.bf16 %v5945, %v5944
  %v5989 = vpack.c.bf16 %v5947, %v5946
  %v5990 = vpack.c.bf16 %v5949, %v5948
  %v5991 = vpack.c.bf16 %v5951, %v5950
  %v5992 = vpack.c.bf16 %v5953, %v5952
  %v5993 = vpack.c.bf16 %v5955, %v5954
  %v5994 = vpack.c.bf16 %v5957, %v5956
  %v5995 = vpack.c.bf16 %v5959, %v5958
  %v5996 = vpack.c.bf16 %v5961, %v5960
  %v5997 = vpack.c.bf16 %v5963, %v5962
  %v5998 = vpack.c.bf16 %v5965, %v5964
  %v5999 = vpack.c.bf16 %v5967, %v5966
  %s6000 = scalar_lea.vmem %s4, 4
  %v6001 = vld [vmem:[%s6000] sm:$0xf]
  %v6003 = vsel %vm5061, %v5968, 0
  %v6006 = vsel %vm5061, %v5969, 0
  %v6009 = vsel %vm5061, %v5970, 0
  %v6012 = vsel %vm5061, %v5971, 0
  %v6015 = vsel %vm5061, %v5972, 0
  %v6018 = vsel %vm5061, %v5973, 0
  %v6021 = vsel %vm5061, %v5974, 0
  %v6024 = vsel %vm5061, %v5975, 0
  %v6027 = vsel %vm5061, %v5976, 0
  %v6030 = vsel %vm5061, %v5977, 0
  %v6033 = vsel %vm5061, %v5978, 0
  %v6036 = vsel %vm5061, %v5979, 0
  %v6039 = vsel %vm5061, %v5980, 0
  %v6042 = vsel %vm5061, %v5981, 0
  %v6045 = vsel %vm5061, %v5982, 0
  %v6048 = vsel %vm5061, %v5983, 0
  %v6051 = vsel %vm5061, %v5984, 0
  %v6054 = vsel %vm5061, %v5985, 0
  %v6057 = vsel %vm5061, %v5986, 0
  %v6060 = vsel %vm5061, %v5987, 0
  %v6063 = vsel %vm5061, %v5988, 0
  %v6066 = vsel %vm5061, %v5989, 0
  %v6069 = vsel %vm5061, %v5990, 0
  %v6072 = vsel %vm5061, %v5991, 0
  %v6075 = vsel %vm5061, %v5992, 0
  %v6078 = vsel %vm5061, %v5993, 0
  %v6081 = vsel %vm5061, %v5994, 0
  %v6084 = vsel %vm5061, %v5995, 0
  %v6087 = vsel %vm5061, %v5996, 0
  %v6090 = vsel %vm5061, %v5997, 0
  %v6093 = vsel %vm5061, %v5998, 0
  %v6096 = vsel %vm5061, %v5999, 0
  %vm6098 = vcmask 1043456
  %v6100 = vsel %vm6098, %v6001, 0
  %6102 = vmatprep.subr.bf16.mxu0 0
  %6103 = vmatpush1.bf16.msra.mxu0 %v6100
  %6104 = vmatprep.subr.bf16.mxu0 0
  %6105 = vmatpush1.bf16.msra.mxu0 0
  %6106 = vmatprep.subr.bf16.mxu0 0
  %6107 = vmatpush1.bf16.msra.mxu0 0
  %6108 = vmatprep.subr.bf16.mxu0 0
  %6109 = vmatpush1.bf16.msra.mxu0 0
  %6110 = vmatprep.subr.bf16.mxu0 0
  %6111 = vmatpush1.bf16.msra.mxu0 0
  %6112 = vmatprep.subr.bf16.mxu0 0
  %6113 = vmatpush1.bf16.msra.mxu0 0
  %6114 = vmatprep.subr.bf16.mxu0 0
  %6115 = vmatpush1.bf16.msra.mxu0 0
  %6116 = vmatprep.subr.bf16.mxu0 0
  %6117 = vmatpush1.bf16.msra.mxu0 0
  %6118 = vmatprep.subr.bf16.mxu0 0
  %6119 = vmatpush1.bf16.msra.mxu0 0
  %6120 = vmatprep.subr.bf16.mxu0 0
  %6121 = vmatpush1.bf16.msra.mxu0 0
  %6122 = vmatprep.subr.bf16.mxu0 0
  %6123 = vmatpush1.bf16.msra.mxu0 0
  %6124 = vmatprep.subr.bf16.mxu0 0
  %6125 = vmatpush1.bf16.msra.mxu0 0
  %6126 = vmatprep.subr.bf16.mxu0 0
  %6127 = vmatpush1.bf16.msra.mxu0 0
  %6128 = vmatprep.subr.bf16.mxu0 0
  %6129 = vmatpush1.bf16.msra.mxu0 0
  %6130 = vmatprep.subr.bf16.mxu0 0
  %6131 = vmatpush1.bf16.msra.mxu0 0
  %6132 = vmatprep.subr.bf16.mxu0 0
  %6133 = vmatpush1.bf16.msra.mxu0 0
  %6134 = vmatprep.mubr.bf16.mxu0 0
  %6135 = vmatmul.mubr.bf16.gmra.mrb[0].mxu0 %v6003
  %v6136 = vpop.f32.mrb[0].mxu0
  %v6137 = vadd.f32 0.0, %v6136
  %v6138 = vpop.f32.mrb[0].mxu0
  %v6139 = vpop.f32.mrb[0].mxu0
  %v6140 = vadd.f32 0.0, %v6139
  %v6141 = vpop.f32.mrb[0].mxu0
  %6142 = vmatprep.mubr.bf16.mxu0 0
  %6143 = vmatmul.mubr.bf16.gmra.mrb[0].mxu0 %v6006
  %v6144 = vpop.f32.mrb[0].mxu0
  %v6145 = vadd.f32 0.0, %v6144
  %v6146 = vpop.f32.mrb[0].mxu0
  %v6147 = vpop.f32.mrb[0].mxu0
  %v6148 = vadd.f32 0.0, %v6147
  %v6149 = vpop.f32.mrb[0].mxu0
  %6150 = vmatprep.mubr.bf16.mxu0 0
  %6151 = vmatmul.mubr.bf16.gmra.mrb[0].mxu0 %v6009
  %v6152 = vpop.f32.mrb[0].mxu0
  %v6153 = vadd.f32 0.0, %v6152
  %v6154 = vpop.f32.mrb[0].mxu0
  %v6155 = vpop.f32.mrb[0].mxu0
  %v6156 = vadd.f32 0.0, %v6155
  %v6157 = vpop.f32.mrb[0].mxu0
  %6158 = vmatprep.mubr.bf16.mxu0 0
  %6159 = vmatmul.mubr.bf16.gmra.mrb[0].mxu0 %v6012
  %v6160 = vpop.f32.mrb[0].mxu0
  %v6161 = vadd.f32 0.0, %v6160
  %v6162 = vpop.f32.mrb[0].mxu0
  %v6163 = vpop.f32.mrb[0].mxu0
  %v6164 = vadd.f32 0.0, %v6163
  %v6165 = vpop.f32.mrb[0].mxu0
  %6166 = vmatprep.mubr.bf16.mxu0 0
  %6167 = vmatmul.mubr.bf16.gmra.mrb[0].mxu0 %v6015
  %v6168 = vpop.f32.mrb[0].mxu0
  %v6169 = vadd.f32 0.0, %v6168
  %v6170 = vpop.f32.mrb[0].mxu0
  %v6171 = vpop.f32.mrb[0].mxu0
  %v6172 = vadd.f32 0.0, %v6171
  %v6173 = vpop.f32.mrb[0].mxu0
  %6174 = vmatprep.mubr.bf16.mxu0 0
  %6175 = vmatmul.mubr.bf16.gmra.mrb[0].mxu0 %v6018
  %v6176 = vpop.f32.mrb[0].mxu0
  %v6177 = vadd.f32 0.0, %v6176
  %v6178 = vpop.f32.mrb[0].mxu0
  %v6179 = vpop.f32.mrb[0].mxu0
  %v6180 = vadd.f32 0.0, %v6179
  %v6181 = vpop.f32.mrb[0].mxu0
  %6182 = vmatprep.mubr.bf16.mxu0 0
  %6183 = vmatmul.mubr.bf16.gmra.mrb[0].mxu0 %v6021
  %v6184 = vpop.f32.mrb[0].mxu0
  %v6185 = vadd.f32 0.0, %v6184
  %v6186 = vpop.f32.mrb[0].mxu0
  %v6187 = vpop.f32.mrb[0].mxu0
  %v6188 = vadd.f32 0.0, %v6187
  %v6189 = vpop.f32.mrb[0].mxu0
  %6190 = vmatprep.mubr.bf16.mxu0 0
  %6191 = vmatmul.mubr.bf16.gmra.mrb[0].mxu0 %v6024
  %v6192 = vpop.f32.mrb[0].mxu0
  %v6193 = vadd.f32 0.0, %v6192
  %v6194 = vpop.f32.mrb[0].mxu0
  %v6195 = vpop.f32.mrb[0].mxu0
  %v6196 = vadd.f32 0.0, %v6195
  %v6197 = vpop.f32.mrb[0].mxu0
  %6198 = vmatprep.mubr.bf16.mxu0 0
  %6199 = vmatmul.mubr.bf16.gmra.mrb[0].mxu0 %v6027
  %v6200 = vpop.f32.mrb[0].mxu0
  %v6201 = vadd.f32 0.0, %v6200
  %v6202 = vpop.f32.mrb[0].mxu0
  %v6203 = vpop.f32.mrb[0].mxu0
  %v6204 = vadd.f32 0.0, %v6203
  %v6205 = vpop.f32.mrb[0].mxu0
  %6206 = vmatprep.mubr.bf16.mxu0 0
  %6207 = vmatmul.mubr.bf16.gmra.mrb[0].mxu0 %v6030
  %v6208 = vpop.f32.mrb[0].mxu0
  %v6209 = vadd.f32 0.0, %v6208
  %v6210 = vpop.f32.mrb[0].mxu0
  %v6211 = vpop.f32.mrb[0].mxu0
  %v6212 = vadd.f32 0.0, %v6211
  %v6213 = vpop.f32.mrb[0].mxu0
  %6214 = vmatprep.mubr.bf16.mxu0 0
  %6215 = vmatmul.mubr.bf16.gmra.mrb[0].mxu0 %v6033
  %v6216 = vpop.f32.mrb[0].mxu0
  %v6217 = vadd.f32 0.0, %v6216
  %v6218 = vpop.f32.mrb[0].mxu0
  %v6219 = vpop.f32.mrb[0].mxu0
  %v6220 = vadd.f32 0.0, %v6219
  %v6221 = vpop.f32.mrb[0].mxu0
  %6222 = vmatprep.mubr.bf16.mxu0 0
  %6223 = vmatmul.mubr.bf16.gmra.mrb[0].mxu0 %v6036
  %v6224 = vpop.f32.mrb[0].mxu0
  %v6225 = vadd.f32 0.0, %v6224
  %v6226 = vpop.f32.mrb[0].mxu0
  %v6227 = vpop.f32.mrb[0].mxu0
  %v6228 = vadd.f32 0.0, %v6227
  %v6229 = vpop.f32.mrb[0].mxu0
  %6230 = vmatprep.mubr.bf16.mxu0 0
  %6231 = vmatmul.mubr.bf16.gmra.mrb[0].mxu0 %v6039
  %v6232 = vpop.f32.mrb[0].mxu0
  %v6233 = vadd.f32 0.0, %v6232
  %v6234 = vpop.f32.mrb[0].mxu0
  %v6235 = vpop.f32.mrb[0].mxu0
  %v6236 = vadd.f32 0.0, %v6235
  %v6237 = vpop.f32.mrb[0].mxu0
  %6238 = vmatprep.mubr.bf16.mxu0 0
  %6239 = vmatmul.mubr.bf16.gmra.mrb[0].mxu0 %v6042
  %v6240 = vpop.f32.mrb[0].mxu0
  %v6241 = vadd.f32 0.0, %v6240
  %v6242 = vpop.f32.mrb[0].mxu0
  %v6243 = vpop.f32.mrb[0].mxu0
  %v6244 = vadd.f32 0.0, %v6243
  %v6245 = vpop.f32.mrb[0].mxu0
  %6246 = vmatprep.mubr.bf16.mxu0 0
  %6247 = vmatmul.mubr.bf16.gmra.mrb[0].mxu0 %v6045
  %v6248 = vpop.f32.mrb[0].mxu0
  %v6249 = vadd.f32 0.0, %v6248
  %v6250 = vpop.f32.mrb[0].mxu0
  %v6251 = vpop.f32.mrb[0].mxu0
  %v6252 = vadd.f32 0.0, %v6251
  %v6253 = vpop.f32.mrb[0].mxu0
  %6254 = vmatprep.mubr.bf16.mxu0 0
  %6255 = vmatmul.mubr.bf16.gmra.mrb[0].mxu0 %v6048
  %v6256 = vpop.f32.mrb[0].mxu0
  %v6257 = vadd.f32 0.0, %v6256
  %v6258 = vpop.f32.mrb[0].mxu0
  %v6259 = vpop.f32.mrb[0].mxu0
  %v6260 = vadd.f32 0.0, %v6259
  %v6261 = vpop.f32.mrb[0].mxu0
  %6262 = vmatprep.mubr.bf16.mxu0 0
  %6263 = vmatmul.mubr.bf16.gmra.mrb[0].mxu0 %v6051
  %v6264 = vpop.f32.mrb[0].mxu0
  %v6265 = vadd.f32 0.0, %v6264
  %v6266 = vpop.f32.mrb[0].mxu0
  %v6267 = vpop.f32.mrb[0].mxu0
  %v6268 = vadd.f32 0.0, %v6267
  %v6269 = vpop.f32.mrb[0].mxu0
  %6270 = vmatprep.mubr.bf16.mxu0 0
  %6271 = vmatmul.mubr.bf16.gmra.mrb[0].mxu0 %v6054
  %v6272 = vpop.f32.mrb[0].mxu0
  %v6273 = vadd.f32 0.0, %v6272
  %v6274 = vpop.f32.mrb[0].mxu0
  %v6275 = vpop.f32.mrb[0].mxu0
  %v6276 = vadd.f32 0.0, %v6275
  %v6277 = vpop.f32.mrb[0].mxu0
  %6278 = vmatprep.mubr.bf16.mxu0 0
  %6279 = vmatmul.mubr.bf16.gmra.mrb[0].mxu0 %v6057
  %v6280 = vpop.f32.mrb[0].mxu0
  %v6281 = vadd.f32 0.0, %v6280
  %v6282 = vpop.f32.mrb[0].mxu0
  %v6283 = vpop.f32.mrb[0].mxu0
  %v6284 = vadd.f32 0.0, %v6283
  %v6285 = vpop.f32.mrb[0].mxu0
  %6286 = vmatprep.mubr.bf16.mxu0 0
  %6287 = vmatmul.mubr.bf16.gmra.mrb[0].mxu0 %v6060
  %v6288 = vpop.f32.mrb[0].mxu0
  %v6289 = vadd.f32 0.0, %v6288
  %v6290 = vpop.f32.mrb[0].mxu0
  %v6291 = vpop.f32.mrb[0].mxu0
  %v6292 = vadd.f32 0.0, %v6291
  %v6293 = vpop.f32.mrb[0].mxu0
  %6294 = vmatprep.mubr.bf16.mxu0 0
  %6295 = vmatmul.mubr.bf16.gmra.mrb[0].mxu0 %v6063
  %v6296 = vpop.f32.mrb[0].mxu0
  %v6297 = vadd.f32 0.0, %v6296
  %v6298 = vpop.f32.mrb[0].mxu0
  %v6299 = vpop.f32.mrb[0].mxu0
  %v6300 = vadd.f32 0.0, %v6299
  %v6301 = vpop.f32.mrb[0].mxu0
  %6302 = vmatprep.mubr.bf16.mxu0 0
  %6303 = vmatmul.mubr.bf16.gmra.mrb[0].mxu0 %v6066
  %v6304 = vpop.f32.mrb[0].mxu0
  %v6305 = vadd.f32 0.0, %v6304
  %v6306 = vpop.f32.mrb[0].mxu0
  %v6307 = vpop.f32.mrb[0].mxu0
  %v6308 = vadd.f32 0.0, %v6307
  %v6309 = vpop.f32.mrb[0].mxu0
  %6310 = vmatprep.mubr.bf16.mxu0 0
  %6311 = vmatmul.mubr.bf16.gmra.mrb[0].mxu0 %v6069
  %v6312 = vpop.f32.mrb[0].mxu0
  %v6313 = vadd.f32 0.0, %v6312
  %v6314 = vpop.f32.mrb[0].mxu0
  %v6315 = vpop.f32.mrb[0].mxu0
  %v6316 = vadd.f32 0.0, %v6315
  %v6317 = vpop.f32.mrb[0].mxu0
  %6318 = vmatprep.mubr.bf16.mxu0 0
  %6319 = vmatmul.mubr.bf16.gmra.mrb[0].mxu0 %v6072
  %v6320 = vpop.f32.mrb[0].mxu0
  %v6321 = vadd.f32 0.0, %v6320
  %v6322 = vpop.f32.mrb[0].mxu0
  %v6323 = vpop.f32.mrb[0].mxu0
  %v6324 = vadd.f32 0.0, %v6323
  %v6325 = vpop.f32.mrb[0].mxu0
  %6326 = vmatprep.mubr.bf16.mxu0 0
  %6327 = vmatmul.mubr.bf16.gmra.mrb[0].mxu0 %v6075
  %v6328 = vpop.f32.mrb[0].mxu0
  %v6329 = vadd.f32 0.0, %v6328
  %v6330 = vpop.f32.mrb[0].mxu0
  %v6331 = vpop.f32.mrb[0].mxu0
  %v6332 = vadd.f32 0.0, %v6331
  %v6333 = vpop.f32.mrb[0].mxu0
  %6334 = vmatprep.mubr.bf16.mxu0 0
  %6335 = vmatmul.mubr.bf16.gmra.mrb[0].mxu0 %v6078
  %v6336 = vpop.f32.mrb[0].mxu0
  %v6337 = vadd.f32 0.0, %v6336
  %v6338 = vpop.f32.mrb[0].mxu0
  %v6339 = vpop.f32.mrb[0].mxu0
  %v6340 = vadd.f32 0.0, %v6339
  %v6341 = vpop.f32.mrb[0].mxu0
  %6342 = vmatprep.mubr.bf16.mxu0 0
  %6343 = vmatmul.mubr.bf16.gmra.mrb[0].mxu0 %v6081
  %v6344 = vpop.f32.mrb[0].mxu0
  %v6345 = vadd.f32 0.0, %v6344
  %v6346 = vpop.f32.mrb[0].mxu0
  %v6347 = vpop.f32.mrb[0].mxu0
  %v6348 = vadd.f32 0.0, %v6347
  %v6349 = vpop.f32.mrb[0].mxu0
  %6350 = vmatprep.mubr.bf16.mxu0 0
  %6351 = vmatmul.mubr.bf16.gmra.mrb[0].mxu0 %v6084
  %v6352 = vpop.f32.mrb[0].mxu0
  %v6353 = vadd.f32 0.0, %v6352
  %v6354 = vpop.f32.mrb[0].mxu0
  %v6355 = vpop.f32.mrb[0].mxu0
  %v6356 = vadd.f32 0.0, %v6355
  %v6357 = vpop.f32.mrb[0].mxu0
  %6358 = vmatprep.mubr.bf16.mxu0 0
  %6359 = vmatmul.mubr.bf16.gmra.mrb[0].mxu0 %v6087
  %v6360 = vpop.f32.mrb[0].mxu0
  %v6361 = vadd.f32 0.0, %v6360
  %v6362 = vpop.f32.mrb[0].mxu0
  %v6363 = vpop.f32.mrb[0].mxu0
  %v6364 = vadd.f32 0.0, %v6363
  %v6365 = vpop.f32.mrb[0].mxu0
  %6366 = vmatprep.mubr.bf16.mxu0 0
  %6367 = vmatmul.mubr.bf16.gmra.mrb[0].mxu0 %v6090
  %v6368 = vpop.f32.mrb[0].mxu0
  %v6369 = vadd.f32 0.0, %v6368
  %v6370 = vpop.f32.mrb[0].mxu0
  %v6371 = vpop.f32.mrb[0].mxu0
  %v6372 = vadd.f32 0.0, %v6371
  %v6373 = vpop.f32.mrb[0].mxu0
  %6374 = vmatprep.mubr.bf16.mxu0 0
  %6375 = vmatmul.mubr.bf16.gmra.mrb[0].mxu0 %v6093
  %v6376 = vpop.f32.mrb[0].mxu0
  %v6377 = vadd.f32 0.0, %v6376
  %v6378 = vpop.f32.mrb[0].mxu0
  %v6379 = vpop.f32.mrb[0].mxu0
  %v6380 = vadd.f32 0.0, %v6379
  %v6381 = vpop.f32.mrb[0].mxu0
  %6382 = vmatprep.mubr.bf16.mxu0 0
  %6383 = vmatmul.mubr.bf16.gmra.mrb[0].mxu0 %v6096
  %v6384 = vpop.f32.mrb[0].mxu0
  %v6385 = vadd.f32 0.0, %v6384
  %v6386 = vpop.f32.mrb[0].mxu0
  %v6387 = vpop.f32.mrb[0].mxu0
  %v6388 = vadd.f32 0.0, %v6387
  %v6389 = vpop.f32.mrb[0].mxu0
  %6390 = vdwg.mxu0
  %v6392 = vsel %vm5061, %v5871, 0
  %v6395 = vsel %vm5061, %v5872, 0
  %v6398 = vsel %vm5061, %v5873, 0
  %v6401 = vsel %vm5061, %v5874, 0
  %v6404 = vsel %vm5061, %v5875, 0
  %v6407 = vsel %vm5061, %v5876, 0
  %v6410 = vsel %vm5061, %v5877, 0
  %v6413 = vsel %vm5061, %v5878, 0
  %v6416 = vsel %vm5061, %v5879, 0
  %v6419 = vsel %vm5061, %v5880, 0
  %v6422 = vsel %vm5061, %v5881, 0
  %v6425 = vsel %vm5061, %v5882, 0
  %v6428 = vsel %vm5061, %v5883, 0
  %v6431 = vsel %vm5061, %v5884, 0
  %v6434 = vsel %vm5061, %v5885, 0
  %v6437 = vsel %vm5061, %v5886, 0
  %v6440 = vsel %vm5061, %v5887, 0
  %v6443 = vsel %vm5061, %v5888, 0
  %v6446 = vsel %vm5061, %v5889, 0
  %v6449 = vsel %vm5061, %v5890, 0
  %v6452 = vsel %vm5061, %v5891, 0
  %v6455 = vsel %vm5061, %v5892, 0
  %v6458 = vsel %vm5061, %v5893, 0
  %v6461 = vsel %vm5061, %v5894, 0
  %v6464 = vsel %vm5061, %v5895, 0
  %v6467 = vsel %vm5061, %v5896, 0
  %v6470 = vsel %vm5061, %v5897, 0
  %v6473 = vsel %vm5061, %v5898, 0
  %v6476 = vsel %vm5061, %v5899, 0
  %v6479 = vsel %vm5061, %v5900, 0
  %v6482 = vsel %vm5061, %v5901, 0
  %v6485 = vsel %vm5061, %v5902, 0
  %v6488 = vsel %vm6098, %v5903, 0
  %6490 = vmatprep.subr.bf16.mxu0 0
  %6491 = vmatpush1.bf16.msra.mxu0 %v6488
  %6492 = vmatprep.subr.bf16.mxu0 0
  %6493 = vmatpush1.bf16.msra.mxu0 0
  %6494 = vmatprep.subr.bf16.mxu0 0
  %6495 = vmatpush1.bf16.msra.mxu0 0
  %6496 = vmatprep.subr.bf16.mxu0 0
  %6497 = vmatpush1.bf16.msra.mxu0 0
  %6498 = vmatprep.subr.bf16.mxu0 0
  %6499 = vmatpush1.bf16.msra.mxu0 0
  %6500 = vmatprep.subr.bf16.mxu0 0
  %6501 = vmatpush1.bf16.msra.mxu0 0
  %6502 = vmatprep.subr.bf16.mxu0 0
  %6503 = vmatpush1.bf16.msra.mxu0 0
  %6504 = vmatprep.subr.bf16.mxu0 0
  %6505 = vmatpush1.bf16.msra.mxu0 0
  %6506 = vmatprep.subr.bf16.mxu0 0
  %6507 = vmatpush1.bf16.msra.mxu0 0
  %6508 = vmatprep.subr.bf16.mxu0 0
  %6509 = vmatpush1.bf16.msra.mxu0 0
  %6510 = vmatprep.subr.bf16.mxu0 0
  %6511 = vmatpush1.bf16.msra.mxu0 0
  %6512 = vmatprep.subr.bf16.mxu0 0
  %6513 = vmatpush1.bf16.msra.mxu0 0
  %6514 = vmatprep.subr.bf16.mxu0 0
  %6515 = vmatpush1.bf16.msra.mxu0 0
  %6516 = vmatprep.subr.bf16.mxu0 0
  %6517 = vmatpush1.bf16.msra.mxu0 0
  %6518 = vmatprep.subr.bf16.mxu0 0
  %6519 = vmatpush1.bf16.msra.mxu0 0
  %6520 = vmatprep.subr.bf16.mxu0 0
  %6521 = vmatpush1.bf16.msra.mxu0 0
  %6522 = vmatprep.mubr.bf16.mxu0 0
  %6523 = vmatmul.mubr.bf16.gmra.mrb[0].mxu0 %v6392
  %v6524 = vpop.f32.mrb[0].mxu0
  %v6525 = vadd.f32 %v6137, %v6524
  %v6526 = vpop.f32.mrb[0].mxu0
  %v6527 = vpop.f32.mrb[0].mxu0
  %v6528 = vadd.f32 %v6140, %v6527
  %v6529 = vpop.f32.mrb[0].mxu0
  %6530 = vmatprep.mubr.bf16.mxu0 0
  %6531 = vmatmul.mubr.bf16.gmra.mrb[0].mxu0 %v6395
  %v6532 = vpop.f32.mrb[0].mxu0
  %v6533 = vadd.f32 %v6145, %v6532
  %v6534 = vpop.f32.mrb[0].mxu0
  %v6535 = vpop.f32.mrb[0].mxu0
  %v6536 = vadd.f32 %v6148, %v6535
  %v6537 = vpop.f32.mrb[0].mxu0
  %6538 = vmatprep.mubr.bf16.mxu0 0
  %6539 = vmatmul.mubr.bf16.gmra.mrb[0].mxu0 %v6398
  %v6540 = vpop.f32.mrb[0].mxu0
  %v6541 = vadd.f32 %v6153, %v6540
  %v6542 = vpop.f32.mrb[0].mxu0
  %v6543 = vpop.f32.mrb[0].mxu0
  %v6544 = vadd.f32 %v6156, %v6543
  %v6545 = vpop.f32.mrb[0].mxu0
  %6546 = vmatprep.mubr.bf16.mxu0 0
  %6547 = vmatmul.mubr.bf16.gmra.mrb[0].mxu0 %v6401
  %v6548 = vpop.f32.mrb[0].mxu0
  %v6549 = vadd.f32 %v6161, %v6548
  %v6550 = vpop.f32.mrb[0].mxu0
  %v6551 = vpop.f32.mrb[0].mxu0
  %v6552 = vadd.f32 %v6164, %v6551
  %v6553 = vpop.f32.mrb[0].mxu0
  %6554 = vmatprep.mubr.bf16.mxu0 0
  %6555 = vmatmul.mubr.bf16.gmra.mrb[0].mxu0 %v6404
  %v6556 = vpop.f32.mrb[0].mxu0
  %v6557 = vadd.f32 %v6169, %v6556
  %v6558 = vpop.f32.mrb[0].mxu0
  %v6559 = vpop.f32.mrb[0].mxu0
  %v6560 = vadd.f32 %v6172, %v6559
  %v6561 = vpop.f32.mrb[0].mxu0
  %6562 = vmatprep.mubr.bf16.mxu0 0
  %6563 = vmatmul.mubr.bf16.gmra.mrb[0].mxu0 %v6407
  %v6564 = vpop.f32.mrb[0].mxu0
  %v6565 = vadd.f32 %v6177, %v6564
  %v6566 = vpop.f32.mrb[0].mxu0
  %v6567 = vpop.f32.mrb[0].mxu0
  %v6568 = vadd.f32 %v6180, %v6567
  %v6569 = vpop.f32.mrb[0].mxu0
  %6570 = vmatprep.mubr.bf16.mxu0 0
  %6571 = vmatmul.mubr.bf16.gmra.mrb[0].mxu0 %v6410
  %v6572 = vpop.f32.mrb[0].mxu0
  %v6573 = vadd.f32 %v6185, %v6572
  %v6574 = vpop.f32.mrb[0].mxu0
  %v6575 = vpop.f32.mrb[0].mxu0
  %v6576 = vadd.f32 %v6188, %v6575
  %v6577 = vpop.f32.mrb[0].mxu0
  %6578 = vmatprep.mubr.bf16.mxu0 0
  %6579 = vmatmul.mubr.bf16.gmra.mrb[0].mxu0 %v6413
  %v6580 = vpop.f32.mrb[0].mxu0
  %v6581 = vadd.f32 %v6193, %v6580
  %v6582 = vpop.f32.mrb[0].mxu0
  %v6583 = vpop.f32.mrb[0].mxu0
  %v6584 = vadd.f32 %v6196, %v6583
  %v6585 = vpop.f32.mrb[0].mxu0
  %6586 = vmatprep.mubr.bf16.mxu0 0
  %6587 = vmatmul.mubr.bf16.gmra.mrb[0].mxu0 %v6416
  %v6588 = vpop.f32.mrb[0].mxu0
  %v6589 = vadd.f32 %v6201, %v6588
  %v6590 = vpop.f32.mrb[0].mxu0
  %v6591 = vpop.f32.mrb[0].mxu0
  %v6592 = vadd.f32 %v6204, %v6591
  %v6593 = vpop.f32.mrb[0].mxu0
  %6594 = vmatprep.mubr.bf16.mxu0 0
  %6595 = vmatmul.mubr.bf16.gmra.mrb[0].mxu0 %v6419
  %v6596 = vpop.f32.mrb[0].mxu0
  %v6597 = vadd.f32 %v6209, %v6596
  %v6598 = vpop.f32.mrb[0].mxu0
  %v6599 = vpop.f32.mrb[0].mxu0
  %v6600 = vadd.f32 %v6212, %v6599
  %v6601 = vpop.f32.mrb[0].mxu0
  %6602 = vmatprep.mubr.bf16.mxu0 0
  %6603 = vmatmul.mubr.bf16.gmra.mrb[0].mxu0 %v6422
  %v6604 = vpop.f32.mrb[0].mxu0
  %v6605 = vadd.f32 %v6217, %v6604
  %v6606 = vpop.f32.mrb[0].mxu0
  %v6607 = vpop.f32.mrb[0].mxu0
  %v6608 = vadd.f32 %v6220, %v6607
  %v6609 = vpop.f32.mrb[0].mxu0
  %6610 = vmatprep.mubr.bf16.mxu0 0
  %6611 = vmatmul.mubr.bf16.gmra.mrb[0].mxu0 %v6425
  %v6612 = vpop.f32.mrb[0].mxu0
  %v6613 = vadd.f32 %v6225, %v6612
  %v6614 = vpop.f32.mrb[0].mxu0
  %v6615 = vpop.f32.mrb[0].mxu0
  %v6616 = vadd.f32 %v6228, %v6615
  %v6617 = vpop.f32.mrb[0].mxu0
  %6618 = vmatprep.mubr.bf16.mxu0 0
  %6619 = vmatmul.mubr.bf16.gmra.mrb[0].mxu0 %v6428
  %v6620 = vpop.f32.mrb[0].mxu0
  %v6621 = vadd.f32 %v6233, %v6620
  %v6622 = vpop.f32.mrb[0].mxu0
  %v6623 = vpop.f32.mrb[0].mxu0
  %v6624 = vadd.f32 %v6236, %v6623
  %v6625 = vpop.f32.mrb[0].mxu0
  %6626 = vmatprep.mubr.bf16.mxu0 0
  %6627 = vmatmul.mubr.bf16.gmra.mrb[0].mxu0 %v6431
  %v6628 = vpop.f32.mrb[0].mxu0
  %v6629 = vadd.f32 %v6241, %v6628
  %v6630 = vpop.f32.mrb[0].mxu0
  %v6631 = vpop.f32.mrb[0].mxu0
  %v6632 = vadd.f32 %v6244, %v6631
  %v6633 = vpop.f32.mrb[0].mxu0
  %6634 = vmatprep.mubr.bf16.mxu0 0
  %6635 = vmatmul.mubr.bf16.gmra.mrb[0].mxu0 %v6434
  %v6636 = vpop.f32.mrb[0].mxu0
  %v6637 = vadd.f32 %v6249, %v6636
  %v6638 = vpop.f32.mrb[0].mxu0
  %v6639 = vpop.f32.mrb[0].mxu0
  %v6640 = vadd.f32 %v6252, %v6639
  %v6641 = vpop.f32.mrb[0].mxu0
  %6642 = vmatprep.mubr.bf16.mxu0 0
  %6643 = vmatmul.mubr.bf16.gmra.mrb[0].mxu0 %v6437
  %v6644 = vpop.f32.mrb[0].mxu0
  %v6645 = vadd.f32 %v6257, %v6644
  %v6646 = vpop.f32.mrb[0].mxu0
  %v6647 = vpop.f32.mrb[0].mxu0
  %v6648 = vadd.f32 %v6260, %v6647
  %v6649 = vpop.f32.mrb[0].mxu0
  %6650 = vmatprep.mubr.bf16.mxu0 0
  %6651 = vmatmul.mubr.bf16.gmra.mrb[0].mxu0 %v6440
  %v6652 = vpop.f32.mrb[0].mxu0
  %v6653 = vadd.f32 %v6265, %v6652
  %v6654 = vpop.f32.mrb[0].mxu0
  %v6655 = vpop.f32.mrb[0].mxu0
  %v6656 = vadd.f32 %v6268, %v6655
  %v6657 = vpop.f32.mrb[0].mxu0
  %6658 = vmatprep.mubr.bf16.mxu0 0
  %6659 = vmatmul.mubr.bf16.gmra.mrb[0].mxu0 %v6443
  %v6660 = vpop.f32.mrb[0].mxu0
  %v6661 = vadd.f32 %v6273, %v6660
  %v6662 = vpop.f32.mrb[0].mxu0
  %v6663 = vpop.f32.mrb[0].mxu0
  %v6664 = vadd.f32 %v6276, %v6663
  %v6665 = vpop.f32.mrb[0].mxu0
  %6666 = vmatprep.mubr.bf16.mxu0 0
  %6667 = vmatmul.mubr.bf16.gmra.mrb[0].mxu0 %v6446
  %v6668 = vpop.f32.mrb[0].mxu0
  %v6669 = vadd.f32 %v6281, %v6668
  %v6670 = vpop.f32.mrb[0].mxu0
  %v6671 = vpop.f32.mrb[0].mxu0
  %v6672 = vadd.f32 %v6284, %v6671
  %v6673 = vpop.f32.mrb[0].mxu0
  %6674 = vmatprep.mubr.bf16.mxu0 0
  %6675 = vmatmul.mubr.bf16.gmra.mrb[0].mxu0 %v6449
  %v6676 = vpop.f32.mrb[0].mxu0
  %v6677 = vadd.f32 %v6289, %v6676
  %v6678 = vpop.f32.mrb[0].mxu0
  %v6679 = vpop.f32.mrb[0].mxu0
  %v6680 = vadd.f32 %v6292, %v6679
  %v6681 = vpop.f32.mrb[0].mxu0
  %6682 = vmatprep.mubr.bf16.mxu0 0
  %6683 = vmatmul.mubr.bf16.gmra.mrb[0].mxu0 %v6452
  %v6684 = vpop.f32.mrb[0].mxu0
  %v6685 = vadd.f32 %v6297, %v6684
  %v6686 = vpop.f32.mrb[0].mxu0
  %v6687 = vpop.f32.mrb[0].mxu0
  %v6688 = vadd.f32 %v6300, %v6687
  %v6689 = vpop.f32.mrb[0].mxu0
  %6690 = vmatprep.mubr.bf16.mxu0 0
  %6691 = vmatmul.mubr.bf16.gmra.mrb[0].mxu0 %v6455
  %v6692 = vpop.f32.mrb[0].mxu0
  %v6693 = vadd.f32 %v6305, %v6692
  %v6694 = vpop.f32.mrb[0].mxu0
  %v6695 = vpop.f32.mrb[0].mxu0
  %v6696 = vadd.f32 %v6308, %v6695
  %v6697 = vpop.f32.mrb[0].mxu0
  %6698 = vmatprep.mubr.bf16.mxu0 0
  %6699 = vmatmul.mubr.bf16.gmra.mrb[0].mxu0 %v6458
  %v6700 = vpop.f32.mrb[0].mxu0
  %v6701 = vadd.f32 %v6313, %v6700
  %v6702 = vpop.f32.mrb[0].mxu0
  %v6703 = vpop.f32.mrb[0].mxu0
  %v6704 = vadd.f32 %v6316, %v6703
  %v6705 = vpop.f32.mrb[0].mxu0
  %6706 = vmatprep.mubr.bf16.mxu0 0
  %6707 = vmatmul.mubr.bf16.gmra.mrb[0].mxu0 %v6461
  %v6708 = vpop.f32.mrb[0].mxu0
  %v6709 = vadd.f32 %v6321, %v6708
  %v6710 = vpop.f32.mrb[0].mxu0
  %v6711 = vpop.f32.mrb[0].mxu0
  %v6712 = vadd.f32 %v6324, %v6711
  %v6713 = vpop.f32.mrb[0].mxu0
  %6714 = vmatprep.mubr.bf16.mxu0 0
  %6715 = vmatmul.mubr.bf16.gmra.mrb[0].mxu0 %v6464
  %v6716 = vpop.f32.mrb[0].mxu0
  %v6717 = vadd.f32 %v6329, %v6716
  %v6718 = vpop.f32.mrb[0].mxu0
  %v6719 = vpop.f32.mrb[0].mxu0
  %v6720 = vadd.f32 %v6332, %v6719
  %v6721 = vpop.f32.mrb[0].mxu0
  %6722 = vmatprep.mubr.bf16.mxu0 0
  %6723 = vmatmul.mubr.bf16.gmra.mrb[0].mxu0 %v6467
  %v6724 = vpop.f32.mrb[0].mxu0
  %v6725 = vadd.f32 %v6337, %v6724
  %v6726 = vpop.f32.mrb[0].mxu0
  %v6727 = vpop.f32.mrb[0].mxu0
  %v6728 = vadd.f32 %v6340, %v6727
  %v6729 = vpop.f32.mrb[0].mxu0
  %6730 = vmatprep.mubr.bf16.mxu0 0
  %6731 = vmatmul.mubr.bf16.gmra.mrb[0].mxu0 %v6470
  %v6732 = vpop.f32.mrb[0].mxu0
  %v6733 = vadd.f32 %v6345, %v6732
  %v6734 = vpop.f32.mrb[0].mxu0
  %v6735 = vpop.f32.mrb[0].mxu0
  %v6736 = vadd.f32 %v6348, %v6735
  %v6737 = vpop.f32.mrb[0].mxu0
  %6738 = vmatprep.mubr.bf16.mxu0 0
  %6739 = vmatmul.mubr.bf16.gmra.mrb[0].mxu0 %v6473
  %v6740 = vpop.f32.mrb[0].mxu0
  %v6741 = vadd.f32 %v6353, %v6740
  %v6742 = vpop.f32.mrb[0].mxu0
  %v6743 = vpop.f32.mrb[0].mxu0
  %v6744 = vadd.f32 %v6356, %v6743
  %v6745 = vpop.f32.mrb[0].mxu0
  %6746 = vmatprep.mubr.bf16.mxu0 0
  %6747 = vmatmul.mubr.bf16.gmra.mrb[0].mxu0 %v6476
  %v6748 = vpop.f32.mrb[0].mxu0
  %v6749 = vadd.f32 %v6361, %v6748
  %v6750 = vpop.f32.mrb[0].mxu0
  %v6751 = vpop.f32.mrb[0].mxu0
  %v6752 = vadd.f32 %v6364, %v6751
  %v6753 = vpop.f32.mrb[0].mxu0
  %6754 = vmatprep.mubr.bf16.mxu0 0
  %6755 = vmatmul.mubr.bf16.gmra.mrb[0].mxu0 %v6479
  %v6756 = vpop.f32.mrb[0].mxu0
  %v6757 = vadd.f32 %v6369, %v6756
  %v6758 = vpop.f32.mrb[0].mxu0
  %v6759 = vpop.f32.mrb[0].mxu0
  %v6760 = vadd.f32 %v6372, %v6759
  %v6761 = vpop.f32.mrb[0].mxu0
  %6762 = vmatprep.mubr.bf16.mxu0 0
  %6763 = vmatmul.mubr.bf16.gmra.mrb[0].mxu0 %v6482
  %v6764 = vpop.f32.mrb[0].mxu0
  %v6765 = vadd.f32 %v6377, %v6764
  %v6766 = vpop.f32.mrb[0].mxu0
  %v6767 = vpop.f32.mrb[0].mxu0
  %v6768 = vadd.f32 %v6380, %v6767
  %v6769 = vpop.f32.mrb[0].mxu0
  %6770 = vmatprep.mubr.bf16.mxu0 0
  %6771 = vmatmul.mubr.bf16.gmra.mrb[0].mxu0 %v6485
  %v6772 = vpop.f32.mrb[0].mxu0
  %v6773 = vadd.f32 %v6385, %v6772
  %v6774 = vpop.f32.mrb[0].mxu0
  %v6775 = vpop.f32.mrb[0].mxu0
  %v6776 = vadd.f32 %v6388, %v6775
  %v6777 = vpop.f32.mrb[0].mxu0
  %6778 = vdwg.mxu0
  %v6779 = vld [vmem:[#allocation3 + $0x2] sm:$0xff]
  %v6780 = vld [vmem:[#allocation3 + $0xa] sm:$0xff]
  %v6781 = vld [vmem:[#allocation3 + $0x1a] sm:$0xff]
  %v6782 = vld [vmem:[#allocation3 + $0x22] sm:$0xff]
  %v6783 = vld [vmem:[#allocation3 + $0x32] sm:$0xff]
  %v6784 = vld [vmem:[#allocation3 + $0x3a] sm:$0xff]
  %v6785 = vld [vmem:[#allocation3 + $0x4a] sm:$0xff]
  %v6786 = vld [vmem:[#allocation3 + $0x52] sm:$0xff]
  %v6787 = vld [vmem:[#allocation3 + $0x62] sm:$0xff]
  %v6788 = vld [vmem:[#allocation3 + $0x6a] sm:$0xff]
  %v6789 = vld [vmem:[#allocation3 + $0x7a] sm:$0xff]
  %v6790 = vld [vmem:[#allocation3 + $0x82] sm:$0xff]
  %v6791 = vld [vmem:[#allocation3 + $0x92] sm:$0xff]
  %v6792 = vld [vmem:[#allocation3 + $0x9a] sm:$0xff]
  %v6793 = vld [vmem:[#allocation3 + $0xaa] sm:$0xff]
  %v6794 = vld [vmem:[#allocation3 + $0xb2] sm:$0xff]
  %v6795 = vld [vmem:[#allocation3 + $0xc2] sm:$0xff]
  %v6796 = vld [vmem:[#allocation3 + $0xca] sm:$0xff]
  %v6797 = vld [vmem:[#allocation3 + $0xda] sm:$0xff]
  %v6798 = vld [vmem:[#allocation3 + $0xe2] sm:$0xff]
  %v6799 = vld [vmem:[#allocation3 + $0xf2] sm:$0xff]
  %v6800 = vld [vmem:[#allocation3 + $0xfa] sm:$0xff]
  %v6801 = vld [vmem:[#allocation3 + $0x10a] sm:$0xff]
  %v6802 = vld [vmem:[#allocation3 + $0x112] sm:$0xff]
  %v6803 = vld [vmem:[#allocation3 + $0x122] sm:$0xff]
  %v6804 = vld [vmem:[#allocation3 + $0x12a] sm:$0xff]
  %v6805 = vld [vmem:[#allocation3 + $0x13a] sm:$0xff]
  %v6806 = vld [vmem:[#allocation3 + $0x142] sm:$0xff]
  %v6807 = vld [vmem:[#allocation3 + $0x152] sm:$0xff]
  %v6808 = vld [vmem:[#allocation3 + $0x15a] sm:$0xff]
  %v6809 = vld [vmem:[#allocation3 + $0x16a] sm:$0xff]
  %v6810 = vld [vmem:[#allocation3 + $0x172] sm:$0xff]
  %v6811 = vld [vmem:[#allocation3 + $0x1b2] sm:$0xff]
  %v6812 = vld [vmem:[#allocation3 + $0x1ba] sm:$0xff]
  %v6813 = vld [vmem:[#allocation3 + $0x1ca] sm:$0xff]
  %v6814 = vld [vmem:[#allocation3 + $0x1d2] sm:$0xff]
  %v6815 = vld [vmem:[#allocation3 + $0x1e2] sm:$0xff]
  %v6816 = vld [vmem:[#allocation3 + $0x1ea] sm:$0xff]
  %v6817 = vld [vmem:[#allocation3 + $0x1fa] sm:$0xff]
  %v6818 = vld [vmem:[#allocation3 + $0x202] sm:$0xff]
  %v6819 = vld [vmem:[#allocation3 + $0x212] sm:$0xff]
  %v6820 = vld [vmem:[#allocation3 + $0x21a] sm:$0xff]
  %v6821 = vld [vmem:[#allocation3 + $0x22a] sm:$0xff]
  %v6822 = vld [vmem:[#allocation3 + $0x232] sm:$0xff]
  %v6823 = vld [vmem:[#allocation3 + $0x242] sm:$0xff]
  %v6824 = vld [vmem:[#allocation3 + $0x24a] sm:$0xff]
  %v6825 = vld [vmem:[#allocation3 + $0x25a] sm:$0xff]
  %v6826 = vld [vmem:[#allocation3 + $0x262] sm:$0xff]
  %v6827 = vld [vmem:[#allocation3 + $0x272] sm:$0xff]
  %v6828 = vld [vmem:[#allocation3 + $0x27a] sm:$0xff]
  %v6829 = vld [vmem:[#allocation3 + $0x28a] sm:$0xff]
  %v6830 = vld [vmem:[#allocation3 + $0x292] sm:$0xff]
  %v6831 = vld [vmem:[#allocation3 + $0x2a2] sm:$0xff]
  %v6832 = vld [vmem:[#allocation3 + $0x2aa] sm:$0xff]
  %v6833 = vld [vmem:[#allocation3 + $0x2ba] sm:$0xff]
  %v6834 = vld [vmem:[#allocation3 + $0x2c2] sm:$0xff]
  %v6835 = vld [vmem:[#allocation3 + $0x2d2] sm:$0xff]
  %v6836 = vld [vmem:[#allocation3 + $0x2da] sm:$0xff]
  %v6837 = vld [vmem:[#allocation3 + $0x2ea] sm:$0xff]
  %v6838 = vld [vmem:[#allocation3 + $0x2f2] sm:$0xff]
  %v6839 = vld [vmem:[#allocation3 + $0x302] sm:$0xff]
  %v6840 = vld [vmem:[#allocation3 + $0x30a] sm:$0xff]
  %v6841 = vld [vmem:[#allocation3 + $0x31a] sm:$0xff]
  %v6842 = vld [vmem:[#allocation3 + $0x322] sm:$0xff]
  %v6843 = vpack.c.bf16 %v6780, %v6779
  %v6844 = vpack.c.bf16 %v6782, %v6781
  %v6845 = vpack.c.bf16 %v6784, %v6783
  %v6846 = vpack.c.bf16 %v6786, %v6785
  %v6847 = vpack.c.bf16 %v6788, %v6787
  %v6848 = vpack.c.bf16 %v6790, %v6789
  %v6849 = vpack.c.bf16 %v6792, %v6791
  %v6850 = vpack.c.bf16 %v6794, %v6793
  %v6851 = vpack.c.bf16 %v6796, %v6795
  %v6852 = vpack.c.bf16 %v6798, %v6797
  %v6853 = vpack.c.bf16 %v6800, %v6799
  %v6854 = vpack.c.bf16 %v6802, %v6801
  %v6855 = vpack.c.bf16 %v6804, %v6803
  %v6856 = vpack.c.bf16 %v6806, %v6805
  %v6857 = vpack.c.bf16 %v6808, %v6807
  %v6858 = vpack.c.bf16 %v6810, %v6809
  %v6859 = vpack.c.bf16 %v6812, %v6811
  %v6860 = vpack.c.bf16 %v6814, %v6813
  %v6861 = vpack.c.bf16 %v6816, %v6815
  %v6862 = vpack.c.bf16 %v6818, %v6817
  %v6863 = vpack.c.bf16 %v6820, %v6819
  %v6864 = vpack.c.bf16 %v6822, %v6821
  %v6865 = vpack.c.bf16 %v6824, %v6823
  %v6866 = vpack.c.bf16 %v6826, %v6825
  %v6867 = vpack.c.bf16 %v6828, %v6827
  %v6868 = vpack.c.bf16 %v6830, %v6829
  %v6869 = vpack.c.bf16 %v6832, %v6831
  %v6870 = vpack.c.bf16 %v6834, %v6833
  %v6871 = vpack.c.bf16 %v6836, %v6835
  %v6872 = vpack.c.bf16 %v6838, %v6837
  %v6873 = vpack.c.bf16 %v6840, %v6839
  %v6874 = vpack.c.bf16 %v6842, %v6841
  %s6875 = scalar_lea.vmem %s4, 8
  %v6876 = vld [vmem:[%s6875] sm:$0xf]
  %v6878 = vsel %vm5061, %v6843, 0
  %v6881 = vsel %vm5061, %v6844, 0
  %v6884 = vsel %vm5061, %v6845, 0
  %v6887 = vsel %vm5061, %v6846, 0
  %v6890 = vsel %vm5061, %v6847, 0
  %v6893 = vsel %vm5061, %v6848, 0
  %v6896 = vsel %vm5061, %v6849, 0
  %v6899 = vsel %vm5061, %v6850, 0
  %v6902 = vsel %vm5061, %v6851, 0
  %v6905 = vsel %vm5061, %v6852, 0
  %v6908 = vsel %vm5061, %v6853, 0
  %v6911 = vsel %vm5061, %v6854, 0
  %v6914 = vsel %vm5061, %v6855, 0
  %v6917 = vsel %vm5061, %v6856, 0
  %v6920 = vsel %vm5061, %v6857, 0
  %v6923 = vsel %vm5061, %v6858, 0
  %v6926 = vsel %vm5061, %v6859, 0
  %v6929 = vsel %vm5061, %v6860, 0
  %v6932 = vsel %vm5061, %v6861, 0
  %v6935 = vsel %vm5061, %v6862, 0
  %v6938 = vsel %vm5061, %v6863, 0
  %v6941 = vsel %vm5061, %v6864, 0
  %v6944 = vsel %vm5061, %v6865, 0
  %v6947 = vsel %vm5061, %v6866, 0
  %v6950 = vsel %vm5061, %v6867, 0
  %v6953 = vsel %vm5061, %v6868, 0
  %v6956 = vsel %vm5061, %v6869, 0
  %v6959 = vsel %vm5061, %v6870, 0
  %v6962 = vsel %vm5061, %v6871, 0
  %v6965 = vsel %vm5061, %v6872, 0
  %v6968 = vsel %vm5061, %v6873, 0
  %v6971 = vsel %vm5061, %v6874, 0
  %v6974 = vsel %vm6098, %v6876, 0
  %6976 = vmatprep.subr.bf16.mxu0 0
  %6977 = vmatpush1.bf16.msra.mxu0 %v6974
  %6978 = vmatprep.subr.bf16.mxu0 0
  %6979 = vmatpush1.bf16.msra.mxu0 0
  %6980 = vmatprep.subr.bf16.mxu0 0
  %6981 = vmatpush1.bf16.msra.mxu0 0
  %6982 = vmatprep.subr.bf16.mxu0 0
  %6983 = vmatpush1.bf16.msra.mxu0 0
  %6984 = vmatprep.subr.bf16.mxu0 0
  %6985 = vmatpush1.bf16.msra.mxu0 0
  %6986 = vmatprep.subr.bf16.mxu0 0
  %6987 = vmatpush1.bf16.msra.mxu0 0
  %6988 = vmatprep.subr.bf16.mxu0 0
  %6989 = vmatpush1.bf16.msra.mxu0 0
  %6990 = vmatprep.subr.bf16.mxu0 0
  %6991 = vmatpush1.bf16.msra.mxu0 0
  %6992 = vmatprep.subr.bf16.mxu0 0
  %6993 = vmatpush1.bf16.msra.mxu0 0
  %6994 = vmatprep.subr.bf16.mxu0 0
  %6995 = vmatpush1.bf16.msra.mxu0 0
  %6996 = vmatprep.subr.bf16.mxu0 0
  %6997 = vmatpush1.bf16.msra.mxu0 0
  %6998 = vmatprep.subr.bf16.mxu0 0
  %6999 = vmatpush1.bf16.msra.mxu0 0
  %7000 = vmatprep.subr.bf16.mxu0 0
  %7001 = vmatpush1.bf16.msra.mxu0 0
  %7002 = vmatprep.subr.bf16.mxu0 0
  %7003 = vmatpush1.bf16.msra.mxu0 0
  %7004 = vmatprep.subr.bf16.mxu0 0
  %7005 = vmatpush1.bf16.msra.mxu0 0
  %7006 = vmatprep.subr.bf16.mxu0 0
  %7007 = vmatpush1.bf16.msra.mxu0 0
  %7008 = vmatprep.mubr.bf16.mxu0 0
  %7009 = vmatmul.mubr.bf16.gmra.mrb[0].mxu0 %v6878
  %v7010 = vpop.f32.mrb[0].mxu0
  %v7011 = vadd.f32 0.0, %v7010
  %v7012 = vpop.f32.mrb[0].mxu0
  %v7013 = vpop.f32.mrb[0].mxu0
  %v7014 = vadd.f32 0.0, %v7013
  %v7015 = vpop.f32.mrb[0].mxu0
  %7016 = vmatprep.mubr.bf16.mxu0 0
  %7017 = vmatmul.mubr.bf16.gmra.mrb[0].mxu0 %v6881
  %v7018 = vpop.f32.mrb[0].mxu0
  %v7019 = vadd.f32 0.0, %v7018
  %v7020 = vpop.f32.mrb[0].mxu0
  %v7021 = vpop.f32.mrb[0].mxu0
  %v7022 = vadd.f32 0.0, %v7021
  %v7023 = vpop.f32.mrb[0].mxu0
  %7024 = vmatprep.mubr.bf16.mxu0 0
  %7025 = vmatmul.mubr.bf16.gmra.mrb[0].mxu0 %v6884
  %v7026 = vpop.f32.mrb[0].mxu0
  %v7027 = vadd.f32 0.0, %v7026
  %v7028 = vpop.f32.mrb[0].mxu0
  %v7029 = vpop.f32.mrb[0].mxu0
  %v7030 = vadd.f32 0.0, %v7029
  %v7031 = vpop.f32.mrb[0].mxu0
  %7032 = vmatprep.mubr.bf16.mxu0 0
  %7033 = vmatmul.mubr.bf16.gmra.mrb[0].mxu0 %v6887
  %v7034 = vpop.f32.mrb[0].mxu0
  %v7035 = vadd.f32 0.0, %v7034
  %v7036 = vpop.f32.mrb[0].mxu0
  %v7037 = vpop.f32.mrb[0].mxu0
  %v7038 = vadd.f32 0.0, %v7037
  %v7039 = vpop.f32.mrb[0].mxu0
  %7040 = vmatprep.mubr.bf16.mxu0 0
  %7041 = vmatmul.mubr.bf16.gmra.mrb[0].mxu0 %v6890
  %v7042 = vpop.f32.mrb[0].mxu0
  %v7043 = vadd.f32 0.0, %v7042
  %v7044 = vpop.f32.mrb[0].mxu0
  %v7045 = vpop.f32.mrb[0].mxu0
  %v7046 = vadd.f32 0.0, %v7045
  %v7047 = vpop.f32.mrb[0].mxu0
  %7048 = vmatprep.mubr.bf16.mxu0 0
  %7049 = vmatmul.mubr.bf16.gmra.mrb[0].mxu0 %v6893
  %v7050 = vpop.f32.mrb[0].mxu0
  %v7051 = vadd.f32 0.0, %v7050
  %v7052 = vpop.f32.mrb[0].mxu0
  %v7053 = vpop.f32.mrb[0].mxu0
  %v7054 = vadd.f32 0.0, %v7053
  %v7055 = vpop.f32.mrb[0].mxu0
  %7056 = vmatprep.mubr.bf16.mxu0 0
  %7057 = vmatmul.mubr.bf16.gmra.mrb[0].mxu0 %v6896
  %v7058 = vpop.f32.mrb[0].mxu0
  %v7059 = vadd.f32 0.0, %v7058
  %v7060 = vpop.f32.mrb[0].mxu0
  %v7061 = vpop.f32.mrb[0].mxu0
  %v7062 = vadd.f32 0.0, %v7061
  %v7063 = vpop.f32.mrb[0].mxu0
  %7064 = vmatprep.mubr.bf16.mxu0 0
  %7065 = vmatmul.mubr.bf16.gmra.mrb[0].mxu0 %v6899
  %v7066 = vpop.f32.mrb[0].mxu0
  %v7067 = vadd.f32 0.0, %v7066
  %v7068 = vpop.f32.mrb[0].mxu0
  %v7069 = vpop.f32.mrb[0].mxu0
  %v7070 = vadd.f32 0.0, %v7069
  %v7071 = vpop.f32.mrb[0].mxu0
  %7072 = vmatprep.mubr.bf16.mxu0 0
  %7073 = vmatmul.mubr.bf16.gmra.mrb[0].mxu0 %v6902
  %v7074 = vpop.f32.mrb[0].mxu0
  %v7075 = vadd.f32 0.0, %v7074
  %v7076 = vpop.f32.mrb[0].mxu0
  %v7077 = vpop.f32.mrb[0].mxu0
  %v7078 = vadd.f32 0.0, %v7077
  %v7079 = vpop.f32.mrb[0].mxu0
  %7080 = vmatprep.mubr.bf16.mxu0 0
  %7081 = vmatmul.mubr.bf16.gmra.mrb[0].mxu0 %v6905
  %v7082 = vpop.f32.mrb[0].mxu0
  %v7083 = vadd.f32 0.0, %v7082
  %v7084 = vpop.f32.mrb[0].mxu0
  %v7085 = vpop.f32.mrb[0].mxu0
  %v7086 = vadd.f32 0.0, %v7085
  %v7087 = vpop.f32.mrb[0].mxu0
  %7088 = vmatprep.mubr.bf16.mxu0 0
  %7089 = vmatmul.mubr.bf16.gmra.mrb[0].mxu0 %v6908
  %v7090 = vpop.f32.mrb[0].mxu0
  %v7091 = vadd.f32 0.0, %v7090
  %v7092 = vpop.f32.mrb[0].mxu0
  %v7093 = vpop.f32.mrb[0].mxu0
  %v7094 = vadd.f32 0.0, %v7093
  %v7095 = vpop.f32.mrb[0].mxu0
  %7096 = vmatprep.mubr.bf16.mxu0 0
  %7097 = vmatmul.mubr.bf16.gmra.mrb[0].mxu0 %v6911
  %v7098 = vpop.f32.mrb[0].mxu0
  %v7099 = vadd.f32 0.0, %v7098
  %v7100 = vpop.f32.mrb[0].mxu0
  %v7101 = vpop.f32.mrb[0].mxu0
  %v7102 = vadd.f32 0.0, %v7101
  %v7103 = vpop.f32.mrb[0].mxu0
  %7104 = vmatprep.mubr.bf16.mxu0 0
  %7105 = vmatmul.mubr.bf16.gmra.mrb[0].mxu0 %v6914
  %v7106 = vpop.f32.mrb[0].mxu0
  %v7107 = vadd.f32 0.0, %v7106
  %v7108 = vpop.f32.mrb[0].mxu0
  %v7109 = vpop.f32.mrb[0].mxu0
  %v7110 = vadd.f32 0.0, %v7109
  %v7111 = vpop.f32.mrb[0].mxu0
  %7112 = vmatprep.mubr.bf16.mxu0 0
  %7113 = vmatmul.mubr.bf16.gmra.mrb[0].mxu0 %v6917
  %v7114 = vpop.f32.mrb[0].mxu0
  %v7115 = vadd.f32 0.0, %v7114
  %v7116 = vpop.f32.mrb[0].mxu0
  %v7117 = vpop.f32.mrb[0].mxu0
  %v7118 = vadd.f32 0.0, %v7117
  %v7119 = vpop.f32.mrb[0].mxu0
  %7120 = vmatprep.mubr.bf16.mxu0 0
  %7121 = vmatmul.mubr.bf16.gmra.mrb[0].mxu0 %v6920
  %v7122 = vpop.f32.mrb[0].mxu0
  %v7123 = vadd.f32 0.0, %v7122
  %v7124 = vpop.f32.mrb[0].mxu0
  %v7125 = vpop.f32.mrb[0].mxu0
  %v7126 = vadd.f32 0.0, %v7125
  %v7127 = vpop.f32.mrb[0].mxu0
  %7128 = vmatprep.mubr.bf16.mxu0 0
  %7129 = vmatmul.mubr.bf16.gmra.mrb[0].mxu0 %v6923
  %v7130 = vpop.f32.mrb[0].mxu0
  %v7131 = vadd.f32 0.0, %v7130
  %v7132 = vpop.f32.mrb[0].mxu0
  %v7133 = vpop.f32.mrb[0].mxu0
  %v7134 = vadd.f32 0.0, %v7133
  %v7135 = vpop.f32.mrb[0].mxu0
  %7136 = vmatprep.mubr.bf16.mxu0 0
  %7137 = vmatmul.mubr.bf16.gmra.mrb[0].mxu0 %v6926
  %v7138 = vpop.f32.mrb[0].mxu0
  %v7139 = vadd.f32 0.0, %v7138
  %v7140 = vpop.f32.mrb[0].mxu0
  %v7141 = vpop.f32.mrb[0].mxu0
  %v7142 = vadd.f32 0.0, %v7141
  %v7143 = vpop.f32.mrb[0].mxu0
  %7144 = vmatprep.mubr.bf16.mxu0 0
  %7145 = vmatmul.mubr.bf16.gmra.mrb[0].mxu0 %v6929
  %v7146 = vpop.f32.mrb[0].mxu0
  %v7147 = vadd.f32 0.0, %v7146
  %v7148 = vpop.f32.mrb[0].mxu0
  %v7149 = vpop.f32.mrb[0].mxu0
  %v7150 = vadd.f32 0.0, %v7149
  %v7151 = vpop.f32.mrb[0].mxu0
  %7152 = vmatprep.mubr.bf16.mxu0 0
  %7153 = vmatmul.mubr.bf16.gmra.mrb[0].mxu0 %v6932
  %v7154 = vpop.f32.mrb[0].mxu0
  %v7155 = vadd.f32 0.0, %v7154
  %v7156 = vpop.f32.mrb[0].mxu0
  %v7157 = vpop.f32.mrb[0].mxu0
  %v7158 = vadd.f32 0.0, %v7157
  %v7159 = vpop.f32.mrb[0].mxu0
  %7160 = vmatprep.mubr.bf16.mxu0 0
  %7161 = vmatmul.mubr.bf16.gmra.mrb[0].mxu0 %v6935
  %v7162 = vpop.f32.mrb[0].mxu0
  %v7163 = vadd.f32 0.0, %v7162
  %v7164 = vpop.f32.mrb[0].mxu0
  %v7165 = vpop.f32.mrb[0].mxu0
  %v7166 = vadd.f32 0.0, %v7165
  %v7167 = vpop.f32.mrb[0].mxu0
  %7168 = vmatprep.mubr.bf16.mxu0 0
  %7169 = vmatmul.mubr.bf16.gmra.mrb[0].mxu0 %v6938
  %v7170 = vpop.f32.mrb[0].mxu0
  %v7171 = vadd.f32 0.0, %v7170
  %v7172 = vpop.f32.mrb[0].mxu0
  %v7173 = vpop.f32.mrb[0].mxu0
  %v7174 = vadd.f32 0.0, %v7173
  %v7175 = vpop.f32.mrb[0].mxu0
  %7176 = vmatprep.mubr.bf16.mxu0 0
  %7177 = vmatmul.mubr.bf16.gmra.mrb[0].mxu0 %v6941
  %v7178 = vpop.f32.mrb[0].mxu0
  %v7179 = vadd.f32 0.0, %v7178
  %v7180 = vpop.f32.mrb[0].mxu0
  %v7181 = vpop.f32.mrb[0].mxu0
  %v7182 = vadd.f32 0.0, %v7181
  %v7183 = vpop.f32.mrb[0].mxu0
  %7184 = vmatprep.mubr.bf16.mxu0 0
  %7185 = vmatmul.mubr.bf16.gmra.mrb[0].mxu0 %v6944
  %v7186 = vpop.f32.mrb[0].mxu0
  %v7187 = vadd.f32 0.0, %v7186
  %v7188 = vpop.f32.mrb[0].mxu0
  %v7189 = vpop.f32.mrb[0].mxu0
  %v7190 = vadd.f32 0.0, %v7189
  %v7191 = vpop.f32.mrb[0].mxu0
  %7192 = vmatprep.mubr.bf16.mxu0 0
  %7193 = vmatmul.mubr.bf16.gmra.mrb[0].mxu0 %v6947
  %v7194 = vpop.f32.mrb[0].mxu0
  %v7195 = vadd.f32 0.0, %v7194
  %v7196 = vpop.f32.mrb[0].mxu0
  %v7197 = vpop.f32.mrb[0].mxu0
  %v7198 = vadd.f32 0.0, %v7197
  %v7199 = vpop.f32.mrb[0].mxu0
  %7200 = vmatprep.mubr.bf16.mxu0 0
  %7201 = vmatmul.mubr.bf16.gmra.mrb[0].mxu0 %v6950
  %v7202 = vpop.f32.mrb[0].mxu0
  %v7203 = vadd.f32 0.0, %v7202
  %v7204 = vpop.f32.mrb[0].mxu0
  %v7205 = vpop.f32.mrb[0].mxu0
  %v7206 = vadd.f32 0.0, %v7205
  %v7207 = vpop.f32.mrb[0].mxu0
  %7208 = vmatprep.mubr.bf16.mxu0 0
  %7209 = vmatmul.mubr.bf16.gmra.mrb[0].mxu0 %v6953
  %v7210 = vpop.f32.mrb[0].mxu0
  %v7211 = vadd.f32 0.0, %v7210
  %v7212 = vpop.f32.mrb[0].mxu0
  %v7213 = vpop.f32.mrb[0].mxu0
  %v7214 = vadd.f32 0.0, %v7213
  %v7215 = vpop.f32.mrb[0].mxu0
  %7216 = vmatprep.mubr.bf16.mxu0 0
  %7217 = vmatmul.mubr.bf16.gmra.mrb[0].mxu0 %v6956
  %v7218 = vpop.f32.mrb[0].mxu0
  %v7219 = vadd.f32 0.0, %v7218
  %v7220 = vpop.f32.mrb[0].mxu0
  %v7221 = vpop.f32.mrb[0].mxu0
  %v7222 = vadd.f32 0.0, %v7221
  %v7223 = vpop.f32.mrb[0].mxu0
  %7224 = vmatprep.mubr.bf16.mxu0 0
  %7225 = vmatmul.mubr.bf16.gmra.mrb[0].mxu0 %v6959
  %v7226 = vpop.f32.mrb[0].mxu0
  %v7227 = vadd.f32 0.0, %v7226
  %v7228 = vpop.f32.mrb[0].mxu0
  %v7229 = vpop.f32.mrb[0].mxu0
  %v7230 = vadd.f32 0.0, %v7229
  %v7231 = vpop.f32.mrb[0].mxu0
  %7232 = vmatprep.mubr.bf16.mxu0 0
  %7233 = vmatmul.mubr.bf16.gmra.mrb[0].mxu0 %v6962
  %v7234 = vpop.f32.mrb[0].mxu0
  %v7235 = vadd.f32 0.0, %v7234
  %v7236 = vpop.f32.mrb[0].mxu0
  %v7237 = vpop.f32.mrb[0].mxu0
  %v7238 = vadd.f32 0.0, %v7237
  %v7239 = vpop.f32.mrb[0].mxu0
  %7240 = vmatprep.mubr.bf16.mxu0 0
  %7241 = vmatmul.mubr.bf16.gmra.mrb[0].mxu0 %v6965
  %v7242 = vpop.f32.mrb[0].mxu0
  %v7243 = vadd.f32 0.0, %v7242
  %v7244 = vpop.f32.mrb[0].mxu0
  %v7245 = vpop.f32.mrb[0].mxu0
  %v7246 = vadd.f32 0.0, %v7245
  %v7247 = vpop.f32.mrb[0].mxu0
  %7248 = vmatprep.mubr.bf16.mxu0 0
  %7249 = vmatmul.mubr.bf16.gmra.mrb[0].mxu0 %v6968
  %v7250 = vpop.f32.mrb[0].mxu0
  %v7251 = vadd.f32 0.0, %v7250
  %v7252 = vpop.f32.mrb[0].mxu0
  %v7253 = vpop.f32.mrb[0].mxu0
  %v7254 = vadd.f32 0.0, %v7253
  %v7255 = vpop.f32.mrb[0].mxu0
  %7256 = vmatprep.mubr.bf16.mxu0 0
  %7257 = vmatmul.mubr.bf16.gmra.mrb[0].mxu0 %v6971
  %v7258 = vpop.f32.mrb[0].mxu0
  %v7259 = vadd.f32 0.0, %v7258
  %v7260 = vpop.f32.mrb[0].mxu0
  %v7261 = vpop.f32.mrb[0].mxu0
  %v7262 = vadd.f32 0.0, %v7261
  %v7263 = vpop.f32.mrb[0].mxu0
  %7264 = vdwg.mxu0
  %v7265 = vadd.f32 %v6525, %v7011
  %v7266 = vadd.f32 %v6528, %v7014
  %v7267 = vadd.f32 %v6533, %v7019
  %v7268 = vadd.f32 %v6536, %v7022
  %v7269 = vadd.f32 %v6541, %v7027
  %v7270 = vadd.f32 %v6544, %v7030
  %v7271 = vadd.f32 %v6549, %v7035
  %v7272 = vadd.f32 %v6552, %v7038
  %v7273 = vadd.f32 %v6557, %v7043
  %v7274 = vadd.f32 %v6560, %v7046
  %v7275 = vadd.f32 %v6565, %v7051
  %v7276 = vadd.f32 %v6568, %v7054
  %v7277 = vadd.f32 %v6573, %v7059
  %v7278 = vadd.f32 %v6576, %v7062
  %v7279 = vadd.f32 %v6581, %v7067
  %v7280 = vadd.f32 %v6584, %v7070
  %v7281 = vadd.f32 %v6589, %v7075
  %v7282 = vadd.f32 %v6592, %v7078
  %v7283 = vadd.f32 %v6597, %v7083
  %v7284 = vadd.f32 %v6600, %v7086
  %v7285 = vadd.f32 %v6605, %v7091
  %v7286 = vadd.f32 %v6608, %v7094
  %v7287 = vadd.f32 %v6613, %v7099
  %v7288 = vadd.f32 %v6616, %v7102
  %v7289 = vadd.f32 %v6621, %v7107
  %v7290 = vadd.f32 %v6624, %v7110
  %v7291 = vadd.f32 %v6629, %v7115
  %v7292 = vadd.f32 %v6632, %v7118
  %v7293 = vadd.f32 %v6637, %v7123
  %v7294 = vadd.f32 %v6640, %v7126
  %v7295 = vadd.f32 %v6645, %v7131
  %v7296 = vadd.f32 %v6648, %v7134
  %v7297 = vadd.f32 %v6653, %v7139
  %v7298 = vadd.f32 %v6656, %v7142
  %v7299 = vadd.f32 %v6661, %v7147
  %v7300 = vadd.f32 %v6664, %v7150
  %v7301 = vadd.f32 %v6669, %v7155
  %v7302 = vadd.f32 %v6672, %v7158
  %v7303 = vadd.f32 %v6677, %v7163
  %v7304 = vadd.f32 %v6680, %v7166
  %v7305 = vadd.f32 %v6685, %v7171
  %v7306 = vadd.f32 %v6688, %v7174
  %v7307 = vadd.f32 %v6693, %v7179
  %v7308 = vadd.f32 %v6696, %v7182
  %v7309 = vadd.f32 %v6701, %v7187
  %v7310 = vadd.f32 %v6704, %v7190
  %v7311 = vadd.f32 %v6709, %v7195
  %v7312 = vadd.f32 %v6712, %v7198
  %v7313 = vadd.f32 %v6717, %v7203
  %v7314 = vadd.f32 %v6720, %v7206
  %v7315 = vadd.f32 %v6725, %v7211
  %v7316 = vadd.f32 %v6728, %v7214
  %v7317 = vadd.f32 %v6733, %v7219
  %v7318 = vadd.f32 %v6736, %v7222
  %v7319 = vadd.f32 %v6741, %v7227
  %v7320 = vadd.f32 %v6744, %v7230
  %v7321 = vadd.f32 %v6749, %v7235
  %v7322 = vadd.f32 %v6752, %v7238
  %v7323 = vadd.f32 %v6757, %v7243
  %v7324 = vadd.f32 %v6760, %v7246
  %v7325 = vadd.f32 %v6765, %v7251
  %v7326 = vadd.f32 %v6768, %v7254
  %v7327 = vadd.f32 %v6773, %v7259
  %v7328 = vadd.f32 %v6776, %v7262
  %v7329 = vld [vmem:[%s5677] sm:$0xff]
  %v7330 = vld [vmem:[%s5677 + $0x8] sm:$0xff]
  %v7331 = vld [vmem:[%s5677 + $0x18] sm:$0xff]
  %v7332 = vld [vmem:[%s5677 + $0x20] sm:$0xff]
  %v7333 = vld [vmem:[%s5677 + $0x30] sm:$0xff]
  %v7334 = vld [vmem:[%s5677 + $0x38] sm:$0xff]
  %v7335 = vld [vmem:[%s5677 + $0x48] sm:$0xff]
  %v7336 = vld [vmem:[%s5677 + $0x50] sm:$0xff]
  %v7337 = vld [vmem:[%s5677 + $0x60] sm:$0xff]
  %v7338 = vld [vmem:[%s5677 + $0x68] sm:$0xff]
  %v7339 = vld [vmem:[%s5677 + $0x78] sm:$0xff]
  %v7340 = vld [vmem:[%s5677 + $0x80] sm:$0xff]
  %v7341 = vld [vmem:[%s5677 + $0x90] sm:$0xff]
  %v7342 = vld [vmem:[%s5677 + $0x98] sm:$0xff]
  %v7343 = vld [vmem:[%s5677 + $0xa8] sm:$0xff]
  %v7344 = vld [vmem:[%s5677 + $0xb0] sm:$0xff]
  %v7345 = vld [vmem:[%s5677 + $0xc0] sm:$0xff]
  %v7346 = vld [vmem:[%s5677 + $0xc8] sm:$0xff]
  %v7347 = vld [vmem:[%s5677 + $0xd8] sm:$0xff]
  %v7348 = vld [vmem:[%s5677 + $0xe0] sm:$0xff]
  %v7349 = vld [vmem:[%s5677 + $0xf0] sm:$0xff]
  %v7350 = vld [vmem:[%s5677 + $0xf8] sm:$0xff]
  %v7351 = vld [vmem:[%s5677 + $0x108] sm:$0xff]
  %v7352 = vld [vmem:[%s5677 + $0x110] sm:$0xff]
  %v7353 = vld [vmem:[%s5677 + $0x120] sm:$0xff]
  %v7354 = vld [vmem:[%s5677 + $0x128] sm:$0xff]
  %v7355 = vld [vmem:[%s5677 + $0x138] sm:$0xff]
  %v7356 = vld [vmem:[%s5677 + $0x140] sm:$0xff]
  %v7357 = vld [vmem:[%s5677 + $0x150] sm:$0xff]
  %v7358 = vld [vmem:[%s5677 + $0x158] sm:$0xff]
  %v7359 = vld [vmem:[%s5677 + $0x168] sm:$0xff]
  %v7360 = vld [vmem:[%s5677 + $0x170] sm:$0xff]
  %v7361 = vld [vmem:[%s5677 + $0x1b0] sm:$0xff]
  %v7362 = vld [vmem:[%s5677 + $0x1b8] sm:$0xff]
  %v7363 = vld [vmem:[%s5677 + $0x1c8] sm:$0xff]
  %v7364 = vld [vmem:[%s5677 + $0x1d0] sm:$0xff]
  %v7365 = vld [vmem:[%s5677 + $0x1e0] sm:$0xff]
  %v7366 = vld [vmem:[%s5677 + $0x1e8] sm:$0xff]
  %v7367 = vld [vmem:[%s5677 + $0x1f8] sm:$0xff]
  %v7368 = vld [vmem:[%s5677 + $0x200] sm:$0xff]
  %v7369 = vld [vmem:[%s5677 + $0x210] sm:$0xff]
  %v7370 = vld [vmem:[%s5677 + $0x218] sm:$0xff]
  %v7371 = vld [vmem:[%s5677 + $0x228] sm:$0xff]
  %v7372 = vld [vmem:[%s5677 + $0x230] sm:$0xff]
  %v7373 = vld [vmem:[%s5677 + $0x240] sm:$0xff]
  %v7374 = vld [vmem:[%s5677 + $0x248] sm:$0xff]
  %v7375 = vld [vmem:[%s5677 + $0x258] sm:$0xff]
  %v7376 = vld [vmem:[%s5677 + $0x260] sm:$0xff]
  %v7377 = vld [vmem:[%s5677 + $0x270] sm:$0xff]
  %v7378 = vld [vmem:[%s5677 + $0x278] sm:$0xff]
  %v7379 = vld [vmem:[%s5677 + $0x288] sm:$0xff]
  %v7380 = vld [vmem:[%s5677 + $0x290] sm:$0xff]
  %v7381 = vld [vmem:[%s5677 + $0x2a0] sm:$0xff]
  %v7382 = vld [vmem:[%s5677 + $0x2a8] sm:$0xff]
  %v7383 = vld [vmem:[%s5677 + $0x2b8] sm:$0xff]
  %v7384 = vld [vmem:[%s5677 + $0x2c0] sm:$0xff]
  %v7385 = vld [vmem:[%s5677 + $0x2d0] sm:$0xff]
  %v7386 = vld [vmem:[%s5677 + $0x2d8] sm:$0xff]
  %v7387 = vld [vmem:[%s5677 + $0x2e8] sm:$0xff]
  %v7388 = vld [vmem:[%s5677 + $0x2f0] sm:$0xff]
  %v7389 = vld [vmem:[%s5677 + $0x300] sm:$0xff]
  %v7390 = vld [vmem:[%s5677 + $0x308] sm:$0xff]
  %v7391 = vld [vmem:[%s5677 + $0x318] sm:$0xff]
  %v7392 = vld [vmem:[%s5677 + $0x320] sm:$0xff]
  %v7393 = vpack.c.bf16 %v7330, %v7329
  %v7394 = vpack.c.bf16 %v7332, %v7331
  %v7395 = vpack.c.bf16 %v7334, %v7333
  %v7396 = vpack.c.bf16 %v7336, %v7335
  %v7397 = vpack.c.bf16 %v7338, %v7337
  %v7398 = vpack.c.bf16 %v7340, %v7339
  %v7399 = vpack.c.bf16 %v7342, %v7341
  %v7400 = vpack.c.bf16 %v7344, %v7343
  %v7401 = vpack.c.bf16 %v7346, %v7345
  %v7402 = vpack.c.bf16 %v7348, %v7347
  %v7403 = vpack.c.bf16 %v7350, %v7349
  %v7404 = vpack.c.bf16 %v7352, %v7351
  %v7405 = vpack.c.bf16 %v7354, %v7353
  %v7406 = vpack.c.bf16 %v7356, %v7355
  %v7407 = vpack.c.bf16 %v7358, %v7357
  %v7408 = vpack.c.bf16 %v7360, %v7359
  %v7409 = vpack.c.bf16 %v7362, %v7361
  %v7410 = vpack.c.bf16 %v7364, %v7363
  %v7411 = vpack.c.bf16 %v7366, %v7365
  %v7412 = vpack.c.bf16 %v7368, %v7367
  %v7413 = vpack.c.bf16 %v7370, %v7369
  %v7414 = vpack.c.bf16 %v7372, %v7371
  %v7415 = vpack.c.bf16 %v7374, %v7373
  %v7416 = vpack.c.bf16 %v7376, %v7375
  %v7417 = vpack.c.bf16 %v7378, %v7377
  %v7418 = vpack.c.bf16 %v7380, %v7379
  %v7419 = vpack.c.bf16 %v7382, %v7381
  %v7420 = vpack.c.bf16 %v7384, %v7383
  %v7421 = vpack.c.bf16 %v7386, %v7385
  %v7422 = vpack.c.bf16 %v7388, %v7387
  %v7423 = vpack.c.bf16 %v7390, %v7389
  %v7424 = vpack.c.bf16 %v7392, %v7391
  %s7425 = scalar_lea.vmem %s4, 12
  %v7426 = vld [vmem:[%s7425] sm:$0xf]
  %v7428 = vsel %vm5061, %v7393, 0
  %v7431 = vsel %vm5061, %v7394, 0
  %v7434 = vsel %vm5061, %v7395, 0
  %v7437 = vsel %vm5061, %v7396, 0
  %v7440 = vsel %vm5061, %v7397, 0
  %v7443 = vsel %vm5061, %v7398, 0
  %v7446 = vsel %vm5061, %v7399, 0
  %v7449 = vsel %vm5061, %v7400, 0
  %v7452 = vsel %vm5061, %v7401, 0
  %v7455 = vsel %vm5061, %v7402, 0
  %v7458 = vsel %vm5061, %v7403, 0
  %v7461 = vsel %vm5061, %v7404, 0
  %v7464 = vsel %vm5061, %v7405, 0
  %v7467 = vsel %vm5061, %v7406, 0
  %v7470 = vsel %vm5061, %v7407, 0
  %v7473 = vsel %vm5061, %v7408, 0
  %v7476 = vsel %vm5061, %v7409, 0
  %v7479 = vsel %vm5061, %v7410, 0
  %v7482 = vsel %vm5061, %v7411, 0
  %v7485 = vsel %vm5061, %v7412, 0
  %v7488 = vsel %vm5061, %v7413, 0
  %v7491 = vsel %vm5061, %v7414, 0
  %v7494 = vsel %vm5061, %v7415, 0
  %v7497 = vsel %vm5061, %v7416, 0
  %v7500 = vsel %vm5061, %v7417, 0
  %v7503 = vsel %vm5061, %v7418, 0
  %v7506 = vsel %vm5061, %v7419, 0
  %v7509 = vsel %vm5061, %v7420, 0
  %v7512 = vsel %vm5061, %v7421, 0
  %v7515 = vsel %vm5061, %v7422, 0
  %v7518 = vsel %vm5061, %v7423, 0
  %v7521 = vsel %vm5061, %v7424, 0
  %v7524 = vsel %vm6098, %v7426, 0
  %7526 = vmatprep.subr.bf16.mxu0 0
  %7527 = vmatpush1.bf16.msra.mxu0 %v7524
  %7528 = vmatprep.subr.bf16.mxu0 0
  %7529 = vmatpush1.bf16.msra.mxu0 0
  %7530 = vmatprep.subr.bf16.mxu0 0
  %7531 = vmatpush1.bf16.msra.mxu0 0
  %7532 = vmatprep.subr.bf16.mxu0 0
  %7533 = vmatpush1.bf16.msra.mxu0 0
  %7534 = vmatprep.subr.bf16.mxu0 0
  %7535 = vmatpush1.bf16.msra.mxu0 0
  %7536 = vmatprep.subr.bf16.mxu0 0
  %7537 = vmatpush1.bf16.msra.mxu0 0
  %7538 = vmatprep.subr.bf16.mxu0 0
  %7539 = vmatpush1.bf16.msra.mxu0 0
  %7540 = vmatprep.subr.bf16.mxu0 0
  %7541 = vmatpush1.bf16.msra.mxu0 0
  %7542 = vmatprep.subr.bf16.mxu0 0
  %7543 = vmatpush1.bf16.msra.mxu0 0
  %7544 = vmatprep.subr.bf16.mxu0 0
  %7545 = vmatpush1.bf16.msra.mxu0 0
  %7546 = vmatprep.subr.bf16.mxu0 0
  %7547 = vmatpush1.bf16.msra.mxu0 0
  %7548 = vmatprep.subr.bf16.mxu0 0
  %7549 = vmatpush1.bf16.msra.mxu0 0
  %7550 = vmatprep.subr.bf16.mxu0 0
  %7551 = vmatpush1.bf16.msra.mxu0 0
  %7552 = vmatprep.subr.bf16.mxu0 0
  %7553 = vmatpush1.bf16.msra.mxu0 0
  %7554 = vmatprep.subr.bf16.mxu0 0
  %7555 = vmatpush1.bf16.msra.mxu0 0
  %7556 = vmatprep.subr.bf16.mxu0 0
  %7557 = vmatpush1.bf16.msra.mxu0 0
  %7558 = vmatprep.mubr.bf16.mxu0 0
  %7559 = vmatmul.mubr.bf16.gmra.mrb[0].mxu0 %v7428
  %v7560 = vpop.f32.mrb[0].mxu0
  %v7561 = vadd.f32 0.0, %v7560
  %v7562 = vpop.f32.mrb[0].mxu0
  %v7563 = vpop.f32.mrb[0].mxu0
  %v7564 = vadd.f32 0.0, %v7563
  %v7565 = vpop.f32.mrb[0].mxu0
  %7566 = vmatprep.mubr.bf16.mxu0 0
  %7567 = vmatmul.mubr.bf16.gmra.mrb[0].mxu0 %v7431
  %v7568 = vpop.f32.mrb[0].mxu0
  %v7569 = vadd.f32 0.0, %v7568
  %v7570 = vpop.f32.mrb[0].mxu0
  %v7571 = vpop.f32.mrb[0].mxu0
  %v7572 = vadd.f32 0.0, %v7571
  %v7573 = vpop.f32.mrb[0].mxu0
  %7574 = vmatprep.mubr.bf16.mxu0 0
  %7575 = vmatmul.mubr.bf16.gmra.mrb[0].mxu0 %v7434
  %v7576 = vpop.f32.mrb[0].mxu0
  %v7577 = vadd.f32 0.0, %v7576
  %v7578 = vpop.f32.mrb[0].mxu0
  %v7579 = vpop.f32.mrb[0].mxu0
  %v7580 = vadd.f32 0.0, %v7579
  %v7581 = vpop.f32.mrb[0].mxu0
  %7582 = vmatprep.mubr.bf16.mxu0 0
  %7583 = vmatmul.mubr.bf16.gmra.mrb[0].mxu0 %v7437
  %v7584 = vpop.f32.mrb[0].mxu0
  %v7585 = vadd.f32 0.0, %v7584
  %v7586 = vpop.f32.mrb[0].mxu0
  %v7587 = vpop.f32.mrb[0].mxu0
  %v7588 = vadd.f32 0.0, %v7587
  %v7589 = vpop.f32.mrb[0].mxu0
  %7590 = vmatprep.mubr.bf16.mxu0 0
  %7591 = vmatmul.mubr.bf16.gmra.mrb[0].mxu0 %v7440
  %v7592 = vpop.f32.mrb[0].mxu0
  %v7593 = vadd.f32 0.0, %v7592
  %v7594 = vpop.f32.mrb[0].mxu0
  %v7595 = vpop.f32.mrb[0].mxu0
  %v7596 = vadd.f32 0.0, %v7595
  %v7597 = vpop.f32.mrb[0].mxu0
  %7598 = vmatprep.mubr.bf16.mxu0 0
  %7599 = vmatmul.mubr.bf16.gmra.mrb[0].mxu0 %v7443
  %v7600 = vpop.f32.mrb[0].mxu0
  %v7601 = vadd.f32 0.0, %v7600
  %v7602 = vpop.f32.mrb[0].mxu0
  %v7603 = vpop.f32.mrb[0].mxu0
  %v7604 = vadd.f32 0.0, %v7603
  %v7605 = vpop.f32.mrb[0].mxu0
  %7606 = vmatprep.mubr.bf16.mxu0 0
  %7607 = vmatmul.mubr.bf16.gmra.mrb[0].mxu0 %v7446
  %v7608 = vpop.f32.mrb[0].mxu0
  %v7609 = vadd.f32 0.0, %v7608
  %v7610 = vpop.f32.mrb[0].mxu0
  %v7611 = vpop.f32.mrb[0].mxu0
  %v7612 = vadd.f32 0.0, %v7611
  %v7613 = vpop.f32.mrb[0].mxu0
  %7614 = vmatprep.mubr.bf16.mxu0 0
  %7615 = vmatmul.mubr.bf16.gmra.mrb[0].mxu0 %v7449
  %v7616 = vpop.f32.mrb[0].mxu0
  %v7617 = vadd.f32 0.0, %v7616
  %v7618 = vpop.f32.mrb[0].mxu0
  %v7619 = vpop.f32.mrb[0].mxu0
  %v7620 = vadd.f32 0.0, %v7619
  %v7621 = vpop.f32.mrb[0].mxu0
  %7622 = vmatprep.mubr.bf16.mxu0 0
  %7623 = vmatmul.mubr.bf16.gmra.mrb[0].mxu0 %v7452
  %v7624 = vpop.f32.mrb[0].mxu0
  %v7625 = vadd.f32 0.0, %v7624
  %v7626 = vpop.f32.mrb[0].mxu0
  %v7627 = vpop.f32.mrb[0].mxu0
  %v7628 = vadd.f32 0.0, %v7627
  %v7629 = vpop.f32.mrb[0].mxu0
  %7630 = vmatprep.mubr.bf16.mxu0 0
  %7631 = vmatmul.mubr.bf16.gmra.mrb[0].mxu0 %v7455
  %v7632 = vpop.f32.mrb[0].mxu0
  %v7633 = vadd.f32 0.0, %v7632
  %v7634 = vpop.f32.mrb[0].mxu0
  %v7635 = vpop.f32.mrb[0].mxu0
  %v7636 = vadd.f32 0.0, %v7635
  %v7637 = vpop.f32.mrb[0].mxu0
  %7638 = vmatprep.mubr.bf16.mxu0 0
  %7639 = vmatmul.mubr.bf16.gmra.mrb[0].mxu0 %v7458
  %v7640 = vpop.f32.mrb[0].mxu0
  %v7641 = vadd.f32 0.0, %v7640
  %v7642 = vpop.f32.mrb[0].mxu0
  %v7643 = vpop.f32.mrb[0].mxu0
  %v7644 = vadd.f32 0.0, %v7643
  %v7645 = vpop.f32.mrb[0].mxu0
  %7646 = vmatprep.mubr.bf16.mxu0 0
  %7647 = vmatmul.mubr.bf16.gmra.mrb[0].mxu0 %v7461
  %v7648 = vpop.f32.mrb[0].mxu0
  %v7649 = vadd.f32 0.0, %v7648
  %v7650 = vpop.f32.mrb[0].mxu0
  %v7651 = vpop.f32.mrb[0].mxu0
  %v7652 = vadd.f32 0.0, %v7651
  %v7653 = vpop.f32.mrb[0].mxu0
  %7654 = vmatprep.mubr.bf16.mxu0 0
  %7655 = vmatmul.mubr.bf16.gmra.mrb[0].mxu0 %v7464
  %v7656 = vpop.f32.mrb[0].mxu0
  %v7657 = vadd.f32 0.0, %v7656
  %v7658 = vpop.f32.mrb[0].mxu0
  %v7659 = vpop.f32.mrb[0].mxu0
  %v7660 = vadd.f32 0.0, %v7659
  %v7661 = vpop.f32.mrb[0].mxu0
  %7662 = vmatprep.mubr.bf16.mxu0 0
  %7663 = vmatmul.mubr.bf16.gmra.mrb[0].mxu0 %v7467
  %v7664 = vpop.f32.mrb[0].mxu0
  %v7665 = vadd.f32 0.0, %v7664
  %v7666 = vpop.f32.mrb[0].mxu0
  %v7667 = vpop.f32.mrb[0].mxu0
  %v7668 = vadd.f32 0.0, %v7667
  %v7669 = vpop.f32.mrb[0].mxu0
  %7670 = vmatprep.mubr.bf16.mxu0 0
  %7671 = vmatmul.mubr.bf16.gmra.mrb[0].mxu0 %v7470
  %v7672 = vpop.f32.mrb[0].mxu0
  %v7673 = vadd.f32 0.0, %v7672
  %v7674 = vpop.f32.mrb[0].mxu0
  %v7675 = vpop.f32.mrb[0].mxu0
  %v7676 = vadd.f32 0.0, %v7675
  %v7677 = vpop.f32.mrb[0].mxu0
  %7678 = vmatprep.mubr.bf16.mxu0 0
  %7679 = vmatmul.mubr.bf16.gmra.mrb[0].mxu0 %v7473
  %v7680 = vpop.f32.mrb[0].mxu0
  %v7681 = vadd.f32 0.0, %v7680
  %v7682 = vpop.f32.mrb[0].mxu0
  %v7683 = vpop.f32.mrb[0].mxu0
  %v7684 = vadd.f32 0.0, %v7683
  %v7685 = vpop.f32.mrb[0].mxu0
  %7686 = vmatprep.mubr.bf16.mxu0 0
  %7687 = vmatmul.mubr.bf16.gmra.mrb[0].mxu0 %v7476
  %v7688 = vpop.f32.mrb[0].mxu0
  %v7689 = vadd.f32 0.0, %v7688
  %v7690 = vpop.f32.mrb[0].mxu0
  %v7691 = vpop.f32.mrb[0].mxu0
  %v7692 = vadd.f32 0.0, %v7691
  %v7693 = vpop.f32.mrb[0].mxu0
  %7694 = vmatprep.mubr.bf16.mxu0 0
  %7695 = vmatmul.mubr.bf16.gmra.mrb[0].mxu0 %v7479
  %v7696 = vpop.f32.mrb[0].mxu0
  %v7697 = vadd.f32 0.0, %v7696
  %v7698 = vpop.f32.mrb[0].mxu0
  %v7699 = vpop.f32.mrb[0].mxu0
  %v7700 = vadd.f32 0.0, %v7699
  %v7701 = vpop.f32.mrb[0].mxu0
  %7702 = vmatprep.mubr.bf16.mxu0 0
  %7703 = vmatmul.mubr.bf16.gmra.mrb[0].mxu0 %v7482
  %v7704 = vpop.f32.mrb[0].mxu0
  %v7705 = vadd.f32 0.0, %v7704
  %v7706 = vpop.f32.mrb[0].mxu0
  %v7707 = vpop.f32.mrb[0].mxu0
  %v7708 = vadd.f32 0.0, %v7707
  %v7709 = vpop.f32.mrb[0].mxu0
  %7710 = vmatprep.mubr.bf16.mxu0 0
  %7711 = vmatmul.mubr.bf16.gmra.mrb[0].mxu0 %v7485
  %v7712 = vpop.f32.mrb[0].mxu0
  %v7713 = vadd.f32 0.0, %v7712
  %v7714 = vpop.f32.mrb[0].mxu0
  %v7715 = vpop.f32.mrb[0].mxu0
  %v7716 = vadd.f32 0.0, %v7715
  %v7717 = vpop.f32.mrb[0].mxu0
  %7718 = vmatprep.mubr.bf16.mxu0 0
  %7719 = vmatmul.mubr.bf16.gmra.mrb[0].mxu0 %v7488
  %v7720 = vpop.f32.mrb[0].mxu0
  %v7721 = vadd.f32 0.0, %v7720
  %v7722 = vpop.f32.mrb[0].mxu0
  %v7723 = vpop.f32.mrb[0].mxu0
  %v7724 = vadd.f32 0.0, %v7723
  %v7725 = vpop.f32.mrb[0].mxu0
  %7726 = vmatprep.mubr.bf16.mxu0 0
  %7727 = vmatmul.mubr.bf16.gmra.mrb[0].mxu0 %v7491
  %v7728 = vpop.f32.mrb[0].mxu0
  %v7729 = vadd.f32 0.0, %v7728
  %v7730 = vpop.f32.mrb[0].mxu0
  %v7731 = vpop.f32.mrb[0].mxu0
  %v7732 = vadd.f32 0.0, %v7731
  %v7733 = vpop.f32.mrb[0].mxu0
  %7734 = vmatprep.mubr.bf16.mxu0 0
  %7735 = vmatmul.mubr.bf16.gmra.mrb[0].mxu0 %v7494
  %v7736 = vpop.f32.mrb[0].mxu0
  %v7737 = vadd.f32 0.0, %v7736
  %v7738 = vpop.f32.mrb[0].mxu0
  %v7739 = vpop.f32.mrb[0].mxu0
  %v7740 = vadd.f32 0.0, %v7739
  %v7741 = vpop.f32.mrb[0].mxu0
  %7742 = vmatprep.mubr.bf16.mxu0 0
  %7743 = vmatmul.mubr.bf16.gmra.mrb[0].mxu0 %v7497
  %v7744 = vpop.f32.mrb[0].mxu0
  %v7745 = vadd.f32 0.0, %v7744
  %v7746 = vpop.f32.mrb[0].mxu0
  %v7747 = vpop.f32.mrb[0].mxu0
  %v7748 = vadd.f32 0.0, %v7747
  %v7749 = vpop.f32.mrb[0].mxu0
  %7750 = vmatprep.mubr.bf16.mxu0 0
  %7751 = vmatmul.mubr.bf16.gmra.mrb[0].mxu0 %v7500
  %v7752 = vpop.f32.mrb[0].mxu0
  %v7753 = vadd.f32 0.0, %v7752
  %v7754 = vpop.f32.mrb[0].mxu0
  %v7755 = vpop.f32.mrb[0].mxu0
  %v7756 = vadd.f32 0.0, %v7755
  %v7757 = vpop.f32.mrb[0].mxu0
  %7758 = vmatprep.mubr.bf16.mxu0 0
  %7759 = vmatmul.mubr.bf16.gmra.mrb[0].mxu0 %v7503
  %v7760 = vpop.f32.mrb[0].mxu0
  %v7761 = vadd.f32 0.0, %v7760
  %v7762 = vpop.f32.mrb[0].mxu0
  %v7763 = vpop.f32.mrb[0].mxu0
  %v7764 = vadd.f32 0.0, %v7763
  %v7765 = vpop.f32.mrb[0].mxu0
  %7766 = vmatprep.mubr.bf16.mxu0 0
  %7767 = vmatmul.mubr.bf16.gmra.mrb[0].mxu0 %v7506
  %v7768 = vpop.f32.mrb[0].mxu0
  %v7769 = vadd.f32 0.0, %v7768
  %v7770 = vpop.f32.mrb[0].mxu0
  %v7771 = vpop.f32.mrb[0].mxu0
  %v7772 = vadd.f32 0.0, %v7771
  %v7773 = vpop.f32.mrb[0].mxu0
  %7774 = vmatprep.mubr.bf16.mxu0 0
  %7775 = vmatmul.mubr.bf16.gmra.mrb[0].mxu0 %v7509
  %v7776 = vpop.f32.mrb[0].mxu0
  %v7777 = vadd.f32 0.0, %v7776
  %v7778 = vpop.f32.mrb[0].mxu0
  %v7779 = vpop.f32.mrb[0].mxu0
  %v7780 = vadd.f32 0.0, %v7779
  %v7781 = vpop.f32.mrb[0].mxu0
  %7782 = vmatprep.mubr.bf16.mxu0 0
  %7783 = vmatmul.mubr.bf16.gmra.mrb[0].mxu0 %v7512
  %v7784 = vpop.f32.mrb[0].mxu0
  %v7785 = vadd.f32 0.0, %v7784
  %v7786 = vpop.f32.mrb[0].mxu0
  %v7787 = vpop.f32.mrb[0].mxu0
  %v7788 = vadd.f32 0.0, %v7787
  %v7789 = vpop.f32.mrb[0].mxu0
  %7790 = vmatprep.mubr.bf16.mxu0 0
  %7791 = vmatmul.mubr.bf16.gmra.mrb[0].mxu0 %v7515
  %v7792 = vpop.f32.mrb[0].mxu0
  %v7793 = vadd.f32 0.0, %v7792
  %v7794 = vpop.f32.mrb[0].mxu0
  %v7795 = vpop.f32.mrb[0].mxu0
  %v7796 = vadd.f32 0.0, %v7795
  %v7797 = vpop.f32.mrb[0].mxu0
  %7798 = vmatprep.mubr.bf16.mxu0 0
  %7799 = vmatmul.mubr.bf16.gmra.mrb[0].mxu0 %v7518
  %v7800 = vpop.f32.mrb[0].mxu0
  %v7801 = vadd.f32 0.0, %v7800
  %v7802 = vpop.f32.mrb[0].mxu0
  %v7803 = vpop.f32.mrb[0].mxu0
  %v7804 = vadd.f32 0.0, %v7803
  %v7805 = vpop.f32.mrb[0].mxu0
  %7806 = vmatprep.mubr.bf16.mxu0 0
  %7807 = vmatmul.mubr.bf16.gmra.mrb[0].mxu0 %v7521
  %v7808 = vpop.f32.mrb[0].mxu0
  %v7809 = vadd.f32 0.0, %v7808
  %v7810 = vpop.f32.mrb[0].mxu0
  %v7811 = vpop.f32.mrb[0].mxu0
  %v7812 = vadd.f32 0.0, %v7811
  %v7813 = vpop.f32.mrb[0].mxu0
  %7814 = vdwg.mxu0
  %v7815 = vadd.f32 %v7265, %v7561
  %v7816 = vadd.f32 %v7266, %v7564
  %v7817 = vadd.f32 %v7267, %v7569
  %v7818 = vadd.f32 %v7268, %v7572
  %v7819 = vadd.f32 %v7269, %v7577
  %v7820 = vadd.f32 %v7270, %v7580
  %v7821 = vadd.f32 %v7271, %v7585
  %v7822 = vadd.f32 %v7272, %v7588
  %v7823 = vadd.f32 %v7273, %v7593
  %v7824 = vadd.f32 %v7274, %v7596
  %v7825 = vadd.f32 %v7275, %v7601
  %v7826 = vadd.f32 %v7276, %v7604
  %v7827 = vadd.f32 %v7277, %v7609
  %v7828 = vadd.f32 %v7278, %v7612
  %v7829 = vadd.f32 %v7279, %v7617
  %v7830 = vadd.f32 %v7280, %v7620
  %v7831 = vadd.f32 %v7281, %v7625
  %v7832 = vadd.f32 %v7282, %v7628
  %v7833 = vadd.f32 %v7283, %v7633
  %v7834 = vadd.f32 %v7284, %v7636
  %v7835 = vadd.f32 %v7285, %v7641
  %v7836 = vadd.f32 %v7286, %v7644
  %v7837 = vadd.f32 %v7287, %v7649
  %v7838 = vadd.f32 %v7288, %v7652
  %v7839 = vadd.f32 %v7289, %v7657
  %v7840 = vadd.f32 %v7290, %v7660
  %v7841 = vadd.f32 %v7291, %v7665
  %v7842 = vadd.f32 %v7292, %v7668
  %v7843 = vadd.f32 %v7293, %v7673
  %v7844 = vadd.f32 %v7294, %v7676
  %v7845 = vadd.f32 %v7295, %v7681
  %v7846 = vadd.f32 %v7296, %v7684
  %v7847 = vadd.f32 %v7297, %v7689
  %v7848 = vadd.f32 %v7298, %v7692
  %v7849 = vadd.f32 %v7299, %v7697
  %v7850 = vadd.f32 %v7300, %v7700
  %v7851 = vadd.f32 %v7301, %v7705
  %v7852 = vadd.f32 %v7302, %v7708
  %v7853 = vadd.f32 %v7303, %v7713
  %v7854 = vadd.f32 %v7304, %v7716
  %v7855 = vadd.f32 %v7305, %v7721
  %v7856 = vadd.f32 %v7306, %v7724
  %v7857 = vadd.f32 %v7307, %v7729
  %v7858 = vadd.f32 %v7308, %v7732
  %v7859 = vadd.f32 %v7309, %v7737
  %v7860 = vadd.f32 %v7310, %v7740
  %v7861 = vadd.f32 %v7311, %v7745
  %v7862 = vadd.f32 %v7312, %v7748
  %v7863 = vadd.f32 %v7313, %v7753
  %v7864 = vadd.f32 %v7314, %v7756
  %v7865 = vadd.f32 %v7315, %v7761
  %v7866 = vadd.f32 %v7316, %v7764
  %v7867 = vadd.f32 %v7317, %v7769
  %v7868 = vadd.f32 %v7318, %v7772
  %v7869 = vadd.f32 %v7319, %v7777
  %v7870 = vadd.f32 %v7320, %v7780
  %v7871 = vadd.f32 %v7321, %v7785
  %v7872 = vadd.f32 %v7322, %v7788
  %v7873 = vadd.f32 %v7323, %v7793
  %v7874 = vadd.f32 %v7324, %v7796
  %v7875 = vadd.f32 %v7325, %v7801
  %v7876 = vadd.f32 %v7326, %v7804
  %v7877 = vadd.f32 %v7327, %v7809
  %v7878 = vadd.f32 %v7328, %v7812
  %v7879 = vld [vmem:[%s5677 + $0x1] sm:$0xff]
  %v7880 = vld [vmem:[%s5677 + $0x9] sm:$0xff]
  %v7881 = vld [vmem:[%s5677 + $0x19] sm:$0xff]
  %v7882 = vld [vmem:[%s5677 + $0x21] sm:$0xff]
  %v7883 = vld [vmem:[%s5677 + $0x31] sm:$0xff]
  %v7884 = vld [vmem:[%s5677 + $0x39] sm:$0xff]
  %v7885 = vld [vmem:[%s5677 + $0x49] sm:$0xff]
  %v7886 = vld [vmem:[%s5677 + $0x51] sm:$0xff]
  %v7887 = vld [vmem:[%s5677 + $0x61] sm:$0xff]
  %v7888 = vld [vmem:[%s5677 + $0x69] sm:$0xff]
  %v7889 = vld [vmem:[%s5677 + $0x79] sm:$0xff]
  %v7890 = vld [vmem:[%s5677 + $0x81] sm:$0xff]
  %v7891 = vld [vmem:[%s5677 + $0x91] sm:$0xff]
  %v7892 = vld [vmem:[%s5677 + $0x99] sm:$0xff]
  %v7893 = vld [vmem:[%s5677 + $0xa9] sm:$0xff]
  %v7894 = vld [vmem:[%s5677 + $0xb1] sm:$0xff]
  %v7895 = vld [vmem:[%s5677 + $0xc1] sm:$0xff]
  %v7896 = vld [vmem:[%s5677 + $0xc9] sm:$0xff]
  %v7897 = vld [vmem:[%s5677 + $0xd9] sm:$0xff]
  %v7898 = vld [vmem:[%s5677 + $0xe1] sm:$0xff]
  %v7899 = vld [vmem:[%s5677 + $0xf1] sm:$0xff]
  %v7900 = vld [vmem:[%s5677 + $0xf9] sm:$0xff]
  %v7901 = vld [vmem:[%s5677 + $0x109] sm:$0xff]
  %v7902 = vld [vmem:[%s5677 + $0x111] sm:$0xff]
  %v7903 = vld [vmem:[%s5677 + $0x121] sm:$0xff]
  %v7904 = vld [vmem:[%s5677 + $0x129] sm:$0xff]
  %v7905 = vld [vmem:[%s5677 + $0x139] sm:$0xff]
  %v7906 = vld [vmem:[%s5677 + $0x141] sm:$0xff]
  %v7907 = vld [vmem:[%s5677 + $0x151] sm:$0xff]
  %v7908 = vld [vmem:[%s5677 + $0x159] sm:$0xff]
  %v7909 = vld [vmem:[%s5677 + $0x169] sm:$0xff]
  %v7910 = vld [vmem:[%s5677 + $0x171] sm:$0xff]
  %v7911 = vld [vmem:[%s5677 + $0x1b1] sm:$0xff]
  %v7912 = vld [vmem:[%s5677 + $0x1b9] sm:$0xff]
  %v7913 = vld [vmem:[%s5677 + $0x1c9] sm:$0xff]
  %v7914 = vld [vmem:[%s5677 + $0x1d1] sm:$0xff]
  %v7915 = vld [vmem:[%s5677 + $0x1e1] sm:$0xff]
  %v7916 = vld [vmem:[%s5677 + $0x1e9] sm:$0xff]
  %v7917 = vld [vmem:[%s5677 + $0x1f9] sm:$0xff]
  %v7918 = vld [vmem:[%s5677 + $0x201] sm:$0xff]
  %v7919 = vld [vmem:[%s5677 + $0x211] sm:$0xff]
  %v7920 = vld [vmem:[%s5677 + $0x219] sm:$0xff]
  %v7921 = vld [vmem:[%s5677 + $0x229] sm:$0xff]
  %v7922 = vld [vmem:[%s5677 + $0x231] sm:$0xff]
  %v7923 = vld [vmem:[%s5677 + $0x241] sm:$0xff]
  %v7924 = vld [vmem:[%s5677 + $0x249] sm:$0xff]
  %v7925 = vld [vmem:[%s5677 + $0x259] sm:$0xff]
  %v7926 = vld [vmem:[%s5677 + $0x261] sm:$0xff]
  %v7927 = vld [vmem:[%s5677 + $0x271] sm:$0xff]
  %v7928 = vld [vmem:[%s5677 + $0x279] sm:$0xff]
  %v7929 = vld [vmem:[%s5677 + $0x289] sm:$0xff]
  %v7930 = vld [vmem:[%s5677 + $0x291] sm:$0xff]
  %v7931 = vld [vmem:[%s5677 + $0x2a1] sm:$0xff]
  %v7932 = vld [vmem:[%s5677 + $0x2a9] sm:$0xff]
  %v7933 = vld [vmem:[%s5677 + $0x2b9] sm:$0xff]
  %v7934 = vld [vmem:[%s5677 + $0x2c1] sm:$0xff]
  %v7935 = vld [vmem:[%s5677 + $0x2d1] sm:$0xff]
  %v7936 = vld [vmem:[%s5677 + $0x2d9] sm:$0xff]
  %v7937 = vld [vmem:[%s5677 + $0x2e9] sm:$0xff]
  %v7938 = vld [vmem:[%s5677 + $0x2f1] sm:$0xff]
  %v7939 = vld [vmem:[%s5677 + $0x301] sm:$0xff]
  %v7940 = vld [vmem:[%s5677 + $0x309] sm:$0xff]
  %v7941 = vld [vmem:[%s5677 + $0x319] sm:$0xff]
  %v7942 = vld [vmem:[%s5677 + $0x321] sm:$0xff]
  %v7943 = vpack.c.bf16 %v7880, %v7879
  %v7944 = vpack.c.bf16 %v7882, %v7881
  %v7945 = vpack.c.bf16 %v7884, %v7883
  %v7946 = vpack.c.bf16 %v7886, %v7885
  %v7947 = vpack.c.bf16 %v7888, %v7887
  %v7948 = vpack.c.bf16 %v7890, %v7889
  %v7949 = vpack.c.bf16 %v7892, %v7891
  %v7950 = vpack.c.bf16 %v7894, %v7893
  %v7951 = vpack.c.bf16 %v7896, %v7895
  %v7952 = vpack.c.bf16 %v7898, %v7897
  %v7953 = vpack.c.bf16 %v7900, %v7899
  %v7954 = vpack.c.bf16 %v7902, %v7901
  %v7955 = vpack.c.bf16 %v7904, %v7903
  %v7956 = vpack.c.bf16 %v7906, %v7905
  %v7957 = vpack.c.bf16 %v7908, %v7907
  %v7958 = vpack.c.bf16 %v7910, %v7909
  %v7959 = vpack.c.bf16 %v7912, %v7911
  %v7960 = vpack.c.bf16 %v7914, %v7913
  %v7961 = vpack.c.bf16 %v7916, %v7915
  %v7962 = vpack.c.bf16 %v7918, %v7917
  %v7963 = vpack.c.bf16 %v7920, %v7919
  %v7964 = vpack.c.bf16 %v7922, %v7921
  %v7965 = vpack.c.bf16 %v7924, %v7923
  %v7966 = vpack.c.bf16 %v7926, %v7925
  %v7967 = vpack.c.bf16 %v7928, %v7927
  %v7968 = vpack.c.bf16 %v7930, %v7929
  %v7969 = vpack.c.bf16 %v7932, %v7931
  %v7970 = vpack.c.bf16 %v7934, %v7933
  %v7971 = vpack.c.bf16 %v7936, %v7935
  %v7972 = vpack.c.bf16 %v7938, %v7937
  %v7973 = vpack.c.bf16 %v7940, %v7939
  %v7974 = vpack.c.bf16 %v7942, %v7941
  %s7975 = scalar_lea.vmem %s4, 16
  %v7976 = vld [vmem:[%s7975] sm:$0xf]
  %v7978 = vsel %vm5061, %v7943, 0
  %v7981 = vsel %vm5061, %v7944, 0
  %v7984 = vsel %vm5061, %v7945, 0
  %v7987 = vsel %vm5061, %v7946, 0
  %v7990 = vsel %vm5061, %v7947, 0
  %v7993 = vsel %vm5061, %v7948, 0
  %v7996 = vsel %vm5061, %v7949, 0
  %v7999 = vsel %vm5061, %v7950, 0
  %v8002 = vsel %vm5061, %v7951, 0
  %v8005 = vsel %vm5061, %v7952, 0
  %v8008 = vsel %vm5061, %v7953, 0
  %v8011 = vsel %vm5061, %v7954, 0
  %v8014 = vsel %vm5061, %v7955, 0
  %v8017 = vsel %vm5061, %v7956, 0
  %v8020 = vsel %vm5061, %v7957, 0
  %v8023 = vsel %vm5061, %v7958, 0
  %v8026 = vsel %vm5061, %v7959, 0
  %v8029 = vsel %vm5061, %v7960, 0
  %v8032 = vsel %vm5061, %v7961, 0
  %v8035 = vsel %vm5061, %v7962, 0
  %v8038 = vsel %vm5061, %v7963, 0
  %v8041 = vsel %vm5061, %v7964, 0
  %v8044 = vsel %vm5061, %v7965, 0
  %v8047 = vsel %vm5061, %v7966, 0
  %v8050 = vsel %vm5061, %v7967, 0
  %v8053 = vsel %vm5061, %v7968, 0
  %v8056 = vsel %vm5061, %v7969, 0
  %v8059 = vsel %vm5061, %v7970, 0
  %v8062 = vsel %vm5061, %v7971, 0
  %v8065 = vsel %vm5061, %v7972, 0
  %v8068 = vsel %vm5061, %v7973, 0
  %v8071 = vsel %vm5061, %v7974, 0
  %v8074 = vsel %vm6098, %v7976, 0
  %8076 = vmatprep.subr.bf16.mxu0 0
  %8077 = vmatpush1.bf16.msra.mxu0 %v8074
  %8078 = vmatprep.subr.bf16.mxu0 0
  %8079 = vmatpush1.bf16.msra.mxu0 0
  %8080 = vmatprep.subr.bf16.mxu0 0
  %8081 = vmatpush1.bf16.msra.mxu0 0
  %8082 = vmatprep.subr.bf16.mxu0 0
  %8083 = vmatpush1.bf16.msra.mxu0 0
  %8084 = vmatprep.subr.bf16.mxu0 0
  %8085 = vmatpush1.bf16.msra.mxu0 0
  %8086 = vmatprep.subr.bf16.mxu0 0
  %8087 = vmatpush1.bf16.msra.mxu0 0
  %8088 = vmatprep.subr.bf16.mxu0 0
  %8089 = vmatpush1.bf16.msra.mxu0 0
  %8090 = vmatprep.subr.bf16.mxu0 0
  %8091 = vmatpush1.bf16.msra.mxu0 0
  %8092 = vmatprep.subr.bf16.mxu0 0
  %8093 = vmatpush1.bf16.msra.mxu0 0
  %8094 = vmatprep.subr.bf16.mxu0 0
  %8095 = vmatpush1.bf16.msra.mxu0 0
  %8096 = vmatprep.subr.bf16.mxu0 0
  %8097 = vmatpush1.bf16.msra.mxu0 0
  %8098 = vmatprep.subr.bf16.mxu0 0
  %8099 = vmatpush1.bf16.msra.mxu0 0
  %8100 = vmatprep.subr.bf16.mxu0 0
  %8101 = vmatpush1.bf16.msra.mxu0 0
  %8102 = vmatprep.subr.bf16.mxu0 0
  %8103 = vmatpush1.bf16.msra.mxu0 0
  %8104 = vmatprep.subr.bf16.mxu0 0
  %8105 = vmatpush1.bf16.msra.mxu0 0
  %8106 = vmatprep.subr.bf16.mxu0 0
  %8107 = vmatpush1.bf16.msra.mxu0 0
  %8108 = vmatprep.mubr.bf16.mxu0 0
  %8109 = vmatmul.mubr.bf16.gmra.mrb[0].mxu0 %v7978
  %v8110 = vpop.f32.mrb[0].mxu0
  %v8111 = vadd.f32 0.0, %v8110
  %v8112 = vpop.f32.mrb[0].mxu0
  %v8113 = vpop.f32.mrb[0].mxu0
  %v8114 = vadd.f32 0.0, %v8113
  %v8115 = vpop.f32.mrb[0].mxu0
  %8116 = vmatprep.mubr.bf16.mxu0 0
  %8117 = vmatmul.mubr.bf16.gmra.mrb[0].mxu0 %v7981
  %v8118 = vpop.f32.mrb[0].mxu0
  %v8119 = vadd.f32 0.0, %v8118
  %v8120 = vpop.f32.mrb[0].mxu0
  %v8121 = vpop.f32.mrb[0].mxu0
  %v8122 = vadd.f32 0.0, %v8121
  %v8123 = vpop.f32.mrb[0].mxu0
  %8124 = vmatprep.mubr.bf16.mxu0 0
  %8125 = vmatmul.mubr.bf16.gmra.mrb[0].mxu0 %v7984
  %v8126 = vpop.f32.mrb[0].mxu0
  %v8127 = vadd.f32 0.0, %v8126
  %v8128 = vpop.f32.mrb[0].mxu0
  %v8129 = vpop.f32.mrb[0].mxu0
  %v8130 = vadd.f32 0.0, %v8129
  %v8131 = vpop.f32.mrb[0].mxu0
  %8132 = vmatprep.mubr.bf16.mxu0 0
  %8133 = vmatmul.mubr.bf16.gmra.mrb[0].mxu0 %v7987
  %v8134 = vpop.f32.mrb[0].mxu0
  %v8135 = vadd.f32 0.0, %v8134
  %v8136 = vpop.f32.mrb[0].mxu0
  %v8137 = vpop.f32.mrb[0].mxu0
  %v8138 = vadd.f32 0.0, %v8137
  %v8139 = vpop.f32.mrb[0].mxu0
  %8140 = vmatprep.mubr.bf16.mxu0 0
  %8141 = vmatmul.mubr.bf16.gmra.mrb[0].mxu0 %v7990
  %v8142 = vpop.f32.mrb[0].mxu0
  %v8143 = vadd.f32 0.0, %v8142
  %v8144 = vpop.f32.mrb[0].mxu0
  %v8145 = vpop.f32.mrb[0].mxu0
  %v8146 = vadd.f32 0.0, %v8145
  %v8147 = vpop.f32.mrb[0].mxu0
  %8148 = vmatprep.mubr.bf16.mxu0 0
  %8149 = vmatmul.mubr.bf16.gmra.mrb[0].mxu0 %v7993
  %v8150 = vpop.f32.mrb[0].mxu0
  %v8151 = vadd.f32 0.0, %v8150
  %v8152 = vpop.f32.mrb[0].mxu0
  %v8153 = vpop.f32.mrb[0].mxu0
  %v8154 = vadd.f32 0.0, %v8153
  %v8155 = vpop.f32.mrb[0].mxu0
  %8156 = vmatprep.mubr.bf16.mxu0 0
  %8157 = vmatmul.mubr.bf16.gmra.mrb[0].mxu0 %v7996
  %v8158 = vpop.f32.mrb[0].mxu0
  %v8159 = vadd.f32 0.0, %v8158
  %v8160 = vpop.f32.mrb[0].mxu0
  %v8161 = vpop.f32.mrb[0].mxu0
  %v8162 = vadd.f32 0.0, %v8161
  %v8163 = vpop.f32.mrb[0].mxu0
  %8164 = vmatprep.mubr.bf16.mxu0 0
  %8165 = vmatmul.mubr.bf16.gmra.mrb[0].mxu0 %v7999
  %v8166 = vpop.f32.mrb[0].mxu0
  %v8167 = vadd.f32 0.0, %v8166
  %v8168 = vpop.f32.mrb[0].mxu0
  %v8169 = vpop.f32.mrb[0].mxu0
  %v8170 = vadd.f32 0.0, %v8169
  %v8171 = vpop.f32.mrb[0].mxu0
  %8172 = vmatprep.mubr.bf16.mxu0 0
  %8173 = vmatmul.mubr.bf16.gmra.mrb[0].mxu0 %v8002
  %v8174 = vpop.f32.mrb[0].mxu0
  %v8175 = vadd.f32 0.0, %v8174
  %v8176 = vpop.f32.mrb[0].mxu0
  %v8177 = vpop.f32.mrb[0].mxu0
  %v8178 = vadd.f32 0.0, %v8177
  %v8179 = vpop.f32.mrb[0].mxu0
  %8180 = vmatprep.mubr.bf16.mxu0 0
  %8181 = vmatmul.mubr.bf16.gmra.mrb[0].mxu0 %v8005
  %v8182 = vpop.f32.mrb[0].mxu0
  %v8183 = vadd.f32 0.0, %v8182
  %v8184 = vpop.f32.mrb[0].mxu0
  %v8185 = vpop.f32.mrb[0].mxu0
  %v8186 = vadd.f32 0.0, %v8185
  %v8187 = vpop.f32.mrb[0].mxu0
  %8188 = vmatprep.mubr.bf16.mxu0 0
  %8189 = vmatmul.mubr.bf16.gmra.mrb[0].mxu0 %v8008
  %v8190 = vpop.f32.mrb[0].mxu0
  %v8191 = vadd.f32 0.0, %v8190
  %v8192 = vpop.f32.mrb[0].mxu0
  %v8193 = vpop.f32.mrb[0].mxu0
  %v8194 = vadd.f32 0.0, %v8193
  %v8195 = vpop.f32.mrb[0].mxu0
  %8196 = vmatprep.mubr.bf16.mxu0 0
  %8197 = vmatmul.mubr.bf16.gmra.mrb[0].mxu0 %v8011
  %v8198 = vpop.f32.mrb[0].mxu0
  %v8199 = vadd.f32 0.0, %v8198
  %v8200 = vpop.f32.mrb[0].mxu0
  %v8201 = vpop.f32.mrb[0].mxu0
  %v8202 = vadd.f32 0.0, %v8201
  %v8203 = vpop.f32.mrb[0].mxu0
  %8204 = vmatprep.mubr.bf16.mxu0 0
  %8205 = vmatmul.mubr.bf16.gmra.mrb[0].mxu0 %v8014
  %v8206 = vpop.f32.mrb[0].mxu0
  %v8207 = vadd.f32 0.0, %v8206
  %v8208 = vpop.f32.mrb[0].mxu0
  %v8209 = vpop.f32.mrb[0].mxu0
  %v8210 = vadd.f32 0.0, %v8209
  %v8211 = vpop.f32.mrb[0].mxu0
  %8212 = vmatprep.mubr.bf16.mxu0 0
  %8213 = vmatmul.mubr.bf16.gmra.mrb[0].mxu0 %v8017
  %v8214 = vpop.f32.mrb[0].mxu0
  %v8215 = vadd.f32 0.0, %v8214
  %v8216 = vpop.f32.mrb[0].mxu0
  %v8217 = vpop.f32.mrb[0].mxu0
  %v8218 = vadd.f32 0.0, %v8217
  %v8219 = vpop.f32.mrb[0].mxu0
  %8220 = vmatprep.mubr.bf16.mxu0 0
  %8221 = vmatmul.mubr.bf16.gmra.mrb[0].mxu0 %v8020
  %v8222 = vpop.f32.mrb[0].mxu0
  %v8223 = vadd.f32 0.0, %v8222
  %v8224 = vpop.f32.mrb[0].mxu0
  %v8225 = vpop.f32.mrb[0].mxu0
  %v8226 = vadd.f32 0.0, %v8225
  %v8227 = vpop.f32.mrb[0].mxu0
  %8228 = vmatprep.mubr.bf16.mxu0 0
  %8229 = vmatmul.mubr.bf16.gmra.mrb[0].mxu0 %v8023
  %v8230 = vpop.f32.mrb[0].mxu0
  %v8231 = vadd.f32 0.0, %v8230
  %v8232 = vpop.f32.mrb[0].mxu0
  %v8233 = vpop.f32.mrb[0].mxu0
  %v8234 = vadd.f32 0.0, %v8233
  %v8235 = vpop.f32.mrb[0].mxu0
  %8236 = vmatprep.mubr.bf16.mxu0 0
  %8237 = vmatmul.mubr.bf16.gmra.mrb[0].mxu0 %v8026
  %v8238 = vpop.f32.mrb[0].mxu0
  %v8239 = vadd.f32 0.0, %v8238
  %v8240 = vpop.f32.mrb[0].mxu0
  %v8241 = vpop.f32.mrb[0].mxu0
  %v8242 = vadd.f32 0.0, %v8241
  %v8243 = vpop.f32.mrb[0].mxu0
  %8244 = vmatprep.mubr.bf16.mxu0 0
  %8245 = vmatmul.mubr.bf16.gmra.mrb[0].mxu0 %v8029
  %v8246 = vpop.f32.mrb[0].mxu0
  %v8247 = vadd.f32 0.0, %v8246
  %v8248 = vpop.f32.mrb[0].mxu0
  %v8249 = vpop.f32.mrb[0].mxu0
  %v8250 = vadd.f32 0.0, %v8249
  %v8251 = vpop.f32.mrb[0].mxu0
  %8252 = vmatprep.mubr.bf16.mxu0 0
  %8253 = vmatmul.mubr.bf16.gmra.mrb[0].mxu0 %v8032
  %v8254 = vpop.f32.mrb[0].mxu0
  %v8255 = vadd.f32 0.0, %v8254
  %v8256 = vpop.f32.mrb[0].mxu0
  %v8257 = vpop.f32.mrb[0].mxu0
  %v8258 = vadd.f32 0.0, %v8257
  %v8259 = vpop.f32.mrb[0].mxu0
  %8260 = vmatprep.mubr.bf16.mxu0 0
  %8261 = vmatmul.mubr.bf16.gmra.mrb[0].mxu0 %v8035
  %v8262 = vpop.f32.mrb[0].mxu0
  %v8263 = vadd.f32 0.0, %v8262
  %v8264 = vpop.f32.mrb[0].mxu0
  %v8265 = vpop.f32.mrb[0].mxu0
  %v8266 = vadd.f32 0.0, %v8265
  %v8267 = vpop.f32.mrb[0].mxu0
  %8268 = vmatprep.mubr.bf16.mxu0 0
  %8269 = vmatmul.mubr.bf16.gmra.mrb[0].mxu0 %v8038
  %v8270 = vpop.f32.mrb[0].mxu0
  %v8271 = vadd.f32 0.0, %v8270
  %v8272 = vpop.f32.mrb[0].mxu0
  %v8273 = vpop.f32.mrb[0].mxu0
  %v8274 = vadd.f32 0.0, %v8273
  %v8275 = vpop.f32.mrb[0].mxu0
  %8276 = vmatprep.mubr.bf16.mxu0 0
  %8277 = vmatmul.mubr.bf16.gmra.mrb[0].mxu0 %v8041
  %v8278 = vpop.f32.mrb[0].mxu0
  %v8279 = vadd.f32 0.0, %v8278
  %v8280 = vpop.f32.mrb[0].mxu0
  %v8281 = vpop.f32.mrb[0].mxu0
  %v8282 = vadd.f32 0.0, %v8281
  %v8283 = vpop.f32.mrb[0].mxu0
  %8284 = vmatprep.mubr.bf16.mxu0 0
  %8285 = vmatmul.mubr.bf16.gmra.mrb[0].mxu0 %v8044
  %v8286 = vpop.f32.mrb[0].mxu0
  %v8287 = vadd.f32 0.0, %v8286
  %v8288 = vpop.f32.mrb[0].mxu0
  %v8289 = vpop.f32.mrb[0].mxu0
  %v8290 = vadd.f32 0.0, %v8289
  %v8291 = vpop.f32.mrb[0].mxu0
  %8292 = vmatprep.mubr.bf16.mxu0 0
  %8293 = vmatmul.mubr.bf16.gmra.mrb[0].mxu0 %v8047
  %v8294 = vpop.f32.mrb[0].mxu0
  %v8295 = vadd.f32 0.0, %v8294
  %v8296 = vpop.f32.mrb[0].mxu0
  %v8297 = vpop.f32.mrb[0].mxu0
  %v8298 = vadd.f32 0.0, %v8297
  %v8299 = vpop.f32.mrb[0].mxu0
  %8300 = vmatprep.mubr.bf16.mxu0 0
  %8301 = vmatmul.mubr.bf16.gmra.mrb[0].mxu0 %v8050
  %v8302 = vpop.f32.mrb[0].mxu0
  %v8303 = vadd.f32 0.0, %v8302
  %v8304 = vpop.f32.mrb[0].mxu0
  %v8305 = vpop.f32.mrb[0].mxu0
  %v8306 = vadd.f32 0.0, %v8305
  %v8307 = vpop.f32.mrb[0].mxu0
  %8308 = vmatprep.mubr.bf16.mxu0 0
  %8309 = vmatmul.mubr.bf16.gmra.mrb[0].mxu0 %v8053
  %v8310 = vpop.f32.mrb[0].mxu0
  %v8311 = vadd.f32 0.0, %v8310
  %v8312 = vpop.f32.mrb[0].mxu0
  %v8313 = vpop.f32.mrb[0].mxu0
  %v8314 = vadd.f32 0.0, %v8313
  %v8315 = vpop.f32.mrb[0].mxu0
  %8316 = vmatprep.mubr.bf16.mxu0 0
  %8317 = vmatmul.mubr.bf16.gmra.mrb[0].mxu0 %v8056
  %v8318 = vpop.f32.mrb[0].mxu0
  %v8319 = vadd.f32 0.0, %v8318
  %v8320 = vpop.f32.mrb[0].mxu0
  %v8321 = vpop.f32.mrb[0].mxu0
  %v8322 = vadd.f32 0.0, %v8321
  %v8323 = vpop.f32.mrb[0].mxu0
  %8324 = vmatprep.mubr.bf16.mxu0 0
  %8325 = vmatmul.mubr.bf16.gmra.mrb[0].mxu0 %v8059
  %v8326 = vpop.f32.mrb[0].mxu0
  %v8327 = vadd.f32 0.0, %v8326
  %v8328 = vpop.f32.mrb[0].mxu0
  %v8329 = vpop.f32.mrb[0].mxu0
  %v8330 = vadd.f32 0.0, %v8329
  %v8331 = vpop.f32.mrb[0].mxu0
  %8332 = vmatprep.mubr.bf16.mxu0 0
  %8333 = vmatmul.mubr.bf16.gmra.mrb[0].mxu0 %v8062
  %v8334 = vpop.f32.mrb[0].mxu0
  %v8335 = vadd.f32 0.0, %v8334
  %v8336 = vpop.f32.mrb[0].mxu0
  %v8337 = vpop.f32.mrb[0].mxu0
  %v8338 = vadd.f32 0.0, %v8337
  %v8339 = vpop.f32.mrb[0].mxu0
  %8340 = vmatprep.mubr.bf16.mxu0 0
  %8341 = vmatmul.mubr.bf16.gmra.mrb[0].mxu0 %v8065
  %v8342 = vpop.f32.mrb[0].mxu0
  %v8343 = vadd.f32 0.0, %v8342
  %v8344 = vpop.f32.mrb[0].mxu0
  %v8345 = vpop.f32.mrb[0].mxu0
  %v8346 = vadd.f32 0.0, %v8345
  %v8347 = vpop.f32.mrb[0].mxu0
  %8348 = vmatprep.mubr.bf16.mxu0 0
  %8349 = vmatmul.mubr.bf16.gmra.mrb[0].mxu0 %v8068
  %v8350 = vpop.f32.mrb[0].mxu0
  %v8351 = vadd.f32 0.0, %v8350
  %v8352 = vpop.f32.mrb[0].mxu0
  %v8353 = vpop.f32.mrb[0].mxu0
  %v8354 = vadd.f32 0.0, %v8353
  %v8355 = vpop.f32.mrb[0].mxu0
  %8356 = vmatprep.mubr.bf16.mxu0 0
  %8357 = vmatmul.mubr.bf16.gmra.mrb[0].mxu0 %v8071
  %v8358 = vpop.f32.mrb[0].mxu0
  %v8359 = vadd.f32 0.0, %v8358
  %v8360 = vpop.f32.mrb[0].mxu0
  %v8361 = vpop.f32.mrb[0].mxu0
  %v8362 = vadd.f32 0.0, %v8361
  %v8363 = vpop.f32.mrb[0].mxu0
  %8364 = vdwg.mxu0
  %v8365 = vadd.f32 %v7815, %v8111
  %v8366 = vadd.f32 %v7816, %v8114
  %v8367 = vadd.f32 %v7817, %v8119
  %v8368 = vadd.f32 %v7818, %v8122
  %v8369 = vadd.f32 %v7819, %v8127
  %v8370 = vadd.f32 %v7820, %v8130
  %v8371 = vadd.f32 %v7821, %v8135
  %v8372 = vadd.f32 %v7822, %v8138
  %v8373 = vadd.f32 %v7823, %v8143
  %v8374 = vadd.f32 %v7824, %v8146
  %v8375 = vadd.f32 %v7825, %v8151
  %v8376 = vadd.f32 %v7826, %v8154
  %v8377 = vadd.f32 %v7827, %v8159
  %v8378 = vadd.f32 %v7828, %v8162
  %v8379 = vadd.f32 %v7829, %v8167
  %v8380 = vadd.f32 %v7830, %v8170
  %v8381 = vadd.f32 %v7831, %v8175
  %v8382 = vadd.f32 %v7832, %v8178
  %v8383 = vadd.f32 %v7833, %v8183
  %v8384 = vadd.f32 %v7834, %v8186
  %v8385 = vadd.f32 %v7835, %v8191
  %v8386 = vadd.f32 %v7836, %v8194
  %v8387 = vadd.f32 %v7837, %v8199
  %v8388 = vadd.f32 %v7838, %v8202
  %v8389 = vadd.f32 %v7839, %v8207
  %v8390 = vadd.f32 %v7840, %v8210
  %v8391 = vadd.f32 %v7841, %v8215
  %v8392 = vadd.f32 %v7842, %v8218
  %v8393 = vadd.f32 %v7843, %v8223
  %v8394 = vadd.f32 %v7844, %v8226
  %v8395 = vadd.f32 %v7845, %v8231
  %v8396 = vadd.f32 %v7846, %v8234
  %v8397 = vadd.f32 %v7847, %v8239
  %v8398 = vadd.f32 %v7848, %v8242
  %v8399 = vadd.f32 %v7849, %v8247
  %v8400 = vadd.f32 %v7850, %v8250
  %v8401 = vadd.f32 %v7851, %v8255
  %v8402 = vadd.f32 %v7852, %v8258
  %v8403 = vadd.f32 %v7853, %v8263
  %v8404 = vadd.f32 %v7854, %v8266
  %v8405 = vadd.f32 %v7855, %v8271
  %v8406 = vadd.f32 %v7856, %v8274
  %v8407 = vadd.f32 %v7857, %v8279
  %v8408 = vadd.f32 %v7858, %v8282
  %v8409 = vadd.f32 %v7859, %v8287
  %v8410 = vadd.f32 %v7860, %v8290
  %v8411 = vadd.f32 %v7861, %v8295
  %v8412 = vadd.f32 %v7862, %v8298
  %v8413 = vadd.f32 %v7863, %v8303
  %v8414 = vadd.f32 %v7864, %v8306
  %v8415 = vadd.f32 %v7865, %v8311
  %v8416 = vadd.f32 %v7866, %v8314
  %v8417 = vadd.f32 %v7867, %v8319
  %v8418 = vadd.f32 %v7868, %v8322
  %v8419 = vadd.f32 %v7869, %v8327
  %v8420 = vadd.f32 %v7870, %v8330
  %v8421 = vadd.f32 %v7871, %v8335
  %v8422 = vadd.f32 %v7872, %v8338
  %v8423 = vadd.f32 %v7873, %v8343
  %v8424 = vadd.f32 %v7874, %v8346
  %v8425 = vadd.f32 %v7875, %v8351
  %v8426 = vadd.f32 %v7876, %v8354
  %v8427 = vadd.f32 %v7877, %v8359
  %v8428 = vadd.f32 %v7878, %v8362
  %v8429 = vld [vmem:[%s5677 + $0x2] sm:$0xff]
  %v8430 = vld [vmem:[%s5677 + $0xa] sm:$0xff]
  %v8431 = vld [vmem:[%s5677 + $0x1a] sm:$0xff]
  %v8432 = vld [vmem:[%s5677 + $0x22] sm:$0xff]
  %v8433 = vld [vmem:[%s5677 + $0x32] sm:$0xff]
  %v8434 = vld [vmem:[%s5677 + $0x3a] sm:$0xff]
  %v8435 = vld [vmem:[%s5677 + $0x4a] sm:$0xff]
  %v8436 = vld [vmem:[%s5677 + $0x52] sm:$0xff]
  %v8437 = vld [vmem:[%s5677 + $0x62] sm:$0xff]
  %v8438 = vld [vmem:[%s5677 + $0x6a] sm:$0xff]
  %v8439 = vld [vmem:[%s5677 + $0x7a] sm:$0xff]
  %v8440 = vld [vmem:[%s5677 + $0x82] sm:$0xff]
  %v8441 = vld [vmem:[%s5677 + $0x92] sm:$0xff]
  %v8442 = vld [vmem:[%s5677 + $0x9a] sm:$0xff]
  %v8443 = vld [vmem:[%s5677 + $0xaa] sm:$0xff]
  %v8444 = vld [vmem:[%s5677 + $0xb2] sm:$0xff]
  %v8445 = vld [vmem:[%s5677 + $0xc2] sm:$0xff]
  %v8446 = vld [vmem:[%s5677 + $0xca] sm:$0xff]
  %v8447 = vld [vmem:[%s5677 + $0xda] sm:$0xff]
  %v8448 = vld [vmem:[%s5677 + $0xe2] sm:$0xff]
  %v8449 = vld [vmem:[%s5677 + $0xf2] sm:$0xff]
  %v8450 = vld [vmem:[%s5677 + $0xfa] sm:$0xff]
  %v8451 = vld [vmem:[%s5677 + $0x10a] sm:$0xff]
  %v8452 = vld [vmem:[%s5677 + $0x112] sm:$0xff]
  %v8453 = vld [vmem:[%s5677 + $0x122] sm:$0xff]
  %v8454 = vld [vmem:[%s5677 + $0x12a] sm:$0xff]
  %v8455 = vld [vmem:[%s5677 + $0x13a] sm:$0xff]
  %v8456 = vld [vmem:[%s5677 + $0x142] sm:$0xff]
  %v8457 = vld [vmem:[%s5677 + $0x152] sm:$0xff]
  %v8458 = vld [vmem:[%s5677 + $0x15a] sm:$0xff]
  %v8459 = vld [vmem:[%s5677 + $0x16a] sm:$0xff]
  %v8460 = vld [vmem:[%s5677 + $0x172] sm:$0xff]
  %v8461 = vld [vmem:[%s5677 + $0x1b2] sm:$0xff]
  %v8462 = vld [vmem:[%s5677 + $0x1ba] sm:$0xff]
  %v8463 = vld [vmem:[%s5677 + $0x1ca] sm:$0xff]
  %v8464 = vld [vmem:[%s5677 + $0x1d2] sm:$0xff]
  %v8465 = vld [vmem:[%s5677 + $0x1e2] sm:$0xff]
  %v8466 = vld [vmem:[%s5677 + $0x1ea] sm:$0xff]
  %v8467 = vld [vmem:[%s5677 + $0x1fa] sm:$0xff]
  %v8468 = vld [vmem:[%s5677 + $0x202] sm:$0xff]
  %v8469 = vld [vmem:[%s5677 + $0x212] sm:$0xff]
  %v8470 = vld [vmem:[%s5677 + $0x21a] sm:$0xff]
  %v8471 = vld [vmem:[%s5677 + $0x22a] sm:$0xff]
  %v8472 = vld [vmem:[%s5677 + $0x232] sm:$0xff]
  %v8473 = vld [vmem:[%s5677 + $0x242] sm:$0xff]
  %v8474 = vld [vmem:[%s5677 + $0x24a] sm:$0xff]
  %v8475 = vld [vmem:[%s5677 + $0x25a] sm:$0xff]
  %v8476 = vld [vmem:[%s5677 + $0x262] sm:$0xff]
  %v8477 = vld [vmem:[%s5677 + $0x272] sm:$0xff]
  %v8478 = vld [vmem:[%s5677 + $0x27a] sm:$0xff]
  %v8479 = vld [vmem:[%s5677 + $0x28a] sm:$0xff]
  %v8480 = vld [vmem:[%s5677 + $0x292] sm:$0xff]
  %v8481 = vld [vmem:[%s5677 + $0x2a2] sm:$0xff]
  %v8482 = vld [vmem:[%s5677 + $0x2aa] sm:$0xff]
  %v8483 = vld [vmem:[%s5677 + $0x2ba] sm:$0xff]
  %v8484 = vld [vmem:[%s5677 + $0x2c2] sm:$0xff]
  %v8485 = vld [vmem:[%s5677 + $0x2d2] sm:$0xff]
  %v8486 = vld [vmem:[%s5677 + $0x2da] sm:$0xff]
  %v8487 = vld [vmem:[%s5677 + $0x2ea] sm:$0xff]
  %v8488 = vld [vmem:[%s5677 + $0x2f2] sm:$0xff]
  %v8489 = vld [vmem:[%s5677 + $0x302] sm:$0xff]
  %v8490 = vld [vmem:[%s5677 + $0x30a] sm:$0xff]
  %v8491 = vld [vmem:[%s5677 + $0x31a] sm:$0xff]
  %v8492 = vld [vmem:[%s5677 + $0x322] sm:$0xff]
  %v8493 = vpack.c.bf16 %v8430, %v8429
  %v8494 = vpack.c.bf16 %v8432, %v8431
  %v8495 = vpack.c.bf16 %v8434, %v8433
  %v8496 = vpack.c.bf16 %v8436, %v8435
  %v8497 = vpack.c.bf16 %v8438, %v8437
  %v8498 = vpack.c.bf16 %v8440, %v8439
  %v8499 = vpack.c.bf16 %v8442, %v8441
  %v8500 = vpack.c.bf16 %v8444, %v8443
  %v8501 = vpack.c.bf16 %v8446, %v8445
  %v8502 = vpack.c.bf16 %v8448, %v8447
  %v8503 = vpack.c.bf16 %v8450, %v8449
  %v8504 = vpack.c.bf16 %v8452, %v8451
  %v8505 = vpack.c.bf16 %v8454, %v8453
  %v8506 = vpack.c.bf16 %v8456, %v8455
  %v8507 = vpack.c.bf16 %v8458, %v8457
  %v8508 = vpack.c.bf16 %v8460, %v8459
  %v8509 = vpack.c.bf16 %v8462, %v8461
  %v8510 = vpack.c.bf16 %v8464, %v8463
  %v8511 = vpack.c.bf16 %v8466, %v8465
  %v8512 = vpack.c.bf16 %v8468, %v8467
  %v8513 = vpack.c.bf16 %v8470, %v8469
  %v8514 = vpack.c.bf16 %v8472, %v8471
  %v8515 = vpack.c.bf16 %v8474, %v8473
  %v8516 = vpack.c.bf16 %v8476, %v8475
  %v8517 = vpack.c.bf16 %v8478, %v8477
  %v8518 = vpack.c.bf16 %v8480, %v8479
  %v8519 = vpack.c.bf16 %v8482, %v8481
  %v8520 = vpack.c.bf16 %v8484, %v8483
  %v8521 = vpack.c.bf16 %v8486, %v8485
  %v8522 = vpack.c.bf16 %v8488, %v8487
  %v8523 = vpack.c.bf16 %v8490, %v8489
  %v8524 = vpack.c.bf16 %v8492, %v8491
  %s8525 = scalar_lea.vmem %s4, 20
  %v8526 = vld [vmem:[%s8525] sm:$0xf]
  %v8528 = vsel %vm5061, %v8493, 0
  %v8531 = vsel %vm5061, %v8494, 0
  %v8534 = vsel %vm5061, %v8495, 0
  %v8537 = vsel %vm5061, %v8496, 0
  %v8540 = vsel %vm5061, %v8497, 0
  %v8543 = vsel %vm5061, %v8498, 0
  %v8546 = vsel %vm5061, %v8499, 0
  %v8549 = vsel %vm5061, %v8500, 0
  %v8552 = vsel %vm5061, %v8501, 0
  %v8555 = vsel %vm5061, %v8502, 0
  %v8558 = vsel %vm5061, %v8503, 0
  %v8561 = vsel %vm5061, %v8504, 0
  %v8564 = vsel %vm5061, %v8505, 0
  %v8567 = vsel %vm5061, %v8506, 0
  %v8570 = vsel %vm5061, %v8507, 0
  %v8573 = vsel %vm5061, %v8508, 0
  %v8576 = vsel %vm5061, %v8509, 0
  %v8579 = vsel %vm5061, %v8510, 0
  %v8582 = vsel %vm5061, %v8511, 0
  %v8585 = vsel %vm5061, %v8512, 0
  %v8588 = vsel %vm5061, %v8513, 0
  %v8591 = vsel %vm5061, %v8514, 0
  %v8594 = vsel %vm5061, %v8515, 0
  %v8597 = vsel %vm5061, %v8516, 0
  %v8600 = vsel %vm5061, %v8517, 0
  %v8603 = vsel %vm5061, %v8518, 0
  %v8606 = vsel %vm5061, %v8519, 0
  %v8609 = vsel %vm5061, %v8520, 0
  %v8612 = vsel %vm5061, %v8521, 0
  %v8615 = vsel %vm5061, %v8522, 0
  %v8618 = vsel %vm5061, %v8523, 0
  %v8621 = vsel %vm5061, %v8524, 0
  %v8624 = vsel %vm6098, %v8526, 0
  %8626 = vmatprep.subr.bf16.mxu0 0
  %8627 = vmatpush1.bf16.msra.mxu0 %v8624
  %8628 = vmatprep.subr.bf16.mxu0 0
  %8629 = vmatpush1.bf16.msra.mxu0 0
  %8630 = vmatprep.subr.bf16.mxu0 0
  %8631 = vmatpush1.bf16.msra.mxu0 0
  %8632 = vmatprep.subr.bf16.mxu0 0
  %8633 = vmatpush1.bf16.msra.mxu0 0
  %8634 = vmatprep.subr.bf16.mxu0 0
  %8635 = vmatpush1.bf16.msra.mxu0 0
  %8636 = vmatprep.subr.bf16.mxu0 0
  %8637 = vmatpush1.bf16.msra.mxu0 0
  %8638 = vmatprep.subr.bf16.mxu0 0
  %8639 = vmatpush1.bf16.msra.mxu0 0
  %8640 = vmatprep.subr.bf16.mxu0 0
  %8641 = vmatpush1.bf16.msra.mxu0 0
  %8642 = vmatprep.subr.bf16.mxu0 0
  %8643 = vmatpush1.bf16.msra.mxu0 0
  %8644 = vmatprep.subr.bf16.mxu0 0
  %8645 = vmatpush1.bf16.msra.mxu0 0
  %8646 = vmatprep.subr.bf16.mxu0 0
  %8647 = vmatpush1.bf16.msra.mxu0 0
  %8648 = vmatprep.subr.bf16.mxu0 0
  %8649 = vmatpush1.bf16.msra.mxu0 0
  %8650 = vmatprep.subr.bf16.mxu0 0
  %8651 = vmatpush1.bf16.msra.mxu0 0
  %8652 = vmatprep.subr.bf16.mxu0 0
  %8653 = vmatpush1.bf16.msra.mxu0 0
  %8654 = vmatprep.subr.bf16.mxu0 0
  %8655 = vmatpush1.bf16.msra.mxu0 0
  %8656 = vmatprep.subr.bf16.mxu0 0
  %8657 = vmatpush1.bf16.msra.mxu0 0
  %8658 = vmatprep.mubr.bf16.mxu0 0
  %8659 = vmatmul.mubr.bf16.gmra.mrb[0].mxu0 %v8528
  %v8660 = vpop.f32.mrb[0].mxu0
  %v8661 = vadd.f32 0.0, %v8660
  %v8662 = vpop.f32.mrb[0].mxu0
  %v8663 = vpop.f32.mrb[0].mxu0
  %v8664 = vadd.f32 0.0, %v8663
  %v8665 = vpop.f32.mrb[0].mxu0
  %8666 = vmatprep.mubr.bf16.mxu0 0
  %8667 = vmatmul.mubr.bf16.gmra.mrb[0].mxu0 %v8531
  %v8668 = vpop.f32.mrb[0].mxu0
  %v8669 = vadd.f32 0.0, %v8668
  %v8670 = vpop.f32.mrb[0].mxu0
  %v8671 = vpop.f32.mrb[0].mxu0
  %v8672 = vadd.f32 0.0, %v8671
  %v8673 = vpop.f32.mrb[0].mxu0
  %8674 = vmatprep.mubr.bf16.mxu0 0
  %8675 = vmatmul.mubr.bf16.gmra.mrb[0].mxu0 %v8534
  %v8676 = vpop.f32.mrb[0].mxu0
  %v8677 = vadd.f32 0.0, %v8676
  %v8678 = vpop.f32.mrb[0].mxu0
  %v8679 = vpop.f32.mrb[0].mxu0
  %v8680 = vadd.f32 0.0, %v8679
  %v8681 = vpop.f32.mrb[0].mxu0
  %8682 = vmatprep.mubr.bf16.mxu0 0
  %8683 = vmatmul.mubr.bf16.gmra.mrb[0].mxu0 %v8537
  %v8684 = vpop.f32.mrb[0].mxu0
  %v8685 = vadd.f32 0.0, %v8684
  %v8686 = vpop.f32.mrb[0].mxu0
  %v8687 = vpop.f32.mrb[0].mxu0
  %v8688 = vadd.f32 0.0, %v8687
  %v8689 = vpop.f32.mrb[0].mxu0
  %8690 = vmatprep.mubr.bf16.mxu0 0
  %8691 = vmatmul.mubr.bf16.gmra.mrb[0].mxu0 %v8540
  %v8692 = vpop.f32.mrb[0].mxu0
  %v8693 = vadd.f32 0.0, %v8692
  %v8694 = vpop.f32.mrb[0].mxu0
  %v8695 = vpop.f32.mrb[0].mxu0
  %v8696 = vadd.f32 0.0, %v8695
  %v8697 = vpop.f32.mrb[0].mxu0
  %8698 = vmatprep.mubr.bf16.mxu0 0
  %8699 = vmatmul.mubr.bf16.gmra.mrb[0].mxu0 %v8543
  %v8700 = vpop.f32.mrb[0].mxu0
  %v8701 = vadd.f32 0.0, %v8700
  %v8702 = vpop.f32.mrb[0].mxu0
  %v8703 = vpop.f32.mrb[0].mxu0
  %v8704 = vadd.f32 0.0, %v8703
  %v8705 = vpop.f32.mrb[0].mxu0
  %8706 = vmatprep.mubr.bf16.mxu0 0
  %8707 = vmatmul.mubr.bf16.gmra.mrb[0].mxu0 %v8546
  %v8708 = vpop.f32.mrb[0].mxu0
  %v8709 = vadd.f32 0.0, %v8708
  %v8710 = vpop.f32.mrb[0].mxu0
  %v8711 = vpop.f32.mrb[0].mxu0
  %v8712 = vadd.f32 0.0, %v8711
  %v8713 = vpop.f32.mrb[0].mxu0
  %8714 = vmatprep.mubr.bf16.mxu0 0
  %8715 = vmatmul.mubr.bf16.gmra.mrb[0].mxu0 %v8549
  %v8716 = vpop.f32.mrb[0].mxu0
  %v8717 = vadd.f32 0.0, %v8716
  %v8718 = vpop.f32.mrb[0].mxu0
  %v8719 = vpop.f32.mrb[0].mxu0
  %v8720 = vadd.f32 0.0, %v8719
  %v8721 = vpop.f32.mrb[0].mxu0
  %8722 = vmatprep.mubr.bf16.mxu0 0
  %8723 = vmatmul.mubr.bf16.gmra.mrb[0].mxu0 %v8552
  %v8724 = vpop.f32.mrb[0].mxu0
  %v8725 = vadd.f32 0.0, %v8724
  %v8726 = vpop.f32.mrb[0].mxu0
  %v8727 = vpop.f32.mrb[0].mxu0
  %v8728 = vadd.f32 0.0, %v8727
  %v8729 = vpop.f32.mrb[0].mxu0
  %8730 = vmatprep.mubr.bf16.mxu0 0
  %8731 = vmatmul.mubr.bf16.gmra.mrb[0].mxu0 %v8555
  %v8732 = vpop.f32.mrb[0].mxu0
  %v8733 = vadd.f32 0.0, %v8732
  %v8734 = vpop.f32.mrb[0].mxu0
  %v8735 = vpop.f32.mrb[0].mxu0
  %v8736 = vadd.f32 0.0, %v8735
  %v8737 = vpop.f32.mrb[0].mxu0
  %8738 = vmatprep.mubr.bf16.mxu0 0
  %8739 = vmatmul.mubr.bf16.gmra.mrb[0].mxu0 %v8558
  %v8740 = vpop.f32.mrb[0].mxu0
  %v8741 = vadd.f32 0.0, %v8740
  %v8742 = vpop.f32.mrb[0].mxu0
  %v8743 = vpop.f32.mrb[0].mxu0
  %v8744 = vadd.f32 0.0, %v8743
  %v8745 = vpop.f32.mrb[0].mxu0
  %8746 = vmatprep.mubr.bf16.mxu0 0
  %8747 = vmatmul.mubr.bf16.gmra.mrb[0].mxu0 %v8561
  %v8748 = vpop.f32.mrb[0].mxu0
  %v8749 = vadd.f32 0.0, %v8748
  %v8750 = vpop.f32.mrb[0].mxu0
  %v8751 = vpop.f32.mrb[0].mxu0
  %v8752 = vadd.f32 0.0, %v8751
  %v8753 = vpop.f32.mrb[0].mxu0
  %8754 = vmatprep.mubr.bf16.mxu0 0
  %8755 = vmatmul.mubr.bf16.gmra.mrb[0].mxu0 %v8564
  %v8756 = vpop.f32.mrb[0].mxu0
  %v8757 = vadd.f32 0.0, %v8756
  %v8758 = vpop.f32.mrb[0].mxu0
  %v8759 = vpop.f32.mrb[0].mxu0
  %v8760 = vadd.f32 0.0, %v8759
  %v8761 = vpop.f32.mrb[0].mxu0
  %8762 = vmatprep.mubr.bf16.mxu0 0
  %8763 = vmatmul.mubr.bf16.gmra.mrb[0].mxu0 %v8567
  %v8764 = vpop.f32.mrb[0].mxu0
  %v8765 = vadd.f32 0.0, %v8764
  %v8766 = vpop.f32.mrb[0].mxu0
  %v8767 = vpop.f32.mrb[0].mxu0
  %v8768 = vadd.f32 0.0, %v8767
  %v8769 = vpop.f32.mrb[0].mxu0
  %8770 = vmatprep.mubr.bf16.mxu0 0
  %8771 = vmatmul.mubr.bf16.gmra.mrb[0].mxu0 %v8570
  %v8772 = vpop.f32.mrb[0].mxu0
  %v8773 = vadd.f32 0.0, %v8772
  %v8774 = vpop.f32.mrb[0].mxu0
  %v8775 = vpop.f32.mrb[0].mxu0
  %v8776 = vadd.f32 0.0, %v8775
  %v8777 = vpop.f32.mrb[0].mxu0
  %8778 = vmatprep.mubr.bf16.mxu0 0
  %8779 = vmatmul.mubr.bf16.gmra.mrb[0].mxu0 %v8573
  %v8780 = vpop.f32.mrb[0].mxu0
  %v8781 = vadd.f32 0.0, %v8780
  %v8782 = vpop.f32.mrb[0].mxu0
  %v8783 = vpop.f32.mrb[0].mxu0
  %v8784 = vadd.f32 0.0, %v8783
  %v8785 = vpop.f32.mrb[0].mxu0
  %8786 = vmatprep.mubr.bf16.mxu0 0
  %8787 = vmatmul.mubr.bf16.gmra.mrb[0].mxu0 %v8576
  %v8788 = vpop.f32.mrb[0].mxu0
  %v8789 = vadd.f32 0.0, %v8788
  %v8790 = vpop.f32.mrb[0].mxu0
  %v8791 = vpop.f32.mrb[0].mxu0
  %v8792 = vadd.f32 0.0, %v8791
  %v8793 = vpop.f32.mrb[0].mxu0
  %8794 = vmatprep.mubr.bf16.mxu0 0
  %8795 = vmatmul.mubr.bf16.gmra.mrb[0].mxu0 %v8579
  %v8796 = vpop.f32.mrb[0].mxu0
  %v8797 = vadd.f32 0.0, %v8796
  %v8798 = vpop.f32.mrb[0].mxu0
  %v8799 = vpop.f32.mrb[0].mxu0
  %v8800 = vadd.f32 0.0, %v8799
  %v8801 = vpop.f32.mrb[0].mxu0
  %8802 = vmatprep.mubr.bf16.mxu0 0
  %8803 = vmatmul.mubr.bf16.gmra.mrb[0].mxu0 %v8582
  %v8804 = vpop.f32.mrb[0].mxu0
  %v8805 = vadd.f32 0.0, %v8804
  %v8806 = vpop.f32.mrb[0].mxu0
  %v8807 = vpop.f32.mrb[0].mxu0
  %v8808 = vadd.f32 0.0, %v8807
  %v8809 = vpop.f32.mrb[0].mxu0
  %8810 = vmatprep.mubr.bf16.mxu0 0
  %8811 = vmatmul.mubr.bf16.gmra.mrb[0].mxu0 %v8585
  %v8812 = vpop.f32.mrb[0].mxu0
  %v8813 = vadd.f32 0.0, %v8812
  %v8814 = vpop.f32.mrb[0].mxu0
  %v8815 = vpop.f32.mrb[0].mxu0
  %v8816 = vadd.f32 0.0, %v8815
  %v8817 = vpop.f32.mrb[0].mxu0
  %8818 = vmatprep.mubr.bf16.mxu0 0
  %8819 = vmatmul.mubr.bf16.gmra.mrb[0].mxu0 %v8588
  %v8820 = vpop.f32.mrb[0].mxu0
  %v8821 = vadd.f32 0.0, %v8820
  %v8822 = vpop.f32.mrb[0].mxu0
  %v8823 = vpop.f32.mrb[0].mxu0
  %v8824 = vadd.f32 0.0, %v8823
  %v8825 = vpop.f32.mrb[0].mxu0
  %8826 = vmatprep.mubr.bf16.mxu0 0
  %8827 = vmatmul.mubr.bf16.gmra.mrb[0].mxu0 %v8591
  %v8828 = vpop.f32.mrb[0].mxu0
  %v8829 = vadd.f32 0.0, %v8828
  %v8830 = vpop.f32.mrb[0].mxu0
  %v8831 = vpop.f32.mrb[0].mxu0
  %v8832 = vadd.f32 0.0, %v8831
  %v8833 = vpop.f32.mrb[0].mxu0
  %8834 = vmatprep.mubr.bf16.mxu0 0
  %8835 = vmatmul.mubr.bf16.gmra.mrb[0].mxu0 %v8594
  %v8836 = vpop.f32.mrb[0].mxu0
  %v8837 = vadd.f32 0.0, %v8836
  %v8838 = vpop.f32.mrb[0].mxu0
  %v8839 = vpop.f32.mrb[0].mxu0
  %v8840 = vadd.f32 0.0, %v8839
  %v8841 = vpop.f32.mrb[0].mxu0
  %8842 = vmatprep.mubr.bf16.mxu0 0
  %8843 = vmatmul.mubr.bf16.gmra.mrb[0].mxu0 %v8597
  %v8844 = vpop.f32.mrb[0].mxu0
  %v8845 = vadd.f32 0.0, %v8844
  %v8846 = vpop.f32.mrb[0].mxu0
  %v8847 = vpop.f32.mrb[0].mxu0
  %v8848 = vadd.f32 0.0, %v8847
  %v8849 = vpop.f32.mrb[0].mxu0
  %8850 = vmatprep.mubr.bf16.mxu0 0
  %8851 = vmatmul.mubr.bf16.gmra.mrb[0].mxu0 %v8600
  %v8852 = vpop.f32.mrb[0].mxu0
  %v8853 = vadd.f32 0.0, %v8852
  %v8854 = vpop.f32.mrb[0].mxu0
  %v8855 = vpop.f32.mrb[0].mxu0
  %v8856 = vadd.f32 0.0, %v8855
  %v8857 = vpop.f32.mrb[0].mxu0
  %8858 = vmatprep.mubr.bf16.mxu0 0
  %8859 = vmatmul.mubr.bf16.gmra.mrb[0].mxu0 %v8603
  %v8860 = vpop.f32.mrb[0].mxu0
  %v8861 = vadd.f32 0.0, %v8860
  %v8862 = vpop.f32.mrb[0].mxu0
  %v8863 = vpop.f32.mrb[0].mxu0
  %v8864 = vadd.f32 0.0, %v8863
  %v8865 = vpop.f32.mrb[0].mxu0
  %8866 = vmatprep.mubr.bf16.mxu0 0
  %8867 = vmatmul.mubr.bf16.gmra.mrb[0].mxu0 %v8606
  %v8868 = vpop.f32.mrb[0].mxu0
  %v8869 = vadd.f32 0.0, %v8868
  %v8870 = vpop.f32.mrb[0].mxu0
  %v8871 = vpop.f32.mrb[0].mxu0
  %v8872 = vadd.f32 0.0, %v8871
  %v8873 = vpop.f32.mrb[0].mxu0
  %8874 = vmatprep.mubr.bf16.mxu0 0
  %8875 = vmatmul.mubr.bf16.gmra.mrb[0].mxu0 %v8609
  %v8876 = vpop.f32.mrb[0].mxu0
  %v8877 = vadd.f32 0.0, %v8876
  %v8878 = vpop.f32.mrb[0].mxu0
  %v8879 = vpop.f32.mrb[0].mxu0
  %v8880 = vadd.f32 0.0, %v8879
  %v8881 = vpop.f32.mrb[0].mxu0
  %8882 = vmatprep.mubr.bf16.mxu0 0
  %8883 = vmatmul.mubr.bf16.gmra.mrb[0].mxu0 %v8612
  %v8884 = vpop.f32.mrb[0].mxu0
  %v8885 = vadd.f32 0.0, %v8884
  %v8886 = vpop.f32.mrb[0].mxu0
  %v8887 = vpop.f32.mrb[0].mxu0
  %v8888 = vadd.f32 0.0, %v8887
  %v8889 = vpop.f32.mrb[0].mxu0
  %8890 = vmatprep.mubr.bf16.mxu0 0
  %8891 = vmatmul.mubr.bf16.gmra.mrb[0].mxu0 %v8615
  %v8892 = vpop.f32.mrb[0].mxu0
  %v8893 = vadd.f32 0.0, %v8892
  %v8894 = vpop.f32.mrb[0].mxu0
  %v8895 = vpop.f32.mrb[0].mxu0
  %v8896 = vadd.f32 0.0, %v8895
  %v8897 = vpop.f32.mrb[0].mxu0
  %8898 = vmatprep.mubr.bf16.mxu0 0
  %8899 = vmatmul.mubr.bf16.gmra.mrb[0].mxu0 %v8618
  %v8900 = vpop.f32.mrb[0].mxu0
  %v8901 = vadd.f32 0.0, %v8900
  %v8902 = vpop.f32.mrb[0].mxu0
  %v8903 = vpop.f32.mrb[0].mxu0
  %v8904 = vadd.f32 0.0, %v8903
  %v8905 = vpop.f32.mrb[0].mxu0
  %8906 = vmatprep.mubr.bf16.mxu0 0
  %8907 = vmatmul.mubr.bf16.gmra.mrb[0].mxu0 %v8621
  %v8908 = vpop.f32.mrb[0].mxu0
  %v8909 = vadd.f32 0.0, %v8908
  %v8910 = vpop.f32.mrb[0].mxu0
  %v8911 = vpop.f32.mrb[0].mxu0
  %v8912 = vadd.f32 0.0, %v8911
  %v8913 = vpop.f32.mrb[0].mxu0
  %8914 = vdwg.mxu0
  %v8915 = vadd.f32 %v8365, %v8661
  %v8916 = vadd.f32 %v8366, %v8664
  %v8917 = vadd.f32 %v8367, %v8669
  %v8918 = vadd.f32 %v8368, %v8672
  %v8919 = vadd.f32 %v8369, %v8677
  %v8920 = vadd.f32 %v8370, %v8680
  %v8921 = vadd.f32 %v8371, %v8685
  %v8922 = vadd.f32 %v8372, %v8688
  %v8923 = vadd.f32 %v8373, %v8693
  %v8924 = vadd.f32 %v8374, %v8696
  %v8925 = vadd.f32 %v8375, %v8701
  %v8926 = vadd.f32 %v8376, %v8704
  %v8927 = vadd.f32 %v8377, %v8709
  %v8928 = vadd.f32 %v8378, %v8712
  %v8929 = vadd.f32 %v8379, %v8717
  %v8930 = vadd.f32 %v8380, %v8720
  %v8931 = vadd.f32 %v8381, %v8725
  %v8932 = vadd.f32 %v8382, %v8728
  %v8933 = vadd.f32 %v8383, %v8733
  %v8934 = vadd.f32 %v8384, %v8736
  %v8935 = vadd.f32 %v8385, %v8741
  %v8936 = vadd.f32 %v8386, %v8744
  %v8937 = vadd.f32 %v8387, %v8749
  %v8938 = vadd.f32 %v8388, %v8752
  %v8939 = vadd.f32 %v8389, %v8757
  %v8940 = vadd.f32 %v8390, %v8760
  %v8941 = vadd.f32 %v8391, %v8765
  %v8942 = vadd.f32 %v8392, %v8768
  %v8943 = vadd.f32 %v8393, %v8773
  %v8944 = vadd.f32 %v8394, %v8776
  %v8945 = vadd.f32 %v8395, %v8781
  %v8946 = vadd.f32 %v8396, %v8784
  %v8947 = vadd.f32 %v8397, %v8789
  %v8948 = vadd.f32 %v8398, %v8792
  %v8949 = vadd.f32 %v8399, %v8797
  %v8950 = vadd.f32 %v8400, %v8800
  %v8951 = vadd.f32 %v8401, %v8805
  %v8952 = vadd.f32 %v8402, %v8808
  %v8953 = vadd.f32 %v8403, %v8813
  %v8954 = vadd.f32 %v8404, %v8816
  %v8955 = vadd.f32 %v8405, %v8821
  %v8956 = vadd.f32 %v8406, %v8824
  %v8957 = vadd.f32 %v8407, %v8829
  %v8958 = vadd.f32 %v8408, %v8832
  %v8959 = vadd.f32 %v8409, %v8837
  %v8960 = vadd.f32 %v8410, %v8840
  %v8961 = vadd.f32 %v8411, %v8845
  %v8962 = vadd.f32 %v8412, %v8848
  %v8963 = vadd.f32 %v8413, %v8853
  %v8964 = vadd.f32 %v8414, %v8856
  %v8965 = vadd.f32 %v8415, %v8861
  %v8966 = vadd.f32 %v8416, %v8864
  %v8967 = vadd.f32 %v8417, %v8869
  %v8968 = vadd.f32 %v8418, %v8872
  %v8969 = vadd.f32 %v8419, %v8877
  %v8970 = vadd.f32 %v8420, %v8880
  %v8971 = vadd.f32 %v8421, %v8885
  %v8972 = vadd.f32 %v8422, %v8888
  %v8973 = vadd.f32 %v8423, %v8893
  %v8974 = vadd.f32 %v8424, %v8896
  %v8975 = vadd.f32 %v8425, %v8901
  %v8976 = vadd.f32 %v8426, %v8904
  %v8977 = vadd.f32 %v8427, %v8909
  %v8978 = vadd.f32 %v8428, %v8912
  %s8979 = scalar_lea.vmem [#allocation3], 48
  %v8980 = vld [vmem:[%s8979] sm:$0xff]
  %v8981 = vld [vmem:[%s8979 + $0x8] sm:$0xff]
  %v8982 = vld [vmem:[%s8979 + $0x18] sm:$0xff]
  %v8983 = vld [vmem:[%s8979 + $0x20] sm:$0xff]
  %v8984 = vld [vmem:[%s8979 + $0x30] sm:$0xff]
  %v8985 = vld [vmem:[%s8979 + $0x38] sm:$0xff]
  %v8986 = vld [vmem:[%s8979 + $0x48] sm:$0xff]
  %v8987 = vld [vmem:[%s8979 + $0x50] sm:$0xff]
  %v8988 = vld [vmem:[%s8979 + $0x60] sm:$0xff]
  %v8989 = vld [vmem:[%s8979 + $0x68] sm:$0xff]
  %v8990 = vld [vmem:[%s8979 + $0x78] sm:$0xff]
  %v8991 = vld [vmem:[%s8979 + $0x80] sm:$0xff]
  %v8992 = vld [vmem:[%s8979 + $0x90] sm:$0xff]
  %v8993 = vld [vmem:[%s8979 + $0x98] sm:$0xff]
  %v8994 = vld [vmem:[%s8979 + $0xa8] sm:$0xff]
  %v8995 = vld [vmem:[%s8979 + $0xb0] sm:$0xff]
  %v8996 = vld [vmem:[%s8979 + $0xc0] sm:$0xff]
  %v8997 = vld [vmem:[%s8979 + $0xc8] sm:$0xff]
  %v8998 = vld [vmem:[%s8979 + $0xd8] sm:$0xff]
  %v8999 = vld [vmem:[%s8979 + $0xe0] sm:$0xff]
  %v9000 = vld [vmem:[%s8979 + $0xf0] sm:$0xff]
  %v9001 = vld [vmem:[%s8979 + $0xf8] sm:$0xff]
  %v9002 = vld [vmem:[%s8979 + $0x108] sm:$0xff]
  %v9003 = vld [vmem:[%s8979 + $0x110] sm:$0xff]
  %v9004 = vld [vmem:[%s8979 + $0x120] sm:$0xff]
  %v9005 = vld [vmem:[%s8979 + $0x128] sm:$0xff]
  %v9006 = vld [vmem:[%s8979 + $0x138] sm:$0xff]
  %v9007 = vld [vmem:[%s8979 + $0x140] sm:$0xff]
  %v9008 = vld [vmem:[%s8979 + $0x150] sm:$0xff]
  %v9009 = vld [vmem:[%s8979 + $0x158] sm:$0xff]
  %v9010 = vld [vmem:[%s8979 + $0x168] sm:$0xff]
  %v9011 = vld [vmem:[%s8979 + $0x170] sm:$0xff]
  %v9012 = vld [vmem:[%s8979 + $0x1b0] sm:$0xff]
  %v9013 = vld [vmem:[%s8979 + $0x1b8] sm:$0xff]
  %v9014 = vld [vmem:[%s8979 + $0x1c8] sm:$0xff]
  %v9015 = vld [vmem:[%s8979 + $0x1d0] sm:$0xff]
  %v9016 = vld [vmem:[%s8979 + $0x1e0] sm:$0xff]
  %v9017 = vld [vmem:[%s8979 + $0x1e8] sm:$0xff]
  %v9018 = vld [vmem:[%s8979 + $0x1f8] sm:$0xff]
  %v9019 = vld [vmem:[%s8979 + $0x200] sm:$0xff]
  %v9020 = vld [vmem:[%s8979 + $0x210] sm:$0xff]
  %v9021 = vld [vmem:[%s8979 + $0x218] sm:$0xff]
  %v9022 = vld [vmem:[%s8979 + $0x228] sm:$0xff]
  %v9023 = vld [vmem:[%s8979 + $0x230] sm:$0xff]
  %v9024 = vld [vmem:[%s8979 + $0x240] sm:$0xff]
  %v9025 = vld [vmem:[%s8979 + $0x248] sm:$0xff]
  %v9026 = vld [vmem:[%s8979 + $0x258] sm:$0xff]
  %v9027 = vld [vmem:[%s8979 + $0x260] sm:$0xff]
  %v9028 = vld [vmem:[%s8979 + $0x270] sm:$0xff]
  %v9029 = vld [vmem:[%s8979 + $0x278] sm:$0xff]
  %v9030 = vld [vmem:[%s8979 + $0x288] sm:$0xff]
  %v9031 = vld [vmem:[%s8979 + $0x290] sm:$0xff]
  %v9032 = vld [vmem:[%s8979 + $0x2a0] sm:$0xff]
  %v9033 = vld [vmem:[%s8979 + $0x2a8] sm:$0xff]
  %v9034 = vld [vmem:[%s8979 + $0x2b8] sm:$0xff]
  %v9035 = vld [vmem:[%s8979 + $0x2c0] sm:$0xff]
  %v9036 = vld [vmem:[%s8979 + $0x2d0] sm:$0xff]
  %v9037 = vld [vmem:[%s8979 + $0x2d8] sm:$0xff]
  %v9038 = vld [vmem:[%s8979 + $0x2e8] sm:$0xff]
  %v9039 = vld [vmem:[%s8979 + $0x2f0] sm:$0xff]
  %v9040 = vld [vmem:[%s8979 + $0x300] sm:$0xff]
  %v9041 = vld [vmem:[%s8979 + $0x308] sm:$0xff]
  %v9042 = vld [vmem:[%s8979 + $0x318] sm:$0xff]
  %v9043 = vld [vmem:[%s8979 + $0x320] sm:$0xff]
  %v9044 = vpack.c.bf16 %v8981, %v8980
  %v9045 = vpack.c.bf16 %v8983, %v8982
  %v9046 = vpack.c.bf16 %v8985, %v8984
  %v9047 = vpack.c.bf16 %v8987, %v8986
  %v9048 = vpack.c.bf16 %v8989, %v8988
  %v9049 = vpack.c.bf16 %v8991, %v8990
  %v9050 = vpack.c.bf16 %v8993, %v8992
  %v9051 = vpack.c.bf16 %v8995, %v8994
  %v9052 = vpack.c.bf16 %v8997, %v8996
  %v9053 = vpack.c.bf16 %v8999, %v8998
  %v9054 = vpack.c.bf16 %v9001, %v9000
  %v9055 = vpack.c.bf16 %v9003, %v9002
  %v9056 = vpack.c.bf16 %v9005, %v9004
  %v9057 = vpack.c.bf16 %v9007, %v9006
  %v9058 = vpack.c.bf16 %v9009, %v9008
  %v9059 = vpack.c.bf16 %v9011, %v9010
  %v9060 = vpack.c.bf16 %v9013, %v9012
  %v9061 = vpack.c.bf16 %v9015, %v9014
  %v9062 = vpack.c.bf16 %v9017, %v9016
  %v9063 = vpack.c.bf16 %v9019, %v9018
  %v9064 = vpack.c.bf16 %v9021, %v9020
  %v9065 = vpack.c.bf16 %v9023, %v9022
  %v9066 = vpack.c.bf16 %v9025, %v9024
  %v9067 = vpack.c.bf16 %v9027, %v9026
  %v9068 = vpack.c.bf16 %v9029, %v9028
  %v9069 = vpack.c.bf16 %v9031, %v9030
  %v9070 = vpack.c.bf16 %v9033, %v9032
  %v9071 = vpack.c.bf16 %v9035, %v9034
  %v9072 = vpack.c.bf16 %v9037, %v9036
  %v9073 = vpack.c.bf16 %v9039, %v9038
  %v9074 = vpack.c.bf16 %v9041, %v9040
  %v9075 = vpack.c.bf16 %v9043, %v9042
  %s9076 = scalar_lea.vmem %s4, 24
  %v9077 = vld [vmem:[%s9076] sm:$0xf]
  %v9079 = vsel %vm5061, %v9044, 0
  %v9082 = vsel %vm5061, %v9045, 0
  %v9085 = vsel %vm5061, %v9046, 0
  %v9088 = vsel %vm5061, %v9047, 0
  %v9091 = vsel %vm5061, %v9048, 0
  %v9094 = vsel %vm5061, %v9049, 0
  %v9097 = vsel %vm5061, %v9050, 0
  %v9100 = vsel %vm5061, %v9051, 0
  %v9103 = vsel %vm5061, %v9052, 0
  %v9106 = vsel %vm5061, %v9053, 0
  %v9109 = vsel %vm5061, %v9054, 0
  %v9112 = vsel %vm5061, %v9055, 0
  %v9115 = vsel %vm5061, %v9056, 0
  %v9118 = vsel %vm5061, %v9057, 0
  %v9121 = vsel %vm5061, %v9058, 0
  %v9124 = vsel %vm5061, %v9059, 0
  %v9127 = vsel %vm5061, %v9060, 0
  %v9130 = vsel %vm5061, %v9061, 0
  %v9133 = vsel %vm5061, %v9062, 0
  %v9136 = vsel %vm5061, %v9063, 0
  %v9139 = vsel %vm5061, %v9064, 0
  %v9142 = vsel %vm5061, %v9065, 0
  %v9145 = vsel %vm5061, %v9066, 0
  %v9148 = vsel %vm5061, %v9067, 0
  %v9151 = vsel %vm5061, %v9068, 0
  %v9154 = vsel %vm5061, %v9069, 0
  %v9157 = vsel %vm5061, %v9070, 0
  %v9160 = vsel %vm5061, %v9071, 0
  %v9163 = vsel %vm5061, %v9072, 0
  %v9166 = vsel %vm5061, %v9073, 0
  %v9169 = vsel %vm5061, %v9074, 0
  %v9172 = vsel %vm5061, %v9075, 0
  %v9175 = vsel %vm6098, %v9077, 0
  %9177 = vmatprep.subr.bf16.mxu0 0
  %9178 = vmatpush1.bf16.msra.mxu0 %v9175
  %9179 = vmatprep.subr.bf16.mxu0 0
  %9180 = vmatpush1.bf16.msra.mxu0 0
  %9181 = vmatprep.subr.bf16.mxu0 0
  %9182 = vmatpush1.bf16.msra.mxu0 0
  %9183 = vmatprep.subr.bf16.mxu0 0
  %9184 = vmatpush1.bf16.msra.mxu0 0
  %9185 = vmatprep.subr.bf16.mxu0 0
  %9186 = vmatpush1.bf16.msra.mxu0 0
  %9187 = vmatprep.subr.bf16.mxu0 0
  %9188 = vmatpush1.bf16.msra.mxu0 0
  %9189 = vmatprep.subr.bf16.mxu0 0
  %9190 = vmatpush1.bf16.msra.mxu0 0
  %9191 = vmatprep.subr.bf16.mxu0 0
  %9192 = vmatpush1.bf16.msra.mxu0 0
  %9193 = vmatprep.subr.bf16.mxu0 0
  %9194 = vmatpush1.bf16.msra.mxu0 0
  %9195 = vmatprep.subr.bf16.mxu0 0
  %9196 = vmatpush1.bf16.msra.mxu0 0
  %9197 = vmatprep.subr.bf16.mxu0 0
  %9198 = vmatpush1.bf16.msra.mxu0 0
  %9199 = vmatprep.subr.bf16.mxu0 0
  %9200 = vmatpush1.bf16.msra.mxu0 0
  %9201 = vmatprep.subr.bf16.mxu0 0
  %9202 = vmatpush1.bf16.msra.mxu0 0
  %9203 = vmatprep.subr.bf16.mxu0 0
  %9204 = vmatpush1.bf16.msra.mxu0 0
  %9205 = vmatprep.subr.bf16.mxu0 0
  %9206 = vmatpush1.bf16.msra.mxu0 0
  %9207 = vmatprep.subr.bf16.mxu0 0
  %9208 = vmatpush1.bf16.msra.mxu0 0
  %9209 = vmatprep.mubr.bf16.mxu0 0
  %9210 = vmatmul.mubr.bf16.gmra.mrb[0].mxu0 %v9079
  %v9211 = vpop.f32.mrb[0].mxu0
  %v9212 = vadd.f32 0.0, %v9211
  %v9213 = vpop.f32.mrb[0].mxu0
  %v9214 = vpop.f32.mrb[0].mxu0
  %v9215 = vadd.f32 0.0, %v9214
  %v9216 = vpop.f32.mrb[0].mxu0
  %9217 = vmatprep.mubr.bf16.mxu0 0
  %9218 = vmatmul.mubr.bf16.gmra.mrb[0].mxu0 %v9082
  %v9219 = vpop.f32.mrb[0].mxu0
  %v9220 = vadd.f32 0.0, %v9219
  %v9221 = vpop.f32.mrb[0].mxu0
  %v9222 = vpop.f32.mrb[0].mxu0
  %v9223 = vadd.f32 0.0, %v9222
  %v9224 = vpop.f32.mrb[0].mxu0
  %9225 = vmatprep.mubr.bf16.mxu0 0
  %9226 = vmatmul.mubr.bf16.gmra.mrb[0].mxu0 %v9085
  %v9227 = vpop.f32.mrb[0].mxu0
  %v9228 = vadd.f32 0.0, %v9227
  %v9229 = vpop.f32.mrb[0].mxu0
  %v9230 = vpop.f32.mrb[0].mxu0
  %v9231 = vadd.f32 0.0, %v9230
  %v9232 = vpop.f32.mrb[0].mxu0
  %9233 = vmatprep.mubr.bf16.mxu0 0
  %9234 = vmatmul.mubr.bf16.gmra.mrb[0].mxu0 %v9088
  %v9235 = vpop.f32.mrb[0].mxu0
  %v9236 = vadd.f32 0.0, %v9235
  %v9237 = vpop.f32.mrb[0].mxu0
  %v9238 = vpop.f32.mrb[0].mxu0
  %v9239 = vadd.f32 0.0, %v9238
  %v9240 = vpop.f32.mrb[0].mxu0
  %9241 = vmatprep.mubr.bf16.mxu0 0
  %9242 = vmatmul.mubr.bf16.gmra.mrb[0].mxu0 %v9091
  %v9243 = vpop.f32.mrb[0].mxu0
  %v9244 = vadd.f32 0.0, %v9243
  %v9245 = vpop.f32.mrb[0].mxu0
  %v9246 = vpop.f32.mrb[0].mxu0
  %v9247 = vadd.f32 0.0, %v9246
  %v9248 = vpop.f32.mrb[0].mxu0
  %9249 = vmatprep.mubr.bf16.mxu0 0
  %9250 = vmatmul.mubr.bf16.gmra.mrb[0].mxu0 %v9094
  %v9251 = vpop.f32.mrb[0].mxu0
  %v9252 = vadd.f32 0.0, %v9251
  %v9253 = vpop.f32.mrb[0].mxu0
  %v9254 = vpop.f32.mrb[0].mxu0
  %v9255 = vadd.f32 0.0, %v9254
  %v9256 = vpop.f32.mrb[0].mxu0
  %9257 = vmatprep.mubr.bf16.mxu0 0
  %9258 = vmatmul.mubr.bf16.gmra.mrb[0].mxu0 %v9097
  %v9259 = vpop.f32.mrb[0].mxu0
  %v9260 = vadd.f32 0.0, %v9259
  %v9261 = vpop.f32.mrb[0].mxu0
  %v9262 = vpop.f32.mrb[0].mxu0
  %v9263 = vadd.f32 0.0, %v9262
  %v9264 = vpop.f32.mrb[0].mxu0
  %9265 = vmatprep.mubr.bf16.mxu0 0
  %9266 = vmatmul.mubr.bf16.gmra.mrb[0].mxu0 %v9100
  %v9267 = vpop.f32.mrb[0].mxu0
  %v9268 = vadd.f32 0.0, %v9267
  %v9269 = vpop.f32.mrb[0].mxu0
  %v9270 = vpop.f32.mrb[0].mxu0
  %v9271 = vadd.f32 0.0, %v9270
  %v9272 = vpop.f32.mrb[0].mxu0
  %9273 = vmatprep.mubr.bf16.mxu0 0
  %9274 = vmatmul.mubr.bf16.gmra.mrb[0].mxu0 %v9103
  %v9275 = vpop.f32.mrb[0].mxu0
  %v9276 = vadd.f32 0.0, %v9275
  %v9277 = vpop.f32.mrb[0].mxu0
  %v9278 = vpop.f32.mrb[0].mxu0
  %v9279 = vadd.f32 0.0, %v9278
  %v9280 = vpop.f32.mrb[0].mxu0
  %9281 = vmatprep.mubr.bf16.mxu0 0
  %9282 = vmatmul.mubr.bf16.gmra.mrb[0].mxu0 %v9106
  %v9283 = vpop.f32.mrb[0].mxu0
  %v9284 = vadd.f32 0.0, %v9283
  %v9285 = vpop.f32.mrb[0].mxu0
  %v9286 = vpop.f32.mrb[0].mxu0
  %v9287 = vadd.f32 0.0, %v9286
  %v9288 = vpop.f32.mrb[0].mxu0
  %9289 = vmatprep.mubr.bf16.mxu0 0
  %9290 = vmatmul.mubr.bf16.gmra.mrb[0].mxu0 %v9109
  %v9291 = vpop.f32.mrb[0].mxu0
  %v9292 = vadd.f32 0.0, %v9291
  %v9293 = vpop.f32.mrb[0].mxu0
  %v9294 = vpop.f32.mrb[0].mxu0
  %v9295 = vadd.f32 0.0, %v9294
  %v9296 = vpop.f32.mrb[0].mxu0
  %9297 = vmatprep.mubr.bf16.mxu0 0
  %9298 = vmatmul.mubr.bf16.gmra.mrb[0].mxu0 %v9112
  %v9299 = vpop.f32.mrb[0].mxu0
  %v9300 = vadd.f32 0.0, %v9299
  %v9301 = vpop.f32.mrb[0].mxu0
  %v9302 = vpop.f32.mrb[0].mxu0
  %v9303 = vadd.f32 0.0, %v9302
  %v9304 = vpop.f32.mrb[0].mxu0
  %9305 = vmatprep.mubr.bf16.mxu0 0
  %9306 = vmatmul.mubr.bf16.gmra.mrb[0].mxu0 %v9115
  %v9307 = vpop.f32.mrb[0].mxu0
  %v9308 = vadd.f32 0.0, %v9307
  %v9309 = vpop.f32.mrb[0].mxu0
  %v9310 = vpop.f32.mrb[0].mxu0
  %v9311 = vadd.f32 0.0, %v9310
  %v9312 = vpop.f32.mrb[0].mxu0
  %9313 = vmatprep.mubr.bf16.mxu0 0
  %9314 = vmatmul.mubr.bf16.gmra.mrb[0].mxu0 %v9118
  %v9315 = vpop.f32.mrb[0].mxu0
  %v9316 = vadd.f32 0.0, %v9315
  %v9317 = vpop.f32.mrb[0].mxu0
  %v9318 = vpop.f32.mrb[0].mxu0
  %v9319 = vadd.f32 0.0, %v9318
  %v9320 = vpop.f32.mrb[0].mxu0
  %9321 = vmatprep.mubr.bf16.mxu0 0
  %9322 = vmatmul.mubr.bf16.gmra.mrb[0].mxu0 %v9121
  %v9323 = vpop.f32.mrb[0].mxu0
  %v9324 = vadd.f32 0.0, %v9323
  %v9325 = vpop.f32.mrb[0].mxu0
  %v9326 = vpop.f32.mrb[0].mxu0
  %v9327 = vadd.f32 0.0, %v9326
  %v9328 = vpop.f32.mrb[0].mxu0
  %9329 = vmatprep.mubr.bf16.mxu0 0
  %9330 = vmatmul.mubr.bf16.gmra.mrb[0].mxu0 %v9124
  %v9331 = vpop.f32.mrb[0].mxu0
  %v9332 = vadd.f32 0.0, %v9331
  %v9333 = vpop.f32.mrb[0].mxu0
  %v9334 = vpop.f32.mrb[0].mxu0
  %v9335 = vadd.f32 0.0, %v9334
  %v9336 = vpop.f32.mrb[0].mxu0
  %9337 = vmatprep.mubr.bf16.mxu0 0
  %9338 = vmatmul.mubr.bf16.gmra.mrb[0].mxu0 %v9127
  %v9339 = vpop.f32.mrb[0].mxu0
  %v9340 = vadd.f32 0.0, %v9339
  %v9341 = vpop.f32.mrb[0].mxu0
  %v9342 = vpop.f32.mrb[0].mxu0
  %v9343 = vadd.f32 0.0, %v9342
  %v9344 = vpop.f32.mrb[0].mxu0
  %9345 = vmatprep.mubr.bf16.mxu0 0
  %9346 = vmatmul.mubr.bf16.gmra.mrb[0].mxu0 %v9130
  %v9347 = vpop.f32.mrb[0].mxu0
  %v9348 = vadd.f32 0.0, %v9347
  %v9349 = vpop.f32.mrb[0].mxu0
  %v9350 = vpop.f32.mrb[0].mxu0
  %v9351 = vadd.f32 0.0, %v9350
  %v9352 = vpop.f32.mrb[0].mxu0
  %9353 = vmatprep.mubr.bf16.mxu0 0
  %9354 = vmatmul.mubr.bf16.gmra.mrb[0].mxu0 %v9133
  %v9355 = vpop.f32.mrb[0].mxu0
  %v9356 = vadd.f32 0.0, %v9355
  %v9357 = vpop.f32.mrb[0].mxu0
  %v9358 = vpop.f32.mrb[0].mxu0
  %v9359 = vadd.f32 0.0, %v9358
  %v9360 = vpop.f32.mrb[0].mxu0
  %9361 = vmatprep.mubr.bf16.mxu0 0
  %9362 = vmatmul.mubr.bf16.gmra.mrb[0].mxu0 %v9136
  %v9363 = vpop.f32.mrb[0].mxu0
  %v9364 = vadd.f32 0.0, %v9363
  %v9365 = vpop.f32.mrb[0].mxu0
  %v9366 = vpop.f32.mrb[0].mxu0
  %v9367 = vadd.f32 0.0, %v9366
  %v9368 = vpop.f32.mrb[0].mxu0
  %9369 = vmatprep.mubr.bf16.mxu0 0
  %9370 = vmatmul.mubr.bf16.gmra.mrb[0].mxu0 %v9139
  %v9371 = vpop.f32.mrb[0].mxu0
  %v9372 = vadd.f32 0.0, %v9371
  %v9373 = vpop.f32.mrb[0].mxu0
  %v9374 = vpop.f32.mrb[0].mxu0
  %v9375 = vadd.f32 0.0, %v9374
  %v9376 = vpop.f32.mrb[0].mxu0
  %9377 = vmatprep.mubr.bf16.mxu0 0
  %9378 = vmatmul.mubr.bf16.gmra.mrb[0].mxu0 %v9142
  %v9379 = vpop.f32.mrb[0].mxu0
  %v9380 = vadd.f32 0.0, %v9379
  %v9381 = vpop.f32.mrb[0].mxu0
  %v9382 = vpop.f32.mrb[0].mxu0
  %v9383 = vadd.f32 0.0, %v9382
  %v9384 = vpop.f32.mrb[0].mxu0
  %9385 = vmatprep.mubr.bf16.mxu0 0
  %9386 = vmatmul.mubr.bf16.gmra.mrb[0].mxu0 %v9145
  %v9387 = vpop.f32.mrb[0].mxu0
  %v9388 = vadd.f32 0.0, %v9387
  %v9389 = vpop.f32.mrb[0].mxu0
  %v9390 = vpop.f32.mrb[0].mxu0
  %v9391 = vadd.f32 0.0, %v9390
  %v9392 = vpop.f32.mrb[0].mxu0
  %9393 = vmatprep.mubr.bf16.mxu0 0
  %9394 = vmatmul.mubr.bf16.gmra.mrb[0].mxu0 %v9148
  %v9395 = vpop.f32.mrb[0].mxu0
  %v9396 = vadd.f32 0.0, %v9395
  %v9397 = vpop.f32.mrb[0].mxu0
  %v9398 = vpop.f32.mrb[0].mxu0
  %v9399 = vadd.f32 0.0, %v9398
  %v9400 = vpop.f32.mrb[0].mxu0
  %9401 = vmatprep.mubr.bf16.mxu0 0
  %9402 = vmatmul.mubr.bf16.gmra.mrb[0].mxu0 %v9151
  %v9403 = vpop.f32.mrb[0].mxu0
  %v9404 = vadd.f32 0.0, %v9403
  %v9405 = vpop.f32.mrb[0].mxu0
  %v9406 = vpop.f32.mrb[0].mxu0
  %v9407 = vadd.f32 0.0, %v9406
  %v9408 = vpop.f32.mrb[0].mxu0
  %9409 = vmatprep.mubr.bf16.mxu0 0
  %9410 = vmatmul.mubr.bf16.gmra.mrb[0].mxu0 %v9154
  %v9411 = vpop.f32.mrb[0].mxu0
  %v9412 = vadd.f32 0.0, %v9411
  %v9413 = vpop.f32.mrb[0].mxu0
  %v9414 = vpop.f32.mrb[0].mxu0
  %v9415 = vadd.f32 0.0, %v9414
  %v9416 = vpop.f32.mrb[0].mxu0
  %9417 = vmatprep.mubr.bf16.mxu0 0
  %9418 = vmatmul.mubr.bf16.gmra.mrb[0].mxu0 %v9157
  %v9419 = vpop.f32.mrb[0].mxu0
  %v9420 = vadd.f32 0.0, %v9419
  %v9421 = vpop.f32.mrb[0].mxu0
  %v9422 = vpop.f32.mrb[0].mxu0
  %v9423 = vadd.f32 0.0, %v9422
  %v9424 = vpop.f32.mrb[0].mxu0
  %9425 = vmatprep.mubr.bf16.mxu0 0
  %9426 = vmatmul.mubr.bf16.gmra.mrb[0].mxu0 %v9160
  %v9427 = vpop.f32.mrb[0].mxu0
  %v9428 = vadd.f32 0.0, %v9427
  %v9429 = vpop.f32.mrb[0].mxu0
  %v9430 = vpop.f32.mrb[0].mxu0
  %v9431 = vadd.f32 0.0, %v9430
  %v9432 = vpop.f32.mrb[0].mxu0
  %9433 = vmatprep.mubr.bf16.mxu0 0
  %9434 = vmatmul.mubr.bf16.gmra.mrb[0].mxu0 %v9163
  %v9435 = vpop.f32.mrb[0].mxu0
  %v9436 = vadd.f32 0.0, %v9435
  %v9437 = vpop.f32.mrb[0].mxu0
  %v9438 = vpop.f32.mrb[0].mxu0
  %v9439 = vadd.f32 0.0, %v9438
  %v9440 = vpop.f32.mrb[0].mxu0
  %9441 = vmatprep.mubr.bf16.mxu0 0
  %9442 = vmatmul.mubr.bf16.gmra.mrb[0].mxu0 %v9166
  %v9443 = vpop.f32.mrb[0].mxu0
  %v9444 = vadd.f32 0.0, %v9443
  %v9445 = vpop.f32.mrb[0].mxu0
  %v9446 = vpop.f32.mrb[0].mxu0
  %v9447 = vadd.f32 0.0, %v9446
  %v9448 = vpop.f32.mrb[0].mxu0
  %9449 = vmatprep.mubr.bf16.mxu0 0
  %9450 = vmatmul.mubr.bf16.gmra.mrb[0].mxu0 %v9169
  %v9451 = vpop.f32.mrb[0].mxu0
  %v9452 = vadd.f32 0.0, %v9451
  %v9453 = vpop.f32.mrb[0].mxu0
  %v9454 = vpop.f32.mrb[0].mxu0
  %v9455 = vadd.f32 0.0, %v9454
  %v9456 = vpop.f32.mrb[0].mxu0
  %9457 = vmatprep.mubr.bf16.mxu0 0
  %9458 = vmatmul.mubr.bf16.gmra.mrb[0].mxu0 %v9172
  %v9459 = vpop.f32.mrb[0].mxu0
  %v9460 = vadd.f32 0.0, %v9459
  %v9461 = vpop.f32.mrb[0].mxu0
  %v9462 = vpop.f32.mrb[0].mxu0
  %v9463 = vadd.f32 0.0, %v9462
  %v9464 = vpop.f32.mrb[0].mxu0
  %9465 = vdwg.mxu0
  %v9466 = vadd.f32 %v8915, %v9212
  %v9467 = vadd.f32 %v8916, %v9215
  %v9468 = vadd.f32 %v8917, %v9220
  %v9469 = vadd.f32 %v8918, %v9223
  %v9470 = vadd.f32 %v8919, %v9228
  %v9471 = vadd.f32 %v8920, %v9231
  %v9472 = vadd.f32 %v8921, %v9236
  %v9473 = vadd.f32 %v8922, %v9239
  %v9474 = vadd.f32 %v8923, %v9244
  %v9475 = vadd.f32 %v8924, %v9247
  %v9476 = vadd.f32 %v8925, %v9252
  %v9477 = vadd.f32 %v8926, %v9255
  %v9478 = vadd.f32 %v8927, %v9260
  %v9479 = vadd.f32 %v8928, %v9263
  %v9480 = vadd.f32 %v8929, %v9268
  %v9481 = vadd.f32 %v8930, %v9271
  %v9482 = vadd.f32 %v8931, %v9276
  %v9483 = vadd.f32 %v8932, %v9279
  %v9484 = vadd.f32 %v8933, %v9284
  %v9485 = vadd.f32 %v8934, %v9287
  %v9486 = vadd.f32 %v8935, %v9292
  %v9487 = vadd.f32 %v8936, %v9295
  %v9488 = vadd.f32 %v8937, %v9300
  %v9489 = vadd.f32 %v8938, %v9303
  %v9490 = vadd.f32 %v8939, %v9308
  %v9491 = vadd.f32 %v8940, %v9311
  %v9492 = vadd.f32 %v8941, %v9316
  %v9493 = vadd.f32 %v8942, %v9319
  %v9494 = vadd.f32 %v8943, %v9324
  %v9495 = vadd.f32 %v8944, %v9327
  %v9496 = vadd.f32 %v8945, %v9332
  %v9497 = vadd.f32 %v8946, %v9335
  %v9498 = vadd.f32 %v8947, %v9340
  %v9499 = vadd.f32 %v8948, %v9343
  %v9500 = vadd.f32 %v8949, %v9348
  %v9501 = vadd.f32 %v8950, %v9351
  %v9502 = vadd.f32 %v8951, %v9356
  %v9503 = vadd.f32 %v8952, %v9359
  %v9504 = vadd.f32 %v8953, %v9364
  %v9505 = vadd.f32 %v8954, %v9367
  %v9506 = vadd.f32 %v8955, %v9372
  %v9507 = vadd.f32 %v8956, %v9375
  %v9508 = vadd.f32 %v8957, %v9380
  %v9509 = vadd.f32 %v8958, %v9383
  %v9510 = vadd.f32 %v8959, %v9388
  %v9511 = vadd.f32 %v8960, %v9391
  %v9512 = vadd.f32 %v8961, %v9396
  %v9513 = vadd.f32 %v8962, %v9399
  %v9514 = vadd.f32 %v8963, %v9404
  %v9515 = vadd.f32 %v8964, %v9407
  %v9516 = vadd.f32 %v8965, %v9412
  %v9517 = vadd.f32 %v8966, %v9415
  %v9518 = vadd.f32 %v8967, %v9420
  %v9519 = vadd.f32 %v8968, %v9423
  %v9520 = vadd.f32 %v8969, %v9428
  %v9521 = vadd.f32 %v8970, %v9431
  %v9522 = vadd.f32 %v8971, %v9436
  %v9523 = vadd.f32 %v8972, %v9439
  %v9524 = vadd.f32 %v8973, %v9444
  %v9525 = vadd.f32 %v8974, %v9447
  %v9526 = vadd.f32 %v8975, %v9452
  %v9527 = vadd.f32 %v8976, %v9455
  %v9528 = vadd.f32 %v8977, %v9460
  %v9529 = vadd.f32 %v8978, %v9463
  %v9530 = vld [vmem:[%s8979 + $0x1] sm:$0xff]
  %v9531 = vld [vmem:[%s8979 + $0x9] sm:$0xff]
  %v9532 = vld [vmem:[%s8979 + $0x19] sm:$0xff]
  %v9533 = vld [vmem:[%s8979 + $0x21] sm:$0xff]
  %v9534 = vld [vmem:[%s8979 + $0x31] sm:$0xff]
  %v9535 = vld [vmem:[%s8979 + $0x39] sm:$0xff]
  %v9536 = vld [vmem:[%s8979 + $0x49] sm:$0xff]
  %v9537 = vld [vmem:[%s8979 + $0x51] sm:$0xff]
  %v9538 = vld [vmem:[%s8979 + $0x61] sm:$0xff]
  %v9539 = vld [vmem:[%s8979 + $0x69] sm:$0xff]
  %v9540 = vld [vmem:[%s8979 + $0x79] sm:$0xff]
  %v9541 = vld [vmem:[%s8979 + $0x81] sm:$0xff]
  %v9542 = vld [vmem:[%s8979 + $0x91] sm:$0xff]
  %v9543 = vld [vmem:[%s8979 + $0x99] sm:$0xff]
  %v9544 = vld [vmem:[%s8979 + $0xa9] sm:$0xff]
  %v9545 = vld [vmem:[%s8979 + $0xb1] sm:$0xff]
  %v9546 = vld [vmem:[%s8979 + $0xc1] sm:$0xff]
  %v9547 = vld [vmem:[%s8979 + $0xc9] sm:$0xff]
  %v9548 = vld [vmem:[%s8979 + $0xd9] sm:$0xff]
  %v9549 = vld [vmem:[%s8979 + $0xe1] sm:$0xff]
  %v9550 = vld [vmem:[%s8979 + $0xf1] sm:$0xff]
  %v9551 = vld [vmem:[%s8979 + $0xf9] sm:$0xff]
  %v9552 = vld [vmem:[%s8979 + $0x109] sm:$0xff]
  %v9553 = vld [vmem:[%s8979 + $0x111] sm:$0xff]
  %v9554 = vld [vmem:[%s8979 + $0x121] sm:$0xff]
  %v9555 = vld [vmem:[%s8979 + $0x129] sm:$0xff]
  %v9556 = vld [vmem:[%s8979 + $0x139] sm:$0xff]
  %v9557 = vld [vmem:[%s8979 + $0x141] sm:$0xff]
  %v9558 = vld [vmem:[%s8979 + $0x151] sm:$0xff]
  %v9559 = vld [vmem:[%s8979 + $0x159] sm:$0xff]
  %v9560 = vld [vmem:[%s8979 + $0x169] sm:$0xff]
  %v9561 = vld [vmem:[%s8979 + $0x171] sm:$0xff]
  %v9562 = vld [vmem:[%s8979 + $0x1b1] sm:$0xff]
  %v9563 = vld [vmem:[%s8979 + $0x1b9] sm:$0xff]
  %v9564 = vld [vmem:[%s8979 + $0x1c9] sm:$0xff]
  %v9565 = vld [vmem:[%s8979 + $0x1d1] sm:$0xff]
  %v9566 = vld [vmem:[%s8979 + $0x1e1] sm:$0xff]
  %v9567 = vld [vmem:[%s8979 + $0x1e9] sm:$0xff]
  %v9568 = vld [vmem:[%s8979 + $0x1f9] sm:$0xff]
  %v9569 = vld [vmem:[%s8979 + $0x201] sm:$0xff]
  %v9570 = vld [vmem:[%s8979 + $0x211] sm:$0xff]
  %v9571 = vld [vmem:[%s8979 + $0x219] sm:$0xff]
  %v9572 = vld [vmem:[%s8979 + $0x229] sm:$0xff]
  %v9573 = vld [vmem:[%s8979 + $0x231] sm:$0xff]
  %v9574 = vld [vmem:[%s8979 + $0x241] sm:$0xff]
  %v9575 = vld [vmem:[%s8979 + $0x249] sm:$0xff]
  %v9576 = vld [vmem:[%s8979 + $0x259] sm:$0xff]
  %v9577 = vld [vmem:[%s8979 + $0x261] sm:$0xff]
  %v9578 = vld [vmem:[%s8979 + $0x271] sm:$0xff]
  %v9579 = vld [vmem:[%s8979 + $0x279] sm:$0xff]
  %v9580 = vld [vmem:[%s8979 + $0x289] sm:$0xff]
  %v9581 = vld [vmem:[%s8979 + $0x291] sm:$0xff]
  %v9582 = vld [vmem:[%s8979 + $0x2a1] sm:$0xff]
  %v9583 = vld [vmem:[%s8979 + $0x2a9] sm:$0xff]
  %v9584 = vld [vmem:[%s8979 + $0x2b9] sm:$0xff]
  %v9585 = vld [vmem:[%s8979 + $0x2c1] sm:$0xff]
  %v9586 = vld [vmem:[%s8979 + $0x2d1] sm:$0xff]
  %v9587 = vld [vmem:[%s8979 + $0x2d9] sm:$0xff]
  %v9588 = vld [vmem:[%s8979 + $0x2e9] sm:$0xff]
  %v9589 = vld [vmem:[%s8979 + $0x2f1] sm:$0xff]
  %v9590 = vld [vmem:[%s8979 + $0x301] sm:$0xff]
  %v9591 = vld [vmem:[%s8979 + $0x309] sm:$0xff]
  %v9592 = vld [vmem:[%s8979 + $0x319] sm:$0xff]
  %v9593 = vld [vmem:[%s8979 + $0x321] sm:$0xff]
  %v9594 = vpack.c.bf16 %v9531, %v9530
  %v9595 = vpack.c.bf16 %v9533, %v9532
  %v9596 = vpack.c.bf16 %v9535, %v9534
  %v9597 = vpack.c.bf16 %v9537, %v9536
  %v9598 = vpack.c.bf16 %v9539, %v9538
  %v9599 = vpack.c.bf16 %v9541, %v9540
  %v9600 = vpack.c.bf16 %v9543, %v9542
  %v9601 = vpack.c.bf16 %v9545, %v9544
  %v9602 = vpack.c.bf16 %v9547, %v9546
  %v9603 = vpack.c.bf16 %v9549, %v9548
  %v9604 = vpack.c.bf16 %v9551, %v9550
  %v9605 = vpack.c.bf16 %v9553, %v9552
  %v9606 = vpack.c.bf16 %v9555, %v9554
  %v9607 = vpack.c.bf16 %v9557, %v9556
  %v9608 = vpack.c.bf16 %v9559, %v9558
  %v9609 = vpack.c.bf16 %v9561, %v9560
  %v9610 = vpack.c.bf16 %v9563, %v9562
  %v9611 = vpack.c.bf16 %v9565, %v9564
  %v9612 = vpack.c.bf16 %v9567, %v9566
  %v9613 = vpack.c.bf16 %v9569, %v9568
  %v9614 = vpack.c.bf16 %v9571, %v9570
  %v9615 = vpack.c.bf16 %v9573, %v9572
  %v9616 = vpack.c.bf16 %v9575, %v9574
  %v9617 = vpack.c.bf16 %v9577, %v9576
  %v9618 = vpack.c.bf16 %v9579, %v9578
  %v9619 = vpack.c.bf16 %v9581, %v9580
  %v9620 = vpack.c.bf16 %v9583, %v9582
  %v9621 = vpack.c.bf16 %v9585, %v9584
  %v9622 = vpack.c.bf16 %v9587, %v9586
  %v9623 = vpack.c.bf16 %v9589, %v9588
  %v9624 = vpack.c.bf16 %v9591, %v9590
  %v9625 = vpack.c.bf16 %v9593, %v9592
  %s9626 = scalar_lea.vmem %s4, 28
  %v9627 = vld [vmem:[%s9626] sm:$0xf]
  %v9629 = vsel %vm5061, %v9594, 0
  %v9632 = vsel %vm5061, %v9595, 0
  %v9635 = vsel %vm5061, %v9596, 0
  %v9638 = vsel %vm5061, %v9597, 0
  %v9641 = vsel %vm5061, %v9598, 0
  %v9644 = vsel %vm5061, %v9599, 0
  %v9647 = vsel %vm5061, %v9600, 0
  %v9650 = vsel %vm5061, %v9601, 0
  %v9653 = vsel %vm5061, %v9602, 0
  %v9656 = vsel %vm5061, %v9603, 0
  %v9659 = vsel %vm5061, %v9604, 0
  %v9662 = vsel %vm5061, %v9605, 0
  %v9665 = vsel %vm5061, %v9606, 0
  %v9668 = vsel %vm5061, %v9607, 0
  %v9671 = vsel %vm5061, %v9608, 0
  %v9674 = vsel %vm5061, %v9609, 0
  %v9677 = vsel %vm5061, %v9610, 0
  %v9680 = vsel %vm5061, %v9611, 0
  %v9683 = vsel %vm5061, %v9612, 0
  %v9686 = vsel %vm5061, %v9613, 0
  %v9689 = vsel %vm5061, %v9614, 0
  %v9692 = vsel %vm5061, %v9615, 0
  %v9695 = vsel %vm5061, %v9616, 0
  %v9698 = vsel %vm5061, %v9617, 0
  %v9701 = vsel %vm5061, %v9618, 0
  %v9704 = vsel %vm5061, %v9619, 0
  %v9707 = vsel %vm5061, %v9620, 0
  %v9710 = vsel %vm5061, %v9621, 0
  %v9713 = vsel %vm5061, %v9622, 0
  %v9716 = vsel %vm5061, %v9623, 0
  %v9719 = vsel %vm5061, %v9624, 0
  %v9722 = vsel %vm5061, %v9625, 0
  %v9725 = vsel %vm6098, %v9627, 0
  %9727 = vmatprep.subr.bf16.mxu0 0
  %9728 = vmatpush1.bf16.msra.mxu0 %v9725
  %9729 = vmatprep.subr.bf16.mxu0 0
  %9730 = vmatpush1.bf16.msra.mxu0 0
  %9731 = vmatprep.subr.bf16.mxu0 0
  %9732 = vmatpush1.bf16.msra.mxu0 0
  %9733 = vmatprep.subr.bf16.mxu0 0
  %9734 = vmatpush1.bf16.msra.mxu0 0
  %9735 = vmatprep.subr.bf16.mxu0 0
  %9736 = vmatpush1.bf16.msra.mxu0 0
  %9737 = vmatprep.subr.bf16.mxu0 0
  %9738 = vmatpush1.bf16.msra.mxu0 0
  %9739 = vmatprep.subr.bf16.mxu0 0
  %9740 = vmatpush1.bf16.msra.mxu0 0
  %9741 = vmatprep.subr.bf16.mxu0 0
  %9742 = vmatpush1.bf16.msra.mxu0 0
  %9743 = vmatprep.subr.bf16.mxu0 0
  %9744 = vmatpush1.bf16.msra.mxu0 0
  %9745 = vmatprep.subr.bf16.mxu0 0
  %9746 = vmatpush1.bf16.msra.mxu0 0
  %9747 = vmatprep.subr.bf16.mxu0 0
  %9748 = vmatpush1.bf16.msra.mxu0 0
  %9749 = vmatprep.subr.bf16.mxu0 0
  %9750 = vmatpush1.bf16.msra.mxu0 0
  %9751 = vmatprep.subr.bf16.mxu0 0
  %9752 = vmatpush1.bf16.msra.mxu0 0
  %9753 = vmatprep.subr.bf16.mxu0 0
  %9754 = vmatpush1.bf16.msra.mxu0 0
  %9755 = vmatprep.subr.bf16.mxu0 0
  %9756 = vmatpush1.bf16.msra.mxu0 0
  %9757 = vmatprep.subr.bf16.mxu0 0
  %9758 = vmatpush1.bf16.msra.mxu0 0
  %9759 = vmatprep.mubr.bf16.mxu0 0
  %9760 = vmatmul.mubr.bf16.gmra.mrb[0].mxu0 %v9629
  %v9761 = vpop.f32.mrb[0].mxu0
  %v9762 = vadd.f32 0.0, %v9761
  %v9763 = vpop.f32.mrb[0].mxu0
  %v9764 = vpop.f32.mrb[0].mxu0
  %v9765 = vadd.f32 0.0, %v9764
  %v9766 = vpop.f32.mrb[0].mxu0
  %9767 = vmatprep.mubr.bf16.mxu0 0
  %9768 = vmatmul.mubr.bf16.gmra.mrb[0].mxu0 %v9632
  %v9769 = vpop.f32.mrb[0].mxu0
  %v9770 = vadd.f32 0.0, %v9769
  %v9771 = vpop.f32.mrb[0].mxu0
  %v9772 = vpop.f32.mrb[0].mxu0
  %v9773 = vadd.f32 0.0, %v9772
  %v9774 = vpop.f32.mrb[0].mxu0
  %9775 = vmatprep.mubr.bf16.mxu0 0
  %9776 = vmatmul.mubr.bf16.gmra.mrb[0].mxu0 %v9635
  %v9777 = vpop.f32.mrb[0].mxu0
  %v9778 = vadd.f32 0.0, %v9777
  %v9779 = vpop.f32.mrb[0].mxu0
  %v9780 = vpop.f32.mrb[0].mxu0
  %v9781 = vadd.f32 0.0, %v9780
  %v9782 = vpop.f32.mrb[0].mxu0
  %9783 = vmatprep.mubr.bf16.mxu0 0
  %9784 = vmatmul.mubr.bf16.gmra.mrb[0].mxu0 %v9638
  %v9785 = vpop.f32.mrb[0].mxu0
  %v9786 = vadd.f32 0.0, %v9785
  %v9787 = vpop.f32.mrb[0].mxu0
  %v9788 = vpop.f32.mrb[0].mxu0
  %v9789 = vadd.f32 0.0, %v9788
  %v9790 = vpop.f32.mrb[0].mxu0
  %9791 = vmatprep.mubr.bf16.mxu0 0
  %9792 = vmatmul.mubr.bf16.gmra.mrb[0].mxu0 %v9641
  %v9793 = vpop.f32.mrb[0].mxu0
  %v9794 = vadd.f32 0.0, %v9793
  %v9795 = vpop.f32.mrb[0].mxu0
  %v9796 = vpop.f32.mrb[0].mxu0
  %v9797 = vadd.f32 0.0, %v9796
  %v9798 = vpop.f32.mrb[0].mxu0
  %9799 = vmatprep.mubr.bf16.mxu0 0
  %9800 = vmatmul.mubr.bf16.gmra.mrb[0].mxu0 %v9644
  %v9801 = vpop.f32.mrb[0].mxu0
  %v9802 = vadd.f32 0.0, %v9801
  %v9803 = vpop.f32.mrb[0].mxu0
  %v9804 = vpop.f32.mrb[0].mxu0
  %v9805 = vadd.f32 0.0, %v9804
  %v9806 = vpop.f32.mrb[0].mxu0
  %9807 = vmatprep.mubr.bf16.mxu0 0
  %9808 = vmatmul.mubr.bf16.gmra.mrb[0].mxu0 %v9647
  %v9809 = vpop.f32.mrb[0].mxu0
  %v9810 = vadd.f32 0.0, %v9809
  %v9811 = vpop.f32.mrb[0].mxu0
  %v9812 = vpop.f32.mrb[0].mxu0
  %v9813 = vadd.f32 0.0, %v9812
  %v9814 = vpop.f32.mrb[0].mxu0
  %9815 = vmatprep.mubr.bf16.mxu0 0
  %9816 = vmatmul.mubr.bf16.gmra.mrb[0].mxu0 %v9650
  %v9817 = vpop.f32.mrb[0].mxu0
  %v9818 = vadd.f32 0.0, %v9817
  %v9819 = vpop.f32.mrb[0].mxu0
  %v9820 = vpop.f32.mrb[0].mxu0
  %v9821 = vadd.f32 0.0, %v9820
  %v9822 = vpop.f32.mrb[0].mxu0
  %9823 = vmatprep.mubr.bf16.mxu0 0
  %9824 = vmatmul.mubr.bf16.gmra.mrb[0].mxu0 %v9653
  %v9825 = vpop.f32.mrb[0].mxu0
  %v9826 = vadd.f32 0.0, %v9825
  %v9827 = vpop.f32.mrb[0].mxu0
  %v9828 = vpop.f32.mrb[0].mxu0
  %v9829 = vadd.f32 0.0, %v9828
  %v9830 = vpop.f32.mrb[0].mxu0
  %9831 = vmatprep.mubr.bf16.mxu0 0
  %9832 = vmatmul.mubr.bf16.gmra.mrb[0].mxu0 %v9656
  %v9833 = vpop.f32.mrb[0].mxu0
  %v9834 = vadd.f32 0.0, %v9833
  %v9835 = vpop.f32.mrb[0].mxu0
  %v9836 = vpop.f32.mrb[0].mxu0
  %v9837 = vadd.f32 0.0, %v9836
  %v9838 = vpop.f32.mrb[0].mxu0
  %9839 = vmatprep.mubr.bf16.mxu0 0
  %9840 = vmatmul.mubr.bf16.gmra.mrb[0].mxu0 %v9659
  %v9841 = vpop.f32.mrb[0].mxu0
  %v9842 = vadd.f32 0.0, %v9841
  %v9843 = vpop.f32.mrb[0].mxu0
  %v9844 = vpop.f32.mrb[0].mxu0
  %v9845 = vadd.f32 0.0, %v9844
  %v9846 = vpop.f32.mrb[0].mxu0
  %9847 = vmatprep.mubr.bf16.mxu0 0
  %9848 = vmatmul.mubr.bf16.gmra.mrb[0].mxu0 %v9662
  %v9849 = vpop.f32.mrb[0].mxu0
  %v9850 = vadd.f32 0.0, %v9849
  %v9851 = vpop.f32.mrb[0].mxu0
  %v9852 = vpop.f32.mrb[0].mxu0
  %v9853 = vadd.f32 0.0, %v9852
  %v9854 = vpop.f32.mrb[0].mxu0
  %9855 = vmatprep.mubr.bf16.mxu0 0
  %9856 = vmatmul.mubr.bf16.gmra.mrb[0].mxu0 %v9665
  %v9857 = vpop.f32.mrb[0].mxu0
  %v9858 = vadd.f32 0.0, %v9857
  %v9859 = vpop.f32.mrb[0].mxu0
  %v9860 = vpop.f32.mrb[0].mxu0
  %v9861 = vadd.f32 0.0, %v9860
  %v9862 = vpop.f32.mrb[0].mxu0
  %9863 = vmatprep.mubr.bf16.mxu0 0
  %9864 = vmatmul.mubr.bf16.gmra.mrb[0].mxu0 %v9668
  %v9865 = vpop.f32.mrb[0].mxu0
  %v9866 = vadd.f32 0.0, %v9865
  %v9867 = vpop.f32.mrb[0].mxu0
  %v9868 = vpop.f32.mrb[0].mxu0
  %v9869 = vadd.f32 0.0, %v9868
  %v9870 = vpop.f32.mrb[0].mxu0
  %9871 = vmatprep.mubr.bf16.mxu0 0
  %9872 = vmatmul.mubr.bf16.gmra.mrb[0].mxu0 %v9671
  %v9873 = vpop.f32.mrb[0].mxu0
  %v9874 = vadd.f32 0.0, %v9873
  %v9875 = vpop.f32.mrb[0].mxu0
  %v9876 = vpop.f32.mrb[0].mxu0
  %v9877 = vadd.f32 0.0, %v9876
  %v9878 = vpop.f32.mrb[0].mxu0
  %9879 = vmatprep.mubr.bf16.mxu0 0
  %9880 = vmatmul.mubr.bf16.gmra.mrb[0].mxu0 %v9674
  %v9881 = vpop.f32.mrb[0].mxu0
  %v9882 = vadd.f32 0.0, %v9881
  %v9883 = vpop.f32.mrb[0].mxu0
  %v9884 = vpop.f32.mrb[0].mxu0
  %v9885 = vadd.f32 0.0, %v9884
  %v9886 = vpop.f32.mrb[0].mxu0
  %9887 = vmatprep.mubr.bf16.mxu0 0
  %9888 = vmatmul.mubr.bf16.gmra.mrb[0].mxu0 %v9677
  %v9889 = vpop.f32.mrb[0].mxu0
  %v9890 = vadd.f32 0.0, %v9889
  %v9891 = vpop.f32.mrb[0].mxu0
  %v9892 = vpop.f32.mrb[0].mxu0
  %v9893 = vadd.f32 0.0, %v9892
  %v9894 = vpop.f32.mrb[0].mxu0
  %9895 = vmatprep.mubr.bf16.mxu0 0
  %9896 = vmatmul.mubr.bf16.gmra.mrb[0].mxu0 %v9680
  %v9897 = vpop.f32.mrb[0].mxu0
  %v9898 = vadd.f32 0.0, %v9897
  %v9899 = vpop.f32.mrb[0].mxu0
  %v9900 = vpop.f32.mrb[0].mxu0
  %v9901 = vadd.f32 0.0, %v9900
  %v9902 = vpop.f32.mrb[0].mxu0
  %9903 = vmatprep.mubr.bf16.mxu0 0
  %9904 = vmatmul.mubr.bf16.gmra.mrb[0].mxu0 %v9683
  %v9905 = vpop.f32.mrb[0].mxu0
  %v9906 = vadd.f32 0.0, %v9905
  %v9907 = vpop.f32.mrb[0].mxu0
  %v9908 = vpop.f32.mrb[0].mxu0
  %v9909 = vadd.f32 0.0, %v9908
  %v9910 = vpop.f32.mrb[0].mxu0
  %9911 = vmatprep.mubr.bf16.mxu0 0
  %9912 = vmatmul.mubr.bf16.gmra.mrb[0].mxu0 %v9686
  %v9913 = vpop.f32.mrb[0].mxu0
  %v9914 = vadd.f32 0.0, %v9913
  %v9915 = vpop.f32.mrb[0].mxu0
  %v9916 = vpop.f32.mrb[0].mxu0
  %v9917 = vadd.f32 0.0, %v9916
  %v9918 = vpop.f32.mrb[0].mxu0
  %9919 = vmatprep.mubr.bf16.mxu0 0
  %9920 = vmatmul.mubr.bf16.gmra.mrb[0].mxu0 %v9689
  %v9921 = vpop.f32.mrb[0].mxu0
  %v9922 = vadd.f32 0.0, %v9921
  %v9923 = vpop.f32.mrb[0].mxu0
  %v9924 = vpop.f32.mrb[0].mxu0
  %v9925 = vadd.f32 0.0, %v9924
  %v9926 = vpop.f32.mrb[0].mxu0
  %9927 = vmatprep.mubr.bf16.mxu0 0
  %9928 = vmatmul.mubr.bf16.gmra.mrb[0].mxu0 %v9692
  %v9929 = vpop.f32.mrb[0].mxu0
  %v9930 = vadd.f32 0.0, %v9929
  %v9931 = vpop.f32.mrb[0].mxu0
  %v9932 = vpop.f32.mrb[0].mxu0
  %v9933 = vadd.f32 0.0, %v9932
  %v9934 = vpop.f32.mrb[0].mxu0
  %9935 = vmatprep.mubr.bf16.mxu0 0
  %9936 = vmatmul.mubr.bf16.gmra.mrb[0].mxu0 %v9695
  %v9937 = vpop.f32.mrb[0].mxu0
  %v9938 = vadd.f32 0.0, %v9937
  %v9939 = vpop.f32.mrb[0].mxu0
  %v9940 = vpop.f32.mrb[0].mxu0
  %v9941 = vadd.f32 0.0, %v9940
  %v9942 = vpop.f32.mrb[0].mxu0
  %9943 = vmatprep.mubr.bf16.mxu0 0
  %9944 = vmatmul.mubr.bf16.gmra.mrb[0].mxu0 %v9698
  %v9945 = vpop.f32.mrb[0].mxu0
  %v9946 = vadd.f32 0.0, %v9945
  %v9947 = vpop.f32.mrb[0].mxu0
  %v9948 = vpop.f32.mrb[0].mxu0
  %v9949 = vadd.f32 0.0, %v9948
  %v9950 = vpop.f32.mrb[0].mxu0
  %9951 = vmatprep.mubr.bf16.mxu0 0
  %9952 = vmatmul.mubr.bf16.gmra.mrb[0].mxu0 %v9701
  %v9953 = vpop.f32.mrb[0].mxu0
  %v9954 = vadd.f32 0.0, %v9953
  %v9955 = vpop.f32.mrb[0].mxu0
  %v9956 = vpop.f32.mrb[0].mxu0
  %v9957 = vadd.f32 0.0, %v9956
  %v9958 = vpop.f32.mrb[0].mxu0
  %9959 = vmatprep.mubr.bf16.mxu0 0
  %9960 = vmatmul.mubr.bf16.gmra.mrb[0].mxu0 %v9704
  %v9961 = vpop.f32.mrb[0].mxu0
  %v9962 = vadd.f32 0.0, %v9961
  %v9963 = vpop.f32.mrb[0].mxu0
  %v9964 = vpop.f32.mrb[0].mxu0
  %v9965 = vadd.f32 0.0, %v9964
  %v9966 = vpop.f32.mrb[0].mxu0
  %9967 = vmatprep.mubr.bf16.mxu0 0
  %9968 = vmatmul.mubr.bf16.gmra.mrb[0].mxu0 %v9707
  %v9969 = vpop.f32.mrb[0].mxu0
  %v9970 = vadd.f32 0.0, %v9969
  %v9971 = vpop.f32.mrb[0].mxu0
  %v9972 = vpop.f32.mrb[0].mxu0
  %v9973 = vadd.f32 0.0, %v9972
  %v9974 = vpop.f32.mrb[0].mxu0
  %9975 = vmatprep.mubr.bf16.mxu0 0
  %9976 = vmatmul.mubr.bf16.gmra.mrb[0].mxu0 %v9710
  %v9977 = vpop.f32.mrb[0].mxu0
  %v9978 = vadd.f32 0.0, %v9977
  %v9979 = vpop.f32.mrb[0].mxu0
  %v9980 = vpop.f32.mrb[0].mxu0
  %v9981 = vadd.f32 0.0, %v9980
  %v9982 = vpop.f32.mrb[0].mxu0
  %9983 = vmatprep.mubr.bf16.mxu0 0
  %9984 = vmatmul.mubr.bf16.gmra.mrb[0].mxu0 %v9713
  %v9985 = vpop.f32.mrb[0].mxu0
  %v9986 = vadd.f32 0.0, %v9985
  %v9987 = vpop.f32.mrb[0].mxu0
  %v9988 = vpop.f32.mrb[0].mxu0
  %v9989 = vadd.f32 0.0, %v9988
  %v9990 = vpop.f32.mrb[0].mxu0
  %9991 = vmatprep.mubr.bf16.mxu0 0
  %9992 = vmatmul.mubr.bf16.gmra.mrb[0].mxu0 %v9716
  %v9993 = vpop.f32.mrb[0].mxu0
  %v9994 = vadd.f32 0.0, %v9993
  %v9995 = vpop.f32.mrb[0].mxu0
  %v9996 = vpop.f32.mrb[0].mxu0
  %v9997 = vadd.f32 0.0, %v9996
  %v9998 = vpop.f32.mrb[0].mxu0
  %9999 = vmatprep.mubr.bf16.mxu0 0
  %10000 = vmatmul.mubr.bf16.gmra.mrb[0].mxu0 %v9719
  %v10001 = vpop.f32.mrb[0].mxu0
  %v10002 = vadd.f32 0.0, %v10001
  %v10003 = vpop.f32.mrb[0].mxu0
  %v10004 = vpop.f32.mrb[0].mxu0
  %v10005 = vadd.f32 0.0, %v10004
  %v10006 = vpop.f32.mrb[0].mxu0
  %10007 = vmatprep.mubr.bf16.mxu0 0
  %10008 = vmatmul.mubr.bf16.gmra.mrb[0].mxu0 %v9722
  %v10009 = vpop.f32.mrb[0].mxu0
  %v10010 = vadd.f32 0.0, %v10009
  %v10011 = vpop.f32.mrb[0].mxu0
  %v10012 = vpop.f32.mrb[0].mxu0
  %v10013 = vadd.f32 0.0, %v10012
  %v10014 = vpop.f32.mrb[0].mxu0
  %10015 = vdwg.mxu0
  %v10016 = vadd.f32 %v9466, %v9762
  %v10017 = vadd.f32 %v9467, %v9765
  %v10018 = vadd.f32 %v9468, %v9770
  %v10019 = vadd.f32 %v9469, %v9773
  %v10020 = vadd.f32 %v9470, %v9778
  %v10021 = vadd.f32 %v9471, %v9781
  %v10022 = vadd.f32 %v9472, %v9786
  %v10023 = vadd.f32 %v9473, %v9789
  %v10024 = vadd.f32 %v9474, %v9794
  %v10025 = vadd.f32 %v9475, %v9797
  %v10026 = vadd.f32 %v9476, %v9802
  %v10027 = vadd.f32 %v9477, %v9805
  %v10028 = vadd.f32 %v9478, %v9810
  %v10029 = vadd.f32 %v9479, %v9813
  %v10030 = vadd.f32 %v9480, %v9818
  %v10031 = vadd.f32 %v9481, %v9821
  %v10032 = vadd.f32 %v9482, %v9826
  %v10033 = vadd.f32 %v9483, %v9829
  %v10034 = vadd.f32 %v9484, %v9834
  %v10035 = vadd.f32 %v9485, %v9837
  %v10036 = vadd.f32 %v9486, %v9842
  %v10037 = vadd.f32 %v9487, %v9845
  %v10038 = vadd.f32 %v9488, %v9850
  %v10039 = vadd.f32 %v9489, %v9853
  %v10040 = vadd.f32 %v9490, %v9858
  %v10041 = vadd.f32 %v9491, %v9861
  %v10042 = vadd.f32 %v9492, %v9866
  %v10043 = vadd.f32 %v9493, %v9869
  %v10044 = vadd.f32 %v9494, %v9874
  %v10045 = vadd.f32 %v9495, %v9877
  %v10046 = vadd.f32 %v9496, %v9882
  %v10047 = vadd.f32 %v9497, %v9885
  %v10048 = vadd.f32 %v9498, %v9890
  %v10049 = vadd.f32 %v9499, %v9893
  %v10050 = vadd.f32 %v9500, %v9898
  %v10051 = vadd.f32 %v9501, %v9901
  %v10052 = vadd.f32 %v9502, %v9906
  %v10053 = vadd.f32 %v9503, %v9909
  %v10054 = vadd.f32 %v9504, %v9914
  %v10055 = vadd.f32 %v9505, %v9917
  %v10056 = vadd.f32 %v9506, %v9922
  %v10057 = vadd.f32 %v9507, %v9925
  %v10058 = vadd.f32 %v9508, %v9930
  %v10059 = vadd.f32 %v9509, %v9933
  %v10060 = vadd.f32 %v9510, %v9938
  %v10061 = vadd.f32 %v9511, %v9941
  %v10062 = vadd.f32 %v9512, %v9946
  %v10063 = vadd.f32 %v9513, %v9949
  %v10064 = vadd.f32 %v9514, %v9954
  %v10065 = vadd.f32 %v9515, %v9957
  %v10066 = vadd.f32 %v9516, %v9962
  %v10067 = vadd.f32 %v9517, %v9965
  %v10068 = vadd.f32 %v9518, %v9970
  %v10069 = vadd.f32 %v9519, %v9973
  %v10070 = vadd.f32 %v9520, %v9978
  %v10071 = vadd.f32 %v9521, %v9981
  %v10072 = vadd.f32 %v9522, %v9986
  %v10073 = vadd.f32 %v9523, %v9989
  %v10074 = vadd.f32 %v9524, %v9994
  %v10075 = vadd.f32 %v9525, %v9997
  %v10076 = vadd.f32 %v9526, %v10002
  %v10077 = vadd.f32 %v9527, %v10005
  %v10078 = vadd.f32 %v9528, %v10010
  %v10079 = vadd.f32 %v9529, %v10013
  %v10080 = vld [vmem:[%s8979 + $0x2] sm:$0xff]
  %v10081 = vld [vmem:[%s8979 + $0xa] sm:$0xff]
  %v10082 = vld [vmem:[%s8979 + $0x1a] sm:$0xff]
  %v10083 = vld [vmem:[%s8979 + $0x22] sm:$0xff]
  %v10084 = vld [vmem:[%s8979 + $0x32] sm:$0xff]
  %v10085 = vld [vmem:[%s8979 + $0x3a] sm:$0xff]
  %v10086 = vld [vmem:[%s8979 + $0x4a] sm:$0xff]
  %v10087 = vld [vmem:[%s8979 + $0x52] sm:$0xff]
  %v10088 = vld [vmem:[%s8979 + $0x62] sm:$0xff]
  %v10089 = vld [vmem:[%s8979 + $0x6a] sm:$0xff]
  %v10090 = vld [vmem:[%s8979 + $0x7a] sm:$0xff]
  %v10091 = vld [vmem:[%s8979 + $0x82] sm:$0xff]
  %v10092 = vld [vmem:[%s8979 + $0x92] sm:$0xff]
  %v10093 = vld [vmem:[%s8979 + $0x9a] sm:$0xff]
  %v10094 = vld [vmem:[%s8979 + $0xaa] sm:$0xff]
  %v10095 = vld [vmem:[%s8979 + $0xb2] sm:$0xff]
  %v10096 = vld [vmem:[%s8979 + $0xc2] sm:$0xff]
  %v10097 = vld [vmem:[%s8979 + $0xca] sm:$0xff]
  %v10098 = vld [vmem:[%s8979 + $0xda] sm:$0xff]
  %v10099 = vld [vmem:[%s8979 + $0xe2] sm:$0xff]
  %v10100 = vld [vmem:[%s8979 + $0xf2] sm:$0xff]
  %v10101 = vld [vmem:[%s8979 + $0xfa] sm:$0xff]
  %v10102 = vld [vmem:[%s8979 + $0x10a] sm:$0xff]
  %v10103 = vld [vmem:[%s8979 + $0x112] sm:$0xff]
  %v10104 = vld [vmem:[%s8979 + $0x122] sm:$0xff]
  %v10105 = vld [vmem:[%s8979 + $0x12a] sm:$0xff]
  %v10106 = vld [vmem:[%s8979 + $0x13a] sm:$0xff]
  %v10107 = vld [vmem:[%s8979 + $0x142] sm:$0xff]
  %v10108 = vld [vmem:[%s8979 + $0x152] sm:$0xff]
  %v10109 = vld [vmem:[%s8979 + $0x15a] sm:$0xff]
  %v10110 = vld [vmem:[%s8979 + $0x16a] sm:$0xff]
  %v10111 = vld [vmem:[%s8979 + $0x172] sm:$0xff]
  %v10112 = vld [vmem:[%s8979 + $0x1b2] sm:$0xff]
  %v10113 = vld [vmem:[%s8979 + $0x1ba] sm:$0xff]
  %v10114 = vld [vmem:[%s8979 + $0x1ca] sm:$0xff]
  %v10115 = vld [vmem:[%s8979 + $0x1d2] sm:$0xff]
  %v10116 = vld [vmem:[%s8979 + $0x1e2] sm:$0xff]
  %v10117 = vld [vmem:[%s8979 + $0x1ea] sm:$0xff]
  %v10118 = vld [vmem:[%s8979 + $0x1fa] sm:$0xff]
  %v10119 = vld [vmem:[%s8979 + $0x202] sm:$0xff]
  %v10120 = vld [vmem:[%s8979 + $0x212] sm:$0xff]
  %v10121 = vld [vmem:[%s8979 + $0x21a] sm:$0xff]
  %v10122 = vld [vmem:[%s8979 + $0x22a] sm:$0xff]
  %v10123 = vld [vmem:[%s8979 + $0x232] sm:$0xff]
  %v10124 = vld [vmem:[%s8979 + $0x242] sm:$0xff]
  %v10125 = vld [vmem:[%s8979 + $0x24a] sm:$0xff]
  %v10126 = vld [vmem:[%s8979 + $0x25a] sm:$0xff]
  %v10127 = vld [vmem:[%s8979 + $0x262] sm:$0xff]
  %v10128 = vld [vmem:[%s8979 + $0x272] sm:$0xff]
  %v10129 = vld [vmem:[%s8979 + $0x27a] sm:$0xff]
  %v10130 = vld [vmem:[%s8979 + $0x28a] sm:$0xff]
  %v10131 = vld [vmem:[%s8979 + $0x292] sm:$0xff]
  %v10132 = vld [vmem:[%s8979 + $0x2a2] sm:$0xff]
  %v10133 = vld [vmem:[%s8979 + $0x2aa] sm:$0xff]
  %v10134 = vld [vmem:[%s8979 + $0x2ba] sm:$0xff]
  %v10135 = vld [vmem:[%s8979 + $0x2c2] sm:$0xff]
  %v10136 = vld [vmem:[%s8979 + $0x2d2] sm:$0xff]
  %v10137 = vld [vmem:[%s8979 + $0x2da] sm:$0xff]
  %v10138 = vld [vmem:[%s8979 + $0x2ea] sm:$0xff]
  %v10139 = vld [vmem:[%s8979 + $0x2f2] sm:$0xff]
  %v10140 = vld [vmem:[%s8979 + $0x302] sm:$0xff]
  %v10141 = vld [vmem:[%s8979 + $0x30a] sm:$0xff]
  %v10142 = vld [vmem:[%s8979 + $0x31a] sm:$0xff]
  %v10143 = vld [vmem:[%s8979 + $0x322] sm:$0xff]
  %v10144 = vpack.c.bf16 %v10081, %v10080
  %v10145 = vpack.c.bf16 %v10083, %v10082
  %v10146 = vpack.c.bf16 %v10085, %v10084
  %v10147 = vpack.c.bf16 %v10087, %v10086
  %v10148 = vpack.c.bf16 %v10089, %v10088
  %v10149 = vpack.c.bf16 %v10091, %v10090
  %v10150 = vpack.c.bf16 %v10093, %v10092
  %v10151 = vpack.c.bf16 %v10095, %v10094
  %v10152 = vpack.c.bf16 %v10097, %v10096
  %v10153 = vpack.c.bf16 %v10099, %v10098
  %v10154 = vpack.c.bf16 %v10101, %v10100
  %v10155 = vpack.c.bf16 %v10103, %v10102
  %v10156 = vpack.c.bf16 %v10105, %v10104
  %v10157 = vpack.c.bf16 %v10107, %v10106
  %v10158 = vpack.c.bf16 %v10109, %v10108
  %v10159 = vpack.c.bf16 %v10111, %v10110
  %v10160 = vpack.c.bf16 %v10113, %v10112
  %v10161 = vpack.c.bf16 %v10115, %v10114
  %v10162 = vpack.c.bf16 %v10117, %v10116
  %v10163 = vpack.c.bf16 %v10119, %v10118
  %v10164 = vpack.c.bf16 %v10121, %v10120
  %v10165 = vpack.c.bf16 %v10123, %v10122
  %v10166 = vpack.c.bf16 %v10125, %v10124
  %v10167 = vpack.c.bf16 %v10127, %v10126
  %v10168 = vpack.c.bf16 %v10129, %v10128
  %v10169 = vpack.c.bf16 %v10131, %v10130
  %v10170 = vpack.c.bf16 %v10133, %v10132
  %v10171 = vpack.c.bf16 %v10135, %v10134
  %v10172 = vpack.c.bf16 %v10137, %v10136
  %v10173 = vpack.c.bf16 %v10139, %v10138
  %v10174 = vpack.c.bf16 %v10141, %v10140
  %v10175 = vpack.c.bf16 %v10143, %v10142
  %s10176 = scalar_lea.vmem %s4, 32
  %v10177 = vld [vmem:[%s10176] sm:$0xf]
  %v10179 = vsel %vm5061, %v10144, 0
  %v10182 = vsel %vm5061, %v10145, 0
  %v10185 = vsel %vm5061, %v10146, 0
  %v10188 = vsel %vm5061, %v10147, 0
  %v10191 = vsel %vm5061, %v10148, 0
  %v10194 = vsel %vm5061, %v10149, 0
  %v10197 = vsel %vm5061, %v10150, 0
  %v10200 = vsel %vm5061, %v10151, 0
  %v10203 = vsel %vm5061, %v10152, 0
  %v10206 = vsel %vm5061, %v10153, 0
  %v10209 = vsel %vm5061, %v10154, 0
  %v10212 = vsel %vm5061, %v10155, 0
  %v10215 = vsel %vm5061, %v10156, 0
  %v10218 = vsel %vm5061, %v10157, 0
  %v10221 = vsel %vm5061, %v10158, 0
  %v10224 = vsel %vm5061, %v10159, 0
  %v10227 = vsel %vm5061, %v10160, 0
  %v10230 = vsel %vm5061, %v10161, 0
  %v10233 = vsel %vm5061, %v10162, 0
  %v10236 = vsel %vm5061, %v10163, 0
  %v10239 = vsel %vm5061, %v10164, 0
  %v10242 = vsel %vm5061, %v10165, 0
  %v10245 = vsel %vm5061, %v10166, 0
  %v10248 = vsel %vm5061, %v10167, 0
  %v10251 = vsel %vm5061, %v10168, 0
  %v10254 = vsel %vm5061, %v10169, 0
  %v10257 = vsel %vm5061, %v10170, 0
  %v10260 = vsel %vm5061, %v10171, 0
  %v10263 = vsel %vm5061, %v10172, 0
  %v10266 = vsel %vm5061, %v10173, 0
  %v10269 = vsel %vm5061, %v10174, 0
  %v10272 = vsel %vm5061, %v10175, 0
  %v10275 = vsel %vm6098, %v10177, 0
  %10277 = vmatprep.subr.bf16.mxu0 0
  %10278 = vmatpush1.bf16.msra.mxu0 %v10275
  %10279 = vmatprep.subr.bf16.mxu0 0
  %10280 = vmatpush1.bf16.msra.mxu0 0
  %10281 = vmatprep.subr.bf16.mxu0 0
  %10282 = vmatpush1.bf16.msra.mxu0 0
  %10283 = vmatprep.subr.bf16.mxu0 0
  %10284 = vmatpush1.bf16.msra.mxu0 0
  %10285 = vmatprep.subr.bf16.mxu0 0
  %10286 = vmatpush1.bf16.msra.mxu0 0
  %10287 = vmatprep.subr.bf16.mxu0 0
  %10288 = vmatpush1.bf16.msra.mxu0 0
  %10289 = vmatprep.subr.bf16.mxu0 0
  %10290 = vmatpush1.bf16.msra.mxu0 0
  %10291 = vmatprep.subr.bf16.mxu0 0
  %10292 = vmatpush1.bf16.msra.mxu0 0
  %10293 = vmatprep.subr.bf16.mxu0 0
  %10294 = vmatpush1.bf16.msra.mxu0 0
  %10295 = vmatprep.subr.bf16.mxu0 0
  %10296 = vmatpush1.bf16.msra.mxu0 0
  %10297 = vmatprep.subr.bf16.mxu0 0
  %10298 = vmatpush1.bf16.msra.mxu0 0
  %10299 = vmatprep.subr.bf16.mxu0 0
  %10300 = vmatpush1.bf16.msra.mxu0 0
  %10301 = vmatprep.subr.bf16.mxu0 0
  %10302 = vmatpush1.bf16.msra.mxu0 0
  %10303 = vmatprep.subr.bf16.mxu0 0
  %10304 = vmatpush1.bf16.msra.mxu0 0
  %10305 = vmatprep.subr.bf16.mxu0 0
  %10306 = vmatpush1.bf16.msra.mxu0 0
  %10307 = vmatprep.subr.bf16.mxu0 0
  %10308 = vmatpush1.bf16.msra.mxu0 0
  %10309 = vmatprep.mubr.bf16.mxu0 0
  %10310 = vmatmul.mubr.bf16.gmra.mrb[0].mxu0 %v10179
  %v10311 = vpop.f32.mrb[0].mxu0
  %v10312 = vadd.f32 0.0, %v10311
  %v10313 = vpop.f32.mrb[0].mxu0
  %v10314 = vpop.f32.mrb[0].mxu0
  %v10315 = vadd.f32 0.0, %v10314
  %v10316 = vpop.f32.mrb[0].mxu0
  %10317 = vmatprep.mubr.bf16.mxu0 0
  %10318 = vmatmul.mubr.bf16.gmra.mrb[0].mxu0 %v10182
  %v10319 = vpop.f32.mrb[0].mxu0
  %v10320 = vadd.f32 0.0, %v10319
  %v10321 = vpop.f32.mrb[0].mxu0
  %v10322 = vpop.f32.mrb[0].mxu0
  %v10323 = vadd.f32 0.0, %v10322
  %v10324 = vpop.f32.mrb[0].mxu0
  %10325 = vmatprep.mubr.bf16.mxu0 0
  %10326 = vmatmul.mubr.bf16.gmra.mrb[0].mxu0 %v10185
  %v10327 = vpop.f32.mrb[0].mxu0
  %v10328 = vadd.f32 0.0, %v10327
  %v10329 = vpop.f32.mrb[0].mxu0
  %v10330 = vpop.f32.mrb[0].mxu0
  %v10331 = vadd.f32 0.0, %v10330
  %v10332 = vpop.f32.mrb[0].mxu0
  %10333 = vmatprep.mubr.bf16.mxu0 0
  %10334 = vmatmul.mubr.bf16.gmra.mrb[0].mxu0 %v10188
  %v10335 = vpop.f32.mrb[0].mxu0
  %v10336 = vadd.f32 0.0, %v10335
  %v10337 = vpop.f32.mrb[0].mxu0
  %v10338 = vpop.f32.mrb[0].mxu0
  %v10339 = vadd.f32 0.0, %v10338
  %v10340 = vpop.f32.mrb[0].mxu0
  %10341 = vmatprep.mubr.bf16.mxu0 0
  %10342 = vmatmul.mubr.bf16.gmra.mrb[0].mxu0 %v10191
  %v10343 = vpop.f32.mrb[0].mxu0
  %v10344 = vadd.f32 0.0, %v10343
  %v10345 = vpop.f32.mrb[0].mxu0
  %v10346 = vpop.f32.mrb[0].mxu0
  %v10347 = vadd.f32 0.0, %v10346
  %v10348 = vpop.f32.mrb[0].mxu0
  %10349 = vmatprep.mubr.bf16.mxu0 0
  %10350 = vmatmul.mubr.bf16.gmra.mrb[0].mxu0 %v10194
  %v10351 = vpop.f32.mrb[0].mxu0
  %v10352 = vadd.f32 0.0, %v10351
  %v10353 = vpop.f32.mrb[0].mxu0
  %v10354 = vpop.f32.mrb[0].mxu0
  %v10355 = vadd.f32 0.0, %v10354
  %v10356 = vpop.f32.mrb[0].mxu0
  %10357 = vmatprep.mubr.bf16.mxu0 0
  %10358 = vmatmul.mubr.bf16.gmra.mrb[0].mxu0 %v10197
  %v10359 = vpop.f32.mrb[0].mxu0
  %v10360 = vadd.f32 0.0, %v10359
  %v10361 = vpop.f32.mrb[0].mxu0
  %v10362 = vpop.f32.mrb[0].mxu0
  %v10363 = vadd.f32 0.0, %v10362
  %v10364 = vpop.f32.mrb[0].mxu0
  %10365 = vmatprep.mubr.bf16.mxu0 0
  %10366 = vmatmul.mubr.bf16.gmra.mrb[0].mxu0 %v10200
  %v10367 = vpop.f32.mrb[0].mxu0
  %v10368 = vadd.f32 0.0, %v10367
  %v10369 = vpop.f32.mrb[0].mxu0
  %v10370 = vpop.f32.mrb[0].mxu0
  %v10371 = vadd.f32 0.0, %v10370
  %v10372 = vpop.f32.mrb[0].mxu0
  %10373 = vmatprep.mubr.bf16.mxu0 0
  %10374 = vmatmul.mubr.bf16.gmra.mrb[0].mxu0 %v10203
  %v10375 = vpop.f32.mrb[0].mxu0
  %v10376 = vadd.f32 0.0, %v10375
  %v10377 = vpop.f32.mrb[0].mxu0
  %v10378 = vpop.f32.mrb[0].mxu0
  %v10379 = vadd.f32 0.0, %v10378
  %v10380 = vpop.f32.mrb[0].mxu0
  %10381 = vmatprep.mubr.bf16.mxu0 0
  %10382 = vmatmul.mubr.bf16.gmra.mrb[0].mxu0 %v10206
  %v10383 = vpop.f32.mrb[0].mxu0
  %v10384 = vadd.f32 0.0, %v10383
  %v10385 = vpop.f32.mrb[0].mxu0
  %v10386 = vpop.f32.mrb[0].mxu0
  %v10387 = vadd.f32 0.0, %v10386
  %v10388 = vpop.f32.mrb[0].mxu0
  %10389 = vmatprep.mubr.bf16.mxu0 0
  %10390 = vmatmul.mubr.bf16.gmra.mrb[0].mxu0 %v10209
  %v10391 = vpop.f32.mrb[0].mxu0
  %v10392 = vadd.f32 0.0, %v10391
  %v10393 = vpop.f32.mrb[0].mxu0
  %v10394 = vpop.f32.mrb[0].mxu0
  %v10395 = vadd.f32 0.0, %v10394
  %v10396 = vpop.f32.mrb[0].mxu0
  %10397 = vmatprep.mubr.bf16.mxu0 0
  %10398 = vmatmul.mubr.bf16.gmra.mrb[0].mxu0 %v10212
  %v10399 = vpop.f32.mrb[0].mxu0
  %v10400 = vadd.f32 0.0, %v10399
  %v10401 = vpop.f32.mrb[0].mxu0
  %v10402 = vpop.f32.mrb[0].mxu0
  %v10403 = vadd.f32 0.0, %v10402
  %v10404 = vpop.f32.mrb[0].mxu0
  %10405 = vmatprep.mubr.bf16.mxu0 0
  %10406 = vmatmul.mubr.bf16.gmra.mrb[0].mxu0 %v10215
  %v10407 = vpop.f32.mrb[0].mxu0
  %v10408 = vadd.f32 0.0, %v10407
  %v10409 = vpop.f32.mrb[0].mxu0
  %v10410 = vpop.f32.mrb[0].mxu0
  %v10411 = vadd.f32 0.0, %v10410
  %v10412 = vpop.f32.mrb[0].mxu0
  %10413 = vmatprep.mubr.bf16.mxu0 0
  %10414 = vmatmul.mubr.bf16.gmra.mrb[0].mxu0 %v10218
  %v10415 = vpop.f32.mrb[0].mxu0
  %v10416 = vadd.f32 0.0, %v10415
  %v10417 = vpop.f32.mrb[0].mxu0
  %v10418 = vpop.f32.mrb[0].mxu0
  %v10419 = vadd.f32 0.0, %v10418
  %v10420 = vpop.f32.mrb[0].mxu0
  %10421 = vmatprep.mubr.bf16.mxu0 0
  %10422 = vmatmul.mubr.bf16.gmra.mrb[0].mxu0 %v10221
  %v10423 = vpop.f32.mrb[0].mxu0
  %v10424 = vadd.f32 0.0, %v10423
  %v10425 = vpop.f32.mrb[0].mxu0
  %v10426 = vpop.f32.mrb[0].mxu0
  %v10427 = vadd.f32 0.0, %v10426
  %v10428 = vpop.f32.mrb[0].mxu0
  %10429 = vmatprep.mubr.bf16.mxu0 0
  %10430 = vmatmul.mubr.bf16.gmra.mrb[0].mxu0 %v10224
  %v10431 = vpop.f32.mrb[0].mxu0
  %v10432 = vadd.f32 0.0, %v10431
  %v10433 = vpop.f32.mrb[0].mxu0
  %v10434 = vpop.f32.mrb[0].mxu0
  %v10435 = vadd.f32 0.0, %v10434
  %v10436 = vpop.f32.mrb[0].mxu0
  %10437 = vmatprep.mubr.bf16.mxu0 0
  %10438 = vmatmul.mubr.bf16.gmra.mrb[0].mxu0 %v10227
  %v10439 = vpop.f32.mrb[0].mxu0
  %v10440 = vadd.f32 0.0, %v10439
  %v10441 = vpop.f32.mrb[0].mxu0
  %v10442 = vpop.f32.mrb[0].mxu0
  %v10443 = vadd.f32 0.0, %v10442
  %v10444 = vpop.f32.mrb[0].mxu0
  %10445 = vmatprep.mubr.bf16.mxu0 0
  %10446 = vmatmul.mubr.bf16.gmra.mrb[0].mxu0 %v10230
  %v10447 = vpop.f32.mrb[0].mxu0
  %v10448 = vadd.f32 0.0, %v10447
  %v10449 = vpop.f32.mrb[0].mxu0
  %v10450 = vpop.f32.mrb[0].mxu0
  %v10451 = vadd.f32 0.0, %v10450
  %v10452 = vpop.f32.mrb[0].mxu0
  %10453 = vmatprep.mubr.bf16.mxu0 0
  %10454 = vmatmul.mubr.bf16.gmra.mrb[0].mxu0 %v10233
  %v10455 = vpop.f32.mrb[0].mxu0
  %v10456 = vadd.f32 0.0, %v10455
  %v10457 = vpop.f32.mrb[0].mxu0
  %v10458 = vpop.f32.mrb[0].mxu0
  %v10459 = vadd.f32 0.0, %v10458
  %v10460 = vpop.f32.mrb[0].mxu0
  %10461 = vmatprep.mubr.bf16.mxu0 0
  %10462 = vmatmul.mubr.bf16.gmra.mrb[0].mxu0 %v10236
  %v10463 = vpop.f32.mrb[0].mxu0
  %v10464 = vadd.f32 0.0, %v10463
  %v10465 = vpop.f32.mrb[0].mxu0
  %v10466 = vpop.f32.mrb[0].mxu0
  %v10467 = vadd.f32 0.0, %v10466
  %v10468 = vpop.f32.mrb[0].mxu0
  %10469 = vmatprep.mubr.bf16.mxu0 0
  %10470 = vmatmul.mubr.bf16.gmra.mrb[0].mxu0 %v10239
  %v10471 = vpop.f32.mrb[0].mxu0
  %v10472 = vadd.f32 0.0, %v10471
  %v10473 = vpop.f32.mrb[0].mxu0
  %v10474 = vpop.f32.mrb[0].mxu0
  %v10475 = vadd.f32 0.0, %v10474
  %v10476 = vpop.f32.mrb[0].mxu0
  %10477 = vmatprep.mubr.bf16.mxu0 0
  %10478 = vmatmul.mubr.bf16.gmra.mrb[0].mxu0 %v10242
  %v10479 = vpop.f32.mrb[0].mxu0
  %v10480 = vadd.f32 0.0, %v10479
  %v10481 = vpop.f32.mrb[0].mxu0
  %v10482 = vpop.f32.mrb[0].mxu0
  %v10483 = vadd.f32 0.0, %v10482
  %v10484 = vpop.f32.mrb[0].mxu0
  %10485 = vmatprep.mubr.bf16.mxu0 0
  %10486 = vmatmul.mubr.bf16.gmra.mrb[0].mxu0 %v10245
  %v10487 = vpop.f32.mrb[0].mxu0
  %v10488 = vadd.f32 0.0, %v10487
  %v10489 = vpop.f32.mrb[0].mxu0
  %v10490 = vpop.f32.mrb[0].mxu0
  %v10491 = vadd.f32 0.0, %v10490
  %v10492 = vpop.f32.mrb[0].mxu0
  %10493 = vmatprep.mubr.bf16.mxu0 0
  %10494 = vmatmul.mubr.bf16.gmra.mrb[0].mxu0 %v10248
  %v10495 = vpop.f32.mrb[0].mxu0
  %v10496 = vadd.f32 0.0, %v10495
  %v10497 = vpop.f32.mrb[0].mxu0
  %v10498 = vpop.f32.mrb[0].mxu0
  %v10499 = vadd.f32 0.0, %v10498
  %v10500 = vpop.f32.mrb[0].mxu0
  %10501 = vmatprep.mubr.bf16.mxu0 0
  %10502 = vmatmul.mubr.bf16.gmra.mrb[0].mxu0 %v10251
  %v10503 = vpop.f32.mrb[0].mxu0
  %v10504 = vadd.f32 0.0, %v10503
  %v10505 = vpop.f32.mrb[0].mxu0
  %v10506 = vpop.f32.mrb[0].mxu0
  %v10507 = vadd.f32 0.0, %v10506
  %v10508 = vpop.f32.mrb[0].mxu0
  %10509 = vmatprep.mubr.bf16.mxu0 0
  %10510 = vmatmul.mubr.bf16.gmra.mrb[0].mxu0 %v10254
  %v10511 = vpop.f32.mrb[0].mxu0
  %v10512 = vadd.f32 0.0, %v10511
  %v10513 = vpop.f32.mrb[0].mxu0
  %v10514 = vpop.f32.mrb[0].mxu0
  %v10515 = vadd.f32 0.0, %v10514
  %v10516 = vpop.f32.mrb[0].mxu0
  %10517 = vmatprep.mubr.bf16.mxu0 0
  %10518 = vmatmul.mubr.bf16.gmra.mrb[0].mxu0 %v10257
  %v10519 = vpop.f32.mrb[0].mxu0
  %v10520 = vadd.f32 0.0, %v10519
  %v10521 = vpop.f32.mrb[0].mxu0
  %v10522 = vpop.f32.mrb[0].mxu0
  %v10523 = vadd.f32 0.0, %v10522
  %v10524 = vpop.f32.mrb[0].mxu0
  %10525 = vmatprep.mubr.bf16.mxu0 0
  %10526 = vmatmul.mubr.bf16.gmra.mrb[0].mxu0 %v10260
  %v10527 = vpop.f32.mrb[0].mxu0
  %v10528 = vadd.f32 0.0, %v10527
  %v10529 = vpop.f32.mrb[0].mxu0
  %v10530 = vpop.f32.mrb[0].mxu0
  %v10531 = vadd.f32 0.0, %v10530
  %v10532 = vpop.f32.mrb[0].mxu0
  %10533 = vmatprep.mubr.bf16.mxu0 0
  %10534 = vmatmul.mubr.bf16.gmra.mrb[0].mxu0 %v10263
  %v10535 = vpop.f32.mrb[0].mxu0
  %v10536 = vadd.f32 0.0, %v10535
  %v10537 = vpop.f32.mrb[0].mxu0
  %v10538 = vpop.f32.mrb[0].mxu0
  %v10539 = vadd.f32 0.0, %v10538
  %v10540 = vpop.f32.mrb[0].mxu0
  %10541 = vmatprep.mubr.bf16.mxu0 0
  %10542 = vmatmul.mubr.bf16.gmra.mrb[0].mxu0 %v10266
  %v10543 = vpop.f32.mrb[0].mxu0
  %v10544 = vadd.f32 0.0, %v10543
  %v10545 = vpop.f32.mrb[0].mxu0
  %v10546 = vpop.f32.mrb[0].mxu0
  %v10547 = vadd.f32 0.0, %v10546
  %v10548 = vpop.f32.mrb[0].mxu0
  %10549 = vmatprep.mubr.bf16.mxu0 0
  %10550 = vmatmul.mubr.bf16.gmra.mrb[0].mxu0 %v10269
  %v10551 = vpop.f32.mrb[0].mxu0
  %v10552 = vadd.f32 0.0, %v10551
  %v10553 = vpop.f32.mrb[0].mxu0
  %v10554 = vpop.f32.mrb[0].mxu0
  %v10555 = vadd.f32 0.0, %v10554
  %v10556 = vpop.f32.mrb[0].mxu0
  %10557 = vmatprep.mubr.bf16.mxu0 0
  %10558 = vmatmul.mubr.bf16.gmra.mrb[0].mxu0 %v10272
  %v10559 = vpop.f32.mrb[0].mxu0
  %v10560 = vadd.f32 0.0, %v10559
  %v10561 = vpop.f32.mrb[0].mxu0
  %v10562 = vpop.f32.mrb[0].mxu0
  %v10563 = vadd.f32 0.0, %v10562
  %v10564 = vpop.f32.mrb[0].mxu0
  %10565 = vdwg.mxu0
  %v10566 = vadd.f32 %v10016, %v10312
  %v10567 = vadd.f32 %v10017, %v10315
  %v10568 = vadd.f32 %v10018, %v10320
  %v10569 = vadd.f32 %v10019, %v10323
  %v10570 = vadd.f32 %v10020, %v10328
  %v10571 = vadd.f32 %v10021, %v10331
  %v10572 = vadd.f32 %v10022, %v10336
  %v10573 = vadd.f32 %v10023, %v10339
  %v10574 = vadd.f32 %v10024, %v10344
  %v10575 = vadd.f32 %v10025, %v10347
  %v10576 = vadd.f32 %v10026, %v10352
  %v10577 = vadd.f32 %v10027, %v10355
  %v10578 = vadd.f32 %v10028, %v10360
  %v10579 = vadd.f32 %v10029, %v10363
  %v10580 = vadd.f32 %v10030, %v10368
  %v10581 = vadd.f32 %v10031, %v10371
  %v10582 = vadd.f32 %v10032, %v10376
  %v10583 = vadd.f32 %v10033, %v10379
  %v10584 = vadd.f32 %v10034, %v10384
  %v10585 = vadd.f32 %v10035, %v10387
  %v10586 = vadd.f32 %v10036, %v10392
  %v10587 = vadd.f32 %v10037, %v10395
  %v10588 = vadd.f32 %v10038, %v10400
  %v10589 = vadd.f32 %v10039, %v10403
  %v10590 = vadd.f32 %v10040, %v10408
  %v10591 = vadd.f32 %v10041, %v10411
  %v10592 = vadd.f32 %v10042, %v10416
  %v10593 = vadd.f32 %v10043, %v10419
  %v10594 = vadd.f32 %v10044, %v10424
  %v10595 = vadd.f32 %v10045, %v10427
  %v10596 = vadd.f32 %v10046, %v10432
  %v10597 = vadd.f32 %v10047, %v10435
  %v10598 = vadd.f32 %v10048, %v10440
  %v10599 = vadd.f32 %v10049, %v10443
  %v10600 = vadd.f32 %v10050, %v10448
  %v10601 = vadd.f32 %v10051, %v10451
  %v10602 = vadd.f32 %v10052, %v10456
  %v10603 = vadd.f32 %v10053, %v10459
  %v10604 = vadd.f32 %v10054, %v10464
  %v10605 = vadd.f32 %v10055, %v10467
  %v10606 = vadd.f32 %v10056, %v10472
  %v10607 = vadd.f32 %v10057, %v10475
  %v10608 = vadd.f32 %v10058, %v10480
  %v10609 = vadd.f32 %v10059, %v10483
  %v10610 = vadd.f32 %v10060, %v10488
  %v10611 = vadd.f32 %v10061, %v10491
  %v10612 = vadd.f32 %v10062, %v10496
  %v10613 = vadd.f32 %v10063, %v10499
  %v10614 = vadd.f32 %v10064, %v10504
  %v10615 = vadd.f32 %v10065, %v10507
  %v10616 = vadd.f32 %v10066, %v10512
  %v10617 = vadd.f32 %v10067, %v10515
  %v10618 = vadd.f32 %v10068, %v10520
  %v10619 = vadd.f32 %v10069, %v10523
  %v10620 = vadd.f32 %v10070, %v10528
  %v10621 = vadd.f32 %v10071, %v10531
  %v10622 = vadd.f32 %v10072, %v10536
  %v10623 = vadd.f32 %v10073, %v10539
  %v10624 = vadd.f32 %v10074, %v10544
  %v10625 = vadd.f32 %v10075, %v10547
  %v10626 = vadd.f32 %v10076, %v10552
  %v10627 = vadd.f32 %v10077, %v10555
  %v10628 = vadd.f32 %v10078, %v10560
  %v10629 = vadd.f32 %v10079, %v10563
  %v10630 = vld [vmem:[%s5] sm:$0x1]
  %v10631 = vld [vmem:[%s6] sm:$0x1]
  %v10632 = vsel %vm5061, %v10566, 0.0
  %v10633 = vsel %vm5061, %v10567, 0.0
  %v10634 = vadd.f32 %v10632, %v10633
  %v10635 = vsel %vm5061, %v10568, 0.0
  %v10636 = vadd.f32 %v10634, %v10635
  %v10637 = vsel %vm5061, %v10569, 0.0
  %v10638 = vadd.f32 %v10636, %v10637
  %v10639 = vsel %vm5061, %v10570, 0.0
  %v10640 = vadd.f32 %v10638, %v10639
  %v10641 = vsel %vm5061, %v10571, 0.0
  %v10642 = vadd.f32 %v10640, %v10641
  %v10643 = vsel %vm5061, %v10572, 0.0
  %v10644 = vadd.f32 %v10642, %v10643
  %v10645 = vsel %vm5061, %v10573, 0.0
  %v10646 = vadd.f32 %v10644, %v10645
  %v10647 = vsel %vm5061, %v10574, 0.0
  %v10648 = vadd.f32 %v10646, %v10647
  %v10649 = vsel %vm5061, %v10575, 0.0
  %v10650 = vadd.f32 %v10648, %v10649
  %v10651 = vsel %vm5061, %v10576, 0.0
  %v10652 = vadd.f32 %v10650, %v10651
  %v10653 = vsel %vm5061, %v10577, 0.0
  %v10654 = vadd.f32 %v10652, %v10653
  %v10655 = vsel %vm5061, %v10578, 0.0
  %v10656 = vadd.f32 %v10654, %v10655
  %v10657 = vsel %vm5061, %v10579, 0.0
  %v10658 = vadd.f32 %v10656, %v10657
  %v10659 = vsel %vm5061, %v10580, 0.0
  %v10660 = vadd.f32 %v10658, %v10659
  %v10661 = vsel %vm5061, %v10581, 0.0
  %v10662 = vadd.f32 %v10660, %v10661
  %v10663 = vsel %vm5061, %v10582, 0.0
  %v10664 = vadd.f32 %v10662, %v10663
  %v10665 = vsel %vm5061, %v10583, 0.0
  %v10666 = vadd.f32 %v10664, %v10665
  %v10667 = vsel %vm5061, %v10584, 0.0
  %v10668 = vadd.f32 %v10666, %v10667
  %v10669 = vsel %vm5061, %v10585, 0.0
  %v10670 = vadd.f32 %v10668, %v10669
  %v10671 = vsel %vm5061, %v10586, 0.0
  %v10672 = vadd.f32 %v10670, %v10671
  %v10673 = vsel %vm5061, %v10587, 0.0
  %v10674 = vadd.f32 %v10672, %v10673
  %v10675 = vsel %vm5061, %v10588, 0.0
  %v10676 = vadd.f32 %v10674, %v10675
  %v10677 = vsel %vm5061, %v10589, 0.0
  %v10678 = vadd.f32 %v10676, %v10677
  %v10679 = vsel %vm5061, %v10590, 0.0
  %v10680 = vadd.f32 %v10678, %v10679
  %v10681 = vsel %vm5061, %v10591, 0.0
  %v10682 = vadd.f32 %v10680, %v10681
  %v10683 = vsel %vm5061, %v10592, 0.0
  %v10684 = vadd.f32 %v10682, %v10683
  %v10685 = vsel %vm5061, %v10593, 0.0
  %v10686 = vadd.f32 %v10684, %v10685
  %v10687 = vsel %vm5061, %v10594, 0.0
  %v10688 = vadd.f32 %v10686, %v10687
  %v10689 = vsel %vm5061, %v10595, 0.0
  %v10690 = vadd.f32 %v10688, %v10689
  %v10691 = vsel %vm5061, %v10596, 0.0
  %v10692 = vadd.f32 %v10690, %v10691
  %v10693 = vsel %vm5061, %v10597, 0.0
  %v10694 = vadd.f32 %v10692, %v10693
  %v10695 = vsel %vm5061, %v10598, 0.0
  %v10696 = vadd.f32 %v10694, %v10695
  %v10697 = vsel %vm5061, %v10599, 0.0
  %v10698 = vadd.f32 %v10696, %v10697
  %v10699 = vsel %vm5061, %v10600, 0.0
  %v10700 = vadd.f32 %v10698, %v10699
  %v10701 = vsel %vm5061, %v10601, 0.0
  %v10702 = vadd.f32 %v10700, %v10701
  %v10703 = vsel %vm5061, %v10602, 0.0
  %v10704 = vadd.f32 %v10702, %v10703
  %v10705 = vsel %vm5061, %v10603, 0.0
  %v10706 = vadd.f32 %v10704, %v10705
  %v10707 = vsel %vm5061, %v10604, 0.0
  %v10708 = vadd.f32 %v10706, %v10707
  %v10709 = vsel %vm5061, %v10605, 0.0
  %v10710 = vadd.f32 %v10708, %v10709
  %v10711 = vsel %vm5061, %v10606, 0.0
  %v10712 = vadd.f32 %v10710, %v10711
  %v10713 = vsel %vm5061, %v10607, 0.0
  %v10714 = vadd.f32 %v10712, %v10713
  %v10715 = vsel %vm5061, %v10608, 0.0
  %v10716 = vadd.f32 %v10714, %v10715
  %v10717 = vsel %vm5061, %v10609, 0.0
  %v10718 = vadd.f32 %v10716, %v10717
  %v10719 = vsel %vm5061, %v10610, 0.0
  %v10720 = vadd.f32 %v10718, %v10719
  %v10721 = vsel %vm5061, %v10611, 0.0
  %v10722 = vadd.f32 %v10720, %v10721
  %v10723 = vsel %vm5061, %v10612, 0.0
  %v10724 = vadd.f32 %v10722, %v10723
  %v10725 = vsel %vm5061, %v10613, 0.0
  %v10726 = vadd.f32 %v10724, %v10725
  %v10727 = vsel %vm5061, %v10614, 0.0
  %v10728 = vadd.f32 %v10726, %v10727
  %v10729 = vsel %vm5061, %v10615, 0.0
  %v10730 = vadd.f32 %v10728, %v10729
  %v10731 = vsel %vm5061, %v10616, 0.0
  %v10732 = vadd.f32 %v10730, %v10731
  %v10733 = vsel %vm5061, %v10617, 0.0
  %v10734 = vadd.f32 %v10732, %v10733
  %v10735 = vsel %vm5061, %v10618, 0.0
  %v10736 = vadd.f32 %v10734, %v10735
  %v10737 = vsel %vm5061, %v10619, 0.0
  %v10738 = vadd.f32 %v10736, %v10737
  %v10739 = vsel %vm5061, %v10620, 0.0
  %v10740 = vadd.f32 %v10738, %v10739
  %v10741 = vsel %vm5061, %v10621, 0.0
  %v10742 = vadd.f32 %v10740, %v10741
  %v10743 = vsel %vm5061, %v10622, 0.0
  %v10744 = vadd.f32 %v10742, %v10743
  %v10745 = vsel %vm5061, %v10623, 0.0
  %v10746 = vadd.f32 %v10744, %v10745
  %v10747 = vsel %vm5061, %v10624, 0.0
  %v10748 = vadd.f32 %v10746, %v10747
  %v10749 = vsel %vm5061, %v10625, 0.0
  %v10750 = vadd.f32 %v10748, %v10749
  %v10751 = vsel %vm5061, %v10626, 0.0
  %v10752 = vadd.f32 %v10750, %v10751
  %v10753 = vsel %vm5061, %v10627, 0.0
  %v10754 = vadd.f32 %v10752, %v10753
  %v10755 = vsel %vm5061, %v10628, 0.0
  %v10756 = vadd.f32 %v10754, %v10755
  %v10757 = vsel %vm5061, %v10629, 0.0
  %v10758 = vadd.f32 %v10756, %v10757
  %v10759 = vrot.slane %v10758, 4
  %v10760 = vadd.f32 %v10758, %v10759
  %v10761 = vrot.slane %v10760, 2
  %v10762 = vadd.f32 %v10760, %v10761
  %v10763 = vrot.slane %v10762, 1
  %v10764 = vadd.f32 %v10762, %v10763
  %v10765 = vmul.f32 %v10764, 0.001953125
  %v10766 = vsub.f32 %v10566, %v10765
  %v10767 = vsub.f32 %v10567, %v10765
  %v10768 = vsub.f32 %v10568, %v10765
  %v10769 = vsub.f32 %v10569, %v10765
  %v10770 = vsub.f32 %v10570, %v10765
  %v10771 = vsub.f32 %v10571, %v10765
  %v10772 = vsub.f32 %v10572, %v10765
  %v10773 = vsub.f32 %v10573, %v10765
  %v10774 = vsub.f32 %v10574, %v10765
  %v10775 = vsub.f32 %v10575, %v10765
  %v10776 = vsub.f32 %v10576, %v10765
  %v10777 = vsub.f32 %v10577, %v10765
  %v10778 = vsub.f32 %v10578, %v10765
  %v10779 = vsub.f32 %v10579, %v10765
  %v10780 = vsub.f32 %v10580, %v10765
  %v10781 = vsub.f32 %v10581, %v10765
  %v10782 = vsub.f32 %v10582, %v10765
  %v10783 = vsub.f32 %v10583, %v10765
  %v10784 = vsub.f32 %v10584, %v10765
  %v10785 = vsub.f32 %v10585, %v10765
  %v10786 = vsub.f32 %v10586, %v10765
  %v10787 = vsub.f32 %v10587, %v10765
  %v10788 = vsub.f32 %v10588, %v10765
  %v10789 = vsub.f32 %v10589, %v10765
  %v10790 = vsub.f32 %v10590, %v10765
  %v10791 = vsub.f32 %v10591, %v10765
  %v10792 = vsub.f32 %v10592, %v10765
  %v10793 = vsub.f32 %v10593, %v10765
  %v10794 = vsub.f32 %v10594, %v10765
  %v10795 = vsub.f32 %v10595, %v10765
  %v10796 = vsub.f32 %v10596, %v10765
  %v10797 = vsub.f32 %v10597, %v10765
  %v10798 = vsub.f32 %v10598, %v10765
  %v10799 = vsub.f32 %v10599, %v10765
  %v10800 = vsub.f32 %v10600, %v10765
  %v10801 = vsub.f32 %v10601, %v10765
  %v10802 = vsub.f32 %v10602, %v10765
  %v10803 = vsub.f32 %v10603, %v10765
  %v10804 = vsub.f32 %v10604, %v10765
  %v10805 = vsub.f32 %v10605, %v10765
  %v10806 = vsub.f32 %v10606, %v10765
  %v10807 = vsub.f32 %v10607, %v10765
  %v10808 = vsub.f32 %v10608, %v10765
  %v10809 = vsub.f32 %v10609, %v10765
  %v10810 = vsub.f32 %v10610, %v10765
  %v10811 = vsub.f32 %v10611, %v10765
  %v10812 = vsub.f32 %v10612, %v10765
  %v10813 = vsub.f32 %v10613, %v10765
  %v10814 = vsub.f32 %v10614, %v10765
  %v10815 = vsub.f32 %v10615, %v10765
  %v10816 = vsub.f32 %v10616, %v10765
  %v10817 = vsub.f32 %v10617, %v10765
  %v10818 = vsub.f32 %v10618, %v10765
  %v10819 = vsub.f32 %v10619, %v10765
  %v10820 = vsub.f32 %v10620, %v10765
  %v10821 = vsub.f32 %v10621, %v10765
  %v10822 = vsub.f32 %v10622, %v10765
  %v10823 = vsub.f32 %v10623, %v10765
  %v10824 = vsub.f32 %v10624, %v10765
  %v10825 = vsub.f32 %v10625, %v10765
  %v10826 = vsub.f32 %v10626, %v10765
  %v10827 = vsub.f32 %v10627, %v10765
  %v10828 = vsub.f32 %v10628, %v10765
  %v10829 = vsub.f32 %v10629, %v10765
  %v10830 = vmul.f32 %v10766, %v10766
  %v10831 = vmul.f32 %v10767, %v10767
  %v10832 = vmul.f32 %v10768, %v10768
  %v10833 = vmul.f32 %v10769, %v10769
  %v10834 = vmul.f32 %v10770, %v10770
  %v10835 = vmul.f32 %v10771, %v10771
  %v10836 = vmul.f32 %v10772, %v10772
  %v10837 = vmul.f32 %v10773, %v10773
  %v10838 = vmul.f32 %v10774, %v10774
  %v10839 = vmul.f32 %v10775, %v10775
  %v10840 = vmul.f32 %v10776, %v10776
  %v10841 = vmul.f32 %v10777, %v10777
  %v10842 = vmul.f32 %v10778, %v10778
  %v10843 = vmul.f32 %v10779, %v10779
  %v10844 = vmul.f32 %v10780, %v10780
  %v10845 = vmul.f32 %v10781, %v10781
  %v10846 = vmul.f32 %v10782, %v10782
  %v10847 = vmul.f32 %v10783, %v10783
  %v10848 = vmul.f32 %v10784, %v10784
  %v10849 = vmul.f32 %v10785, %v10785
  %v10850 = vmul.f32 %v10786, %v10786
  %v10851 = vmul.f32 %v10787, %v10787
  %v10852 = vmul.f32 %v10788, %v10788
  %v10853 = vmul.f32 %v10789, %v10789
  %v10854 = vmul.f32 %v10790, %v10790
  %v10855 = vmul.f32 %v10791, %v10791
  %v10856 = vmul.f32 %v10792, %v10792
  %v10857 = vmul.f32 %v10793, %v10793
  %v10858 = vmul.f32 %v10794, %v10794
  %v10859 = vmul.f32 %v10795, %v10795
  %v10860 = vmul.f32 %v10796, %v10796
  %v10861 = vmul.f32 %v10797, %v10797
  %v10862 = vmul.f32 %v10798, %v10798
  %v10863 = vmul.f32 %v10799, %v10799
  %v10864 = vmul.f32 %v10800, %v10800
  %v10865 = vmul.f32 %v10801, %v10801
  %v10866 = vmul.f32 %v10802, %v10802
  %v10867 = vmul.f32 %v10803, %v10803
  %v10868 = vmul.f32 %v10804, %v10804
  %v10869 = vmul.f32 %v10805, %v10805
  %v10870 = vmul.f32 %v10806, %v10806
  %v10871 = vmul.f32 %v10807, %v10807
  %v10872 = vmul.f32 %v10808, %v10808
  %v10873 = vmul.f32 %v10809, %v10809
  %v10874 = vmul.f32 %v10810, %v10810
  %v10875 = vmul.f32 %v10811, %v10811
  %v10876 = vmul.f32 %v10812, %v10812
  %v10877 = vmul.f32 %v10813, %v10813
  %v10878 = vmul.f32 %v10814, %v10814
  %v10879 = vmul.f32 %v10815, %v10815
  %v10880 = vmul.f32 %v10816, %v10816
  %v10881 = vmul.f32 %v10817, %v10817
  %v10882 = vmul.f32 %v10818, %v10818
  %v10883 = vmul.f32 %v10819, %v10819
  %v10884 = vmul.f32 %v10820, %v10820
  %v10885 = vmul.f32 %v10821, %v10821
  %v10886 = vmul.f32 %v10822, %v10822
  %v10887 = vmul.f32 %v10823, %v10823
  %v10888 = vmul.f32 %v10824, %v10824
  %v10889 = vmul.f32 %v10825, %v10825
  %v10890 = vmul.f32 %v10826, %v10826
  %v10891 = vmul.f32 %v10827, %v10827
  %v10892 = vmul.f32 %v10828, %v10828
  %v10893 = vmul.f32 %v10829, %v10829
  %v10894 = vsel %vm5061, %v10830, 0.0
  %v10895 = vsel %vm5061, %v10831, 0.0
  %v10896 = vadd.f32 %v10894, %v10895
  %v10897 = vsel %vm5061, %v10832, 0.0
  %v10898 = vadd.f32 %v10896, %v10897
  %v10899 = vsel %vm5061, %v10833, 0.0
  %v10900 = vadd.f32 %v10898, %v10899
  %v10901 = vsel %vm5061, %v10834, 0.0
  %v10902 = vadd.f32 %v10900, %v10901
  %v10903 = vsel %vm5061, %v10835, 0.0
  %v10904 = vadd.f32 %v10902, %v10903
  %v10905 = vsel %vm5061, %v10836, 0.0
  %v10906 = vadd.f32 %v10904, %v10905
  %v10907 = vsel %vm5061, %v10837, 0.0
  %v10908 = vadd.f32 %v10906, %v10907
  %v10909 = vsel %vm5061, %v10838, 0.0
  %v10910 = vadd.f32 %v10908, %v10909
  %v10911 = vsel %vm5061, %v10839, 0.0
  %v10912 = vadd.f32 %v10910, %v10911
  %v10913 = vsel %vm5061, %v10840, 0.0
  %v10914 = vadd.f32 %v10912, %v10913
  %v10915 = vsel %vm5061, %v10841, 0.0
  %v10916 = vadd.f32 %v10914, %v10915
  %v10917 = vsel %vm5061, %v10842, 0.0
  %v10918 = vadd.f32 %v10916, %v10917
  %v10919 = vsel %vm5061, %v10843, 0.0
  %v10920 = vadd.f32 %v10918, %v10919
  %v10921 = vsel %vm5061, %v10844, 0.0
  %v10922 = vadd.f32 %v10920, %v10921
  %v10923 = vsel %vm5061, %v10845, 0.0
  %v10924 = vadd.f32 %v10922, %v10923
  %v10925 = vsel %vm5061, %v10846, 0.0
  %v10926 = vadd.f32 %v10924, %v10925
  %v10927 = vsel %vm5061, %v10847, 0.0
  %v10928 = vadd.f32 %v10926, %v10927
  %v10929 = vsel %vm5061, %v10848, 0.0
  %v10930 = vadd.f32 %v10928, %v10929
  %v10931 = vsel %vm5061, %v10849, 0.0
  %v10932 = vadd.f32 %v10930, %v10931
  %v10933 = vsel %vm5061, %v10850, 0.0
  %v10934 = vadd.f32 %v10932, %v10933
  %v10935 = vsel %vm5061, %v10851, 0.0
  %v10936 = vadd.f32 %v10934, %v10935
  %v10937 = vsel %vm5061, %v10852, 0.0
  %v10938 = vadd.f32 %v10936, %v10937
  %v10939 = vsel %vm5061, %v10853, 0.0
  %v10940 = vadd.f32 %v10938, %v10939
  %v10941 = vsel %vm5061, %v10854, 0.0
  %v10942 = vadd.f32 %v10940, %v10941
  %v10943 = vsel %vm5061, %v10855, 0.0
  %v10944 = vadd.f32 %v10942, %v10943
  %v10945 = vsel %vm5061, %v10856, 0.0
  %v10946 = vadd.f32 %v10944, %v10945
  %v10947 = vsel %vm5061, %v10857, 0.0
  %v10948 = vadd.f32 %v10946, %v10947
  %v10949 = vsel %vm5061, %v10858, 0.0
  %v10950 = vadd.f32 %v10948, %v10949
  %v10951 = vsel %vm5061, %v10859, 0.0
  %v10952 = vadd.f32 %v10950, %v10951
  %v10953 = vsel %vm5061, %v10860, 0.0
  %v10954 = vadd.f32 %v10952, %v10953
  %v10955 = vsel %vm5061, %v10861, 0.0
  %v10956 = vadd.f32 %v10954, %v10955
  %v10957 = vsel %vm5061, %v10862, 0.0
  %v10958 = vadd.f32 %v10956, %v10957
  %v10959 = vsel %vm5061, %v10863, 0.0
  %v10960 = vadd.f32 %v10958, %v10959
  %v10961 = vsel %vm5061, %v10864, 0.0
  %v10962 = vadd.f32 %v10960, %v10961
  %v10963 = vsel %vm5061, %v10865, 0.0
  %v10964 = vadd.f32 %v10962, %v10963
  %v10965 = vsel %vm5061, %v10866, 0.0
  %v10966 = vadd.f32 %v10964, %v10965
  %v10967 = vsel %vm5061, %v10867, 0.0
  %v10968 = vadd.f32 %v10966, %v10967
  %v10969 = vsel %vm5061, %v10868, 0.0
  %v10970 = vadd.f32 %v10968, %v10969
  %v10971 = vsel %vm5061, %v10869, 0.0
  %v10972 = vadd.f32 %v10970, %v10971
  %v10973 = vsel %vm5061, %v10870, 0.0
  %v10974 = vadd.f32 %v10972, %v10973
  %v10975 = vsel %vm5061, %v10871, 0.0
  %v10976 = vadd.f32 %v10974, %v10975
  %v10977 = vsel %vm5061, %v10872, 0.0
  %v10978 = vadd.f32 %v10976, %v10977
  %v10979 = vsel %vm5061, %v10873, 0.0
  %v10980 = vadd.f32 %v10978, %v10979
  %v10981 = vsel %vm5061, %v10874, 0.0
  %v10982 = vadd.f32 %v10980, %v10981
  %v10983 = vsel %vm5061, %v10875, 0.0
  %v10984 = vadd.f32 %v10982, %v10983
  %v10985 = vsel %vm5061, %v10876, 0.0
  %v10986 = vadd.f32 %v10984, %v10985
  %v10987 = vsel %vm5061, %v10877, 0.0
  %v10988 = vadd.f32 %v10986, %v10987
  %v10989 = vsel %vm5061, %v10878, 0.0
  %v10990 = vadd.f32 %v10988, %v10989
  %v10991 = vsel %vm5061, %v10879, 0.0
  %v10992 = vadd.f32 %v10990, %v10991
  %v10993 = vsel %vm5061, %v10880, 0.0
  %v10994 = vadd.f32 %v10992, %v10993
  %v10995 = vsel %vm5061, %v10881, 0.0
  %v10996 = vadd.f32 %v10994, %v10995
  %v10997 = vsel %vm5061, %v10882, 0.0
  %v10998 = vadd.f32 %v10996, %v10997
  %v10999 = vsel %vm5061, %v10883, 0.0
  %v11000 = vadd.f32 %v10998, %v10999
  %v11001 = vsel %vm5061, %v10884, 0.0
  %v11002 = vadd.f32 %v11000, %v11001
  %v11003 = vsel %vm5061, %v10885, 0.0
  %v11004 = vadd.f32 %v11002, %v11003
  %v11005 = vsel %vm5061, %v10886, 0.0
  %v11006 = vadd.f32 %v11004, %v11005
  %v11007 = vsel %vm5061, %v10887, 0.0
  %v11008 = vadd.f32 %v11006, %v11007
  %v11009 = vsel %vm5061, %v10888, 0.0
  %v11010 = vadd.f32 %v11008, %v11009
  %v11011 = vsel %vm5061, %v10889, 0.0
  %v11012 = vadd.f32 %v11010, %v11011
  %v11013 = vsel %vm5061, %v10890, 0.0
  %v11014 = vadd.f32 %v11012, %v11013
  %v11015 = vsel %vm5061, %v10891, 0.0
  %v11016 = vadd.f32 %v11014, %v11015
  %v11017 = vsel %vm5061, %v10892, 0.0
  %v11018 = vadd.f32 %v11016, %v11017
  %v11019 = vsel %vm5061, %v10893, 0.0
  %v11020 = vadd.f32 %v11018, %v11019
  %v11021 = vrot.slane %v11020, 4
  %v11022 = vadd.f32 %v11020, %v11021
  %v11023 = vrot.slane %v11022, 2
  %v11024 = vadd.f32 %v11022, %v11023
  %v11025 = vrot.slane %v11024, 1
  %v11026 = vadd.f32 %v11024, %v11025
  %v11027 = vmul.f32 %v11026, 0.001953125
  %v11028 = vadd.f32 %v11027, 1e-05
  %v11029 = vrsqrt.pop %v11028
  %v11030 = vmul.f32 %v11029, %v10630
  %v11031 = vlaneseq
  %v11032 = vshrl.u32 %v11031, 7
  %v11033 = vsub.s32 0, %v11032
  %v11034 = vrot.slane %v11030, %v11033
  %v11035 = vmul.f32 %v10766, %v11034
  %v11036 = vmul.f32 %v10767, %v11034
  %v11037 = vmul.f32 %v10768, %v11034
  %v11038 = vmul.f32 %v10769, %v11034
  %v11039 = vmul.f32 %v10770, %v11034
  %v11040 = vmul.f32 %v10771, %v11034
  %v11041 = vmul.f32 %v10772, %v11034
  %v11042 = vmul.f32 %v10773, %v11034
  %v11043 = vmul.f32 %v10774, %v11034
  %v11044 = vmul.f32 %v10775, %v11034
  %v11045 = vmul.f32 %v10776, %v11034
  %v11046 = vmul.f32 %v10777, %v11034
  %v11047 = vmul.f32 %v10778, %v11034
  %v11048 = vmul.f32 %v10779, %v11034
  %v11049 = vmul.f32 %v10780, %v11034
  %v11050 = vmul.f32 %v10781, %v11034
  %v11051 = vmul.f32 %v10782, %v11034
  %v11052 = vmul.f32 %v10783, %v11034
  %v11053 = vmul.f32 %v10784, %v11034
  %v11054 = vmul.f32 %v10785, %v11034
  %v11055 = vmul.f32 %v10786, %v11034
  %v11056 = vmul.f32 %v10787, %v11034
  %v11057 = vmul.f32 %v10788, %v11034
  %v11058 = vmul.f32 %v10789, %v11034
  %v11059 = vmul.f32 %v10790, %v11034
  %v11060 = vmul.f32 %v10791, %v11034
  %v11061 = vmul.f32 %v10792, %v11034
  %v11062 = vmul.f32 %v10793, %v11034
  %v11063 = vmul.f32 %v10794, %v11034
  %v11064 = vmul.f32 %v10795, %v11034
  %v11065 = vmul.f32 %v10796, %v11034
  %v11066 = vmul.f32 %v10797, %v11034
  %v11067 = vmul.f32 %v10798, %v11034
  %v11068 = vmul.f32 %v10799, %v11034
  %v11069 = vmul.f32 %v10800, %v11034
  %v11070 = vmul.f32 %v10801, %v11034
  %v11071 = vmul.f32 %v10802, %v11034
  %v11072 = vmul.f32 %v10803, %v11034
  %v11073 = vmul.f32 %v10804, %v11034
  %v11074 = vmul.f32 %v10805, %v11034
  %v11075 = vmul.f32 %v10806, %v11034
  %v11076 = vmul.f32 %v10807, %v11034
  %v11077 = vmul.f32 %v10808, %v11034
  %v11078 = vmul.f32 %v10809, %v11034
  %v11079 = vmul.f32 %v10810, %v11034
  %v11080 = vmul.f32 %v10811, %v11034
  %v11081 = vmul.f32 %v10812, %v11034
  %v11082 = vmul.f32 %v10813, %v11034
  %v11083 = vmul.f32 %v10814, %v11034
  %v11084 = vmul.f32 %v10815, %v11034
  %v11085 = vmul.f32 %v10816, %v11034
  %v11086 = vmul.f32 %v10817, %v11034
  %v11087 = vmul.f32 %v10818, %v11034
  %v11088 = vmul.f32 %v10819, %v11034
  %v11089 = vmul.f32 %v10820, %v11034
  %v11090 = vmul.f32 %v10821, %v11034
  %v11091 = vmul.f32 %v10822, %v11034
  %v11092 = vmul.f32 %v10823, %v11034
  %v11093 = vmul.f32 %v10824, %v11034
  %v11094 = vmul.f32 %v10825, %v11034
  %v11095 = vmul.f32 %v10826, %v11034
  %v11096 = vmul.f32 %v10827, %v11034
  %v11097 = vmul.f32 %v10828, %v11034
  %v11098 = vmul.f32 %v10829, %v11034
  %v11100 = vlaneseq
  %v11101 = vshrl.u32 %v11100, 7
  %v11102 = vsub.s32 0, %v11101
  %v11103 = vrot.slane %v10631, %v11102
  %v11105 = vadd.f32 %v11035, %v11103
  %v11106 = vadd.f32 %v11036, %v11103
  %v11107 = vadd.f32 %v11037, %v11103
  %v11108 = vadd.f32 %v11038, %v11103
  %v11109 = vadd.f32 %v11039, %v11103
  %v11110 = vadd.f32 %v11040, %v11103
  %v11111 = vadd.f32 %v11041, %v11103
  %v11112 = vadd.f32 %v11042, %v11103
  %v11113 = vadd.f32 %v11043, %v11103
  %v11114 = vadd.f32 %v11044, %v11103
  %v11115 = vadd.f32 %v11045, %v11103
  %v11116 = vadd.f32 %v11046, %v11103
  %v11117 = vadd.f32 %v11047, %v11103
  %v11118 = vadd.f32 %v11048, %v11103
  %v11119 = vadd.f32 %v11049, %v11103
  %v11120 = vadd.f32 %v11050, %v11103
  %v11121 = vadd.f32 %v11051, %v11103
  %v11122 = vadd.f32 %v11052, %v11103
  %v11123 = vadd.f32 %v11053, %v11103
  %v11124 = vadd.f32 %v11054, %v11103
  %v11125 = vadd.f32 %v11055, %v11103
  %v11126 = vadd.f32 %v11056, %v11103
  %v11127 = vadd.f32 %v11057, %v11103
  %v11128 = vadd.f32 %v11058, %v11103
  %v11129 = vadd.f32 %v11059, %v11103
  %v11130 = vadd.f32 %v11060, %v11103
  %v11131 = vadd.f32 %v11061, %v11103
  %v11132 = vadd.f32 %v11062, %v11103
  %v11133 = vadd.f32 %v11063, %v11103
  %v11134 = vadd.f32 %v11064, %v11103
  %v11135 = vadd.f32 %v11065, %v11103
  %v11136 = vadd.f32 %v11066, %v11103
  %v11137 = vadd.f32 %v11067, %v11103
  %v11138 = vadd.f32 %v11068, %v11103
  %v11139 = vadd.f32 %v11069, %v11103
  %v11140 = vadd.f32 %v11070, %v11103
  %v11141 = vadd.f32 %v11071, %v11103
  %v11142 = vadd.f32 %v11072, %v11103
  %v11143 = vadd.f32 %v11073, %v11103
  %v11144 = vadd.f32 %v11074, %v11103
  %v11145 = vadd.f32 %v11075, %v11103
  %v11146 = vadd.f32 %v11076, %v11103
  %v11147 = vadd.f32 %v11077, %v11103
  %v11148 = vadd.f32 %v11078, %v11103
  %v11149 = vadd.f32 %v11079, %v11103
  %v11150 = vadd.f32 %v11080, %v11103
  %v11151 = vadd.f32 %v11081, %v11103
  %v11152 = vadd.f32 %v11082, %v11103
  %v11153 = vadd.f32 %v11083, %v11103
  %v11154 = vadd.f32 %v11084, %v11103
  %v11155 = vadd.f32 %v11085, %v11103
  %v11156 = vadd.f32 %v11086, %v11103
  %v11157 = vadd.f32 %v11087, %v11103
  %v11158 = vadd.f32 %v11088, %v11103
  %v11159 = vadd.f32 %v11089, %v11103
  %v11160 = vadd.f32 %v11090, %v11103
  %v11161 = vadd.f32 %v11091, %v11103
  %v11162 = vadd.f32 %v11092, %v11103
  %v11163 = vadd.f32 %v11093, %v11103
  %v11164 = vadd.f32 %v11094, %v11103
  %v11165 = vadd.f32 %v11095, %v11103
  %v11166 = vadd.f32 %v11096, %v11103
  %v11167 = vadd.f32 %v11097, %v11103
  %v11168 = vadd.f32 %v11098, %v11103
  %v11169 = vmax.f32 %v11105, 0.0
  %v11170 = vmax.f32 %v11106, 0.0
  %v11171 = vmax.f32 %v11107, 0.0
  %v11172 = vmax.f32 %v11108, 0.0
  %v11173 = vmax.f32 %v11109, 0.0
  %v11174 = vmax.f32 %v11110, 0.0
  %v11175 = vmax.f32 %v11111, 0.0
  %v11176 = vmax.f32 %v11112, 0.0
  %v11177 = vmax.f32 %v11113, 0.0
  %v11178 = vmax.f32 %v11114, 0.0
  %v11179 = vmax.f32 %v11115, 0.0
  %v11180 = vmax.f32 %v11116, 0.0
  %v11181 = vmax.f32 %v11117, 0.0
  %v11182 = vmax.f32 %v11118, 0.0
  %v11183 = vmax.f32 %v11119, 0.0
  %v11184 = vmax.f32 %v11120, 0.0
  %v11185 = vmax.f32 %v11121, 0.0
  %v11186 = vmax.f32 %v11122, 0.0
  %v11187 = vmax.f32 %v11123, 0.0
  %v11188 = vmax.f32 %v11124, 0.0
  %v11189 = vmax.f32 %v11125, 0.0
  %v11190 = vmax.f32 %v11126, 0.0
  %v11191 = vmax.f32 %v11127, 0.0
  %v11192 = vmax.f32 %v11128, 0.0
  %v11193 = vmax.f32 %v11129, 0.0
  %v11194 = vmax.f32 %v11130, 0.0
  %v11195 = vmax.f32 %v11131, 0.0
  %v11196 = vmax.f32 %v11132, 0.0
  %v11197 = vmax.f32 %v11133, 0.0
  %v11198 = vmax.f32 %v11134, 0.0
  %v11199 = vmax.f32 %v11135, 0.0
  %v11200 = vmax.f32 %v11136, 0.0
  %v11201 = vmax.f32 %v11137, 0.0
  %v11202 = vmax.f32 %v11138, 0.0
  %v11203 = vmax.f32 %v11139, 0.0
  %v11204 = vmax.f32 %v11140, 0.0
  %v11205 = vmax.f32 %v11141, 0.0
  %v11206 = vmax.f32 %v11142, 0.0
  %v11207 = vmax.f32 %v11143, 0.0
  %v11208 = vmax.f32 %v11144, 0.0
  %v11209 = vmax.f32 %v11145, 0.0
  %v11210 = vmax.f32 %v11146, 0.0
  %v11211 = vmax.f32 %v11147, 0.0
  %v11212 = vmax.f32 %v11148, 0.0
  %v11213 = vmax.f32 %v11149, 0.0
  %v11214 = vmax.f32 %v11150, 0.0
  %v11215 = vmax.f32 %v11151, 0.0
  %v11216 = vmax.f32 %v11152, 0.0
  %v11217 = vmax.f32 %v11153, 0.0
  %v11218 = vmax.f32 %v11154, 0.0
  %v11219 = vmax.f32 %v11155, 0.0
  %v11220 = vmax.f32 %v11156, 0.0
  %v11221 = vmax.f32 %v11157, 0.0
  %v11222 = vmax.f32 %v11158, 0.0
  %v11223 = vmax.f32 %v11159, 0.0
  %v11224 = vmax.f32 %v11160, 0.0
  %v11225 = vmax.f32 %v11161, 0.0
  %v11226 = vmax.f32 %v11162, 0.0
  %v11227 = vmax.f32 %v11163, 0.0
  %v11228 = vmax.f32 %v11164, 0.0
  %v11229 = vmax.f32 %v11165, 0.0
  %v11230 = vmax.f32 %v11166, 0.0
  %v11231 = vmax.f32 %v11167, 0.0
  %v11232 = vmax.f32 %v11168, 0.0
  %11233 = vst.msk [vmem:[%s7] sm:$0xff] %vm5061, %v11169
  %11234 = vst.msk [vmem:[%s7 + $0x8] sm:$0xff] %vm5061, %v11170
  %11235 = vst.msk [vmem:[%s7 + $0x10] sm:$0xff] %vm5061, %v11171
  %11236 = vst.msk [vmem:[%s7 + $0x18] sm:$0xff] %vm5061, %v11172
  %11237 = vst.msk [vmem:[%s7 + $0x20] sm:$0xff] %vm5061, %v11173
  %11238 = vst.msk [vmem:[%s7 + $0x28] sm:$0xff] %vm5061, %v11174
  %11239 = vst.msk [vmem:[%s7 + $0x30] sm:$0xff] %vm5061, %v11175
  %11240 = vst.msk [vmem:[%s7 + $0x38] sm:$0xff] %vm5061, %v11176
  %11241 = vst.msk [vmem:[%s7 + $0x40] sm:$0xff] %vm5061, %v11177
  %11242 = vst.msk [vmem:[%s7 + $0x48] sm:$0xff] %vm5061, %v11178
  %11243 = vst.msk [vmem:[%s7 + $0x50] sm:$0xff] %vm5061, %v11179
  %11244 = vst.msk [vmem:[%s7 + $0x58] sm:$0xff] %vm5061, %v11180
  %11245 = vst.msk [vmem:[%s7 + $0x60] sm:$0xff] %vm5061, %v11181
  %11246 = vst.msk [vmem:[%s7 + $0x68] sm:$0xff] %vm5061, %v11182
  %11247 = vst.msk [vmem:[%s7 + $0x70] sm:$0xff] %vm5061, %v11183
  %11248 = vst.msk [vmem:[%s7 + $0x78] sm:$0xff] %vm5061, %v11184
  %11249 = vst.msk [vmem:[%s7 + $0x80] sm:$0xff] %vm5061, %v11185
  %11250 = vst.msk [vmem:[%s7 + $0x88] sm:$0xff] %vm5061, %v11186
  %11251 = vst.msk [vmem:[%s7 + $0x90] sm:$0xff] %vm5061, %v11187
  %11252 = vst.msk [vmem:[%s7 + $0x98] sm:$0xff] %vm5061, %v11188
  %11253 = vst.msk [vmem:[%s7 + $0xa0] sm:$0xff] %vm5061, %v11189
  %11254 = vst.msk [vmem:[%s7 + $0xa8] sm:$0xff] %vm5061, %v11190
  %11255 = vst.msk [vmem:[%s7 + $0xb0] sm:$0xff] %vm5061, %v11191
  %11256 = vst.msk [vmem:[%s7 + $0xb8] sm:$0xff] %vm5061, %v11192
  %11257 = vst.msk [vmem:[%s7 + $0xc0] sm:$0xff] %vm5061, %v11193
  %11258 = vst.msk [vmem:[%s7 + $0xc8] sm:$0xff] %vm5061, %v11194
  %11259 = vst.msk [vmem:[%s7 + $0xd0] sm:$0xff] %vm5061, %v11195
  %11260 = vst.msk [vmem:[%s7 + $0xd8] sm:$0xff] %vm5061, %v11196
  %11261 = vst.msk [vmem:[%s7 + $0xe0] sm:$0xff] %vm5061, %v11197
  %11262 = vst.msk [vmem:[%s7 + $0xe8] sm:$0xff] %vm5061, %v11198
  %11263 = vst.msk [vmem:[%s7 + $0xf0] sm:$0xff] %vm5061, %v11199
  %11264 = vst.msk [vmem:[%s7 + $0xf8] sm:$0xff] %vm5061, %v11200
  %11265 = vst.msk [vmem:[%s7 + $0x100] sm:$0xff] %vm5061, %v11201
  %11266 = vst.msk [vmem:[%s7 + $0x108] sm:$0xff] %vm5061, %v11202
  %11267 = vst.msk [vmem:[%s7 + $0x110] sm:$0xff] %vm5061, %v11203
  %11268 = vst.msk [vmem:[%s7 + $0x118] sm:$0xff] %vm5061, %v11204
  %11269 = vst.msk [vmem:[%s7 + $0x120] sm:$0xff] %vm5061, %v11205
  %11270 = vst.msk [vmem:[%s7 + $0x128] sm:$0xff] %vm5061, %v11206
  %11271 = vst.msk [vmem:[%s7 + $0x130] sm:$0xff] %vm5061, %v11207
  %11272 = vst.msk [vmem:[%s7 + $0x138] sm:$0xff] %vm5061, %v11208
  %11273 = vst.msk [vmem:[%s7 + $0x140] sm:$0xff] %vm5061, %v11209
  %11274 = vst.msk [vmem:[%s7 + $0x148] sm:$0xff] %vm5061, %v11210
  %11275 = vst.msk [vmem:[%s7 + $0x150] sm:$0xff] %vm5061, %v11211
  %11276 = vst.msk [vmem:[%s7 + $0x158] sm:$0xff] %vm5061, %v11212
  %11277 = vst.msk [vmem:[%s7 + $0x160] sm:$0xff] %vm5061, %v11213
  %11278 = vst.msk [vmem:[%s7 + $0x168] sm:$0xff] %vm5061, %v11214
  %11279 = vst.msk [vmem:[%s7 + $0x170] sm:$0xff] %vm5061, %v11215
  %11280 = vst.msk [vmem:[%s7 + $0x178] sm:$0xff] %vm5061, %v11216
  %11281 = vst.msk [vmem:[%s7 + $0x180] sm:$0xff] %vm5061, %v11217
  %11282 = vst.msk [vmem:[%s7 + $0x188] sm:$0xff] %vm5061, %v11218
  %11283 = vst.msk [vmem:[%s7 + $0x190] sm:$0xff] %vm5061, %v11219
  %11284 = vst.msk [vmem:[%s7 + $0x198] sm:$0xff] %vm5061, %v11220
  %11285 = vst.msk [vmem:[%s7 + $0x1a0] sm:$0xff] %vm5061, %v11221
  %11286 = vst.msk [vmem:[%s7 + $0x1a8] sm:$0xff] %vm5061, %v11222
  %11287 = vst.msk [vmem:[%s7 + $0x1b0] sm:$0xff] %vm5061, %v11223
  %11288 = vst.msk [vmem:[%s7 + $0x1b8] sm:$0xff] %vm5061, %v11224
  %11289 = vst.msk [vmem:[%s7 + $0x1c0] sm:$0xff] %vm5061, %v11225
  %11290 = vst.msk [vmem:[%s7 + $0x1c8] sm:$0xff] %vm5061, %v11226
  %11291 = vst.msk [vmem:[%s7 + $0x1d0] sm:$0xff] %vm5061, %v11227
  %11292 = vst.msk [vmem:[%s7 + $0x1d8] sm:$0xff] %vm5061, %v11228
  %11293 = vst.msk [vmem:[%s7 + $0x1e0] sm:$0xff] %vm5061, %v11229
  %11294 = vst.msk [vmem:[%s7 + $0x1e8] sm:$0xff] %vm5061, %v11230
  %11295 = vst.msk [vmem:[%s7 + $0x1f0] sm:$0xff] %vm5061, %v11231
  %11296 = vst.msk [vmem:[%s7 + $0x1f8] sm:$0xff] %vm5061, %v11232
  // Predicated region
  $region30: #{double_conv.1} parent=0 // pred_check
    _
  $region31: #{double_conv.1} parent=0 // pred_check_branch
    %11298 = sbr.rel (0) target = $region33
  $region32: #{double_conv.1} parent=0 // pred_region
    _
  $region33: #{double_conv.1} parent=0 // pred_fallthru
    _
  // Predicated region
  $region34: #{double_conv.1} parent=0 // pred_check
    _
  $region35: #{double_conv.1} parent=0 // pred_check_branch
    %11300 = sbr.rel (0) target = $region37
  $region36: #{double_conv.1} parent=0 // pred_region
    _
  $region37: #{double_conv.1} parent=0 // pred_fallthru
    _

</llo_original>
